<compile_context>
chip_gen: v6e
topology: v6e:2x2x1
jax: 0.10.0
libtpu: 0.0.40
codegen_flags: <defaults>
</compile_context>

<pallas_src>
import functools

import jax
import jax.numpy as jnp
from jax.experimental import pallas as pl
from jax.experimental.pallas import tpu as pltpu

EPS = 1e-5


def _round_up(n, m):
    return (n + m - 1) // m * m


def _reflect_pad_borders(pad_ref, H, W):
    """Fill the 1-px border of pad_ref from its already-written interior.

    Interior: pad[1:H+1, 1:W+1, :] holds v[0:H, 0:W, :], so (ReflectionPad2d(1))
    padded row/col 0 mirrors v row/col 1 (= pad 2) and padded row/col N+1 mirrors
    v row/col N-2 (= pad N-1).  Only columns [0, W+2) of the sublane-padded scratch
    are touched; the alignment tail stays dead.
    """
    # edges
    pad_ref[0:1, 1:W + 1, :] = pad_ref[2:3, 1:W + 1, :]                       # top
    pad_ref[H + 1:H + 2, 1:W + 1, :] = pad_ref[H - 1:H, 1:W + 1, :]           # bottom
    pad_ref[1:H + 1, 0:1, :] = pad_ref[1:H + 1, 2:3, :]                       # left
    pad_ref[1:H + 1, W + 1:W + 2, :] = pad_ref[1:H + 1, W - 1:W, :]           # right
    # corners
    pad_ref[0:1, 0:1, :] = pad_ref[2:3, 2:3, :]
    pad_ref[0:1, W + 1:W + 2, :] = pad_ref[2:3, W - 1:W, :]
    pad_ref[H + 1:H + 2, 0:1, :] = pad_ref[H - 1:H, 2:3, :]
    pad_ref[H + 1:H + 2, W + 1:W + 2, :] = pad_ref[H - 1:H, W - 1:W, :]


def _conv3x3_acc(pad_ref, w_ref, acc_ref, H, W, C):
    """'valid' 3x3 conv of the padded slab as 9 accumulated K=C MXU matmuls.

    No im2col buffer: each tap reads a shifted (H, W, C) window of pad_ref (a strided
    VMEM load in the matmul dtype), multiplies by its (C, C) weight slice and
    accumulates in f32.  The accumulated value is stored to acc_ref exactly once.
    """
    acc = None
    for k in range(9):
        ky, kx = divmod(k, 3)
        lhs = pad_ref[ky:ky + H, kx:kx + W, :].reshape(H * W, C)
        part = jnp.dot(lhs, w_ref[k], preferred_element_type=jnp.float32)
        acc = part if acc is None else acc + part
    acc_ref[...] = acc


def _in_scale_shift(acc, inv_hw):
    """Single-pass InstanceNorm stats: normalized = acc * scale + shift.

    One read of acc for both sum and sum-of-squares; biased variance, eps=1e-5.
    The affine fold lets the consumer apply the normalization element-wise without
    materializing a 'centered' temp.
    """
    mean = jnp.sum(acc, axis=0, keepdims=True) * inv_hw
    meansq = jnp.sum(acc * acc, axis=0, keepdims=True) * inv_hw
    var = jnp.maximum(meansq - mean * mean, 0.0)
    scale = jax.lax.rsqrt(var + EPS)
    return scale, -mean * scale


def resnet_block_kernel(x_ref, w1_ref, w2_ref, o_ref, pad_ref, acc_ref):
    # x_ref/o_ref: (1, H, W, C)       w*_ref: (9, C, C) in the matmul dtype
    # pad_ref: (H+2, Wp, C) matmul dtype (Wp = round_up(W+2, 8), tail columns dead)
    # acc_ref: (H*W, C) f32 conv accumulator
    _, H, W, C = x_ref.shape
    inv_hw = 1.0 / float(H * W)

    # ---- reflect-pad(x) (single cast to the matmul dtype) -> conv1 ----
    pad_ref[1:H + 1, 1:W + 1, :] = x_ref[0].astype(pad_ref.dtype)
    _reflect_pad_borders(pad_ref, H, W)
    _conv3x3_acc(pad_ref, w1_ref, acc_ref, H, W, C)

    # ---- InstanceNorm + ReLU, fused into the second pad-interior write ----
    acc = acc_ref[...]                               # one f32 read of the accumulator
    scale, shift = _in_scale_shift(acc, inv_hw)
    pad_ref[1:H + 1, 1:W + 1, :] = (
        jnp.maximum(acc * scale + shift, 0.0)
        .reshape(H, W, C)
        .astype(pad_ref.dtype))
    _reflect_pad_borders(pad_ref, H, W)

    # ---- conv2 -> InstanceNorm -> residual add ----
    _conv3x3_acc(pad_ref, w2_ref, acc_ref, H, W, C)
    acc = acc_ref[...]
    scale, shift = _in_scale_shift(acc, inv_hw)
    y = (acc * scale + shift).reshape(H, W, C)
    o_ref[0] = (x_ref[0].astype(jnp.float32) + y).astype(o_ref.dtype)


def _vmem_limit_bytes(H, W, C, matmul_bytes):
    """Generation-aware VMEM budget: per-sample working set + headroom, capped at
    ~85% of physical per-core VMEM (≈54 MiB on v7x, ≈108 MiB on v5e/v6e)."""
    f32 = 4
    Wp = _round_up(W + 2, 8)
    io = 2 * 2 * H * W * C * f32                      # x + out blocks, double-buffered
    wts = 2 * 2 * 9 * C * C * matmul_bytes            # w1, w2 constant blocks (double-buffered)
    pad = (H + 2) * Wp * C * matmul_bytes             # reflection-pad scratch
    acc = H * W * C * f32                             # conv accumulator scratch
    temps = 2 * H * W * C * f32                       # compiler temps (acc value, dot partials)
    need = io + wts + pad + acc + temps
    try:
        phys = pltpu.get_tpu_info().vmem_capacity_bytes
    except Exception:                                  # conservative fallback
        phys = 64 * 1024 * 1024
    cap = int(phys * 0.85)
    return int(min(max(int(1.25 * need), 16 * 1024 * 1024), cap))


def resnet_block_nhwc(x_nhwc, w1, b1, w2, b2,
                      matmul_dtype=jnp.bfloat16, out_dtype=None):
    """Core fused block (production entry point — no boundary transposes).

    x_nhwc: (N, H, W, C) (f32 or bf16).  w*: (3, 3, C_in, C_out).  b*: (C,).
    b1/b2 are accepted for interface parity but are mathematically dead under
    InstanceNorm2d(affine=False), so they are not passed to the kernel.
    """
    del b1, b2
    N, H, W, C = x_nhwc.shape
    assert H >= 2 and W >= 2, "ReflectionPad2d(1) requires H, W >= 2"
    out_dtype = x_nhwc.dtype if out_dtype is None else out_dtype

    # Weights to tap-major (9, C_in, C_out) layout, pre-cast to the matmul dtype.
    w1c = jnp.asarray(w1, jnp.float32).reshape(9, C, C).astype(matmul_dtype)
    w2c = jnp.asarray(w2, jnp.float32).reshape(9, C, C).astype(matmul_dtype)

    Wp = _round_up(W + 2, 8)   # sublane-aligned padded width

    grid_spec = pltpu.PrefetchScalarGridSpec(
        num_scalar_prefetch=0,
        grid=(N,),
        in_specs=[
            pl.BlockSpec((1, H, W, C), lambda n: (n, 0, 0, 0)),   # x, one sample per step
            pl.BlockSpec((9, C, C), lambda n: (0, 0, 0)),         # w1 (constant block)
            pl.BlockSpec((9, C, C), lambda n: (0, 0, 0)),         # w2 (constant block)
        ],
        out_specs=pl.BlockSpec((1, H, W, C), lambda n: (n, 0, 0, 0)),
        scratch_shapes=[
            pltpu.VMEM((H + 2, Wp, C), matmul_dtype),             # reflection-padded activations
            pltpu.VMEM((H * W, C), jnp.float32),                  # f32 conv accumulator
        ],
    )
    return pl.pallas_call(
        resnet_block_kernel,
        out_shape=jax.ShapeDtypeStruct((N, H, W, C), out_dtype),
        grid_spec=grid_spec,
        compiler_params=pltpu.CompilerParams(
            dimension_semantics=("parallel",),
            vmem_limit_bytes=_vmem_limit_bytes(
                H, W, C, jnp.dtype(matmul_dtype).itemsize),
        ),
    )(x_nhwc, w1c, w2c)


@functools.partial(jax.jit, static_argnames=("matmul_dtype",))
def resnet_block(x_nchw, w1, b1, w2, b2, matmul_dtype=jnp.bfloat16):
    """PyTorch-style NCHW interface.  NHWC callers should use resnet_block_nhwc directly
    to skip the two boundary transposes (each a full extra HBM pass)."""
    x = jnp.transpose(x_nchw, (0, 2, 3, 1))
    out = resnet_block_nhwc(x, w1, b1, w2, b2, matmul_dtype=matmul_dtype,
                            out_dtype=jnp.float32)
    return jnp.transpose(out, (0, 3, 1, 2))


def _reference(x_nchw, w1, b1, w2, b2):
    """Pure-JAX f32 reference mirroring the PyTorch module (bias included)."""
    def conv(x_nhwc, w, b):
        xp = jnp.pad(x_nhwc, ((0, 0), (1, 1), (1, 1), (0, 0)), mode="reflect")
        y = jax.lax.conv_general_dilated(
            xp, w, window_strides=(1, 1), padding="VALID",
            dimension_numbers=("NHWC", "HWIO", "NHWC"))
        return y + b.reshape(1, 1, 1, -1)

    def inorm(y):
        mean = jnp.mean(y, axis=(1, 2), keepdims=True)
        var = jnp.mean((y - mean) ** 2, axis=(1, 2), keepdims=True)
        return (y - mean) * jax.lax.rsqrt(var + EPS)

    x = jnp.transpose(x_nchw, (0, 2, 3, 1)).astype(jnp.float32)
    h = jnp.maximum(inorm(conv(x, w1, b1)), 0.0)
    h = inorm(conv(h, w2, b2))
    return jnp.transpose(x + h, (0, 3, 1, 2))


if __name__ == "__main__":
    key = jax.random.PRNGKey(0)
    N, C, H, W = 2, 4, 16, 16  # small demo shape (dim = 4); production is C=256, H=W=64

    k_x, k_w1, k_b1, k_w2, k_b2 = jax.random.split(key, 5)
    x = jax.random.normal(k_x, (N, C, H, W), jnp.float32)
    # Conv2d(dim, dim, 3) params stored as (ky, kx, C_in, C_out) (PyTorch: w.permute(2,3,1,0)).
    w1 = jax.random.normal(k_w1, (3, 3, C, C), jnp.float32) * 0.1
    b1 = jax.random.normal(k_b1, (C,), jnp.float32) * 0.1
    w2 = jax.random.normal(k_w2, (3, 3, C, C), jnp.float32) * 0.1
    b2 = jax.random.normal(k_b2, (C,), jnp.float32) * 0.1

    ref = jax.block_until_ready(_reference(x, w1, b1, w2, b2))

    # f32 matmul path: tight algorithmic check against the XLA reference (also verifies
    # that dropping the bias under affine-less InstanceNorm is exact).
    out_f32 = jax.block_until_ready(
        resnet_block(x, w1, b1, w2, b2, matmul_dtype=jnp.float32))
    assert out_f32.shape == (N, C, H, W), out_f32.shape
    assert jnp.allclose(out_f32, ref, atol=1e-3, rtol=1e-3), \
        float(jnp.max(jnp.abs(out_f32 - ref)))

    # Default bf16 MXU path (f32 accumulation + f32 InstanceNorm stats): bf16-input
    # rounding bounds the error, so a correspondingly looser tolerance is used.
    out_bf16 = jax.block_until_ready(resnet_block(x, w1, b1, w2, b2))
    assert out_bf16.shape == (N, C, H, W), out_bf16.shape
    assert jnp.allclose(out_bf16, ref, atol=5e-2, rtol=5e-2), \
        float(jnp.max(jnp.abs(out_bf16 - ref)))

    print("KERNEL_OK")
</pallas_src>

<mosaic_0001>
module attributes {stable_mosaic.version = 11 : i64} {
  func.func @resnet_block_kernel(%arg0: i32, %arg1: memref<1x16x16x4xf32, #tpu.memory_space<vmem>>, %arg2: memref<9x4x4xf32, #tpu.memory_space<vmem>>, %arg3: memref<9x4x4xf32, #tpu.memory_space<vmem>>, %arg4: memref<1x16x16x4xf32, #tpu.memory_space<vmem>>, %arg5: memref<18x24x4xf32, #tpu.memory_space<vmem>>, %arg6: memref<256x4xf32, #tpu.memory_space<vmem>>) attributes {dimension_semantics = [#tpu.dimension_semantics<parallel>], iteration_bounds = array<i64: 2>, scalar_prefetch = 0 : i64, scratch_operands = 2 : i64, tpu.core_type = #tpu.core_type<tc>, window_params = [{transform_indices = @transform_0, window_bounds = array<i64: 1, 16, 16, 4>}, {pipeline_mode = #tpu.pipeline_mode<synchronous>, transform_indices = @transform_1, window_bounds = array<i64: 9, 4, 4>}, {pipeline_mode = #tpu.pipeline_mode<synchronous>, transform_indices = @transform_2, window_bounds = array<i64: 9, 4, 4>}, {transform_indices = @transform_3, window_bounds = array<i64: 1, 16, 16, 4>}]} {
    %c0 = arith.constant 0 : index
    %c0_0 = arith.constant 0 : index
    %c0_1 = arith.constant 0 : index
    %c0_2 = arith.constant 0 : index
    %0 = vector.load %arg1[%c0, %c0_0, %c0_1, %c0_2] : memref<1x16x16x4xf32, #tpu.memory_space<vmem>>, vector<1x16x16x4xf32>
    %1 = vector.shape_cast %0 : vector<1x16x16x4xf32> to vector<16x16x4xf32>
    %c1 = arith.constant 1 : index
    %c1_3 = arith.constant 1 : index
    %c0_4 = arith.constant 0 : index
    %2 = vector.load %arg5[%c1, %c1_3, %c0_4] : memref<18x24x4xf32, #tpu.memory_space<vmem>>, vector<16x16x4xf32>
    tpu.vector_store %arg5[%c1, %c1_3, %c0_4], %1 {strides = array<i32>} : memref<18x24x4xf32, #tpu.memory_space<vmem>>, vector<16x16x4xf32>,
    %c2 = arith.constant 2 : index
    %c1_5 = arith.constant 1 : index
    %c0_6 = arith.constant 0 : index
    %3 = vector.load %arg5[%c2, %c1_5, %c0_6] : memref<18x24x4xf32, #tpu.memory_space<vmem>>, vector<1x16x4xf32>
    %c0_7 = arith.constant 0 : index
    %c1_8 = arith.constant 1 : index
    %c0_9 = arith.constant 0 : index
    %4 = vector.load %arg5[%c0_7, %c1_8, %c0_9] : memref<18x24x4xf32, #tpu.memory_space<vmem>>, vector<1x16x4xf32>
    tpu.vector_store %arg5[%c0_7, %c1_8, %c0_9], %3 {strides = array<i32>} : memref<18x24x4xf32, #tpu.memory_space<vmem>>, vector<1x16x4xf32>,
    %c15 = arith.constant 15 : index
    %c1_10 = arith.constant 1 : index
    %c0_11 = arith.constant 0 : index
    %5 = vector.load %arg5[%c15, %c1_10, %c0_11] : memref<18x24x4xf32, #tpu.memory_space<vmem>>, vector<1x16x4xf32>
    %c17 = arith.constant 17 : index
    %c1_12 = arith.constant 1 : index
    %c0_13 = arith.constant 0 : index
    %6 = vector.load %arg5[%c17, %c1_12, %c0_13] : memref<18x24x4xf32, #tpu.memory_space<vmem>>, vector<1x16x4xf32>
    tpu.vector_store %arg5[%c17, %c1_12, %c0_13], %5 {strides = array<i32>} : memref<18x24x4xf32, #tpu.memory_space<vmem>>, vector<1x16x4xf32>,
    %c1_14 = arith.constant 1 : index
    %c2_15 = arith.constant 2 : index
    %c0_16 = arith.constant 0 : index
    %7 = vector.load %arg5[%c1_14, %c2_15, %c0_16] : memref<18x24x4xf32, #tpu.memory_space<vmem>>, vector<16x1x4xf32>
    %c1_17 = arith.constant 1 : index
    %c0_18 = arith.constant 0 : index
    %c0_19 = arith.constant 0 : index
    %8 = vector.load %arg5[%c1_17, %c0_18, %c0_19] : memref<18x24x4xf32, #tpu.memory_space<vmem>>, vector<16x1x4xf32>
    tpu.vector_store %arg5[%c1_17, %c0_18, %c0_19], %7 {strides = array<i32>} : memref<18x24x4xf32, #tpu.memory_space<vmem>>, vector<16x1x4xf32>,
    %c1_20 = arith.constant 1 : index
    %c15_21 = arith.constant 15 : index
    %c0_22 = arith.constant 0 : index
    %9 = vector.load %arg5[%c1_20, %c15_21, %c0_22] : memref<18x24x4xf32, #tpu.memory_space<vmem>>, vector<16x1x4xf32>
    %c1_23 = arith.constant 1 : index
    %c17_24 = arith.constant 17 : index
    %c0_25 = arith.constant 0 : index
    %10 = vector.load %arg5[%c1_23, %c17_24, %c0_25] : memref<18x24x4xf32, #tpu.memory_space<vmem>>, vector<16x1x4xf32>
    tpu.vector_store %arg5[%c1_23, %c17_24, %c0_25], %9 {strides = array<i32>} : memref<18x24x4xf32, #tpu.memory_space<vmem>>, vector<16x1x4xf32>,
    %c2_26 = arith.constant 2 : index
    %c2_27 = arith.constant 2 : index
    %c0_28 = arith.constant 0 : index
    %11 = vector.load %arg5[%c2_26, %c2_27, %c0_28] : memref<18x24x4xf32, #tpu.memory_space<vmem>>, vector<1x1x4xf32>
    %c0_29 = arith.constant 0 : index
    %c0_30 = arith.constant 0 : index
    %c0_31 = arith.constant 0 : index
    %12 = vector.load %arg5[%c0_29, %c0_30, %c0_31] : memref<18x24x4xf32, #tpu.memory_space<vmem>>, vector<1x1x4xf32>
    tpu.vector_store %arg5[%c0_29, %c0_30, %c0_31], %11 {strides = array<i32>} : memref<18x24x4xf32, #tpu.memory_space<vmem>>, vector<1x1x4xf32>,
    %c2_32 = arith.constant 2 : index
    %c15_33 = arith.constant 15 : index
    %c0_34 = arith.constant 0 : index
    %13 = vector.load %arg5[%c2_32, %c15_33, %c0_34] : memref<18x24x4xf32, #tpu.memory_space<vmem>>, vector<1x1x4xf32>
    %c0_35 = arith.constant 0 : index
    %c17_36 = arith.constant 17 : index
    %c0_37 = arith.constant 0 : index
    %14 = vector.load %arg5[%c0_35, %c17_36, %c0_37] : memref<18x24x4xf32, #tpu.memory_space<vmem>>, vector<1x1x4xf32>
    tpu.vector_store %arg5[%c0_35, %c17_36, %c0_37], %13 {strides = array<i32>} : memref<18x24x4xf32, #tpu.memory_space<vmem>>, vector<1x1x4xf32>,
    %c15_38 = arith.constant 15 : index
    %c2_39 = arith.constant 2 : index
    %c0_40 = arith.constant 0 : index
    %15 = vector.load %arg5[%c15_38, %c2_39, %c0_40] : memref<18x24x4xf32, #tpu.memory_space<vmem>>, vector<1x1x4xf32>
    %c17_41 = arith.constant 17 : index
    %c0_42 = arith.constant 0 : index
    %c0_43 = arith.constant 0 : index
    %16 = vector.load %arg5[%c17_41, %c0_42, %c0_43] : memref<18x24x4xf32, #tpu.memory_space<vmem>>, vector<1x1x4xf32>
    tpu.vector_store %arg5[%c17_41, %c0_42, %c0_43], %15 {strides = array<i32>} : memref<18x24x4xf32, #tpu.memory_space<vmem>>, vector<1x1x4xf32>,
    %c15_44 = arith.constant 15 : index
    %c15_45 = arith.constant 15 : index
    %c0_46 = arith.constant 0 : index
    %17 = vector.load %arg5[%c15_44, %c15_45, %c0_46] : memref<18x24x4xf32, #tpu.memory_space<vmem>>, vector<1x1x4xf32>
    %c17_47 = arith.constant 17 : index
    %c17_48 = arith.constant 17 : index
    %c0_49 = arith.constant 0 : index
    %18 = vector.load %arg5[%c17_47, %c17_48, %c0_49] : memref<18x24x4xf32, #tpu.memory_space<vmem>>, vector<1x1x4xf32>
    tpu.vector_store %arg5[%c17_47, %c17_48, %c0_49], %17 {strides = array<i32>} : memref<18x24x4xf32, #tpu.memory_space<vmem>>, vector<1x1x4xf32>,
    %c0_50 = arith.constant 0 : index
    %c0_51 = arith.constant 0 : index
    %c0_52 = arith.constant 0 : index
    %19 = vector.load %arg5[%c0_50, %c0_51, %c0_52] : memref<18x24x4xf32, #tpu.memory_space<vmem>>, vector<16x16x4xf32>
    %20 = vector.shape_cast %19 : vector<16x16x4xf32> to vector<256x4xf32>
    %c0_53 = arith.constant 0 : index
    %c0_54 = arith.constant 0 : index
    %c0_55 = arith.constant 0 : index
    %21 = vector.load %arg2[%c0_53, %c0_54, %c0_55] : memref<9x4x4xf32, #tpu.memory_space<vmem>>, vector<1x4x4xf32>
    %22 = vector.shape_cast %21 : vector<1x4x4xf32> to vector<4x4xf32>
    %cst = arith.constant dense<0.000000e+00> : vector<256x4xf32>
    %23 = tpu.matmul %20, %22, %cst {dimension_numbers = #tpu.dot_dimension_numbers<[1], [0], [0], [1], [0, 0, 1, 1], [], []>} : vector<256x4xf32>, vector<4x4xf32>, vector<256x4xf32> -> vector<256x4xf32>
    %c0_56 = arith.constant 0 : index
    %c1_57 = arith.constant 1 : index
    %c0_58 = arith.constant 0 : index
    %24 = vector.load %arg5[%c0_56, %c1_57, %c0_58] : memref<18x24x4xf32, #tpu.memory_space<vmem>>, vector<16x16x4xf32>
    %25 = vector.shape_cast %24 : vector<16x16x4xf32> to vector<256x4xf32>
    %c1_59 = arith.constant 1 : index
    %c0_60 = arith.constant 0 : index
    %c0_61 = arith.constant 0 : index
    %26 = vector.load %arg2[%c1_59, %c0_60, %c0_61] : memref<9x4x4xf32, #tpu.memory_space<vmem>>, vector<1x4x4xf32>
    %27 = vector.shape_cast %26 : vector<1x4x4xf32> to vector<4x4xf32>
    %cst_62 = arith.constant dense<0.000000e+00> : vector<256x4xf32>
    %28 = tpu.matmul %25, %27, %cst_62 {dimension_numbers = #tpu.dot_dimension_numbers<[1], [0], [0], [1], [0, 0, 1, 1], [], []>} : vector<256x4xf32>, vector<4x4xf32>, vector<256x4xf32> -> vector<256x4xf32>
    %29 = arith.addf %23, %28 : vector<256x4xf32>
    %c0_63 = arith.constant 0 : index
    %c2_64 = arith.constant 2 : index
    %c0_65 = arith.constant 0 : index
    %30 = vector.load %arg5[%c0_63, %c2_64, %c0_65] : memref<18x24x4xf32, #tpu.memory_space<vmem>>, vector<16x16x4xf32>
    %31 = vector.shape_cast %30 : vector<16x16x4xf32> to vector<256x4xf32>
    %c2_66 = arith.constant 2 : index
    %c0_67 = arith.constant 0 : index
    %c0_68 = arith.constant 0 : index
    %32 = vector.load %arg2[%c2_66, %c0_67, %c0_68] : memref<9x4x4xf32, #tpu.memory_space<vmem>>, vector<1x4x4xf32>
    %33 = vector.shape_cast %32 : vector<1x4x4xf32> to vector<4x4xf32>
    %cst_69 = arith.constant dense<0.000000e+00> : vector<256x4xf32>
    %34 = tpu.matmul %31, %33, %cst_69 {dimension_numbers = #tpu.dot_dimension_numbers<[1], [0], [0], [1], [0, 0, 1, 1], [], []>} : vector<256x4xf32>, vector<4x4xf32>, vector<256x4xf32> -> vector<256x4xf32>
    %35 = arith.addf %29, %34 : vector<256x4xf32>
    %c1_70 = arith.constant 1 : index
    %c0_71 = arith.constant 0 : index
    %c0_72 = arith.constant 0 : index
    %36 = vector.load %arg5[%c1_70, %c0_71, %c0_72] : memref<18x24x4xf32, #tpu.memory_space<vmem>>, vector<16x16x4xf32>
    %37 = vector.shape_cast %36 : vector<16x16x4xf32> to vector<256x4xf32>
    %c3 = arith.constant 3 : index
    %c0_73 = arith.constant 0 : index
    %c0_74 = arith.constant 0 : index
    %38 = vector.load %arg2[%c3, %c0_73, %c0_74] : memref<9x4x4xf32, #tpu.memory_space<vmem>>, vector<1x4x4xf32>
    %39 = vector.shape_cast %38 : vector<1x4x4xf32> to vector<4x4xf32>
    %cst_75 = arith.constant dense<0.000000e+00> : vector<256x4xf32>
    %40 = tpu.matmul %37, %39, %cst_75 {dimension_numbers = #tpu.dot_dimension_numbers<[1], [0], [0], [1], [0, 0, 1, 1], [], []>} : vector<256x4xf32>, vector<4x4xf32>, vector<256x4xf32> -> vector<256x4xf32>
    %41 = arith.addf %35, %40 : vector<256x4xf32>
    %c1_76 = arith.constant 1 : index
    %c1_77 = arith.constant 1 : index
    %c0_78 = arith.constant 0 : index
    %42 = vector.load %arg5[%c1_76, %c1_77, %c0_78] : memref<18x24x4xf32, #tpu.memory_space<vmem>>, vector<16x16x4xf32>
    %43 = vector.shape_cast %42 : vector<16x16x4xf32> to vector<256x4xf32>
    %c4 = arith.constant 4 : index
    %c0_79 = arith.constant 0 : index
    %c0_80 = arith.constant 0 : index
    %44 = vector.load %arg2[%c4, %c0_79, %c0_80] : memref<9x4x4xf32, #tpu.memory_space<vmem>>, vector<1x4x4xf32>
    %45 = vector.shape_cast %44 : vector<1x4x4xf32> to vector<4x4xf32>
    %cst_81 = arith.constant dense<0.000000e+00> : vector<256x4xf32>
    %46 = tpu.matmul %43, %45, %cst_81 {dimension_numbers = #tpu.dot_dimension_numbers<[1], [0], [0], [1], [0, 0, 1, 1], [], []>} : vector<256x4xf32>, vector<4x4xf32>, vector<256x4xf32> -> vector<256x4xf32>
    %47 = arith.addf %41, %46 : vector<256x4xf32>
    %c1_82 = arith.constant 1 : index
    %c2_83 = arith.constant 2 : index
    %c0_84 = arith.constant 0 : index
    %48 = vector.load %arg5[%c1_82, %c2_83, %c0_84] : memref<18x24x4xf32, #tpu.memory_space<vmem>>, vector<16x16x4xf32>
    %49 = vector.shape_cast %48 : vector<16x16x4xf32> to vector<256x4xf32>
    %c5 = arith.constant 5 : index
    %c0_85 = arith.constant 0 : index
    %c0_86 = arith.constant 0 : index
    %50 = vector.load %arg2[%c5, %c0_85, %c0_86] : memref<9x4x4xf32, #tpu.memory_space<vmem>>, vector<1x4x4xf32>
    %51 = vector.shape_cast %50 : vector<1x4x4xf32> to vector<4x4xf32>
    %cst_87 = arith.constant dense<0.000000e+00> : vector<256x4xf32>
    %52 = tpu.matmul %49, %51, %cst_87 {dimension_numbers = #tpu.dot_dimension_numbers<[1], [0], [0], [1], [0, 0, 1, 1], [], []>} : vector<256x4xf32>, vector<4x4xf32>, vector<256x4xf32> -> vector<256x4xf32>
    %53 = arith.addf %47, %52 : vector<256x4xf32>
    %c2_88 = arith.constant 2 : index
    %c0_89 = arith.constant 0 : index
    %c0_90 = arith.constant 0 : index
    %54 = vector.load %arg5[%c2_88, %c0_89, %c0_90] : memref<18x24x4xf32, #tpu.memory_space<vmem>>, vector<16x16x4xf32>
    %55 = vector.shape_cast %54 : vector<16x16x4xf32> to vector<256x4xf32>
    %c6 = arith.constant 6 : index
    %c0_91 = arith.constant 0 : index
    %c0_92 = arith.constant 0 : index
    %56 = vector.load %arg2[%c6, %c0_91, %c0_92] : memref<9x4x4xf32, #tpu.memory_space<vmem>>, vector<1x4x4xf32>
    %57 = vector.shape_cast %56 : vector<1x4x4xf32> to vector<4x4xf32>
    %cst_93 = arith.constant dense<0.000000e+00> : vector<256x4xf32>
    %58 = tpu.matmul %55, %57, %cst_93 {dimension_numbers = #tpu.dot_dimension_numbers<[1], [0], [0], [1], [0, 0, 1, 1], [], []>} : vector<256x4xf32>, vector<4x4xf32>, vector<256x4xf32> -> vector<256x4xf32>
    %59 = arith.addf %53, %58 : vector<256x4xf32>
    %c2_94 = arith.constant 2 : index
    %c1_95 = arith.constant 1 : index
    %c0_96 = arith.constant 0 : index
    %60 = vector.load %arg5[%c2_94, %c1_95, %c0_96] : memref<18x24x4xf32, #tpu.memory_space<vmem>>, vector<16x16x4xf32>
    %61 = vector.shape_cast %60 : vector<16x16x4xf32> to vector<256x4xf32>
    %c7 = arith.constant 7 : index
    %c0_97 = arith.constant 0 : index
    %c0_98 = arith.constant 0 : index
    %62 = vector.load %arg2[%c7, %c0_97, %c0_98] : memref<9x4x4xf32, #tpu.memory_space<vmem>>, vector<1x4x4xf32>
    %63 = vector.shape_cast %62 : vector<1x4x4xf32> to vector<4x4xf32>
    %cst_99 = arith.constant dense<0.000000e+00> : vector<256x4xf32>
    %64 = tpu.matmul %61, %63, %cst_99 {dimension_numbers = #tpu.dot_dimension_numbers<[1], [0], [0], [1], [0, 0, 1, 1], [], []>} : vector<256x4xf32>, vector<4x4xf32>, vector<256x4xf32> -> vector<256x4xf32>
    %65 = arith.addf %59, %64 : vector<256x4xf32>
    %c2_100 = arith.constant 2 : index
    %c2_101 = arith.constant 2 : index
    %c0_102 = arith.constant 0 : index
    %66 = vector.load %arg5[%c2_100, %c2_101, %c0_102] : memref<18x24x4xf32, #tpu.memory_space<vmem>>, vector<16x16x4xf32>
    %67 = vector.shape_cast %66 : vector<16x16x4xf32> to vector<256x4xf32>
    %c8 = arith.constant 8 : index
    %c0_103 = arith.constant 0 : index
    %c0_104 = arith.constant 0 : index
    %68 = vector.load %arg2[%c8, %c0_103, %c0_104] : memref<9x4x4xf32, #tpu.memory_space<vmem>>, vector<1x4x4xf32>
    %69 = vector.shape_cast %68 : vector<1x4x4xf32> to vector<4x4xf32>
    %cst_105 = arith.constant dense<0.000000e+00> : vector<256x4xf32>
    %70 = tpu.matmul %67, %69, %cst_105 {dimension_numbers = #tpu.dot_dimension_numbers<[1], [0], [0], [1], [0, 0, 1, 1], [], []>} : vector<256x4xf32>, vector<4x4xf32>, vector<256x4xf32> -> vector<256x4xf32>
    %71 = arith.addf %65, %70 : vector<256x4xf32>
    %c0_106 = arith.constant 0 : index
    %c0_107 = arith.constant 0 : index
    %72 = vector.load %arg6[%c0_106, %c0_107] : memref<256x4xf32, #tpu.memory_space<vmem>>, vector<256x4xf32>
    tpu.vector_store %arg6[%c0_106, %c0_107], %71 {strides = array<i32>} : memref<256x4xf32, #tpu.memory_space<vmem>>, vector<256x4xf32>,
    %c0_108 = arith.constant 0 : index
    %c0_109 = arith.constant 0 : index
    %73 = vector.load %arg6[%c0_108, %c0_109] : memref<256x4xf32, #tpu.memory_space<vmem>>, vector<256x4xf32>
    %cst_110 = arith.constant dense<0.000000e+00> : vector<4xf32>
    %74 = vector.multi_reduction <add>, %73, %cst_110 [0] : vector<256x4xf32> to vector<4xf32>
    %75 = vector.shape_cast %74 : vector<4xf32> to vector<1x4xf32>
    %cst_111 = arith.constant 3.906250e-03 : f32
    %76 = vector.broadcast %cst_111 : f32 to vector<1x4xf32>
    %77 = arith.mulf %75, %76 : vector<1x4xf32>
    %78 = arith.mulf %73, %73 : vector<256x4xf32>
    %cst_112 = arith.constant dense<0.000000e+00> : vector<4xf32>
    %79 = vector.multi_reduction <add>, %78, %cst_112 [0] : vector<256x4xf32> to vector<4xf32>
    %80 = vector.shape_cast %79 : vector<4xf32> to vector<1x4xf32>
    %cst_113 = arith.constant 3.906250e-03 : f32
    %81 = vector.broadcast %cst_113 : f32 to vector<1x4xf32>
    %82 = arith.mulf %80, %81 : vector<1x4xf32>
    %83 = arith.mulf %77, %77 : vector<1x4xf32>
    %84 = arith.subf %82, %83 : vector<1x4xf32>
    %cst_114 = arith.constant 0.000000e+00 : f32
    %85 = vector.broadcast %cst_114 : f32 to vector<1x4xf32>
    %86 = arith.maximumf %84, %85 : vector<1x4xf32>
    %cst_115 = arith.constant 9.99999974E-6 : f32
    %87 = vector.broadcast %cst_115 : f32 to vector<1x4xf32>
    %88 = arith.addf %86, %87 : vector<1x4xf32>
    %89 = math.rsqrt %88 : vector<1x4xf32>
    %cst_116 = arith.constant 0.000000e+00 : f32
    %90 = vector.broadcast %cst_116 : f32 to vector<1x4xf32>
    %91 = arith.subf %90, %77 : vector<1x4xf32>
    %92 = arith.mulf %91, %89 : vector<1x4xf32>
    %93 = vector.broadcast %89 : vector<1x4xf32> to vector<256x4xf32>
    %94 = arith.mulf %73, %93 : vector<256x4xf32>
    %95 = vector.broadcast %92 : vector<1x4xf32> to vector<256x4xf32>
    %96 = arith.addf %94, %95 : vector<256x4xf32>
    %cst_117 = arith.constant 0.000000e+00 : f32
    %97 = vector.broadcast %cst_117 : f32 to vector<256x4xf32>
    %98 = arith.maximumf %96, %97 : vector<256x4xf32>
    %99 = vector.shape_cast %98 : vector<256x4xf32> to vector<16x16x4xf32>
    %c1_118 = arith.constant 1 : index
    %c1_119 = arith.constant 1 : index
    %c0_120 = arith.constant 0 : index
    %100 = vector.load %arg5[%c1_118, %c1_119, %c0_120] : memref<18x24x4xf32, #tpu.memory_space<vmem>>, vector<16x16x4xf32>
    tpu.vector_store %arg5[%c1_118, %c1_119, %c0_120], %99 {strides = array<i32>} : memref<18x24x4xf32, #tpu.memory_space<vmem>>, vector<16x16x4xf32>,
    %c2_121 = arith.constant 2 : index
    %c1_122 = arith.constant 1 : index
    %c0_123 = arith.constant 0 : index
    %101 = vector.load %arg5[%c2_121, %c1_122, %c0_123] : memref<18x24x4xf32, #tpu.memory_space<vmem>>, vector<1x16x4xf32>
    %c0_124 = arith.constant 0 : index
    %c1_125 = arith.constant 1 : index
    %c0_126 = arith.constant 0 : index
    %102 = vector.load %arg5[%c0_124, %c1_125, %c0_126] : memref<18x24x4xf32, #tpu.memory_space<vmem>>, vector<1x16x4xf32>
    tpu.vector_store %arg5[%c0_124, %c1_125, %c0_126], %101 {strides = array<i32>} : memref<18x24x4xf32, #tpu.memory_space<vmem>>, vector<1x16x4xf32>,
    %c15_127 = arith.constant 15 : index
    %c1_128 = arith.constant 1 : index
    %c0_129 = arith.constant 0 : index
    %103 = vector.load %arg5[%c15_127, %c1_128, %c0_129] : memref<18x24x4xf32, #tpu.memory_space<vmem>>, vector<1x16x4xf32>
    %c17_130 = arith.constant 17 : index
    %c1_131 = arith.constant 1 : index
    %c0_132 = arith.constant 0 : index
    %104 = vector.load %arg5[%c17_130, %c1_131, %c0_132] : memref<18x24x4xf32, #tpu.memory_space<vmem>>, vector<1x16x4xf32>
    tpu.vector_store %arg5[%c17_130, %c1_131, %c0_132], %103 {strides = array<i32>} : memref<18x24x4xf32, #tpu.memory_space<vmem>>, vector<1x16x4xf32>,
    %c1_133 = arith.constant 1 : index
    %c2_134 = arith.constant 2 : index
    %c0_135 = arith.constant 0 : index
    %105 = vector.load %arg5[%c1_133, %c2_134, %c0_135] : memref<18x24x4xf32, #tpu.memory_space<vmem>>, vector<16x1x4xf32>
    %c1_136 = arith.constant 1 : index
    %c0_137 = arith.constant 0 : index
    %c0_138 = arith.constant 0 : index
    %106 = vector.load %arg5[%c1_136, %c0_137, %c0_138] : memref<18x24x4xf32, #tpu.memory_space<vmem>>, vector<16x1x4xf32>
    tpu.vector_store %arg5[%c1_136, %c0_137, %c0_138], %105 {strides = array<i32>} : memref<18x24x4xf32, #tpu.memory_space<vmem>>, vector<16x1x4xf32>,
    %c1_139 = arith.constant 1 : index
    %c15_140 = arith.constant 15 : index
    %c0_141 = arith.constant 0 : index
    %107 = vector.load %arg5[%c1_139, %c15_140, %c0_141] : memref<18x24x4xf32, #tpu.memory_space<vmem>>, vector<16x1x4xf32>
    %c1_142 = arith.constant 1 : index
    %c17_143 = arith.constant 17 : index
    %c0_144 = arith.constant 0 : index
    %108 = vector.load %arg5[%c1_142, %c17_143, %c0_144] : memref<18x24x4xf32, #tpu.memory_space<vmem>>, vector<16x1x4xf32>
    tpu.vector_store %arg5[%c1_142, %c17_143, %c0_144], %107 {strides = array<i32>} : memref<18x24x4xf32, #tpu.memory_space<vmem>>, vector<16x1x4xf32>,
    %c2_145 = arith.constant 2 : index
    %c2_146 = arith.constant 2 : index
    %c0_147 = arith.constant 0 : index
    %109 = vector.load %arg5[%c2_145, %c2_146, %c0_147] : memref<18x24x4xf32, #tpu.memory_space<vmem>>, vector<1x1x4xf32>
    %c0_148 = arith.constant 0 : index
    %c0_149 = arith.constant 0 : index
    %c0_150 = arith.constant 0 : index
    %110 = vector.load %arg5[%c0_148, %c0_149, %c0_150] : memref<18x24x4xf32, #tpu.memory_space<vmem>>, vector<1x1x4xf32>
    tpu.vector_store %arg5[%c0_148, %c0_149, %c0_150], %109 {strides = array<i32>} : memref<18x24x4xf32, #tpu.memory_space<vmem>>, vector<1x1x4xf32>,
    %c2_151 = arith.constant 2 : index
    %c15_152 = arith.constant 15 : index
    %c0_153 = arith.constant 0 : index
    %111 = vector.load %arg5[%c2_151, %c15_152, %c0_153] : memref<18x24x4xf32, #tpu.memory_space<vmem>>, vector<1x1x4xf32>
    %c0_154 = arith.constant 0 : index
    %c17_155 = arith.constant 17 : index
    %c0_156 = arith.constant 0 : index
    %112 = vector.load %arg5[%c0_154, %c17_155, %c0_156] : memref<18x24x4xf32, #tpu.memory_space<vmem>>, vector<1x1x4xf32>
    tpu.vector_store %arg5[%c0_154, %c17_155, %c0_156], %111 {strides = array<i32>} : memref<18x24x4xf32, #tpu.memory_space<vmem>>, vector<1x1x4xf32>,
    %c15_157 = arith.constant 15 : index
    %c2_158 = arith.constant 2 : index
    %c0_159 = arith.constant 0 : index
    %113 = vector.load %arg5[%c15_157, %c2_158, %c0_159] : memref<18x24x4xf32, #tpu.memory_space<vmem>>, vector<1x1x4xf32>
    %c17_160 = arith.constant 17 : index
    %c0_161 = arith.constant 0 : index
    %c0_162 = arith.constant 0 : index
    %114 = vector.load %arg5[%c17_160, %c0_161, %c0_162] : memref<18x24x4xf32, #tpu.memory_space<vmem>>, vector<1x1x4xf32>
    tpu.vector_store %arg5[%c17_160, %c0_161, %c0_162], %113 {strides = array<i32>} : memref<18x24x4xf32, #tpu.memory_space<vmem>>, vector<1x1x4xf32>,
    %c15_163 = arith.constant 15 : index
    %c15_164 = arith.constant 15 : index
    %c0_165 = arith.constant 0 : index
    %115 = vector.load %arg5[%c15_163, %c15_164, %c0_165] : memref<18x24x4xf32, #tpu.memory_space<vmem>>, vector<1x1x4xf32>
    %c17_166 = arith.constant 17 : index
    %c17_167 = arith.constant 17 : index
    %c0_168 = arith.constant 0 : index
    %116 = vector.load %arg5[%c17_166, %c17_167, %c0_168] : memref<18x24x4xf32, #tpu.memory_space<vmem>>, vector<1x1x4xf32>
    tpu.vector_store %arg5[%c17_166, %c17_167, %c0_168], %115 {strides = array<i32>} : memref<18x24x4xf32, #tpu.memory_space<vmem>>, vector<1x1x4xf32>,
    %c0_169 = arith.constant 0 : index
    %c0_170 = arith.constant 0 : index
    %c0_171 = arith.constant 0 : index
    %117 = vector.load %arg5[%c0_169, %c0_170, %c0_171] : memref<18x24x4xf32, #tpu.memory_space<vmem>>, vector<16x16x4xf32>
    %118 = vector.shape_cast %117 : vector<16x16x4xf32> to vector<256x4xf32>
    %c0_172 = arith.constant 0 : index
    %c0_173 = arith.constant 0 : index
    %c0_174 = arith.constant 0 : index
    %119 = vector.load %arg3[%c0_172, %c0_173, %c0_174] : memref<9x4x4xf32, #tpu.memory_space<vmem>>, vector<1x4x4xf32>
    %120 = vector.shape_cast %119 : vector<1x4x4xf32> to vector<4x4xf32>
    %cst_175 = arith.constant dense<0.000000e+00> : vector<256x4xf32>
    %121 = tpu.matmul %118, %120, %cst_175 {dimension_numbers = #tpu.dot_dimension_numbers<[1], [0], [0], [1], [0, 0, 1, 1], [], []>} : vector<256x4xf32>, vector<4x4xf32>, vector<256x4xf32> -> vector<256x4xf32>
    %c0_176 = arith.constant 0 : index
    %c1_177 = arith.constant 1 : index
    %c0_178 = arith.constant 0 : index
    %122 = vector.load %arg5[%c0_176, %c1_177, %c0_178] : memref<18x24x4xf32, #tpu.memory_space<vmem>>, vector<16x16x4xf32>
    %123 = vector.shape_cast %122 : vector<16x16x4xf32> to vector<256x4xf32>
    %c1_179 = arith.constant 1 : index
    %c0_180 = arith.constant 0 : index
    %c0_181 = arith.constant 0 : index
    %124 = vector.load %arg3[%c1_179, %c0_180, %c0_181] : memref<9x4x4xf32, #tpu.memory_space<vmem>>, vector<1x4x4xf32>
    %125 = vector.shape_cast %124 : vector<1x4x4xf32> to vector<4x4xf32>
    %cst_182 = arith.constant dense<0.000000e+00> : vector<256x4xf32>
    %126 = tpu.matmul %123, %125, %cst_182 {dimension_numbers = #tpu.dot_dimension_numbers<[1], [0], [0], [1], [0, 0, 1, 1], [], []>} : vector<256x4xf32>, vector<4x4xf32>, vector<256x4xf32> -> vector<256x4xf32>
    %127 = arith.addf %121, %126 : vector<256x4xf32>
    %c0_183 = arith.constant 0 : index
    %c2_184 = arith.constant 2 : index
    %c0_185 = arith.constant 0 : index
    %128 = vector.load %arg5[%c0_183, %c2_184, %c0_185] : memref<18x24x4xf32, #tpu.memory_space<vmem>>, vector<16x16x4xf32>
    %129 = vector.shape_cast %128 : vector<16x16x4xf32> to vector<256x4xf32>
    %c2_186 = arith.constant 2 : index
    %c0_187 = arith.constant 0 : index
    %c0_188 = arith.constant 0 : index
    %130 = vector.load %arg3[%c2_186, %c0_187, %c0_188] : memref<9x4x4xf32, #tpu.memory_space<vmem>>, vector<1x4x4xf32>
    %131 = vector.shape_cast %130 : vector<1x4x4xf32> to vector<4x4xf32>
    %cst_189 = arith.constant dense<0.000000e+00> : vector<256x4xf32>
    %132 = tpu.matmul %129, %131, %cst_189 {dimension_numbers = #tpu.dot_dimension_numbers<[1], [0], [0], [1], [0, 0, 1, 1], [], []>} : vector<256x4xf32>, vector<4x4xf32>, vector<256x4xf32> -> vector<256x4xf32>
    %133 = arith.addf %127, %132 : vector<256x4xf32>
    %c1_190 = arith.constant 1 : index
    %c0_191 = arith.constant 0 : index
    %c0_192 = arith.constant 0 : index
    %134 = vector.load %arg5[%c1_190, %c0_191, %c0_192] : memref<18x24x4xf32, #tpu.memory_space<vmem>>, vector<16x16x4xf32>
    %135 = vector.shape_cast %134 : vector<16x16x4xf32> to vector<256x4xf32>
    %c3_193 = arith.constant 3 : index
    %c0_194 = arith.constant 0 : index
    %c0_195 = arith.constant 0 : index
    %136 = vector.load %arg3[%c3_193, %c0_194, %c0_195] : memref<9x4x4xf32, #tpu.memory_space<vmem>>, vector<1x4x4xf32>
    %137 = vector.shape_cast %136 : vector<1x4x4xf32> to vector<4x4xf32>
    %cst_196 = arith.constant dense<0.000000e+00> : vector<256x4xf32>
    %138 = tpu.matmul %135, %137, %cst_196 {dimension_numbers = #tpu.dot_dimension_numbers<[1], [0], [0], [1], [0, 0, 1, 1], [], []>} : vector<256x4xf32>, vector<4x4xf32>, vector<256x4xf32> -> vector<256x4xf32>
    %139 = arith.addf %133, %138 : vector<256x4xf32>
    %c1_197 = arith.constant 1 : index
    %c1_198 = arith.constant 1 : index
    %c0_199 = arith.constant 0 : index
    %140 = vector.load %arg5[%c1_197, %c1_198, %c0_199] : memref<18x24x4xf32, #tpu.memory_space<vmem>>, vector<16x16x4xf32>
    %141 = vector.shape_cast %140 : vector<16x16x4xf32> to vector<256x4xf32>
    %c4_200 = arith.constant 4 : index
    %c0_201 = arith.constant 0 : index
    %c0_202 = arith.constant 0 : index
    %142 = vector.load %arg3[%c4_200, %c0_201, %c0_202] : memref<9x4x4xf32, #tpu.memory_space<vmem>>, vector<1x4x4xf32>
    %143 = vector.shape_cast %142 : vector<1x4x4xf32> to vector<4x4xf32>
    %cst_203 = arith.constant dense<0.000000e+00> : vector<256x4xf32>
    %144 = tpu.matmul %141, %143, %cst_203 {dimension_numbers = #tpu.dot_dimension_numbers<[1], [0], [0], [1], [0, 0, 1, 1], [], []>} : vector<256x4xf32>, vector<4x4xf32>, vector<256x4xf32> -> vector<256x4xf32>
    %145 = arith.addf %139, %144 : vector<256x4xf32>
    %c1_204 = arith.constant 1 : index
    %c2_205 = arith.constant 2 : index
    %c0_206 = arith.constant 0 : index
    %146 = vector.load %arg5[%c1_204, %c2_205, %c0_206] : memref<18x24x4xf32, #tpu.memory_space<vmem>>, vector<16x16x4xf32>
    %147 = vector.shape_cast %146 : vector<16x16x4xf32> to vector<256x4xf32>
    %c5_207 = arith.constant 5 : index
    %c0_208 = arith.constant 0 : index
    %c0_209 = arith.constant 0 : index
    %148 = vector.load %arg3[%c5_207, %c0_208, %c0_209] : memref<9x4x4xf32, #tpu.memory_space<vmem>>, vector<1x4x4xf32>
    %149 = vector.shape_cast %148 : vector<1x4x4xf32> to vector<4x4xf32>
    %cst_210 = arith.constant dense<0.000000e+00> : vector<256x4xf32>
    %150 = tpu.matmul %147, %149, %cst_210 {dimension_numbers = #tpu.dot_dimension_numbers<[1], [0], [0], [1], [0, 0, 1, 1], [], []>} : vector<256x4xf32>, vector<4x4xf32>, vector<256x4xf32> -> vector<256x4xf32>
    %151 = arith.addf %145, %150 : vector<256x4xf32>
    %c2_211 = arith.constant 2 : index
    %c0_212 = arith.constant 0 : index
    %c0_213 = arith.constant 0 : index
    %152 = vector.load %arg5[%c2_211, %c0_212, %c0_213] : memref<18x24x4xf32, #tpu.memory_space<vmem>>, vector<16x16x4xf32>
    %153 = vector.shape_cast %152 : vector<16x16x4xf32> to vector<256x4xf32>
    %c6_214 = arith.constant 6 : index
    %c0_215 = arith.constant 0 : index
    %c0_216 = arith.constant 0 : index
    %154 = vector.load %arg3[%c6_214, %c0_215, %c0_216] : memref<9x4x4xf32, #tpu.memory_space<vmem>>, vector<1x4x4xf32>
    %155 = vector.shape_cast %154 : vector<1x4x4xf32> to vector<4x4xf32>
    %cst_217 = arith.constant dense<0.000000e+00> : vector<256x4xf32>
    %156 = tpu.matmul %153, %155, %cst_217 {dimension_numbers = #tpu.dot_dimension_numbers<[1], [0], [0], [1], [0, 0, 1, 1], [], []>} : vector<256x4xf32>, vector<4x4xf32>, vector<256x4xf32> -> vector<256x4xf32>
    %157 = arith.addf %151, %156 : vector<256x4xf32>
    %c2_218 = arith.constant 2 : index
    %c1_219 = arith.constant 1 : index
    %c0_220 = arith.constant 0 : index
    %158 = vector.load %arg5[%c2_218, %c1_219, %c0_220] : memref<18x24x4xf32, #tpu.memory_space<vmem>>, vector<16x16x4xf32>
    %159 = vector.shape_cast %158 : vector<16x16x4xf32> to vector<256x4xf32>
    %c7_221 = arith.constant 7 : index
    %c0_222 = arith.constant 0 : index
    %c0_223 = arith.constant 0 : index
    %160 = vector.load %arg3[%c7_221, %c0_222, %c0_223] : memref<9x4x4xf32, #tpu.memory_space<vmem>>, vector<1x4x4xf32>
    %161 = vector.shape_cast %160 : vector<1x4x4xf32> to vector<4x4xf32>
    %cst_224 = arith.constant dense<0.000000e+00> : vector<256x4xf32>
    %162 = tpu.matmul %159, %161, %cst_224 {dimension_numbers = #tpu.dot_dimension_numbers<[1], [0], [0], [1], [0, 0, 1, 1], [], []>} : vector<256x4xf32>, vector<4x4xf32>, vector<256x4xf32> -> vector<256x4xf32>
    %163 = arith.addf %157, %162 : vector<256x4xf32>
    %c2_225 = arith.constant 2 : index
    %c2_226 = arith.constant 2 : index
    %c0_227 = arith.constant 0 : index
    %164 = vector.load %arg5[%c2_225, %c2_226, %c0_227] : memref<18x24x4xf32, #tpu.memory_space<vmem>>, vector<16x16x4xf32>
    %165 = vector.shape_cast %164 : vector<16x16x4xf32> to vector<256x4xf32>
    %c8_228 = arith.constant 8 : index
    %c0_229 = arith.constant 0 : index
    %c0_230 = arith.constant 0 : index
    %166 = vector.load %arg3[%c8_228, %c0_229, %c0_230] : memref<9x4x4xf32, #tpu.memory_space<vmem>>, vector<1x4x4xf32>
    %167 = vector.shape_cast %166 : vector<1x4x4xf32> to vector<4x4xf32>
    %cst_231 = arith.constant dense<0.000000e+00> : vector<256x4xf32>
    %168 = tpu.matmul %165, %167, %cst_231 {dimension_numbers = #tpu.dot_dimension_numbers<[1], [0], [0], [1], [0, 0, 1, 1], [], []>} : vector<256x4xf32>, vector<4x4xf32>, vector<256x4xf32> -> vector<256x4xf32>
    %169 = arith.addf %163, %168 : vector<256x4xf32>
    %c0_232 = arith.constant 0 : index
    %c0_233 = arith.constant 0 : index
    %170 = vector.load %arg6[%c0_232, %c0_233] : memref<256x4xf32, #tpu.memory_space<vmem>>, vector<256x4xf32>
    tpu.vector_store %arg6[%c0_232, %c0_233], %169 {strides = array<i32>} : memref<256x4xf32, #tpu.memory_space<vmem>>, vector<256x4xf32>,
    %c0_234 = arith.constant 0 : index
    %c0_235 = arith.constant 0 : index
    %171 = vector.load %arg6[%c0_234, %c0_235] : memref<256x4xf32, #tpu.memory_space<vmem>>, vector<256x4xf32>
    %cst_236 = arith.constant dense<0.000000e+00> : vector<4xf32>
    %172 = vector.multi_reduction <add>, %171, %cst_236 [0] : vector<256x4xf32> to vector<4xf32>
    %173 = vector.shape_cast %172 : vector<4xf32> to vector<1x4xf32>
    %cst_237 = arith.constant 3.906250e-03 : f32
    %174 = vector.broadcast %cst_237 : f32 to vector<1x4xf32>
    %175 = arith.mulf %173, %174 : vector<1x4xf32>
    %176 = arith.mulf %171, %171 : vector<256x4xf32>
    %cst_238 = arith.constant dense<0.000000e+00> : vector<4xf32>
    %177 = vector.multi_reduction <add>, %176, %cst_238 [0] : vector<256x4xf32> to vector<4xf32>
    %178 = vector.shape_cast %177 : vector<4xf32> to vector<1x4xf32>
    %cst_239 = arith.constant 3.906250e-03 : f32
    %179 = vector.broadcast %cst_239 : f32 to vector<1x4xf32>
    %180 = arith.mulf %178, %179 : vector<1x4xf32>
    %181 = arith.mulf %175, %175 : vector<1x4xf32>
    %182 = arith.subf %180, %181 : vector<1x4xf32>
    %cst_240 = arith.constant 0.000000e+00 : f32
    %183 = vector.broadcast %cst_240 : f32 to vector<1x4xf32>
    %184 = arith.maximumf %182, %183 : vector<1x4xf32>
    %cst_241 = arith.constant 9.99999974E-6 : f32
    %185 = vector.broadcast %cst_241 : f32 to vector<1x4xf32>
    %186 = arith.addf %184, %185 : vector<1x4xf32>
    %187 = math.rsqrt %186 : vector<1x4xf32>
    %cst_242 = arith.constant 0.000000e+00 : f32
    %188 = vector.broadcast %cst_242 : f32 to vector<1x4xf32>
    %189 = arith.subf %188, %175 : vector<1x4xf32>
    %190 = arith.mulf %189, %187 : vector<1x4xf32>
    %191 = vector.broadcast %187 : vector<1x4xf32> to vector<256x4xf32>
    %192 = arith.mulf %171, %191 : vector<256x4xf32>
    %193 = vector.broadcast %190 : vector<1x4xf32> to vector<256x4xf32>
    %194 = arith.addf %192, %193 : vector<256x4xf32>
    %195 = vector.shape_cast %194 : vector<256x4xf32> to vector<16x16x4xf32>
    %c0_243 = arith.constant 0 : index
    %c0_244 = arith.constant 0 : index
    %c0_245 = arith.constant 0 : index
    %c0_246 = arith.constant 0 : index
    %196 = vector.load %arg1[%c0_243, %c0_244, %c0_245, %c0_246] : memref<1x16x16x4xf32, #tpu.memory_space<vmem>>, vector<1x16x16x4xf32>
    %197 = vector.shape_cast %196 : vector<1x16x16x4xf32> to vector<16x16x4xf32>
    %198 = arith.addf %197, %195 : vector<16x16x4xf32>
    %c0_247 = arith.constant 0 : index
    %c0_248 = arith.constant 0 : index
    %c0_249 = arith.constant 0 : index
    %c0_250 = arith.constant 0 : index
    %199 = vector.load %arg4[%c0_247, %c0_248, %c0_249, %c0_250] : memref<1x16x16x4xf32, #tpu.memory_space<vmem>>, vector<1x16x16x4xf32>
    %200 = vector.shape_cast %199 : vector<1x16x16x4xf32> to vector<16x16x4xf32>
    %201 = vector.shape_cast %198 : vector<16x16x4xf32> to vector<1x16x16x4xf32>
    tpu.vector_store %arg4[%c0_247, %c0_248, %c0_249, %c0_250], %201 {strides = array<i32>} : memref<1x16x16x4xf32, #tpu.memory_space<vmem>>, vector<1x16x16x4xf32>,
    return
  }
  func.func @transform_0(%arg0: i32) -> (i32, i32, i32, i32) {
    %c0_i32 = arith.constant 0 : i32
    %c0_i32_0 = arith.constant 0 : i32
    %c0_i32_1 = arith.constant 0 : i32
    %c0_i32_2 = arith.constant 0 : i32
    return %arg0, %c0_i32, %c0_i32_0, %c0_i32_1 : i32, i32, i32, i32
  }
  func.func @transform_1(%arg0: i32) -> (i32, i32, i32) {
    %c0_i32 = arith.constant 0 : i32
    %c0_i32_0 = arith.constant 0 : i32
    %c0_i32_1 = arith.constant 0 : i32
    %c0_i32_2 = arith.constant 0 : i32
    return %c0_i32, %c0_i32_0, %c0_i32_1 : i32, i32, i32
  }
  func.func @transform_2(%arg0: i32) -> (i32, i32, i32) {
    %c0_i32 = arith.constant 0 : i32
    %c0_i32_0 = arith.constant 0 : i32
    %c0_i32_1 = arith.constant 0 : i32
    %c0_i32_2 = arith.constant 0 : i32
    return %c0_i32, %c0_i32_0, %c0_i32_1 : i32, i32, i32
  }
  func.func @transform_3(%arg0: i32) -> (i32, i32, i32, i32) {
    %c0_i32 = arith.constant 0 : i32
    %c0_i32_0 = arith.constant 0 : i32
    %c0_i32_1 = arith.constant 0 : i32
    %c0_i32_2 = arith.constant 0 : i32
    return %arg0, %c0_i32, %c0_i32_0, %c0_i32_1 : i32, i32, i32, i32
  }
}

</mosaic_0001>

<llo_original>
// kernel: resnet_block.1
$region0: #{resnet_block.1}
  #allocation0 [shape = 'u32[]', space=smem, size = 0x4, offset = 0x4, fixed_abs, tag = 'smem constant byte address 0x4 - core index']
  #allocation1 [shape = 'u32[144,128]{1,0:T(1,128)}', space=vmem, size = 0x12000, scoped, tag = 'internal scratch']
  #allocation2 [shape = 'f32[18,24,4]{2,1,0:T(8,128)}', space=vmem, size = 0x36000, scoped, tag = 'scratch operand']
  #allocation3 [shape = 'f32[256,4]{1,0:T(8,128)}', space=vmem, size = 0x20000, scoped, tag = 'scratch operand']
  %s0 = inlined_call_operand.vmem [shape: f32[2,16,16,4], index: 0, kind: input, shape index: {}]
  %s1 = inlined_call_operand.vmem [shape: f32[9,4,4], index: 1, kind: input, shape index: {}]
  %s2 = inlined_call_operand.vmem [shape: f32[9,4,4], index: 2, kind: input, shape index: {}]
  %s3 = inlined_call_operand.vmem [shape: f32[2,16,16,4], index: 3, kind: output, shape index: {}]
  %s4 = sld [smem:[#allocation0]]
  $region45: #{resnet_block.1} parent=0
    _
  %s6 = ssub.s32 1, %s4
  %s7 = scalar_select 0, %s6, %s4
  loop: start=0, step=1, limit=4
  $region2: #{resnet_block.1} parent=0 // loop_pre_header
    _
  $region3: #{resnet_block.1} parent=0 // loop_header
    %s9 = sphi 0, %s13
    %p10 = scmp.ge.s32.totalorder %s9, 4
    %s19 = sphi 0, %s21
    %s22 = sphi 0, %s19
    %s23 = sphi 0, %s22
    %s39 = sphi 0, %s23
    %s43 = sphi 0, %s43
    %s45 = sphi 0, %s43
    %s46 = sphi 0, %s45
    %s60 = sphi 0, %s46
    %s64 = sphi 0, %s64
    %s66 = sphi 0, %s64
    %s67 = sphi 0, %s66
    %s81 = sphi 0, %s67
    %s87 = sphi 0, %s89
    %s90 = sphi 0, %s87
    %s91 = sphi 0, %s90
    %s107 = sphi 0, %s91
  $region4: #{resnet_block.1} parent=0 // loop_header_branch
    %12 = sbr.rel (%p10) target = $region8
  $region5: #{resnet_block.1} parent=0 // loop_body
    %s14 = ssub.s32 %s9, 1
    %s15 = ssub.s32 %s9, 2
    %s16 = sadd.s32 %s9, 1
    %s17 = ssub.s32 %s9, %s16
    %p18 = scmp.eq.s32.totalorder %s17, 0
    %s20 = sadd.s32 %s19, 1
    %s21 = scalar_select %p18, %s19, %s20
    %p24 = pneg %p18
    %p25 = scmp.eq.s32.totalorder %s9, 1
    %p26 = por %p24, %p25
    %p27 = scmp.ne.s32.totalorder %s19, %s22
    %p28 = scmp.eq.s32.totalorder %s9, 0
    %p29 = por %p27, %p28
    %p30 = scmp.ne.s32.totalorder %s19, %s22
    %p31 = scmp.eq.s32.totalorder %s14, 1
    %p32 = por %p30, %p31
    %p33 = scmp.ne.s32.totalorder %s22, %s23
    %p34 = scmp.eq.s32.totalorder %s14, 0
    %p35 = por %p33, %p34
    %p36 = scmp.ne.s32.totalorder %s22, %s23
    %p37 = scmp.eq.s32.totalorder %s15, 1
    %p38 = por %p36, %p37
    %p40 = scmp.ne.s32.totalorder %s23, %s39
    %p41 = scmp.eq.s32.totalorder %s15, 0
    %p42 = por %p40, %p41
    %s44 = sadd.s32 %s43, 1
    %p47 = scmp.eq.s32.totalorder %s9, 1
    %p48 = scmp.ne.s32.totalorder %s43, %s45
    %p49 = scmp.eq.s32.totalorder %s9, 0
    %p50 = por %p48, %p49
    %p51 = scmp.ne.s32.totalorder %s43, %s45
    %p52 = scmp.eq.s32.totalorder %s14, 1
    %p53 = por %p51, %p52
    %p54 = scmp.ne.s32.totalorder %s45, %s46
    %p55 = scmp.eq.s32.totalorder %s14, 0
    %p56 = por %p54, %p55
    %p57 = scmp.ne.s32.totalorder %s45, %s46
    %p58 = scmp.eq.s32.totalorder %s15, 1
    %p59 = por %p57, %p58
    %p61 = scmp.ne.s32.totalorder %s46, %s60
    %p62 = scmp.eq.s32.totalorder %s15, 0
    %p63 = por %p61, %p62
    %s65 = sadd.s32 %s64, 1
    %p68 = scmp.eq.s32.totalorder %s9, 1
    %p69 = scmp.ne.s32.totalorder %s64, %s66
    %p70 = scmp.eq.s32.totalorder %s9, 0
    %p71 = por %p69, %p70
    %p72 = scmp.ne.s32.totalorder %s64, %s66
    %p73 = scmp.eq.s32.totalorder %s14, 1
    %p74 = por %p72, %p73
    %p75 = scmp.ne.s32.totalorder %s66, %s67
    %p76 = scmp.eq.s32.totalorder %s14, 0
    %p77 = por %p75, %p76
    %p78 = scmp.ne.s32.totalorder %s66, %s67
    %p79 = scmp.eq.s32.totalorder %s15, 1
    %p80 = por %p78, %p79
    %p82 = scmp.ne.s32.totalorder %s67, %s81
    %p83 = scmp.eq.s32.totalorder %s15, 0
    %p84 = por %p82, %p83
    %s85 = ssub.s32 %s9, %s16
    %p86 = scmp.eq.s32.totalorder %s85, 0
    %s88 = sadd.s32 %s87, 1
    %s89 = scalar_select %p86, %s87, %s88
    %p92 = pneg %p86
    %p93 = scmp.eq.s32.totalorder %s9, 1
    %p94 = por %p92, %p93
    %p95 = scmp.ne.s32.totalorder %s87, %s90
    %p96 = scmp.eq.s32.totalorder %s9, 0
    %p97 = por %p95, %p96
    %p98 = scmp.ne.s32.totalorder %s87, %s90
    %p99 = scmp.eq.s32.totalorder %s14, 1
    %p100 = por %p98, %p99
    %p101 = scmp.ne.s32.totalorder %s90, %s91
    %p102 = scmp.eq.s32.totalorder %s14, 0
    %p103 = por %p101, %p102
    %p104 = scmp.ne.s32.totalorder %s90, %s91
    %p105 = scmp.eq.s32.totalorder %s15, 1
    %p106 = por %p104, %p105
    %p108 = scmp.ne.s32.totalorder %s91, %s107
    %p109 = scmp.eq.s32.totalorder %s15, 0
    %p110 = por %p108, %p109
    %p111 = scmp.le.s32.totalorder 1, %s9
    %p112 = scmp.lt.s32.totalorder %s9, 3
    %p113 = pnand %p111, %p112
    %p114 = pneg %p113
    // Predicated region
    $region9: #{resnet_block.1} parent=5 // pred_check
      _
    $region10: #{resnet_block.1} parent=5 // pred_check_branch
      %116 = sbr.rel (%p113) target = $region12
    $region11: #{resnet_block.1} parent=5 // pred_region
      %s117 = ssub.s32 %s9, 1
      // Predicated region
      $region13: #{resnet_block.1} parent=11 // pred_check
        %p118 = pneg %p56
      $region14: #{resnet_block.1} parent=11 // pred_check_branch
        %120 = sbr.rel (%p118) target = $region16
      $region15: #{resnet_block.1} parent=11 // pred_region
        _
      $region16: #{resnet_block.1} parent=11 // pred_fallthru
        _
      // Predicated region
      $region17: #{resnet_block.1} parent=11 // pred_check
        %p121 = pneg %p77
      $region18: #{resnet_block.1} parent=11 // pred_check_branch
        %123 = sbr.rel (%p121) target = $region20
      $region19: #{resnet_block.1} parent=11 // pred_region
        _
      $region20: #{resnet_block.1} parent=11 // pred_fallthru
        _
    $region12: #{resnet_block.1} parent=5 // pred_fallthru
      _
    %p124 = scmp.lt.s32.totalorder %s9, 2
    // Predicated region
    $region21: #{resnet_block.1} parent=5 // pred_check
      %p125 = pneg %p124
    $region22: #{resnet_block.1} parent=5 // pred_check_branch
      %127 = sbr.rel (%p125) target = $region24
    $region23: #{resnet_block.1} parent=5 // pred_region
      // Predicated region
      $region25: #{resnet_block.1} parent=23 // pred_check
        %p128 = pneg %p29
      $region26: #{resnet_block.1} parent=23 // pred_check_branch
        %130 = sbr.rel (%p128) target = $region28
      $region27: #{resnet_block.1} parent=23 // pred_region
        %p131 = scmp.lt.s32.totalorder %s9, 1
        %s132 = scalar_select %p131, %s9, 1
        %s133 = smul.addr %s132, 32
        %s134 = smul.addr %s133, 8
        %s135 = scalar_lea.vmem %s0, %s134
      $region28: #{resnet_block.1} parent=23 // pred_fallthru
        _
    $region24: #{resnet_block.1} parent=5 // pred_fallthru
      _
    %p136 = scmp.le.s32.totalorder 1, %s9
    %p137 = scmp.lt.s32.totalorder %s9, 3
    %p138 = pnand %p136, %p137
    %p139 = pneg %p138
    // Predicated region
    $region29: #{resnet_block.1} parent=5 // pred_check
      _
    $region30: #{resnet_block.1} parent=5 // pred_check_branch
      %141 = sbr.rel (%p138) target = $region32
    $region31: #{resnet_block.1} parent=5 // pred_region
      %s142 = ssub.s32 %s9, 1
      %p143 = scmp.lt.s32.totalorder %s14, 1
      %s144 = scalar_select %p143, %s14, 1
      %s145 = smul.addr %s144, 32
      %s146 = smul.addr %s145, 8
      %s147 = scalar_lea.vmem %s0, %s146
      %p148 = pneg %p35
      %p149 = pneg %p32
      %p150 = pneg %p56
      %p151 = pneg %p53
      %p152 = pneg %p77
      %p153 = pneg %p74
      %p154 = pneg %p103
      %p155 = pneg %p100
      %p156 = scmp.lt.s32.totalorder %s14, 1
      %s157 = scalar_select %p156, %s14, 1
      %s158 = smul.addr %s157, 32
      %s159 = smul.addr %s158, 8
      %s160 = scalar_lea.vmem %s3, %s159
      %p161 = scmp.lt.s32.totalorder %s14, 1
      %s162 = scalar_select %p161, %s14, 1
      %s163 = smul.addr %s162, 32
      %s164 = smul.addr %s163, 8
      %s165 = scalar_lea.vmem %s0, %s164
      %p166 = scmp.lt.s32.totalorder %s14, 1
      %s167 = scalar_select %p166, %s14, 1
      %s168 = smul.addr %s167, 32
      %s169 = smul.addr %s168, 8
      %s170 = scalar_lea.vmem %s3, %s169
      %v171 = vld [vmem:[%s165] sm:$0xff]
      %v172 = vld [vmem:[%s165 + $0x8] sm:$0xff]
      %v173 = vld [vmem:[%s165 + $0x10] sm:$0xff]
      %v174 = vld [vmem:[%s165 + $0x18] sm:$0xff]
      %v175 = vld [vmem:[%s165 + $0x20] sm:$0xff]
      %v176 = vld [vmem:[%s165 + $0x28] sm:$0xff]
      %v177 = vld [vmem:[%s165 + $0x30] sm:$0xff]
      %v178 = vld [vmem:[%s165 + $0x38] sm:$0xff]
      %v179 = vld [vmem:[%s165 + $0x40] sm:$0xff]
      %v180 = vld [vmem:[%s165 + $0x48] sm:$0xff]
      %v181 = vld [vmem:[%s165 + $0x50] sm:$0xff]
      %v182 = vld [vmem:[%s165 + $0x58] sm:$0xff]
      %v183 = vld [vmem:[%s165 + $0x60] sm:$0xff]
      %v184 = vld [vmem:[%s165 + $0x68] sm:$0xff]
      %v185 = vld [vmem:[%s165 + $0x70] sm:$0xff]
      %v186 = vld [vmem:[%s165 + $0x78] sm:$0xff]
      %v187 = vld [vmem:[%s165 + $0x80] sm:$0xff]
      %v188 = vld [vmem:[%s165 + $0x88] sm:$0xff]
      %v189 = vld [vmem:[%s165 + $0x90] sm:$0xff]
      %v190 = vld [vmem:[%s165 + $0x98] sm:$0xff]
      %v191 = vld [vmem:[%s165 + $0xa0] sm:$0xff]
      %v192 = vld [vmem:[%s165 + $0xa8] sm:$0xff]
      %v193 = vld [vmem:[%s165 + $0xb0] sm:$0xff]
      %v194 = vld [vmem:[%s165 + $0xb8] sm:$0xff]
      %v195 = vld [vmem:[%s165 + $0xc0] sm:$0xff]
      %v196 = vld [vmem:[%s165 + $0xc8] sm:$0xff]
      %v197 = vld [vmem:[%s165 + $0xd0] sm:$0xff]
      %v198 = vld [vmem:[%s165 + $0xd8] sm:$0xff]
      %v199 = vld [vmem:[%s165 + $0xe0] sm:$0xff]
      %v200 = vld [vmem:[%s165 + $0xe8] sm:$0xff]
      %v201 = vld [vmem:[%s165 + $0xf0] sm:$0xff]
      %v202 = vld [vmem:[%s165 + $0xf8] sm:$0xff]
      %s203 = scalar_lea.vmem [#allocation2], 24
      %vm204 = vcmask 31744
      %205 = vst.msk [vmem:[%s203 + $0x1] sm:$0xff] %vm204, %v171
      %206 = vst.msk [vmem:[%s203 + $0x9] sm:$0xff] %vm204, %v172
      %207 = vst.msk [vmem:[%s203 + $0x19] sm:$0xff] %vm204, %v173
      %208 = vst.msk [vmem:[%s203 + $0x21] sm:$0xff] %vm204, %v174
      %209 = vst.msk [vmem:[%s203 + $0x31] sm:$0xff] %vm204, %v175
      %210 = vst.msk [vmem:[%s203 + $0x39] sm:$0xff] %vm204, %v176
      %211 = vst.msk [vmem:[%s203 + $0x49] sm:$0xff] %vm204, %v177
      %212 = vst.msk [vmem:[%s203 + $0x51] sm:$0xff] %vm204, %v178
      %213 = vst.msk [vmem:[%s203 + $0x61] sm:$0xff] %vm204, %v179
      %214 = vst.msk [vmem:[%s203 + $0x69] sm:$0xff] %vm204, %v180
      %215 = vst.msk [vmem:[%s203 + $0x79] sm:$0xff] %vm204, %v181
      %216 = vst.msk [vmem:[%s203 + $0x81] sm:$0xff] %vm204, %v182
      %217 = vst.msk [vmem:[%s203 + $0x91] sm:$0xff] %vm204, %v183
      %218 = vst.msk [vmem:[%s203 + $0x99] sm:$0xff] %vm204, %v184
      %219 = vst.msk [vmem:[%s203 + $0xa9] sm:$0xff] %vm204, %v185
      %220 = vst.msk [vmem:[%s203 + $0xb1] sm:$0xff] %vm204, %v186
      %221 = vst.msk [vmem:[%s203 + $0xc1] sm:$0xff] %vm204, %v187
      %222 = vst.msk [vmem:[%s203 + $0xc9] sm:$0xff] %vm204, %v188
      %223 = vst.msk [vmem:[%s203 + $0xd9] sm:$0xff] %vm204, %v189
      %224 = vst.msk [vmem:[%s203 + $0xe1] sm:$0xff] %vm204, %v190
      %225 = vst.msk [vmem:[%s203 + $0xf1] sm:$0xff] %vm204, %v191
      %226 = vst.msk [vmem:[%s203 + $0xf9] sm:$0xff] %vm204, %v192
      %227 = vst.msk [vmem:[%s203 + $0x109] sm:$0xff] %vm204, %v193
      %228 = vst.msk [vmem:[%s203 + $0x111] sm:$0xff] %vm204, %v194
      %229 = vst.msk [vmem:[%s203 + $0x121] sm:$0xff] %vm204, %v195
      %230 = vst.msk [vmem:[%s203 + $0x129] sm:$0xff] %vm204, %v196
      %231 = vst.msk [vmem:[%s203 + $0x139] sm:$0xff] %vm204, %v197
      %232 = vst.msk [vmem:[%s203 + $0x141] sm:$0xff] %vm204, %v198
      %233 = vst.msk [vmem:[%s203 + $0x151] sm:$0xff] %vm204, %v199
      %234 = vst.msk [vmem:[%s203 + $0x159] sm:$0xff] %vm204, %v200
      %235 = vst.msk [vmem:[%s203 + $0x169] sm:$0xff] %vm204, %v201
      %236 = vst.msk [vmem:[%s203 + $0x171] sm:$0xff] %vm204, %v202
      %s237 = scalar_lea.vmem [#allocation2], 48
      %v238 = vld [vmem:[%s237 + $0x1] sm:$0xff]
      %v239 = vld [vmem:[%s237 + $0x9] sm:$0xff]
      %240 = vst.msk [vmem:[#allocation2 + $0x1] sm:$0xff] %vm204, %v238
      %241 = vst.msk [vmem:[#allocation2 + $0x9] sm:$0xff] %vm204, %v239
      %s242 = scalar_lea.vmem [#allocation2], 360
      %v243 = vld [vmem:[%s242 + $0x1] sm:$0xff]
      %v244 = vld [vmem:[%s242 + $0x9] sm:$0xff]
      %s245 = scalar_lea.vmem [#allocation2], 408
      %246 = vst.msk [vmem:[%s245 + $0x1] sm:$0xff] %vm204, %v243
      %247 = vst.msk [vmem:[%s245 + $0x9] sm:$0xff] %vm204, %v244
      %v248 = vld [vmem:[%s203 + $0x2] sm:$0x1]
      %v249 = vld [vmem:[%s203 + $0x1a] sm:$0x1]
      %v250 = vld [vmem:[%s203 + $0x32] sm:$0x1]
      %v251 = vld [vmem:[%s203 + $0x4a] sm:$0x1]
      %v252 = vld [vmem:[%s203 + $0x62] sm:$0x1]
      %v253 = vld [vmem:[%s203 + $0x7a] sm:$0x1]
      %v254 = vld [vmem:[%s203 + $0x92] sm:$0x1]
      %v255 = vld [vmem:[%s203 + $0xaa] sm:$0x1]
      %v256 = vld [vmem:[%s203 + $0xc2] sm:$0x1]
      %v257 = vld [vmem:[%s203 + $0xda] sm:$0x1]
      %v258 = vld [vmem:[%s203 + $0xf2] sm:$0x1]
      %v259 = vld [vmem:[%s203 + $0x10a] sm:$0x1]
      %v260 = vld [vmem:[%s203 + $0x122] sm:$0x1]
      %v261 = vld [vmem:[%s203 + $0x13a] sm:$0x1]
      %v262 = vld [vmem:[%s203 + $0x152] sm:$0x1]
      %v263 = vld [vmem:[%s203 + $0x16a] sm:$0x1]
      %vm264 = vcmask 24576
      %265 = vst.msk [vmem:[%s203] sm:$0x1] %vm264, %v248
      %266 = vst.msk [vmem:[%s203 + $0x18] sm:$0x1] %vm264, %v249
      %267 = vst.msk [vmem:[%s203 + $0x30] sm:$0x1] %vm264, %v250
      %268 = vst.msk [vmem:[%s203 + $0x48] sm:$0x1] %vm264, %v251
      %269 = vst.msk [vmem:[%s203 + $0x60] sm:$0x1] %vm264, %v252
      %270 = vst.msk [vmem:[%s203 + $0x78] sm:$0x1] %vm264, %v253
      %271 = vst.msk [vmem:[%s203 + $0x90] sm:$0x1] %vm264, %v254
      %272 = vst.msk [vmem:[%s203 + $0xa8] sm:$0x1] %vm264, %v255
      %273 = vst.msk [vmem:[%s203 + $0xc0] sm:$0x1] %vm264, %v256
      %274 = vst.msk [vmem:[%s203 + $0xd8] sm:$0x1] %vm264, %v257
      %275 = vst.msk [vmem:[%s203 + $0xf0] sm:$0x1] %vm264, %v258
      %276 = vst.msk [vmem:[%s203 + $0x108] sm:$0x1] %vm264, %v259
      %277 = vst.msk [vmem:[%s203 + $0x120] sm:$0x1] %vm264, %v260
      %278 = vst.msk [vmem:[%s203 + $0x138] sm:$0x1] %vm264, %v261
      %279 = vst.msk [vmem:[%s203 + $0x150] sm:$0x1] %vm264, %v262
      %280 = vst.msk [vmem:[%s203 + $0x168] sm:$0x1] %vm264, %v263
      %v281 = vld [vmem:[%s203 + $0xf] sm:$0x1]
      %v282 = vld [vmem:[%s203 + $0x27] sm:$0x1]
      %v283 = vld [vmem:[%s203 + $0x3f] sm:$0x1]
      %v284 = vld [vmem:[%s203 + $0x57] sm:$0x1]
      %v285 = vld [vmem:[%s203 + $0x6f] sm:$0x1]
      %v286 = vld [vmem:[%s203 + $0x87] sm:$0x1]
      %v287 = vld [vmem:[%s203 + $0x9f] sm:$0x1]
      %v288 = vld [vmem:[%s203 + $0xb7] sm:$0x1]
      %v289 = vld [vmem:[%s203 + $0xcf] sm:$0x1]
      %v290 = vld [vmem:[%s203 + $0xe7] sm:$0x1]
      %v291 = vld [vmem:[%s203 + $0xff] sm:$0x1]
      %v292 = vld [vmem:[%s203 + $0x117] sm:$0x1]
      %v293 = vld [vmem:[%s203 + $0x12f] sm:$0x1]
      %v294 = vld [vmem:[%s203 + $0x147] sm:$0x1]
      %v295 = vld [vmem:[%s203 + $0x15f] sm:$0x1]
      %v296 = vld [vmem:[%s203 + $0x177] sm:$0x1]
      %297 = vst.msk [vmem:[%s203 + $0x11] sm:$0x1] %vm264, %v281
      %298 = vst.msk [vmem:[%s203 + $0x29] sm:$0x1] %vm264, %v282
      %299 = vst.msk [vmem:[%s203 + $0x41] sm:$0x1] %vm264, %v283
      %300 = vst.msk [vmem:[%s203 + $0x59] sm:$0x1] %vm264, %v284
      %301 = vst.msk [vmem:[%s203 + $0x71] sm:$0x1] %vm264, %v285
      %302 = vst.msk [vmem:[%s203 + $0x89] sm:$0x1] %vm264, %v286
      %303 = vst.msk [vmem:[%s203 + $0xa1] sm:$0x1] %vm264, %v287
      %304 = vst.msk [vmem:[%s203 + $0xb9] sm:$0x1] %vm264, %v288
      %305 = vst.msk [vmem:[%s203 + $0xd1] sm:$0x1] %vm264, %v289
      %306 = vst.msk [vmem:[%s203 + $0xe9] sm:$0x1] %vm264, %v290
      %307 = vst.msk [vmem:[%s203 + $0x101] sm:$0x1] %vm264, %v291
      %308 = vst.msk [vmem:[%s203 + $0x119] sm:$0x1] %vm264, %v292
      %309 = vst.msk [vmem:[%s203 + $0x131] sm:$0x1] %vm264, %v293
      %310 = vst.msk [vmem:[%s203 + $0x149] sm:$0x1] %vm264, %v294
      %311 = vst.msk [vmem:[%s203 + $0x161] sm:$0x1] %vm264, %v295
      %312 = vst.msk [vmem:[%s203 + $0x179] sm:$0x1] %vm264, %v296
      %v313 = vld [vmem:[%s237 + $0x2] sm:$0x1]
      %314 = vst.msk [vmem:[#allocation2] sm:$0x1] %vm264, %v313
      %v315 = vld [vmem:[%s237 + $0xf] sm:$0x1]
      %316 = vst.msk [vmem:[#allocation2 + $0x11] sm:$0x1] %vm264, %v315
      %v317 = vld [vmem:[%s242 + $0x2] sm:$0x1]
      %318 = vst.msk [vmem:[%s245] sm:$0x1] %vm264, %v317
      %v319 = vld [vmem:[%s242 + $0xf] sm:$0x1]
      %320 = vst.msk [vmem:[%s245 + $0x11] sm:$0x1] %vm264, %v319
      %v321 = vld [vmem:[#allocation2] sm:$0xff]
      %v322 = vld [vmem:[#allocation2 + $0x8] sm:$0xff]
      %v323 = vld [vmem:[#allocation2 + $0x18] sm:$0xff]
      %v324 = vld [vmem:[#allocation2 + $0x20] sm:$0xff]
      %v325 = vld [vmem:[#allocation2 + $0x30] sm:$0xff]
      %v326 = vld [vmem:[#allocation2 + $0x38] sm:$0xff]
      %v327 = vld [vmem:[#allocation2 + $0x48] sm:$0xff]
      %v328 = vld [vmem:[#allocation2 + $0x50] sm:$0xff]
      %v329 = vld [vmem:[#allocation2 + $0x60] sm:$0xff]
      %v330 = vld [vmem:[#allocation2 + $0x68] sm:$0xff]
      %v331 = vld [vmem:[#allocation2 + $0x78] sm:$0xff]
      %v332 = vld [vmem:[#allocation2 + $0x80] sm:$0xff]
      %v333 = vld [vmem:[#allocation2 + $0x90] sm:$0xff]
      %v334 = vld [vmem:[#allocation2 + $0x98] sm:$0xff]
      %v335 = vld [vmem:[#allocation2 + $0xa8] sm:$0xff]
      %v336 = vld [vmem:[#allocation2 + $0xb0] sm:$0xff]
      %v337 = vld [vmem:[#allocation2 + $0xc0] sm:$0xff]
      %v338 = vld [vmem:[#allocation2 + $0xc8] sm:$0xff]
      %v339 = vld [vmem:[#allocation2 + $0xd8] sm:$0xff]
      %v340 = vld [vmem:[#allocation2 + $0xe0] sm:$0xff]
      %v341 = vld [vmem:[#allocation2 + $0xf0] sm:$0xff]
      %v342 = vld [vmem:[#allocation2 + $0xf8] sm:$0xff]
      %v343 = vld [vmem:[#allocation2 + $0x108] sm:$0xff]
      %v344 = vld [vmem:[#allocation2 + $0x110] sm:$0xff]
      %v345 = vld [vmem:[#allocation2 + $0x120] sm:$0xff]
      %v346 = vld [vmem:[#allocation2 + $0x128] sm:$0xff]
      %v347 = vld [vmem:[#allocation2 + $0x138] sm:$0xff]
      %v348 = vld [vmem:[#allocation2 + $0x140] sm:$0xff]
      %v349 = vld [vmem:[#allocation2 + $0x150] sm:$0xff]
      %v350 = vld [vmem:[#allocation2 + $0x158] sm:$0xff]
      %v351 = vld [vmem:[#allocation2 + $0x168] sm:$0xff]
      %v352 = vld [vmem:[#allocation2 + $0x170] sm:$0xff]
      %v353 = vld [vmem:[%s1] sm:$0xf]
      %v354 = vld [vmem:[#allocation2 + $0x1] sm:$0xff]
      %v355 = vld [vmem:[#allocation2 + $0x9] sm:$0xff]
      %v356 = vld [vmem:[#allocation2 + $0x19] sm:$0xff]
      %v357 = vld [vmem:[#allocation2 + $0x21] sm:$0xff]
      %v358 = vld [vmem:[#allocation2 + $0x31] sm:$0xff]
      %v359 = vld [vmem:[#allocation2 + $0x39] sm:$0xff]
      %v360 = vld [vmem:[#allocation2 + $0x49] sm:$0xff]
      %v361 = vld [vmem:[#allocation2 + $0x51] sm:$0xff]
      %v362 = vld [vmem:[#allocation2 + $0x61] sm:$0xff]
      %v363 = vld [vmem:[#allocation2 + $0x69] sm:$0xff]
      %v364 = vld [vmem:[#allocation2 + $0x79] sm:$0xff]
      %v365 = vld [vmem:[#allocation2 + $0x81] sm:$0xff]
      %v366 = vld [vmem:[#allocation2 + $0x91] sm:$0xff]
      %v367 = vld [vmem:[#allocation2 + $0x99] sm:$0xff]
      %v368 = vld [vmem:[#allocation2 + $0xa9] sm:$0xff]
      %v369 = vld [vmem:[#allocation2 + $0xb1] sm:$0xff]
      %v370 = vld [vmem:[#allocation2 + $0xc1] sm:$0xff]
      %v371 = vld [vmem:[#allocation2 + $0xc9] sm:$0xff]
      %v372 = vld [vmem:[#allocation2 + $0xd9] sm:$0xff]
      %v373 = vld [vmem:[#allocation2 + $0xe1] sm:$0xff]
      %v374 = vld [vmem:[#allocation2 + $0xf1] sm:$0xff]
      %v375 = vld [vmem:[#allocation2 + $0xf9] sm:$0xff]
      %v376 = vld [vmem:[#allocation2 + $0x109] sm:$0xff]
      %v377 = vld [vmem:[#allocation2 + $0x111] sm:$0xff]
      %v378 = vld [vmem:[#allocation2 + $0x121] sm:$0xff]
      %v379 = vld [vmem:[#allocation2 + $0x129] sm:$0xff]
      %v380 = vld [vmem:[#allocation2 + $0x139] sm:$0xff]
      %v381 = vld [vmem:[#allocation2 + $0x141] sm:$0xff]
      %v382 = vld [vmem:[#allocation2 + $0x151] sm:$0xff]
      %v383 = vld [vmem:[#allocation2 + $0x159] sm:$0xff]
      %v384 = vld [vmem:[#allocation2 + $0x169] sm:$0xff]
      %v385 = vld [vmem:[#allocation2 + $0x171] sm:$0xff]
      %s386 = scalar_lea.vmem %s1, 4
      %v387 = vld [vmem:[%s386] sm:$0xf]
      %v389 = vsel %vm204, %v354, 0
      %v392 = vsel %vm204, %v355, 0
      %v395 = vsel %vm204, %v356, 0
      %v398 = vsel %vm204, %v357, 0
      %v401 = vsel %vm204, %v358, 0
      %v404 = vsel %vm204, %v359, 0
      %v407 = vsel %vm204, %v360, 0
      %v410 = vsel %vm204, %v361, 0
      %v413 = vsel %vm204, %v362, 0
      %v416 = vsel %vm204, %v363, 0
      %v419 = vsel %vm204, %v364, 0
      %v422 = vsel %vm204, %v365, 0
      %v425 = vsel %vm204, %v366, 0
      %v428 = vsel %vm204, %v367, 0
      %v431 = vsel %vm204, %v368, 0
      %v434 = vsel %vm204, %v369, 0
      %v437 = vsel %vm204, %v370, 0
      %v440 = vsel %vm204, %v371, 0
      %v443 = vsel %vm204, %v372, 0
      %v446 = vsel %vm204, %v373, 0
      %v449 = vsel %vm204, %v374, 0
      %v452 = vsel %vm204, %v375, 0
      %v455 = vsel %vm204, %v376, 0
      %v458 = vsel %vm204, %v377, 0
      %v461 = vsel %vm204, %v378, 0
      %v464 = vsel %vm204, %v379, 0
      %v467 = vsel %vm204, %v380, 0
      %v470 = vsel %vm204, %v381, 0
      %v473 = vsel %vm204, %v382, 0
      %v476 = vsel %vm204, %v383, 0
      %v479 = vsel %vm204, %v384, 0
      %v482 = vsel %vm204, %v385, 0
      %vm484 = vcmask 1043456
      %v486 = vsel %vm484, %v387, 0
      %488 = vmatprep.subr.mxu0 0.0
      %489 = vmatpush1.msra.mxu0 0.0
      %490 = vmatprep.subr.mxu0 0.0
      %491 = vmatpush1.msra.mxu0 0.0
      %492 = vmatprep.subr.mxu0 0.0
      %493 = vmatpush1.msra.mxu0 0.0
      %494 = vmatprep.subr.mxu0 0.0
      %495 = vmatpush1.msra.mxu0 0.0
      %496 = vmatprep.subr.mxu0 0.0
      %497 = vmatpush1.msra.mxu0 0.0
      %498 = vmatprep.subr.mxu0 0.0
      %499 = vmatpush1.msra.mxu0 0.0
      %500 = vmatprep.subr.mxu0 0.0
      %501 = vmatpush1.msra.mxu0 0.0
      %502 = vmatprep.subr.mxu0 0.0
      %503 = vmatpush1.msra.mxu0 0.0
      %504 = vmatprep.subr.mxu0 0.0
      %505 = vmatpush1.msra.mxu0 0.0
      %506 = vmatprep.subr.mxu0 0.0
      %507 = vmatpush1.msra.mxu0 0.0
      %508 = vmatprep.subr.mxu0 0.0
      %509 = vmatpush1.msra.mxu0 0.0
      %510 = vmatprep.subr.mxu0 0.0
      %511 = vmatpush1.msra.mxu0 0.0
      %512 = vmatprep.subr.mxu0 0.0
      %513 = vmatpush1.msra.mxu0 0.0
      %514 = vmatprep.subr.mxu0 0.0
      %515 = vmatpush1.msra.mxu0 0.0
      %516 = vmatprep.subr.mxu0 0.0
      %517 = vmatpush1.msra.mxu0 0.0
      %518 = vmatprep.subr.mxu0 0.0
      %519 = vmatpush1.msra.mxu0 %v486
      %520 = vmatprep.subr.mxu0 0.0
      %521 = vmatpush2.msra.mxu0 0.0
      %522 = vmatprep.subr.mxu0 0.0
      %523 = vmatpush2.msra.mxu0 0.0
      %524 = vmatprep.subr.mxu0 0.0
      %525 = vmatpush2.msra.mxu0 0.0
      %526 = vmatprep.subr.mxu0 0.0
      %527 = vmatpush2.msra.mxu0 0.0
      %528 = vmatprep.subr.mxu0 0.0
      %529 = vmatpush2.msra.mxu0 0.0
      %530 = vmatprep.subr.mxu0 0.0
      %531 = vmatpush2.msra.mxu0 0.0
      %532 = vmatprep.subr.mxu0 0.0
      %533 = vmatpush2.msra.mxu0 0.0
      %534 = vmatprep.subr.mxu0 0.0
      %535 = vmatpush2.msra.mxu0 0.0
      %536 = vmatprep.subr.mxu0 0.0
      %537 = vmatpush2.msra.mxu0 0.0
      %538 = vmatprep.subr.mxu0 0.0
      %539 = vmatpush2.msra.mxu0 0.0
      %540 = vmatprep.subr.mxu0 0.0
      %541 = vmatpush2.msra.mxu0 0.0
      %542 = vmatprep.subr.mxu0 0.0
      %543 = vmatpush2.msra.mxu0 0.0
      %544 = vmatprep.subr.mxu0 0.0
      %545 = vmatpush2.msra.mxu0 0.0
      %546 = vmatprep.subr.mxu0 0.0
      %547 = vmatpush2.msra.mxu0 0.0
      %548 = vmatprep.subr.mxu0 0.0
      %549 = vmatpush2.msra.mxu0 0.0
      %550 = vmatprep.subr.mxu0 0.0
      %551 = vmatpush2.msra.mxu0 0.0
      %552 = vmatprep.mubr.f32.mxu0 0.0
      %553 = vmatmul.mubr.f32.gmra.mxu0 %v389
      %v554 = vpop.f32.mrf.mxu0
      %v555 = vadd.f32 0.0, %v554
      %v556 = vpop.f32.mrf.mxu0
      %557 = vmatprep.mubr.f32.mxu0 0.0
      %558 = vmatmul.mubr.f32.gmra.mxu0 %v392
      %v559 = vpop.f32.mrf.mxu0
      %v560 = vadd.f32 0.0, %v559
      %v561 = vpop.f32.mrf.mxu0
      %562 = vmatprep.mubr.f32.mxu0 0.0
      %563 = vmatmul.mubr.f32.gmra.mxu0 %v395
      %v564 = vpop.f32.mrf.mxu0
      %v565 = vadd.f32 0.0, %v564
      %v566 = vpop.f32.mrf.mxu0
      %567 = vmatprep.mubr.f32.mxu0 0.0
      %568 = vmatmul.mubr.f32.gmra.mxu0 %v398
      %v569 = vpop.f32.mrf.mxu0
      %v570 = vadd.f32 0.0, %v569
      %v571 = vpop.f32.mrf.mxu0
      %572 = vmatprep.mubr.f32.mxu0 0.0
      %573 = vmatmul.mubr.f32.gmra.mxu0 %v401
      %v574 = vpop.f32.mrf.mxu0
      %v575 = vadd.f32 0.0, %v574
      %v576 = vpop.f32.mrf.mxu0
      %577 = vmatprep.mubr.f32.mxu0 0.0
      %578 = vmatmul.mubr.f32.gmra.mxu0 %v404
      %v579 = vpop.f32.mrf.mxu0
      %v580 = vadd.f32 0.0, %v579
      %v581 = vpop.f32.mrf.mxu0
      %582 = vmatprep.mubr.f32.mxu0 0.0
      %583 = vmatmul.mubr.f32.gmra.mxu0 %v407
      %v584 = vpop.f32.mrf.mxu0
      %v585 = vadd.f32 0.0, %v584
      %v586 = vpop.f32.mrf.mxu0
      %587 = vmatprep.mubr.f32.mxu0 0.0
      %588 = vmatmul.mubr.f32.gmra.mxu0 %v410
      %v589 = vpop.f32.mrf.mxu0
      %v590 = vadd.f32 0.0, %v589
      %v591 = vpop.f32.mrf.mxu0
      %592 = vmatprep.mubr.f32.mxu0 0.0
      %593 = vmatmul.mubr.f32.gmra.mxu0 %v413
      %v594 = vpop.f32.mrf.mxu0
      %v595 = vadd.f32 0.0, %v594
      %v596 = vpop.f32.mrf.mxu0
      %597 = vmatprep.mubr.f32.mxu0 0.0
      %598 = vmatmul.mubr.f32.gmra.mxu0 %v416
      %v599 = vpop.f32.mrf.mxu0
      %v600 = vadd.f32 0.0, %v599
      %v601 = vpop.f32.mrf.mxu0
      %602 = vmatprep.mubr.f32.mxu0 0.0
      %603 = vmatmul.mubr.f32.gmra.mxu0 %v419
      %v604 = vpop.f32.mrf.mxu0
      %v605 = vadd.f32 0.0, %v604
      %v606 = vpop.f32.mrf.mxu0
      %607 = vmatprep.mubr.f32.mxu0 0.0
      %608 = vmatmul.mubr.f32.gmra.mxu0 %v422
      %v609 = vpop.f32.mrf.mxu0
      %v610 = vadd.f32 0.0, %v609
      %v611 = vpop.f32.mrf.mxu0
      %612 = vmatprep.mubr.f32.mxu0 0.0
      %613 = vmatmul.mubr.f32.gmra.mxu0 %v425
      %v614 = vpop.f32.mrf.mxu0
      %v615 = vadd.f32 0.0, %v614
      %v616 = vpop.f32.mrf.mxu0
      %617 = vmatprep.mubr.f32.mxu0 0.0
      %618 = vmatmul.mubr.f32.gmra.mxu0 %v428
      %v619 = vpop.f32.mrf.mxu0
      %v620 = vadd.f32 0.0, %v619
      %v621 = vpop.f32.mrf.mxu0
      %622 = vmatprep.mubr.f32.mxu0 0.0
      %623 = vmatmul.mubr.f32.gmra.mxu0 %v431
      %v624 = vpop.f32.mrf.mxu0
      %v625 = vadd.f32 0.0, %v624
      %v626 = vpop.f32.mrf.mxu0
      %627 = vmatprep.mubr.f32.mxu0 0.0
      %628 = vmatmul.mubr.f32.gmra.mxu0 %v434
      %v629 = vpop.f32.mrf.mxu0
      %v630 = vadd.f32 0.0, %v629
      %v631 = vpop.f32.mrf.mxu0
      %632 = vmatprep.mubr.f32.mxu0 0.0
      %633 = vmatmul.mubr.f32.gmra.mxu0 %v437
      %v634 = vpop.f32.mrf.mxu0
      %v635 = vadd.f32 0.0, %v634
      %v636 = vpop.f32.mrf.mxu0
      %637 = vmatprep.mubr.f32.mxu0 0.0
      %638 = vmatmul.mubr.f32.gmra.mxu0 %v440
      %v639 = vpop.f32.mrf.mxu0
      %v640 = vadd.f32 0.0, %v639
      %v641 = vpop.f32.mrf.mxu0
      %642 = vmatprep.mubr.f32.mxu0 0.0
      %643 = vmatmul.mubr.f32.gmra.mxu0 %v443
      %v644 = vpop.f32.mrf.mxu0
      %v645 = vadd.f32 0.0, %v644
      %v646 = vpop.f32.mrf.mxu0
      %647 = vmatprep.mubr.f32.mxu0 0.0
      %648 = vmatmul.mubr.f32.gmra.mxu0 %v446
      %v649 = vpop.f32.mrf.mxu0
      %v650 = vadd.f32 0.0, %v649
      %v651 = vpop.f32.mrf.mxu0
      %652 = vmatprep.mubr.f32.mxu0 0.0
      %653 = vmatmul.mubr.f32.gmra.mxu0 %v449
      %v654 = vpop.f32.mrf.mxu0
      %v655 = vadd.f32 0.0, %v654
      %v656 = vpop.f32.mrf.mxu0
      %657 = vmatprep.mubr.f32.mxu0 0.0
      %658 = vmatmul.mubr.f32.gmra.mxu0 %v452
      %v659 = vpop.f32.mrf.mxu0
      %v660 = vadd.f32 0.0, %v659
      %v661 = vpop.f32.mrf.mxu0
      %662 = vmatprep.mubr.f32.mxu0 0.0
      %663 = vmatmul.mubr.f32.gmra.mxu0 %v455
      %v664 = vpop.f32.mrf.mxu0
      %v665 = vadd.f32 0.0, %v664
      %v666 = vpop.f32.mrf.mxu0
      %667 = vmatprep.mubr.f32.mxu0 0.0
      %668 = vmatmul.mubr.f32.gmra.mxu0 %v458
      %v669 = vpop.f32.mrf.mxu0
      %v670 = vadd.f32 0.0, %v669
      %v671 = vpop.f32.mrf.mxu0
      %672 = vmatprep.mubr.f32.mxu0 0.0
      %673 = vmatmul.mubr.f32.gmra.mxu0 %v461
      %v674 = vpop.f32.mrf.mxu0
      %v675 = vadd.f32 0.0, %v674
      %v676 = vpop.f32.mrf.mxu0
      %677 = vmatprep.mubr.f32.mxu0 0.0
      %678 = vmatmul.mubr.f32.gmra.mxu0 %v464
      %v679 = vpop.f32.mrf.mxu0
      %v680 = vadd.f32 0.0, %v679
      %v681 = vpop.f32.mrf.mxu0
      %682 = vmatprep.mubr.f32.mxu0 0.0
      %683 = vmatmul.mubr.f32.gmra.mxu0 %v467
      %v684 = vpop.f32.mrf.mxu0
      %v685 = vadd.f32 0.0, %v684
      %v686 = vpop.f32.mrf.mxu0
      %687 = vmatprep.mubr.f32.mxu0 0.0
      %688 = vmatmul.mubr.f32.gmra.mxu0 %v470
      %v689 = vpop.f32.mrf.mxu0
      %v690 = vadd.f32 0.0, %v689
      %v691 = vpop.f32.mrf.mxu0
      %692 = vmatprep.mubr.f32.mxu0 0.0
      %693 = vmatmul.mubr.f32.gmra.mxu0 %v473
      %v694 = vpop.f32.mrf.mxu0
      %v695 = vadd.f32 0.0, %v694
      %v696 = vpop.f32.mrf.mxu0
      %697 = vmatprep.mubr.f32.mxu0 0.0
      %698 = vmatmul.mubr.f32.gmra.mxu0 %v476
      %v699 = vpop.f32.mrf.mxu0
      %v700 = vadd.f32 0.0, %v699
      %v701 = vpop.f32.mrf.mxu0
      %702 = vmatprep.mubr.f32.mxu0 0.0
      %703 = vmatmul.mubr.f32.gmra.mxu0 %v479
      %v704 = vpop.f32.mrf.mxu0
      %v705 = vadd.f32 0.0, %v704
      %v706 = vpop.f32.mrf.mxu0
      %707 = vmatprep.mubr.f32.mxu0 0.0
      %708 = vmatmul.mubr.f32.gmra.mxu0 %v482
      %v709 = vpop.f32.mrf.mxu0
      %v710 = vadd.f32 0.0, %v709
      %v711 = vpop.f32.mrf.mxu0
      %712 = vdwg.mxu0
      %v714 = vsel %vm204, %v321, 0
      %v717 = vsel %vm204, %v322, 0
      %v720 = vsel %vm204, %v323, 0
      %v723 = vsel %vm204, %v324, 0
      %v726 = vsel %vm204, %v325, 0
      %v729 = vsel %vm204, %v326, 0
      %v732 = vsel %vm204, %v327, 0
      %v735 = vsel %vm204, %v328, 0
      %v738 = vsel %vm204, %v329, 0
      %v741 = vsel %vm204, %v330, 0
      %v744 = vsel %vm204, %v331, 0
      %v747 = vsel %vm204, %v332, 0
      %v750 = vsel %vm204, %v333, 0
      %v753 = vsel %vm204, %v334, 0
      %v756 = vsel %vm204, %v335, 0
      %v759 = vsel %vm204, %v336, 0
      %v762 = vsel %vm204, %v337, 0
      %v765 = vsel %vm204, %v338, 0
      %v768 = vsel %vm204, %v339, 0
      %v771 = vsel %vm204, %v340, 0
      %v774 = vsel %vm204, %v341, 0
      %v777 = vsel %vm204, %v342, 0
      %v780 = vsel %vm204, %v343, 0
      %v783 = vsel %vm204, %v344, 0
      %v786 = vsel %vm204, %v345, 0
      %v789 = vsel %vm204, %v346, 0
      %v792 = vsel %vm204, %v347, 0
      %v795 = vsel %vm204, %v348, 0
      %v798 = vsel %vm204, %v349, 0
      %v801 = vsel %vm204, %v350, 0
      %v804 = vsel %vm204, %v351, 0
      %v807 = vsel %vm204, %v352, 0
      %v810 = vsel %vm484, %v353, 0
      %812 = vmatprep.subr.mxu0 0.0
      %813 = vmatpush1.msra.mxu0 0.0
      %814 = vmatprep.subr.mxu0 0.0
      %815 = vmatpush1.msra.mxu0 0.0
      %816 = vmatprep.subr.mxu0 0.0
      %817 = vmatpush1.msra.mxu0 0.0
      %818 = vmatprep.subr.mxu0 0.0
      %819 = vmatpush1.msra.mxu0 0.0
      %820 = vmatprep.subr.mxu0 0.0
      %821 = vmatpush1.msra.mxu0 0.0
      %822 = vmatprep.subr.mxu0 0.0
      %823 = vmatpush1.msra.mxu0 0.0
      %824 = vmatprep.subr.mxu0 0.0
      %825 = vmatpush1.msra.mxu0 0.0
      %826 = vmatprep.subr.mxu0 0.0
      %827 = vmatpush1.msra.mxu0 0.0
      %828 = vmatprep.subr.mxu0 0.0
      %829 = vmatpush1.msra.mxu0 0.0
      %830 = vmatprep.subr.mxu0 0.0
      %831 = vmatpush1.msra.mxu0 0.0
      %832 = vmatprep.subr.mxu0 0.0
      %833 = vmatpush1.msra.mxu0 0.0
      %834 = vmatprep.subr.mxu0 0.0
      %835 = vmatpush1.msra.mxu0 0.0
      %836 = vmatprep.subr.mxu0 0.0
      %837 = vmatpush1.msra.mxu0 0.0
      %838 = vmatprep.subr.mxu0 0.0
      %839 = vmatpush1.msra.mxu0 0.0
      %840 = vmatprep.subr.mxu0 0.0
      %841 = vmatpush1.msra.mxu0 0.0
      %842 = vmatprep.subr.mxu0 0.0
      %843 = vmatpush1.msra.mxu0 %v810
      %844 = vmatprep.subr.mxu0 0.0
      %845 = vmatpush2.msra.mxu0 0.0
      %846 = vmatprep.subr.mxu0 0.0
      %847 = vmatpush2.msra.mxu0 0.0
      %848 = vmatprep.subr.mxu0 0.0
      %849 = vmatpush2.msra.mxu0 0.0
      %850 = vmatprep.subr.mxu0 0.0
      %851 = vmatpush2.msra.mxu0 0.0
      %852 = vmatprep.subr.mxu0 0.0
      %853 = vmatpush2.msra.mxu0 0.0
      %854 = vmatprep.subr.mxu0 0.0
      %855 = vmatpush2.msra.mxu0 0.0
      %856 = vmatprep.subr.mxu0 0.0
      %857 = vmatpush2.msra.mxu0 0.0
      %858 = vmatprep.subr.mxu0 0.0
      %859 = vmatpush2.msra.mxu0 0.0
      %860 = vmatprep.subr.mxu0 0.0
      %861 = vmatpush2.msra.mxu0 0.0
      %862 = vmatprep.subr.mxu0 0.0
      %863 = vmatpush2.msra.mxu0 0.0
      %864 = vmatprep.subr.mxu0 0.0
      %865 = vmatpush2.msra.mxu0 0.0
      %866 = vmatprep.subr.mxu0 0.0
      %867 = vmatpush2.msra.mxu0 0.0
      %868 = vmatprep.subr.mxu0 0.0
      %869 = vmatpush2.msra.mxu0 0.0
      %870 = vmatprep.subr.mxu0 0.0
      %871 = vmatpush2.msra.mxu0 0.0
      %872 = vmatprep.subr.mxu0 0.0
      %873 = vmatpush2.msra.mxu0 0.0
      %874 = vmatprep.subr.mxu0 0.0
      %875 = vmatpush2.msra.mxu0 0.0
      %876 = vmatprep.mubr.f32.mxu0 0.0
      %877 = vmatmul.mubr.f32.gmra.mxu0 %v714
      %v878 = vpop.f32.mrf.mxu0
      %v879 = vadd.f32 %v555, %v878
      %v880 = vpop.f32.mrf.mxu0
      %881 = vmatprep.mubr.f32.mxu0 0.0
      %882 = vmatmul.mubr.f32.gmra.mxu0 %v717
      %v883 = vpop.f32.mrf.mxu0
      %v884 = vadd.f32 %v560, %v883
      %v885 = vpop.f32.mrf.mxu0
      %886 = vmatprep.mubr.f32.mxu0 0.0
      %887 = vmatmul.mubr.f32.gmra.mxu0 %v720
      %v888 = vpop.f32.mrf.mxu0
      %v889 = vadd.f32 %v565, %v888
      %v890 = vpop.f32.mrf.mxu0
      %891 = vmatprep.mubr.f32.mxu0 0.0
      %892 = vmatmul.mubr.f32.gmra.mxu0 %v723
      %v893 = vpop.f32.mrf.mxu0
      %v894 = vadd.f32 %v570, %v893
      %v895 = vpop.f32.mrf.mxu0
      %896 = vmatprep.mubr.f32.mxu0 0.0
      %897 = vmatmul.mubr.f32.gmra.mxu0 %v726
      %v898 = vpop.f32.mrf.mxu0
      %v899 = vadd.f32 %v575, %v898
      %v900 = vpop.f32.mrf.mxu0
      %901 = vmatprep.mubr.f32.mxu0 0.0
      %902 = vmatmul.mubr.f32.gmra.mxu0 %v729
      %v903 = vpop.f32.mrf.mxu0
      %v904 = vadd.f32 %v580, %v903
      %v905 = vpop.f32.mrf.mxu0
      %906 = vmatprep.mubr.f32.mxu0 0.0
      %907 = vmatmul.mubr.f32.gmra.mxu0 %v732
      %v908 = vpop.f32.mrf.mxu0
      %v909 = vadd.f32 %v585, %v908
      %v910 = vpop.f32.mrf.mxu0
      %911 = vmatprep.mubr.f32.mxu0 0.0
      %912 = vmatmul.mubr.f32.gmra.mxu0 %v735
      %v913 = vpop.f32.mrf.mxu0
      %v914 = vadd.f32 %v590, %v913
      %v915 = vpop.f32.mrf.mxu0
      %916 = vmatprep.mubr.f32.mxu0 0.0
      %917 = vmatmul.mubr.f32.gmra.mxu0 %v738
      %v918 = vpop.f32.mrf.mxu0
      %v919 = vadd.f32 %v595, %v918
      %v920 = vpop.f32.mrf.mxu0
      %921 = vmatprep.mubr.f32.mxu0 0.0
      %922 = vmatmul.mubr.f32.gmra.mxu0 %v741
      %v923 = vpop.f32.mrf.mxu0
      %v924 = vadd.f32 %v600, %v923
      %v925 = vpop.f32.mrf.mxu0
      %926 = vmatprep.mubr.f32.mxu0 0.0
      %927 = vmatmul.mubr.f32.gmra.mxu0 %v744
      %v928 = vpop.f32.mrf.mxu0
      %v929 = vadd.f32 %v605, %v928
      %v930 = vpop.f32.mrf.mxu0
      %931 = vmatprep.mubr.f32.mxu0 0.0
      %932 = vmatmul.mubr.f32.gmra.mxu0 %v747
      %v933 = vpop.f32.mrf.mxu0
      %v934 = vadd.f32 %v610, %v933
      %v935 = vpop.f32.mrf.mxu0
      %936 = vmatprep.mubr.f32.mxu0 0.0
      %937 = vmatmul.mubr.f32.gmra.mxu0 %v750
      %v938 = vpop.f32.mrf.mxu0
      %v939 = vadd.f32 %v615, %v938
      %v940 = vpop.f32.mrf.mxu0
      %941 = vmatprep.mubr.f32.mxu0 0.0
      %942 = vmatmul.mubr.f32.gmra.mxu0 %v753
      %v943 = vpop.f32.mrf.mxu0
      %v944 = vadd.f32 %v620, %v943
      %v945 = vpop.f32.mrf.mxu0
      %946 = vmatprep.mubr.f32.mxu0 0.0
      %947 = vmatmul.mubr.f32.gmra.mxu0 %v756
      %v948 = vpop.f32.mrf.mxu0
      %v949 = vadd.f32 %v625, %v948
      %v950 = vpop.f32.mrf.mxu0
      %951 = vmatprep.mubr.f32.mxu0 0.0
      %952 = vmatmul.mubr.f32.gmra.mxu0 %v759
      %v953 = vpop.f32.mrf.mxu0
      %v954 = vadd.f32 %v630, %v953
      %v955 = vpop.f32.mrf.mxu0
      %956 = vmatprep.mubr.f32.mxu0 0.0
      %957 = vmatmul.mubr.f32.gmra.mxu0 %v762
      %v958 = vpop.f32.mrf.mxu0
      %v959 = vadd.f32 %v635, %v958
      %v960 = vpop.f32.mrf.mxu0
      %961 = vmatprep.mubr.f32.mxu0 0.0
      %962 = vmatmul.mubr.f32.gmra.mxu0 %v765
      %v963 = vpop.f32.mrf.mxu0
      %v964 = vadd.f32 %v640, %v963
      %v965 = vpop.f32.mrf.mxu0
      %966 = vmatprep.mubr.f32.mxu0 0.0
      %967 = vmatmul.mubr.f32.gmra.mxu0 %v768
      %v968 = vpop.f32.mrf.mxu0
      %v969 = vadd.f32 %v645, %v968
      %v970 = vpop.f32.mrf.mxu0
      %971 = vmatprep.mubr.f32.mxu0 0.0
      %972 = vmatmul.mubr.f32.gmra.mxu0 %v771
      %v973 = vpop.f32.mrf.mxu0
      %v974 = vadd.f32 %v650, %v973
      %v975 = vpop.f32.mrf.mxu0
      %976 = vmatprep.mubr.f32.mxu0 0.0
      %977 = vmatmul.mubr.f32.gmra.mxu0 %v774
      %v978 = vpop.f32.mrf.mxu0
      %v979 = vadd.f32 %v655, %v978
      %v980 = vpop.f32.mrf.mxu0
      %981 = vmatprep.mubr.f32.mxu0 0.0
      %982 = vmatmul.mubr.f32.gmra.mxu0 %v777
      %v983 = vpop.f32.mrf.mxu0
      %v984 = vadd.f32 %v660, %v983
      %v985 = vpop.f32.mrf.mxu0
      %986 = vmatprep.mubr.f32.mxu0 0.0
      %987 = vmatmul.mubr.f32.gmra.mxu0 %v780
      %v988 = vpop.f32.mrf.mxu0
      %v989 = vadd.f32 %v665, %v988
      %v990 = vpop.f32.mrf.mxu0
      %991 = vmatprep.mubr.f32.mxu0 0.0
      %992 = vmatmul.mubr.f32.gmra.mxu0 %v783
      %v993 = vpop.f32.mrf.mxu0
      %v994 = vadd.f32 %v670, %v993
      %v995 = vpop.f32.mrf.mxu0
      %996 = vmatprep.mubr.f32.mxu0 0.0
      %997 = vmatmul.mubr.f32.gmra.mxu0 %v786
      %v998 = vpop.f32.mrf.mxu0
      %v999 = vadd.f32 %v675, %v998
      %v1000 = vpop.f32.mrf.mxu0
      %1001 = vmatprep.mubr.f32.mxu0 0.0
      %1002 = vmatmul.mubr.f32.gmra.mxu0 %v789
      %v1003 = vpop.f32.mrf.mxu0
      %v1004 = vadd.f32 %v680, %v1003
      %v1005 = vpop.f32.mrf.mxu0
      %1006 = vmatprep.mubr.f32.mxu0 0.0
      %1007 = vmatmul.mubr.f32.gmra.mxu0 %v792
      %v1008 = vpop.f32.mrf.mxu0
      %v1009 = vadd.f32 %v685, %v1008
      %v1010 = vpop.f32.mrf.mxu0
      %1011 = vmatprep.mubr.f32.mxu0 0.0
      %1012 = vmatmul.mubr.f32.gmra.mxu0 %v795
      %v1013 = vpop.f32.mrf.mxu0
      %v1014 = vadd.f32 %v690, %v1013
      %v1015 = vpop.f32.mrf.mxu0
      %1016 = vmatprep.mubr.f32.mxu0 0.0
      %1017 = vmatmul.mubr.f32.gmra.mxu0 %v798
      %v1018 = vpop.f32.mrf.mxu0
      %v1019 = vadd.f32 %v695, %v1018
      %v1020 = vpop.f32.mrf.mxu0
      %1021 = vmatprep.mubr.f32.mxu0 0.0
      %1022 = vmatmul.mubr.f32.gmra.mxu0 %v801
      %v1023 = vpop.f32.mrf.mxu0
      %v1024 = vadd.f32 %v700, %v1023
      %v1025 = vpop.f32.mrf.mxu0
      %1026 = vmatprep.mubr.f32.mxu0 0.0
      %1027 = vmatmul.mubr.f32.gmra.mxu0 %v804
      %v1028 = vpop.f32.mrf.mxu0
      %v1029 = vadd.f32 %v705, %v1028
      %v1030 = vpop.f32.mrf.mxu0
      %1031 = vmatprep.mubr.f32.mxu0 0.0
      %1032 = vmatmul.mubr.f32.gmra.mxu0 %v807
      %v1033 = vpop.f32.mrf.mxu0
      %v1034 = vadd.f32 %v710, %v1033
      %v1035 = vpop.f32.mrf.mxu0
      %1036 = vdwg.mxu0
      %v1037 = vld [vmem:[#allocation2 + $0x2] sm:$0xff]
      %v1038 = vld [vmem:[#allocation2 + $0xa] sm:$0xff]
      %v1039 = vld [vmem:[#allocation2 + $0x1a] sm:$0xff]
      %v1040 = vld [vmem:[#allocation2 + $0x22] sm:$0xff]
      %v1041 = vld [vmem:[#allocation2 + $0x32] sm:$0xff]
      %v1042 = vld [vmem:[#allocation2 + $0x3a] sm:$0xff]
      %v1043 = vld [vmem:[#allocation2 + $0x4a] sm:$0xff]
      %v1044 = vld [vmem:[#allocation2 + $0x52] sm:$0xff]
      %v1045 = vld [vmem:[#allocation2 + $0x62] sm:$0xff]
      %v1046 = vld [vmem:[#allocation2 + $0x6a] sm:$0xff]
      %v1047 = vld [vmem:[#allocation2 + $0x7a] sm:$0xff]
      %v1048 = vld [vmem:[#allocation2 + $0x82] sm:$0xff]
      %v1049 = vld [vmem:[#allocation2 + $0x92] sm:$0xff]
      %v1050 = vld [vmem:[#allocation2 + $0x9a] sm:$0xff]
      %v1051 = vld [vmem:[#allocation2 + $0xaa] sm:$0xff]
      %v1052 = vld [vmem:[#allocation2 + $0xb2] sm:$0xff]
      %v1053 = vld [vmem:[#allocation2 + $0xc2] sm:$0xff]
      %v1054 = vld [vmem:[#allocation2 + $0xca] sm:$0xff]
      %v1055 = vld [vmem:[#allocation2 + $0xda] sm:$0xff]
      %v1056 = vld [vmem:[#allocation2 + $0xe2] sm:$0xff]
      %v1057 = vld [vmem:[#allocation2 + $0xf2] sm:$0xff]
      %v1058 = vld [vmem:[#allocation2 + $0xfa] sm:$0xff]
      %v1059 = vld [vmem:[#allocation2 + $0x10a] sm:$0xff]
      %v1060 = vld [vmem:[#allocation2 + $0x112] sm:$0xff]
      %v1061 = vld [vmem:[#allocation2 + $0x122] sm:$0xff]
      %v1062 = vld [vmem:[#allocation2 + $0x12a] sm:$0xff]
      %v1063 = vld [vmem:[#allocation2 + $0x13a] sm:$0xff]
      %v1064 = vld [vmem:[#allocation2 + $0x142] sm:$0xff]
      %v1065 = vld [vmem:[#allocation2 + $0x152] sm:$0xff]
      %v1066 = vld [vmem:[#allocation2 + $0x15a] sm:$0xff]
      %v1067 = vld [vmem:[#allocation2 + $0x16a] sm:$0xff]
      %v1068 = vld [vmem:[#allocation2 + $0x172] sm:$0xff]
      %s1069 = scalar_lea.vmem %s1, 8
      %v1070 = vld [vmem:[%s1069] sm:$0xf]
      %v1072 = vsel %vm204, %v1037, 0
      %v1075 = vsel %vm204, %v1038, 0
      %v1078 = vsel %vm204, %v1039, 0
      %v1081 = vsel %vm204, %v1040, 0
      %v1084 = vsel %vm204, %v1041, 0
      %v1087 = vsel %vm204, %v1042, 0
      %v1090 = vsel %vm204, %v1043, 0
      %v1093 = vsel %vm204, %v1044, 0
      %v1096 = vsel %vm204, %v1045, 0
      %v1099 = vsel %vm204, %v1046, 0
      %v1102 = vsel %vm204, %v1047, 0
      %v1105 = vsel %vm204, %v1048, 0
      %v1108 = vsel %vm204, %v1049, 0
      %v1111 = vsel %vm204, %v1050, 0
      %v1114 = vsel %vm204, %v1051, 0
      %v1117 = vsel %vm204, %v1052, 0
      %v1120 = vsel %vm204, %v1053, 0
      %v1123 = vsel %vm204, %v1054, 0
      %v1126 = vsel %vm204, %v1055, 0
      %v1129 = vsel %vm204, %v1056, 0
      %v1132 = vsel %vm204, %v1057, 0
      %v1135 = vsel %vm204, %v1058, 0
      %v1138 = vsel %vm204, %v1059, 0
      %v1141 = vsel %vm204, %v1060, 0
      %v1144 = vsel %vm204, %v1061, 0
      %v1147 = vsel %vm204, %v1062, 0
      %v1150 = vsel %vm204, %v1063, 0
      %v1153 = vsel %vm204, %v1064, 0
      %v1156 = vsel %vm204, %v1065, 0
      %v1159 = vsel %vm204, %v1066, 0
      %v1162 = vsel %vm204, %v1067, 0
      %v1165 = vsel %vm204, %v1068, 0
      %v1168 = vsel %vm484, %v1070, 0
      %1170 = vmatprep.subr.mxu0 0.0
      %1171 = vmatpush1.msra.mxu0 0.0
      %1172 = vmatprep.subr.mxu0 0.0
      %1173 = vmatpush1.msra.mxu0 0.0
      %1174 = vmatprep.subr.mxu0 0.0
      %1175 = vmatpush1.msra.mxu0 0.0
      %1176 = vmatprep.subr.mxu0 0.0
      %1177 = vmatpush1.msra.mxu0 0.0
      %1178 = vmatprep.subr.mxu0 0.0
      %1179 = vmatpush1.msra.mxu0 0.0
      %1180 = vmatprep.subr.mxu0 0.0
      %1181 = vmatpush1.msra.mxu0 0.0
      %1182 = vmatprep.subr.mxu0 0.0
      %1183 = vmatpush1.msra.mxu0 0.0
      %1184 = vmatprep.subr.mxu0 0.0
      %1185 = vmatpush1.msra.mxu0 0.0
      %1186 = vmatprep.subr.mxu0 0.0
      %1187 = vmatpush1.msra.mxu0 0.0
      %1188 = vmatprep.subr.mxu0 0.0
      %1189 = vmatpush1.msra.mxu0 0.0
      %1190 = vmatprep.subr.mxu0 0.0
      %1191 = vmatpush1.msra.mxu0 0.0
      %1192 = vmatprep.subr.mxu0 0.0
      %1193 = vmatpush1.msra.mxu0 0.0
      %1194 = vmatprep.subr.mxu0 0.0
      %1195 = vmatpush1.msra.mxu0 0.0
      %1196 = vmatprep.subr.mxu0 0.0
      %1197 = vmatpush1.msra.mxu0 0.0
      %1198 = vmatprep.subr.mxu0 0.0
      %1199 = vmatpush1.msra.mxu0 0.0
      %1200 = vmatprep.subr.mxu0 0.0
      %1201 = vmatpush1.msra.mxu0 %v1168
      %1202 = vmatprep.subr.mxu0 0.0
      %1203 = vmatpush2.msra.mxu0 0.0
      %1204 = vmatprep.subr.mxu0 0.0
      %1205 = vmatpush2.msra.mxu0 0.0
      %1206 = vmatprep.subr.mxu0 0.0
      %1207 = vmatpush2.msra.mxu0 0.0
      %1208 = vmatprep.subr.mxu0 0.0
      %1209 = vmatpush2.msra.mxu0 0.0
      %1210 = vmatprep.subr.mxu0 0.0
      %1211 = vmatpush2.msra.mxu0 0.0
      %1212 = vmatprep.subr.mxu0 0.0
      %1213 = vmatpush2.msra.mxu0 0.0
      %1214 = vmatprep.subr.mxu0 0.0
      %1215 = vmatpush2.msra.mxu0 0.0
      %1216 = vmatprep.subr.mxu0 0.0
      %1217 = vmatpush2.msra.mxu0 0.0
      %1218 = vmatprep.subr.mxu0 0.0
      %1219 = vmatpush2.msra.mxu0 0.0
      %1220 = vmatprep.subr.mxu0 0.0
      %1221 = vmatpush2.msra.mxu0 0.0
      %1222 = vmatprep.subr.mxu0 0.0
      %1223 = vmatpush2.msra.mxu0 0.0
      %1224 = vmatprep.subr.mxu0 0.0
      %1225 = vmatpush2.msra.mxu0 0.0
      %1226 = vmatprep.subr.mxu0 0.0
      %1227 = vmatpush2.msra.mxu0 0.0
      %1228 = vmatprep.subr.mxu0 0.0
      %1229 = vmatpush2.msra.mxu0 0.0
      %1230 = vmatprep.subr.mxu0 0.0
      %1231 = vmatpush2.msra.mxu0 0.0
      %1232 = vmatprep.subr.mxu0 0.0
      %1233 = vmatpush2.msra.mxu0 0.0
      %1234 = vmatprep.mubr.f32.mxu0 0.0
      %1235 = vmatmul.mubr.f32.gmra.mxu0 %v1072
      %v1236 = vpop.f32.mrf.mxu0
      %v1237 = vadd.f32 0.0, %v1236
      %v1238 = vpop.f32.mrf.mxu0
      %1239 = vmatprep.mubr.f32.mxu0 0.0
      %1240 = vmatmul.mubr.f32.gmra.mxu0 %v1075
      %v1241 = vpop.f32.mrf.mxu0
      %v1242 = vadd.f32 0.0, %v1241
      %v1243 = vpop.f32.mrf.mxu0
      %1244 = vmatprep.mubr.f32.mxu0 0.0
      %1245 = vmatmul.mubr.f32.gmra.mxu0 %v1078
      %v1246 = vpop.f32.mrf.mxu0
      %v1247 = vadd.f32 0.0, %v1246
      %v1248 = vpop.f32.mrf.mxu0
      %1249 = vmatprep.mubr.f32.mxu0 0.0
      %1250 = vmatmul.mubr.f32.gmra.mxu0 %v1081
      %v1251 = vpop.f32.mrf.mxu0
      %v1252 = vadd.f32 0.0, %v1251
      %v1253 = vpop.f32.mrf.mxu0
      %1254 = vmatprep.mubr.f32.mxu0 0.0
      %1255 = vmatmul.mubr.f32.gmra.mxu0 %v1084
      %v1256 = vpop.f32.mrf.mxu0
      %v1257 = vadd.f32 0.0, %v1256
      %v1258 = vpop.f32.mrf.mxu0
      %1259 = vmatprep.mubr.f32.mxu0 0.0
      %1260 = vmatmul.mubr.f32.gmra.mxu0 %v1087
      %v1261 = vpop.f32.mrf.mxu0
      %v1262 = vadd.f32 0.0, %v1261
      %v1263 = vpop.f32.mrf.mxu0
      %1264 = vmatprep.mubr.f32.mxu0 0.0
      %1265 = vmatmul.mubr.f32.gmra.mxu0 %v1090
      %v1266 = vpop.f32.mrf.mxu0
      %v1267 = vadd.f32 0.0, %v1266
      %v1268 = vpop.f32.mrf.mxu0
      %1269 = vmatprep.mubr.f32.mxu0 0.0
      %1270 = vmatmul.mubr.f32.gmra.mxu0 %v1093
      %v1271 = vpop.f32.mrf.mxu0
      %v1272 = vadd.f32 0.0, %v1271
      %v1273 = vpop.f32.mrf.mxu0
      %1274 = vmatprep.mubr.f32.mxu0 0.0
      %1275 = vmatmul.mubr.f32.gmra.mxu0 %v1096
      %v1276 = vpop.f32.mrf.mxu0
      %v1277 = vadd.f32 0.0, %v1276
      %v1278 = vpop.f32.mrf.mxu0
      %1279 = vmatprep.mubr.f32.mxu0 0.0
      %1280 = vmatmul.mubr.f32.gmra.mxu0 %v1099
      %v1281 = vpop.f32.mrf.mxu0
      %v1282 = vadd.f32 0.0, %v1281
      %v1283 = vpop.f32.mrf.mxu0
      %1284 = vmatprep.mubr.f32.mxu0 0.0
      %1285 = vmatmul.mubr.f32.gmra.mxu0 %v1102
      %v1286 = vpop.f32.mrf.mxu0
      %v1287 = vadd.f32 0.0, %v1286
      %v1288 = vpop.f32.mrf.mxu0
      %1289 = vmatprep.mubr.f32.mxu0 0.0
      %1290 = vmatmul.mubr.f32.gmra.mxu0 %v1105
      %v1291 = vpop.f32.mrf.mxu0
      %v1292 = vadd.f32 0.0, %v1291
      %v1293 = vpop.f32.mrf.mxu0
      %1294 = vmatprep.mubr.f32.mxu0 0.0
      %1295 = vmatmul.mubr.f32.gmra.mxu0 %v1108
      %v1296 = vpop.f32.mrf.mxu0
      %v1297 = vadd.f32 0.0, %v1296
      %v1298 = vpop.f32.mrf.mxu0
      %1299 = vmatprep.mubr.f32.mxu0 0.0
      %1300 = vmatmul.mubr.f32.gmra.mxu0 %v1111
      %v1301 = vpop.f32.mrf.mxu0
      %v1302 = vadd.f32 0.0, %v1301
      %v1303 = vpop.f32.mrf.mxu0
      %1304 = vmatprep.mubr.f32.mxu0 0.0
      %1305 = vmatmul.mubr.f32.gmra.mxu0 %v1114
      %v1306 = vpop.f32.mrf.mxu0
      %v1307 = vadd.f32 0.0, %v1306
      %v1308 = vpop.f32.mrf.mxu0
      %1309 = vmatprep.mubr.f32.mxu0 0.0
      %1310 = vmatmul.mubr.f32.gmra.mxu0 %v1117
      %v1311 = vpop.f32.mrf.mxu0
      %v1312 = vadd.f32 0.0, %v1311
      %v1313 = vpop.f32.mrf.mxu0
      %1314 = vmatprep.mubr.f32.mxu0 0.0
      %1315 = vmatmul.mubr.f32.gmra.mxu0 %v1120
      %v1316 = vpop.f32.mrf.mxu0
      %v1317 = vadd.f32 0.0, %v1316
      %v1318 = vpop.f32.mrf.mxu0
      %1319 = vmatprep.mubr.f32.mxu0 0.0
      %1320 = vmatmul.mubr.f32.gmra.mxu0 %v1123
      %v1321 = vpop.f32.mrf.mxu0
      %v1322 = vadd.f32 0.0, %v1321
      %v1323 = vpop.f32.mrf.mxu0
      %1324 = vmatprep.mubr.f32.mxu0 0.0
      %1325 = vmatmul.mubr.f32.gmra.mxu0 %v1126
      %v1326 = vpop.f32.mrf.mxu0
      %v1327 = vadd.f32 0.0, %v1326
      %v1328 = vpop.f32.mrf.mxu0
      %1329 = vmatprep.mubr.f32.mxu0 0.0
      %1330 = vmatmul.mubr.f32.gmra.mxu0 %v1129
      %v1331 = vpop.f32.mrf.mxu0
      %v1332 = vadd.f32 0.0, %v1331
      %v1333 = vpop.f32.mrf.mxu0
      %1334 = vmatprep.mubr.f32.mxu0 0.0
      %1335 = vmatmul.mubr.f32.gmra.mxu0 %v1132
      %v1336 = vpop.f32.mrf.mxu0
      %v1337 = vadd.f32 0.0, %v1336
      %v1338 = vpop.f32.mrf.mxu0
      %1339 = vmatprep.mubr.f32.mxu0 0.0
      %1340 = vmatmul.mubr.f32.gmra.mxu0 %v1135
      %v1341 = vpop.f32.mrf.mxu0
      %v1342 = vadd.f32 0.0, %v1341
      %v1343 = vpop.f32.mrf.mxu0
      %1344 = vmatprep.mubr.f32.mxu0 0.0
      %1345 = vmatmul.mubr.f32.gmra.mxu0 %v1138
      %v1346 = vpop.f32.mrf.mxu0
      %v1347 = vadd.f32 0.0, %v1346
      %v1348 = vpop.f32.mrf.mxu0
      %1349 = vmatprep.mubr.f32.mxu0 0.0
      %1350 = vmatmul.mubr.f32.gmra.mxu0 %v1141
      %v1351 = vpop.f32.mrf.mxu0
      %v1352 = vadd.f32 0.0, %v1351
      %v1353 = vpop.f32.mrf.mxu0
      %1354 = vmatprep.mubr.f32.mxu0 0.0
      %1355 = vmatmul.mubr.f32.gmra.mxu0 %v1144
      %v1356 = vpop.f32.mrf.mxu0
      %v1357 = vadd.f32 0.0, %v1356
      %v1358 = vpop.f32.mrf.mxu0
      %1359 = vmatprep.mubr.f32.mxu0 0.0
      %1360 = vmatmul.mubr.f32.gmra.mxu0 %v1147
      %v1361 = vpop.f32.mrf.mxu0
      %v1362 = vadd.f32 0.0, %v1361
      %v1363 = vpop.f32.mrf.mxu0
      %1364 = vmatprep.mubr.f32.mxu0 0.0
      %1365 = vmatmul.mubr.f32.gmra.mxu0 %v1150
      %v1366 = vpop.f32.mrf.mxu0
      %v1367 = vadd.f32 0.0, %v1366
      %v1368 = vpop.f32.mrf.mxu0
      %1369 = vmatprep.mubr.f32.mxu0 0.0
      %1370 = vmatmul.mubr.f32.gmra.mxu0 %v1153
      %v1371 = vpop.f32.mrf.mxu0
      %v1372 = vadd.f32 0.0, %v1371
      %v1373 = vpop.f32.mrf.mxu0
      %1374 = vmatprep.mubr.f32.mxu0 0.0
      %1375 = vmatmul.mubr.f32.gmra.mxu0 %v1156
      %v1376 = vpop.f32.mrf.mxu0
      %v1377 = vadd.f32 0.0, %v1376
      %v1378 = vpop.f32.mrf.mxu0
      %1379 = vmatprep.mubr.f32.mxu0 0.0
      %1380 = vmatmul.mubr.f32.gmra.mxu0 %v1159
      %v1381 = vpop.f32.mrf.mxu0
      %v1382 = vadd.f32 0.0, %v1381
      %v1383 = vpop.f32.mrf.mxu0
      %1384 = vmatprep.mubr.f32.mxu0 0.0
      %1385 = vmatmul.mubr.f32.gmra.mxu0 %v1162
      %v1386 = vpop.f32.mrf.mxu0
      %v1387 = vadd.f32 0.0, %v1386
      %v1388 = vpop.f32.mrf.mxu0
      %1389 = vmatprep.mubr.f32.mxu0 0.0
      %1390 = vmatmul.mubr.f32.gmra.mxu0 %v1165
      %v1391 = vpop.f32.mrf.mxu0
      %v1392 = vadd.f32 0.0, %v1391
      %v1393 = vpop.f32.mrf.mxu0
      %1394 = vdwg.mxu0
      %v1395 = vadd.f32 %v879, %v1237
      %v1396 = vadd.f32 %v884, %v1242
      %v1397 = vadd.f32 %v889, %v1247
      %v1398 = vadd.f32 %v894, %v1252
      %v1399 = vadd.f32 %v899, %v1257
      %v1400 = vadd.f32 %v904, %v1262
      %v1401 = vadd.f32 %v909, %v1267
      %v1402 = vadd.f32 %v914, %v1272
      %v1403 = vadd.f32 %v919, %v1277
      %v1404 = vadd.f32 %v924, %v1282
      %v1405 = vadd.f32 %v929, %v1287
      %v1406 = vadd.f32 %v934, %v1292
      %v1407 = vadd.f32 %v939, %v1297
      %v1408 = vadd.f32 %v944, %v1302
      %v1409 = vadd.f32 %v949, %v1307
      %v1410 = vadd.f32 %v954, %v1312
      %v1411 = vadd.f32 %v959, %v1317
      %v1412 = vadd.f32 %v964, %v1322
      %v1413 = vadd.f32 %v969, %v1327
      %v1414 = vadd.f32 %v974, %v1332
      %v1415 = vadd.f32 %v979, %v1337
      %v1416 = vadd.f32 %v984, %v1342
      %v1417 = vadd.f32 %v989, %v1347
      %v1418 = vadd.f32 %v994, %v1352
      %v1419 = vadd.f32 %v999, %v1357
      %v1420 = vadd.f32 %v1004, %v1362
      %v1421 = vadd.f32 %v1009, %v1367
      %v1422 = vadd.f32 %v1014, %v1372
      %v1423 = vadd.f32 %v1019, %v1377
      %v1424 = vadd.f32 %v1024, %v1382
      %v1425 = vadd.f32 %v1029, %v1387
      %v1426 = vadd.f32 %v1034, %v1392
      %v1427 = vld [vmem:[%s203] sm:$0xff]
      %v1428 = vld [vmem:[%s203 + $0x8] sm:$0xff]
      %v1429 = vld [vmem:[%s203 + $0x18] sm:$0xff]
      %v1430 = vld [vmem:[%s203 + $0x20] sm:$0xff]
      %v1431 = vld [vmem:[%s203 + $0x30] sm:$0xff]
      %v1432 = vld [vmem:[%s203 + $0x38] sm:$0xff]
      %v1433 = vld [vmem:[%s203 + $0x48] sm:$0xff]
      %v1434 = vld [vmem:[%s203 + $0x50] sm:$0xff]
      %v1435 = vld [vmem:[%s203 + $0x60] sm:$0xff]
      %v1436 = vld [vmem:[%s203 + $0x68] sm:$0xff]
      %v1437 = vld [vmem:[%s203 + $0x78] sm:$0xff]
      %v1438 = vld [vmem:[%s203 + $0x80] sm:$0xff]
      %v1439 = vld [vmem:[%s203 + $0x90] sm:$0xff]
      %v1440 = vld [vmem:[%s203 + $0x98] sm:$0xff]
      %v1441 = vld [vmem:[%s203 + $0xa8] sm:$0xff]
      %v1442 = vld [vmem:[%s203 + $0xb0] sm:$0xff]
      %v1443 = vld [vmem:[%s203 + $0xc0] sm:$0xff]
      %v1444 = vld [vmem:[%s203 + $0xc8] sm:$0xff]
      %v1445 = vld [vmem:[%s203 + $0xd8] sm:$0xff]
      %v1446 = vld [vmem:[%s203 + $0xe0] sm:$0xff]
      %v1447 = vld [vmem:[%s203 + $0xf0] sm:$0xff]
      %v1448 = vld [vmem:[%s203 + $0xf8] sm:$0xff]
      %v1449 = vld [vmem:[%s203 + $0x108] sm:$0xff]
      %v1450 = vld [vmem:[%s203 + $0x110] sm:$0xff]
      %v1451 = vld [vmem:[%s203 + $0x120] sm:$0xff]
      %v1452 = vld [vmem:[%s203 + $0x128] sm:$0xff]
      %v1453 = vld [vmem:[%s203 + $0x138] sm:$0xff]
      %v1454 = vld [vmem:[%s203 + $0x140] sm:$0xff]
      %v1455 = vld [vmem:[%s203 + $0x150] sm:$0xff]
      %v1456 = vld [vmem:[%s203 + $0x158] sm:$0xff]
      %v1457 = vld [vmem:[%s203 + $0x168] sm:$0xff]
      %v1458 = vld [vmem:[%s203 + $0x170] sm:$0xff]
      %s1459 = scalar_lea.vmem %s1, 12
      %v1460 = vld [vmem:[%s1459] sm:$0xf]
      %v1462 = vsel %vm204, %v1427, 0
      %v1465 = vsel %vm204, %v1428, 0
      %v1468 = vsel %vm204, %v1429, 0
      %v1471 = vsel %vm204, %v1430, 0
      %v1474 = vsel %vm204, %v1431, 0
      %v1477 = vsel %vm204, %v1432, 0
      %v1480 = vsel %vm204, %v1433, 0
      %v1483 = vsel %vm204, %v1434, 0
      %v1486 = vsel %vm204, %v1435, 0
      %v1489 = vsel %vm204, %v1436, 0
      %v1492 = vsel %vm204, %v1437, 0
      %v1495 = vsel %vm204, %v1438, 0
      %v1498 = vsel %vm204, %v1439, 0
      %v1501 = vsel %vm204, %v1440, 0
      %v1504 = vsel %vm204, %v1441, 0
      %v1507 = vsel %vm204, %v1442, 0
      %v1510 = vsel %vm204, %v1443, 0
      %v1513 = vsel %vm204, %v1444, 0
      %v1516 = vsel %vm204, %v1445, 0
      %v1519 = vsel %vm204, %v1446, 0
      %v1522 = vsel %vm204, %v1447, 0
      %v1525 = vsel %vm204, %v1448, 0
      %v1528 = vsel %vm204, %v1449, 0
      %v1531 = vsel %vm204, %v1450, 0
      %v1534 = vsel %vm204, %v1451, 0
      %v1537 = vsel %vm204, %v1452, 0
      %v1540 = vsel %vm204, %v1453, 0
      %v1543 = vsel %vm204, %v1454, 0
      %v1546 = vsel %vm204, %v1455, 0
      %v1549 = vsel %vm204, %v1456, 0
      %v1552 = vsel %vm204, %v1457, 0
      %v1555 = vsel %vm204, %v1458, 0
      %v1558 = vsel %vm484, %v1460, 0
      %1560 = vmatprep.subr.mxu0 0.0
      %1561 = vmatpush1.msra.mxu0 0.0
      %1562 = vmatprep.subr.mxu0 0.0
      %1563 = vmatpush1.msra.mxu0 0.0
      %1564 = vmatprep.subr.mxu0 0.0
      %1565 = vmatpush1.msra.mxu0 0.0
      %1566 = vmatprep.subr.mxu0 0.0
      %1567 = vmatpush1.msra.mxu0 0.0
      %1568 = vmatprep.subr.mxu0 0.0
      %1569 = vmatpush1.msra.mxu0 0.0
      %1570 = vmatprep.subr.mxu0 0.0
      %1571 = vmatpush1.msra.mxu0 0.0
      %1572 = vmatprep.subr.mxu0 0.0
      %1573 = vmatpush1.msra.mxu0 0.0
      %1574 = vmatprep.subr.mxu0 0.0
      %1575 = vmatpush1.msra.mxu0 0.0
      %1576 = vmatprep.subr.mxu0 0.0
      %1577 = vmatpush1.msra.mxu0 0.0
      %1578 = vmatprep.subr.mxu0 0.0
      %1579 = vmatpush1.msra.mxu0 0.0
      %1580 = vmatprep.subr.mxu0 0.0
      %1581 = vmatpush1.msra.mxu0 0.0
      %1582 = vmatprep.subr.mxu0 0.0
      %1583 = vmatpush1.msra.mxu0 0.0
      %1584 = vmatprep.subr.mxu0 0.0
      %1585 = vmatpush1.msra.mxu0 0.0
      %1586 = vmatprep.subr.mxu0 0.0
      %1587 = vmatpush1.msra.mxu0 0.0
      %1588 = vmatprep.subr.mxu0 0.0
      %1589 = vmatpush1.msra.mxu0 0.0
      %1590 = vmatprep.subr.mxu0 0.0
      %1591 = vmatpush1.msra.mxu0 %v1558
      %1592 = vmatprep.subr.mxu0 0.0
      %1593 = vmatpush2.msra.mxu0 0.0
      %1594 = vmatprep.subr.mxu0 0.0
      %1595 = vmatpush2.msra.mxu0 0.0
      %1596 = vmatprep.subr.mxu0 0.0
      %1597 = vmatpush2.msra.mxu0 0.0
      %1598 = vmatprep.subr.mxu0 0.0
      %1599 = vmatpush2.msra.mxu0 0.0
      %1600 = vmatprep.subr.mxu0 0.0
      %1601 = vmatpush2.msra.mxu0 0.0
      %1602 = vmatprep.subr.mxu0 0.0
      %1603 = vmatpush2.msra.mxu0 0.0
      %1604 = vmatprep.subr.mxu0 0.0
      %1605 = vmatpush2.msra.mxu0 0.0
      %1606 = vmatprep.subr.mxu0 0.0
      %1607 = vmatpush2.msra.mxu0 0.0
      %1608 = vmatprep.subr.mxu0 0.0
      %1609 = vmatpush2.msra.mxu0 0.0
      %1610 = vmatprep.subr.mxu0 0.0
      %1611 = vmatpush2.msra.mxu0 0.0
      %1612 = vmatprep.subr.mxu0 0.0
      %1613 = vmatpush2.msra.mxu0 0.0
      %1614 = vmatprep.subr.mxu0 0.0
      %1615 = vmatpush2.msra.mxu0 0.0
      %1616 = vmatprep.subr.mxu0 0.0
      %1617 = vmatpush2.msra.mxu0 0.0
      %1618 = vmatprep.subr.mxu0 0.0
      %1619 = vmatpush2.msra.mxu0 0.0
      %1620 = vmatprep.subr.mxu0 0.0
      %1621 = vmatpush2.msra.mxu0 0.0
      %1622 = vmatprep.subr.mxu0 0.0
      %1623 = vmatpush2.msra.mxu0 0.0
      %1624 = vmatprep.mubr.f32.mxu0 0.0
      %1625 = vmatmul.mubr.f32.gmra.mxu0 %v1462
      %v1626 = vpop.f32.mrf.mxu0
      %v1627 = vadd.f32 0.0, %v1626
      %v1628 = vpop.f32.mrf.mxu0
      %1629 = vmatprep.mubr.f32.mxu0 0.0
      %1630 = vmatmul.mubr.f32.gmra.mxu0 %v1465
      %v1631 = vpop.f32.mrf.mxu0
      %v1632 = vadd.f32 0.0, %v1631
      %v1633 = vpop.f32.mrf.mxu0
      %1634 = vmatprep.mubr.f32.mxu0 0.0
      %1635 = vmatmul.mubr.f32.gmra.mxu0 %v1468
      %v1636 = vpop.f32.mrf.mxu0
      %v1637 = vadd.f32 0.0, %v1636
      %v1638 = vpop.f32.mrf.mxu0
      %1639 = vmatprep.mubr.f32.mxu0 0.0
      %1640 = vmatmul.mubr.f32.gmra.mxu0 %v1471
      %v1641 = vpop.f32.mrf.mxu0
      %v1642 = vadd.f32 0.0, %v1641
      %v1643 = vpop.f32.mrf.mxu0
      %1644 = vmatprep.mubr.f32.mxu0 0.0
      %1645 = vmatmul.mubr.f32.gmra.mxu0 %v1474
      %v1646 = vpop.f32.mrf.mxu0
      %v1647 = vadd.f32 0.0, %v1646
      %v1648 = vpop.f32.mrf.mxu0
      %1649 = vmatprep.mubr.f32.mxu0 0.0
      %1650 = vmatmul.mubr.f32.gmra.mxu0 %v1477
      %v1651 = vpop.f32.mrf.mxu0
      %v1652 = vadd.f32 0.0, %v1651
      %v1653 = vpop.f32.mrf.mxu0
      %1654 = vmatprep.mubr.f32.mxu0 0.0
      %1655 = vmatmul.mubr.f32.gmra.mxu0 %v1480
      %v1656 = vpop.f32.mrf.mxu0
      %v1657 = vadd.f32 0.0, %v1656
      %v1658 = vpop.f32.mrf.mxu0
      %1659 = vmatprep.mubr.f32.mxu0 0.0
      %1660 = vmatmul.mubr.f32.gmra.mxu0 %v1483
      %v1661 = vpop.f32.mrf.mxu0
      %v1662 = vadd.f32 0.0, %v1661
      %v1663 = vpop.f32.mrf.mxu0
      %1664 = vmatprep.mubr.f32.mxu0 0.0
      %1665 = vmatmul.mubr.f32.gmra.mxu0 %v1486
      %v1666 = vpop.f32.mrf.mxu0
      %v1667 = vadd.f32 0.0, %v1666
      %v1668 = vpop.f32.mrf.mxu0
      %1669 = vmatprep.mubr.f32.mxu0 0.0
      %1670 = vmatmul.mubr.f32.gmra.mxu0 %v1489
      %v1671 = vpop.f32.mrf.mxu0
      %v1672 = vadd.f32 0.0, %v1671
      %v1673 = vpop.f32.mrf.mxu0
      %1674 = vmatprep.mubr.f32.mxu0 0.0
      %1675 = vmatmul.mubr.f32.gmra.mxu0 %v1492
      %v1676 = vpop.f32.mrf.mxu0
      %v1677 = vadd.f32 0.0, %v1676
      %v1678 = vpop.f32.mrf.mxu0
      %1679 = vmatprep.mubr.f32.mxu0 0.0
      %1680 = vmatmul.mubr.f32.gmra.mxu0 %v1495
      %v1681 = vpop.f32.mrf.mxu0
      %v1682 = vadd.f32 0.0, %v1681
      %v1683 = vpop.f32.mrf.mxu0
      %1684 = vmatprep.mubr.f32.mxu0 0.0
      %1685 = vmatmul.mubr.f32.gmra.mxu0 %v1498
      %v1686 = vpop.f32.mrf.mxu0
      %v1687 = vadd.f32 0.0, %v1686
      %v1688 = vpop.f32.mrf.mxu0
      %1689 = vmatprep.mubr.f32.mxu0 0.0
      %1690 = vmatmul.mubr.f32.gmra.mxu0 %v1501
      %v1691 = vpop.f32.mrf.mxu0
      %v1692 = vadd.f32 0.0, %v1691
      %v1693 = vpop.f32.mrf.mxu0
      %1694 = vmatprep.mubr.f32.mxu0 0.0
      %1695 = vmatmul.mubr.f32.gmra.mxu0 %v1504
      %v1696 = vpop.f32.mrf.mxu0
      %v1697 = vadd.f32 0.0, %v1696
      %v1698 = vpop.f32.mrf.mxu0
      %1699 = vmatprep.mubr.f32.mxu0 0.0
      %1700 = vmatmul.mubr.f32.gmra.mxu0 %v1507
      %v1701 = vpop.f32.mrf.mxu0
      %v1702 = vadd.f32 0.0, %v1701
      %v1703 = vpop.f32.mrf.mxu0
      %1704 = vmatprep.mubr.f32.mxu0 0.0
      %1705 = vmatmul.mubr.f32.gmra.mxu0 %v1510
      %v1706 = vpop.f32.mrf.mxu0
      %v1707 = vadd.f32 0.0, %v1706
      %v1708 = vpop.f32.mrf.mxu0
      %1709 = vmatprep.mubr.f32.mxu0 0.0
      %1710 = vmatmul.mubr.f32.gmra.mxu0 %v1513
      %v1711 = vpop.f32.mrf.mxu0
      %v1712 = vadd.f32 0.0, %v1711
      %v1713 = vpop.f32.mrf.mxu0
      %1714 = vmatprep.mubr.f32.mxu0 0.0
      %1715 = vmatmul.mubr.f32.gmra.mxu0 %v1516
      %v1716 = vpop.f32.mrf.mxu0
      %v1717 = vadd.f32 0.0, %v1716
      %v1718 = vpop.f32.mrf.mxu0
      %1719 = vmatprep.mubr.f32.mxu0 0.0
      %1720 = vmatmul.mubr.f32.gmra.mxu0 %v1519
      %v1721 = vpop.f32.mrf.mxu0
      %v1722 = vadd.f32 0.0, %v1721
      %v1723 = vpop.f32.mrf.mxu0
      %1724 = vmatprep.mubr.f32.mxu0 0.0
      %1725 = vmatmul.mubr.f32.gmra.mxu0 %v1522
      %v1726 = vpop.f32.mrf.mxu0
      %v1727 = vadd.f32 0.0, %v1726
      %v1728 = vpop.f32.mrf.mxu0
      %1729 = vmatprep.mubr.f32.mxu0 0.0
      %1730 = vmatmul.mubr.f32.gmra.mxu0 %v1525
      %v1731 = vpop.f32.mrf.mxu0
      %v1732 = vadd.f32 0.0, %v1731
      %v1733 = vpop.f32.mrf.mxu0
      %1734 = vmatprep.mubr.f32.mxu0 0.0
      %1735 = vmatmul.mubr.f32.gmra.mxu0 %v1528
      %v1736 = vpop.f32.mrf.mxu0
      %v1737 = vadd.f32 0.0, %v1736
      %v1738 = vpop.f32.mrf.mxu0
      %1739 = vmatprep.mubr.f32.mxu0 0.0
      %1740 = vmatmul.mubr.f32.gmra.mxu0 %v1531
      %v1741 = vpop.f32.mrf.mxu0
      %v1742 = vadd.f32 0.0, %v1741
      %v1743 = vpop.f32.mrf.mxu0
      %1744 = vmatprep.mubr.f32.mxu0 0.0
      %1745 = vmatmul.mubr.f32.gmra.mxu0 %v1534
      %v1746 = vpop.f32.mrf.mxu0
      %v1747 = vadd.f32 0.0, %v1746
      %v1748 = vpop.f32.mrf.mxu0
      %1749 = vmatprep.mubr.f32.mxu0 0.0
      %1750 = vmatmul.mubr.f32.gmra.mxu0 %v1537
      %v1751 = vpop.f32.mrf.mxu0
      %v1752 = vadd.f32 0.0, %v1751
      %v1753 = vpop.f32.mrf.mxu0
      %1754 = vmatprep.mubr.f32.mxu0 0.0
      %1755 = vmatmul.mubr.f32.gmra.mxu0 %v1540
      %v1756 = vpop.f32.mrf.mxu0
      %v1757 = vadd.f32 0.0, %v1756
      %v1758 = vpop.f32.mrf.mxu0
      %1759 = vmatprep.mubr.f32.mxu0 0.0
      %1760 = vmatmul.mubr.f32.gmra.mxu0 %v1543
      %v1761 = vpop.f32.mrf.mxu0
      %v1762 = vadd.f32 0.0, %v1761
      %v1763 = vpop.f32.mrf.mxu0
      %1764 = vmatprep.mubr.f32.mxu0 0.0
      %1765 = vmatmul.mubr.f32.gmra.mxu0 %v1546
      %v1766 = vpop.f32.mrf.mxu0
      %v1767 = vadd.f32 0.0, %v1766
      %v1768 = vpop.f32.mrf.mxu0
      %1769 = vmatprep.mubr.f32.mxu0 0.0
      %1770 = vmatmul.mubr.f32.gmra.mxu0 %v1549
      %v1771 = vpop.f32.mrf.mxu0
      %v1772 = vadd.f32 0.0, %v1771
      %v1773 = vpop.f32.mrf.mxu0
      %1774 = vmatprep.mubr.f32.mxu0 0.0
      %1775 = vmatmul.mubr.f32.gmra.mxu0 %v1552
      %v1776 = vpop.f32.mrf.mxu0
      %v1777 = vadd.f32 0.0, %v1776
      %v1778 = vpop.f32.mrf.mxu0
      %1779 = vmatprep.mubr.f32.mxu0 0.0
      %1780 = vmatmul.mubr.f32.gmra.mxu0 %v1555
      %v1781 = vpop.f32.mrf.mxu0
      %v1782 = vadd.f32 0.0, %v1781
      %v1783 = vpop.f32.mrf.mxu0
      %1784 = vdwg.mxu0
      %v1785 = vadd.f32 %v1395, %v1627
      %v1786 = vadd.f32 %v1396, %v1632
      %v1787 = vadd.f32 %v1397, %v1637
      %v1788 = vadd.f32 %v1398, %v1642
      %v1789 = vadd.f32 %v1399, %v1647
      %v1790 = vadd.f32 %v1400, %v1652
      %v1791 = vadd.f32 %v1401, %v1657
      %v1792 = vadd.f32 %v1402, %v1662
      %v1793 = vadd.f32 %v1403, %v1667
      %v1794 = vadd.f32 %v1404, %v1672
      %v1795 = vadd.f32 %v1405, %v1677
      %v1796 = vadd.f32 %v1406, %v1682
      %v1797 = vadd.f32 %v1407, %v1687
      %v1798 = vadd.f32 %v1408, %v1692
      %v1799 = vadd.f32 %v1409, %v1697
      %v1800 = vadd.f32 %v1410, %v1702
      %v1801 = vadd.f32 %v1411, %v1707
      %v1802 = vadd.f32 %v1412, %v1712
      %v1803 = vadd.f32 %v1413, %v1717
      %v1804 = vadd.f32 %v1414, %v1722
      %v1805 = vadd.f32 %v1415, %v1727
      %v1806 = vadd.f32 %v1416, %v1732
      %v1807 = vadd.f32 %v1417, %v1737
      %v1808 = vadd.f32 %v1418, %v1742
      %v1809 = vadd.f32 %v1419, %v1747
      %v1810 = vadd.f32 %v1420, %v1752
      %v1811 = vadd.f32 %v1421, %v1757
      %v1812 = vadd.f32 %v1422, %v1762
      %v1813 = vadd.f32 %v1423, %v1767
      %v1814 = vadd.f32 %v1424, %v1772
      %v1815 = vadd.f32 %v1425, %v1777
      %v1816 = vadd.f32 %v1426, %v1782
      %v1817 = vld [vmem:[%s203 + $0x1] sm:$0xff]
      %v1818 = vld [vmem:[%s203 + $0x9] sm:$0xff]
      %v1819 = vld [vmem:[%s203 + $0x19] sm:$0xff]
      %v1820 = vld [vmem:[%s203 + $0x21] sm:$0xff]
      %v1821 = vld [vmem:[%s203 + $0x31] sm:$0xff]
      %v1822 = vld [vmem:[%s203 + $0x39] sm:$0xff]
      %v1823 = vld [vmem:[%s203 + $0x49] sm:$0xff]
      %v1824 = vld [vmem:[%s203 + $0x51] sm:$0xff]
      %v1825 = vld [vmem:[%s203 + $0x61] sm:$0xff]
      %v1826 = vld [vmem:[%s203 + $0x69] sm:$0xff]
      %v1827 = vld [vmem:[%s203 + $0x79] sm:$0xff]
      %v1828 = vld [vmem:[%s203 + $0x81] sm:$0xff]
      %v1829 = vld [vmem:[%s203 + $0x91] sm:$0xff]
      %v1830 = vld [vmem:[%s203 + $0x99] sm:$0xff]
      %v1831 = vld [vmem:[%s203 + $0xa9] sm:$0xff]
      %v1832 = vld [vmem:[%s203 + $0xb1] sm:$0xff]
      %v1833 = vld [vmem:[%s203 + $0xc1] sm:$0xff]
      %v1834 = vld [vmem:[%s203 + $0xc9] sm:$0xff]
      %v1835 = vld [vmem:[%s203 + $0xd9] sm:$0xff]
      %v1836 = vld [vmem:[%s203 + $0xe1] sm:$0xff]
      %v1837 = vld [vmem:[%s203 + $0xf1] sm:$0xff]
      %v1838 = vld [vmem:[%s203 + $0xf9] sm:$0xff]
      %v1839 = vld [vmem:[%s203 + $0x109] sm:$0xff]
      %v1840 = vld [vmem:[%s203 + $0x111] sm:$0xff]
      %v1841 = vld [vmem:[%s203 + $0x121] sm:$0xff]
      %v1842 = vld [vmem:[%s203 + $0x129] sm:$0xff]
      %v1843 = vld [vmem:[%s203 + $0x139] sm:$0xff]
      %v1844 = vld [vmem:[%s203 + $0x141] sm:$0xff]
      %v1845 = vld [vmem:[%s203 + $0x151] sm:$0xff]
      %v1846 = vld [vmem:[%s203 + $0x159] sm:$0xff]
      %v1847 = vld [vmem:[%s203 + $0x169] sm:$0xff]
      %v1848 = vld [vmem:[%s203 + $0x171] sm:$0xff]
      %s1849 = scalar_lea.vmem %s1, 16
      %v1850 = vld [vmem:[%s1849] sm:$0xf]
      %v1852 = vsel %vm204, %v1817, 0
      %v1855 = vsel %vm204, %v1818, 0
      %v1858 = vsel %vm204, %v1819, 0
      %v1861 = vsel %vm204, %v1820, 0
      %v1864 = vsel %vm204, %v1821, 0
      %v1867 = vsel %vm204, %v1822, 0
      %v1870 = vsel %vm204, %v1823, 0
      %v1873 = vsel %vm204, %v1824, 0
      %v1876 = vsel %vm204, %v1825, 0
      %v1879 = vsel %vm204, %v1826, 0
      %v1882 = vsel %vm204, %v1827, 0
      %v1885 = vsel %vm204, %v1828, 0
      %v1888 = vsel %vm204, %v1829, 0
      %v1891 = vsel %vm204, %v1830, 0
      %v1894 = vsel %vm204, %v1831, 0
      %v1897 = vsel %vm204, %v1832, 0
      %v1900 = vsel %vm204, %v1833, 0
      %v1903 = vsel %vm204, %v1834, 0
      %v1906 = vsel %vm204, %v1835, 0
      %v1909 = vsel %vm204, %v1836, 0
      %v1912 = vsel %vm204, %v1837, 0
      %v1915 = vsel %vm204, %v1838, 0
      %v1918 = vsel %vm204, %v1839, 0
      %v1921 = vsel %vm204, %v1840, 0
      %v1924 = vsel %vm204, %v1841, 0
      %v1927 = vsel %vm204, %v1842, 0
      %v1930 = vsel %vm204, %v1843, 0
      %v1933 = vsel %vm204, %v1844, 0
      %v1936 = vsel %vm204, %v1845, 0
      %v1939 = vsel %vm204, %v1846, 0
      %v1942 = vsel %vm204, %v1847, 0
      %v1945 = vsel %vm204, %v1848, 0
      %v1948 = vsel %vm484, %v1850, 0
      %1950 = vmatprep.subr.mxu0 0.0
      %1951 = vmatpush1.msra.mxu0 0.0
      %1952 = vmatprep.subr.mxu0 0.0
      %1953 = vmatpush1.msra.mxu0 0.0
      %1954 = vmatprep.subr.mxu0 0.0
      %1955 = vmatpush1.msra.mxu0 0.0
      %1956 = vmatprep.subr.mxu0 0.0
      %1957 = vmatpush1.msra.mxu0 0.0
      %1958 = vmatprep.subr.mxu0 0.0
      %1959 = vmatpush1.msra.mxu0 0.0
      %1960 = vmatprep.subr.mxu0 0.0
      %1961 = vmatpush1.msra.mxu0 0.0
      %1962 = vmatprep.subr.mxu0 0.0
      %1963 = vmatpush1.msra.mxu0 0.0
      %1964 = vmatprep.subr.mxu0 0.0
      %1965 = vmatpush1.msra.mxu0 0.0
      %1966 = vmatprep.subr.mxu0 0.0
      %1967 = vmatpush1.msra.mxu0 0.0
      %1968 = vmatprep.subr.mxu0 0.0
      %1969 = vmatpush1.msra.mxu0 0.0
      %1970 = vmatprep.subr.mxu0 0.0
      %1971 = vmatpush1.msra.mxu0 0.0
      %1972 = vmatprep.subr.mxu0 0.0
      %1973 = vmatpush1.msra.mxu0 0.0
      %1974 = vmatprep.subr.mxu0 0.0
      %1975 = vmatpush1.msra.mxu0 0.0
      %1976 = vmatprep.subr.mxu0 0.0
      %1977 = vmatpush1.msra.mxu0 0.0
      %1978 = vmatprep.subr.mxu0 0.0
      %1979 = vmatpush1.msra.mxu0 0.0
      %1980 = vmatprep.subr.mxu0 0.0
      %1981 = vmatpush1.msra.mxu0 %v1948
      %1982 = vmatprep.subr.mxu0 0.0
      %1983 = vmatpush2.msra.mxu0 0.0
      %1984 = vmatprep.subr.mxu0 0.0
      %1985 = vmatpush2.msra.mxu0 0.0
      %1986 = vmatprep.subr.mxu0 0.0
      %1987 = vmatpush2.msra.mxu0 0.0
      %1988 = vmatprep.subr.mxu0 0.0
      %1989 = vmatpush2.msra.mxu0 0.0
      %1990 = vmatprep.subr.mxu0 0.0
      %1991 = vmatpush2.msra.mxu0 0.0
      %1992 = vmatprep.subr.mxu0 0.0
      %1993 = vmatpush2.msra.mxu0 0.0
      %1994 = vmatprep.subr.mxu0 0.0
      %1995 = vmatpush2.msra.mxu0 0.0
      %1996 = vmatprep.subr.mxu0 0.0
      %1997 = vmatpush2.msra.mxu0 0.0
      %1998 = vmatprep.subr.mxu0 0.0
      %1999 = vmatpush2.msra.mxu0 0.0
      %2000 = vmatprep.subr.mxu0 0.0
      %2001 = vmatpush2.msra.mxu0 0.0
      %2002 = vmatprep.subr.mxu0 0.0
      %2003 = vmatpush2.msra.mxu0 0.0
      %2004 = vmatprep.subr.mxu0 0.0
      %2005 = vmatpush2.msra.mxu0 0.0
      %2006 = vmatprep.subr.mxu0 0.0
      %2007 = vmatpush2.msra.mxu0 0.0
      %2008 = vmatprep.subr.mxu0 0.0
      %2009 = vmatpush2.msra.mxu0 0.0
      %2010 = vmatprep.subr.mxu0 0.0
      %2011 = vmatpush2.msra.mxu0 0.0
      %2012 = vmatprep.subr.mxu0 0.0
      %2013 = vmatpush2.msra.mxu0 0.0
      %2014 = vmatprep.mubr.f32.mxu0 0.0
      %2015 = vmatmul.mubr.f32.gmra.mxu0 %v1852
      %v2016 = vpop.f32.mrf.mxu0
      %v2017 = vadd.f32 0.0, %v2016
      %v2018 = vpop.f32.mrf.mxu0
      %2019 = vmatprep.mubr.f32.mxu0 0.0
      %2020 = vmatmul.mubr.f32.gmra.mxu0 %v1855
      %v2021 = vpop.f32.mrf.mxu0
      %v2022 = vadd.f32 0.0, %v2021
      %v2023 = vpop.f32.mrf.mxu0
      %2024 = vmatprep.mubr.f32.mxu0 0.0
      %2025 = vmatmul.mubr.f32.gmra.mxu0 %v1858
      %v2026 = vpop.f32.mrf.mxu0
      %v2027 = vadd.f32 0.0, %v2026
      %v2028 = vpop.f32.mrf.mxu0
      %2029 = vmatprep.mubr.f32.mxu0 0.0
      %2030 = vmatmul.mubr.f32.gmra.mxu0 %v1861
      %v2031 = vpop.f32.mrf.mxu0
      %v2032 = vadd.f32 0.0, %v2031
      %v2033 = vpop.f32.mrf.mxu0
      %2034 = vmatprep.mubr.f32.mxu0 0.0
      %2035 = vmatmul.mubr.f32.gmra.mxu0 %v1864
      %v2036 = vpop.f32.mrf.mxu0
      %v2037 = vadd.f32 0.0, %v2036
      %v2038 = vpop.f32.mrf.mxu0
      %2039 = vmatprep.mubr.f32.mxu0 0.0
      %2040 = vmatmul.mubr.f32.gmra.mxu0 %v1867
      %v2041 = vpop.f32.mrf.mxu0
      %v2042 = vadd.f32 0.0, %v2041
      %v2043 = vpop.f32.mrf.mxu0
      %2044 = vmatprep.mubr.f32.mxu0 0.0
      %2045 = vmatmul.mubr.f32.gmra.mxu0 %v1870
      %v2046 = vpop.f32.mrf.mxu0
      %v2047 = vadd.f32 0.0, %v2046
      %v2048 = vpop.f32.mrf.mxu0
      %2049 = vmatprep.mubr.f32.mxu0 0.0
      %2050 = vmatmul.mubr.f32.gmra.mxu0 %v1873
      %v2051 = vpop.f32.mrf.mxu0
      %v2052 = vadd.f32 0.0, %v2051
      %v2053 = vpop.f32.mrf.mxu0
      %2054 = vmatprep.mubr.f32.mxu0 0.0
      %2055 = vmatmul.mubr.f32.gmra.mxu0 %v1876
      %v2056 = vpop.f32.mrf.mxu0
      %v2057 = vadd.f32 0.0, %v2056
      %v2058 = vpop.f32.mrf.mxu0
      %2059 = vmatprep.mubr.f32.mxu0 0.0
      %2060 = vmatmul.mubr.f32.gmra.mxu0 %v1879
      %v2061 = vpop.f32.mrf.mxu0
      %v2062 = vadd.f32 0.0, %v2061
      %v2063 = vpop.f32.mrf.mxu0
      %2064 = vmatprep.mubr.f32.mxu0 0.0
      %2065 = vmatmul.mubr.f32.gmra.mxu0 %v1882
      %v2066 = vpop.f32.mrf.mxu0
      %v2067 = vadd.f32 0.0, %v2066
      %v2068 = vpop.f32.mrf.mxu0
      %2069 = vmatprep.mubr.f32.mxu0 0.0
      %2070 = vmatmul.mubr.f32.gmra.mxu0 %v1885
      %v2071 = vpop.f32.mrf.mxu0
      %v2072 = vadd.f32 0.0, %v2071
      %v2073 = vpop.f32.mrf.mxu0
      %2074 = vmatprep.mubr.f32.mxu0 0.0
      %2075 = vmatmul.mubr.f32.gmra.mxu0 %v1888
      %v2076 = vpop.f32.mrf.mxu0
      %v2077 = vadd.f32 0.0, %v2076
      %v2078 = vpop.f32.mrf.mxu0
      %2079 = vmatprep.mubr.f32.mxu0 0.0
      %2080 = vmatmul.mubr.f32.gmra.mxu0 %v1891
      %v2081 = vpop.f32.mrf.mxu0
      %v2082 = vadd.f32 0.0, %v2081
      %v2083 = vpop.f32.mrf.mxu0
      %2084 = vmatprep.mubr.f32.mxu0 0.0
      %2085 = vmatmul.mubr.f32.gmra.mxu0 %v1894
      %v2086 = vpop.f32.mrf.mxu0
      %v2087 = vadd.f32 0.0, %v2086
      %v2088 = vpop.f32.mrf.mxu0
      %2089 = vmatprep.mubr.f32.mxu0 0.0
      %2090 = vmatmul.mubr.f32.gmra.mxu0 %v1897
      %v2091 = vpop.f32.mrf.mxu0
      %v2092 = vadd.f32 0.0, %v2091
      %v2093 = vpop.f32.mrf.mxu0
      %2094 = vmatprep.mubr.f32.mxu0 0.0
      %2095 = vmatmul.mubr.f32.gmra.mxu0 %v1900
      %v2096 = vpop.f32.mrf.mxu0
      %v2097 = vadd.f32 0.0, %v2096
      %v2098 = vpop.f32.mrf.mxu0
      %2099 = vmatprep.mubr.f32.mxu0 0.0
      %2100 = vmatmul.mubr.f32.gmra.mxu0 %v1903
      %v2101 = vpop.f32.mrf.mxu0
      %v2102 = vadd.f32 0.0, %v2101
      %v2103 = vpop.f32.mrf.mxu0
      %2104 = vmatprep.mubr.f32.mxu0 0.0
      %2105 = vmatmul.mubr.f32.gmra.mxu0 %v1906
      %v2106 = vpop.f32.mrf.mxu0
      %v2107 = vadd.f32 0.0, %v2106
      %v2108 = vpop.f32.mrf.mxu0
      %2109 = vmatprep.mubr.f32.mxu0 0.0
      %2110 = vmatmul.mubr.f32.gmra.mxu0 %v1909
      %v2111 = vpop.f32.mrf.mxu0
      %v2112 = vadd.f32 0.0, %v2111
      %v2113 = vpop.f32.mrf.mxu0
      %2114 = vmatprep.mubr.f32.mxu0 0.0
      %2115 = vmatmul.mubr.f32.gmra.mxu0 %v1912
      %v2116 = vpop.f32.mrf.mxu0
      %v2117 = vadd.f32 0.0, %v2116
      %v2118 = vpop.f32.mrf.mxu0
      %2119 = vmatprep.mubr.f32.mxu0 0.0
      %2120 = vmatmul.mubr.f32.gmra.mxu0 %v1915
      %v2121 = vpop.f32.mrf.mxu0
      %v2122 = vadd.f32 0.0, %v2121
      %v2123 = vpop.f32.mrf.mxu0
      %2124 = vmatprep.mubr.f32.mxu0 0.0
      %2125 = vmatmul.mubr.f32.gmra.mxu0 %v1918
      %v2126 = vpop.f32.mrf.mxu0
      %v2127 = vadd.f32 0.0, %v2126
      %v2128 = vpop.f32.mrf.mxu0
      %2129 = vmatprep.mubr.f32.mxu0 0.0
      %2130 = vmatmul.mubr.f32.gmra.mxu0 %v1921
      %v2131 = vpop.f32.mrf.mxu0
      %v2132 = vadd.f32 0.0, %v2131
      %v2133 = vpop.f32.mrf.mxu0
      %2134 = vmatprep.mubr.f32.mxu0 0.0
      %2135 = vmatmul.mubr.f32.gmra.mxu0 %v1924
      %v2136 = vpop.f32.mrf.mxu0
      %v2137 = vadd.f32 0.0, %v2136
      %v2138 = vpop.f32.mrf.mxu0
      %2139 = vmatprep.mubr.f32.mxu0 0.0
      %2140 = vmatmul.mubr.f32.gmra.mxu0 %v1927
      %v2141 = vpop.f32.mrf.mxu0
      %v2142 = vadd.f32 0.0, %v2141
      %v2143 = vpop.f32.mrf.mxu0
      %2144 = vmatprep.mubr.f32.mxu0 0.0
      %2145 = vmatmul.mubr.f32.gmra.mxu0 %v1930
      %v2146 = vpop.f32.mrf.mxu0
      %v2147 = vadd.f32 0.0, %v2146
      %v2148 = vpop.f32.mrf.mxu0
      %2149 = vmatprep.mubr.f32.mxu0 0.0
      %2150 = vmatmul.mubr.f32.gmra.mxu0 %v1933
      %v2151 = vpop.f32.mrf.mxu0
      %v2152 = vadd.f32 0.0, %v2151
      %v2153 = vpop.f32.mrf.mxu0
      %2154 = vmatprep.mubr.f32.mxu0 0.0
      %2155 = vmatmul.mubr.f32.gmra.mxu0 %v1936
      %v2156 = vpop.f32.mrf.mxu0
      %v2157 = vadd.f32 0.0, %v2156
      %v2158 = vpop.f32.mrf.mxu0
      %2159 = vmatprep.mubr.f32.mxu0 0.0
      %2160 = vmatmul.mubr.f32.gmra.mxu0 %v1939
      %v2161 = vpop.f32.mrf.mxu0
      %v2162 = vadd.f32 0.0, %v2161
      %v2163 = vpop.f32.mrf.mxu0
      %2164 = vmatprep.mubr.f32.mxu0 0.0
      %2165 = vmatmul.mubr.f32.gmra.mxu0 %v1942
      %v2166 = vpop.f32.mrf.mxu0
      %v2167 = vadd.f32 0.0, %v2166
      %v2168 = vpop.f32.mrf.mxu0
      %2169 = vmatprep.mubr.f32.mxu0 0.0
      %2170 = vmatmul.mubr.f32.gmra.mxu0 %v1945
      %v2171 = vpop.f32.mrf.mxu0
      %v2172 = vadd.f32 0.0, %v2171
      %v2173 = vpop.f32.mrf.mxu0
      %2174 = vdwg.mxu0
      %v2175 = vadd.f32 %v1785, %v2017
      %v2176 = vadd.f32 %v1786, %v2022
      %v2177 = vadd.f32 %v1787, %v2027
      %v2178 = vadd.f32 %v1788, %v2032
      %v2179 = vadd.f32 %v1789, %v2037
      %v2180 = vadd.f32 %v1790, %v2042
      %v2181 = vadd.f32 %v1791, %v2047
      %v2182 = vadd.f32 %v1792, %v2052
      %v2183 = vadd.f32 %v1793, %v2057
      %v2184 = vadd.f32 %v1794, %v2062
      %v2185 = vadd.f32 %v1795, %v2067
      %v2186 = vadd.f32 %v1796, %v2072
      %v2187 = vadd.f32 %v1797, %v2077
      %v2188 = vadd.f32 %v1798, %v2082
      %v2189 = vadd.f32 %v1799, %v2087
      %v2190 = vadd.f32 %v1800, %v2092
      %v2191 = vadd.f32 %v1801, %v2097
      %v2192 = vadd.f32 %v1802, %v2102
      %v2193 = vadd.f32 %v1803, %v2107
      %v2194 = vadd.f32 %v1804, %v2112
      %v2195 = vadd.f32 %v1805, %v2117
      %v2196 = vadd.f32 %v1806, %v2122
      %v2197 = vadd.f32 %v1807, %v2127
      %v2198 = vadd.f32 %v1808, %v2132
      %v2199 = vadd.f32 %v1809, %v2137
      %v2200 = vadd.f32 %v1810, %v2142
      %v2201 = vadd.f32 %v1811, %v2147
      %v2202 = vadd.f32 %v1812, %v2152
      %v2203 = vadd.f32 %v1813, %v2157
      %v2204 = vadd.f32 %v1814, %v2162
      %v2205 = vadd.f32 %v1815, %v2167
      %v2206 = vadd.f32 %v1816, %v2172
      %v2207 = vld [vmem:[%s203 + $0x2] sm:$0xff]
      %v2208 = vld [vmem:[%s203 + $0xa] sm:$0xff]
      %v2209 = vld [vmem:[%s203 + $0x1a] sm:$0xff]
      %v2210 = vld [vmem:[%s203 + $0x22] sm:$0xff]
      %v2211 = vld [vmem:[%s203 + $0x32] sm:$0xff]
      %v2212 = vld [vmem:[%s203 + $0x3a] sm:$0xff]
      %v2213 = vld [vmem:[%s203 + $0x4a] sm:$0xff]
      %v2214 = vld [vmem:[%s203 + $0x52] sm:$0xff]
      %v2215 = vld [vmem:[%s203 + $0x62] sm:$0xff]
      %v2216 = vld [vmem:[%s203 + $0x6a] sm:$0xff]
      %v2217 = vld [vmem:[%s203 + $0x7a] sm:$0xff]
      %v2218 = vld [vmem:[%s203 + $0x82] sm:$0xff]
      %v2219 = vld [vmem:[%s203 + $0x92] sm:$0xff]
      %v2220 = vld [vmem:[%s203 + $0x9a] sm:$0xff]
      %v2221 = vld [vmem:[%s203 + $0xaa] sm:$0xff]
      %v2222 = vld [vmem:[%s203 + $0xb2] sm:$0xff]
      %v2223 = vld [vmem:[%s203 + $0xc2] sm:$0xff]
      %v2224 = vld [vmem:[%s203 + $0xca] sm:$0xff]
      %v2225 = vld [vmem:[%s203 + $0xda] sm:$0xff]
      %v2226 = vld [vmem:[%s203 + $0xe2] sm:$0xff]
      %v2227 = vld [vmem:[%s203 + $0xf2] sm:$0xff]
      %v2228 = vld [vmem:[%s203 + $0xfa] sm:$0xff]
      %v2229 = vld [vmem:[%s203 + $0x10a] sm:$0xff]
      %v2230 = vld [vmem:[%s203 + $0x112] sm:$0xff]
      %v2231 = vld [vmem:[%s203 + $0x122] sm:$0xff]
      %v2232 = vld [vmem:[%s203 + $0x12a] sm:$0xff]
      %v2233 = vld [vmem:[%s203 + $0x13a] sm:$0xff]
      %v2234 = vld [vmem:[%s203 + $0x142] sm:$0xff]
      %v2235 = vld [vmem:[%s203 + $0x152] sm:$0xff]
      %v2236 = vld [vmem:[%s203 + $0x15a] sm:$0xff]
      %v2237 = vld [vmem:[%s203 + $0x16a] sm:$0xff]
      %v2238 = vld [vmem:[%s203 + $0x172] sm:$0xff]
      %s2239 = scalar_lea.vmem %s1, 20
      %v2240 = vld [vmem:[%s2239] sm:$0xf]
      %v2242 = vsel %vm204, %v2207, 0
      %v2245 = vsel %vm204, %v2208, 0
      %v2248 = vsel %vm204, %v2209, 0
      %v2251 = vsel %vm204, %v2210, 0
      %v2254 = vsel %vm204, %v2211, 0
      %v2257 = vsel %vm204, %v2212, 0
      %v2260 = vsel %vm204, %v2213, 0
      %v2263 = vsel %vm204, %v2214, 0
      %v2266 = vsel %vm204, %v2215, 0
      %v2269 = vsel %vm204, %v2216, 0
      %v2272 = vsel %vm204, %v2217, 0
      %v2275 = vsel %vm204, %v2218, 0
      %v2278 = vsel %vm204, %v2219, 0
      %v2281 = vsel %vm204, %v2220, 0
      %v2284 = vsel %vm204, %v2221, 0
      %v2287 = vsel %vm204, %v2222, 0
      %v2290 = vsel %vm204, %v2223, 0
      %v2293 = vsel %vm204, %v2224, 0
      %v2296 = vsel %vm204, %v2225, 0
      %v2299 = vsel %vm204, %v2226, 0
      %v2302 = vsel %vm204, %v2227, 0
      %v2305 = vsel %vm204, %v2228, 0
      %v2308 = vsel %vm204, %v2229, 0
      %v2311 = vsel %vm204, %v2230, 0
      %v2314 = vsel %vm204, %v2231, 0
      %v2317 = vsel %vm204, %v2232, 0
      %v2320 = vsel %vm204, %v2233, 0
      %v2323 = vsel %vm204, %v2234, 0
      %v2326 = vsel %vm204, %v2235, 0
      %v2329 = vsel %vm204, %v2236, 0
      %v2332 = vsel %vm204, %v2237, 0
      %v2335 = vsel %vm204, %v2238, 0
      %v2338 = vsel %vm484, %v2240, 0
      %2340 = vmatprep.subr.mxu0 0.0
      %2341 = vmatpush1.msra.mxu0 0.0
      %2342 = vmatprep.subr.mxu0 0.0
      %2343 = vmatpush1.msra.mxu0 0.0
      %2344 = vmatprep.subr.mxu0 0.0
      %2345 = vmatpush1.msra.mxu0 0.0
      %2346 = vmatprep.subr.mxu0 0.0
      %2347 = vmatpush1.msra.mxu0 0.0
      %2348 = vmatprep.subr.mxu0 0.0
      %2349 = vmatpush1.msra.mxu0 0.0
      %2350 = vmatprep.subr.mxu0 0.0
      %2351 = vmatpush1.msra.mxu0 0.0
      %2352 = vmatprep.subr.mxu0 0.0
      %2353 = vmatpush1.msra.mxu0 0.0
      %2354 = vmatprep.subr.mxu0 0.0
      %2355 = vmatpush1.msra.mxu0 0.0
      %2356 = vmatprep.subr.mxu0 0.0
      %2357 = vmatpush1.msra.mxu0 0.0
      %2358 = vmatprep.subr.mxu0 0.0
      %2359 = vmatpush1.msra.mxu0 0.0
      %2360 = vmatprep.subr.mxu0 0.0
      %2361 = vmatpush1.msra.mxu0 0.0
      %2362 = vmatprep.subr.mxu0 0.0
      %2363 = vmatpush1.msra.mxu0 0.0
      %2364 = vmatprep.subr.mxu0 0.0
      %2365 = vmatpush1.msra.mxu0 0.0
      %2366 = vmatprep.subr.mxu0 0.0
      %2367 = vmatpush1.msra.mxu0 0.0
      %2368 = vmatprep.subr.mxu0 0.0
      %2369 = vmatpush1.msra.mxu0 0.0
      %2370 = vmatprep.subr.mxu0 0.0
      %2371 = vmatpush1.msra.mxu0 %v2338
      %2372 = vmatprep.subr.mxu0 0.0
      %2373 = vmatpush2.msra.mxu0 0.0
      %2374 = vmatprep.subr.mxu0 0.0
      %2375 = vmatpush2.msra.mxu0 0.0
      %2376 = vmatprep.subr.mxu0 0.0
      %2377 = vmatpush2.msra.mxu0 0.0
      %2378 = vmatprep.subr.mxu0 0.0
      %2379 = vmatpush2.msra.mxu0 0.0
      %2380 = vmatprep.subr.mxu0 0.0
      %2381 = vmatpush2.msra.mxu0 0.0
      %2382 = vmatprep.subr.mxu0 0.0
      %2383 = vmatpush2.msra.mxu0 0.0
      %2384 = vmatprep.subr.mxu0 0.0
      %2385 = vmatpush2.msra.mxu0 0.0
      %2386 = vmatprep.subr.mxu0 0.0
      %2387 = vmatpush2.msra.mxu0 0.0
      %2388 = vmatprep.subr.mxu0 0.0
      %2389 = vmatpush2.msra.mxu0 0.0
      %2390 = vmatprep.subr.mxu0 0.0
      %2391 = vmatpush2.msra.mxu0 0.0
      %2392 = vmatprep.subr.mxu0 0.0
      %2393 = vmatpush2.msra.mxu0 0.0
      %2394 = vmatprep.subr.mxu0 0.0
      %2395 = vmatpush2.msra.mxu0 0.0
      %2396 = vmatprep.subr.mxu0 0.0
      %2397 = vmatpush2.msra.mxu0 0.0
      %2398 = vmatprep.subr.mxu0 0.0
      %2399 = vmatpush2.msra.mxu0 0.0
      %2400 = vmatprep.subr.mxu0 0.0
      %2401 = vmatpush2.msra.mxu0 0.0
      %2402 = vmatprep.subr.mxu0 0.0
      %2403 = vmatpush2.msra.mxu0 0.0
      %2404 = vmatprep.mubr.f32.mxu0 0.0
      %2405 = vmatmul.mubr.f32.gmra.mxu0 %v2242
      %v2406 = vpop.f32.mrf.mxu0
      %v2407 = vadd.f32 0.0, %v2406
      %v2408 = vpop.f32.mrf.mxu0
      %2409 = vmatprep.mubr.f32.mxu0 0.0
      %2410 = vmatmul.mubr.f32.gmra.mxu0 %v2245
      %v2411 = vpop.f32.mrf.mxu0
      %v2412 = vadd.f32 0.0, %v2411
      %v2413 = vpop.f32.mrf.mxu0
      %2414 = vmatprep.mubr.f32.mxu0 0.0
      %2415 = vmatmul.mubr.f32.gmra.mxu0 %v2248
      %v2416 = vpop.f32.mrf.mxu0
      %v2417 = vadd.f32 0.0, %v2416
      %v2418 = vpop.f32.mrf.mxu0
      %2419 = vmatprep.mubr.f32.mxu0 0.0
      %2420 = vmatmul.mubr.f32.gmra.mxu0 %v2251
      %v2421 = vpop.f32.mrf.mxu0
      %v2422 = vadd.f32 0.0, %v2421
      %v2423 = vpop.f32.mrf.mxu0
      %2424 = vmatprep.mubr.f32.mxu0 0.0
      %2425 = vmatmul.mubr.f32.gmra.mxu0 %v2254
      %v2426 = vpop.f32.mrf.mxu0
      %v2427 = vadd.f32 0.0, %v2426
      %v2428 = vpop.f32.mrf.mxu0
      %2429 = vmatprep.mubr.f32.mxu0 0.0
      %2430 = vmatmul.mubr.f32.gmra.mxu0 %v2257
      %v2431 = vpop.f32.mrf.mxu0
      %v2432 = vadd.f32 0.0, %v2431
      %v2433 = vpop.f32.mrf.mxu0
      %2434 = vmatprep.mubr.f32.mxu0 0.0
      %2435 = vmatmul.mubr.f32.gmra.mxu0 %v2260
      %v2436 = vpop.f32.mrf.mxu0
      %v2437 = vadd.f32 0.0, %v2436
      %v2438 = vpop.f32.mrf.mxu0
      %2439 = vmatprep.mubr.f32.mxu0 0.0
      %2440 = vmatmul.mubr.f32.gmra.mxu0 %v2263
      %v2441 = vpop.f32.mrf.mxu0
      %v2442 = vadd.f32 0.0, %v2441
      %v2443 = vpop.f32.mrf.mxu0
      %2444 = vmatprep.mubr.f32.mxu0 0.0
      %2445 = vmatmul.mubr.f32.gmra.mxu0 %v2266
      %v2446 = vpop.f32.mrf.mxu0
      %v2447 = vadd.f32 0.0, %v2446
      %v2448 = vpop.f32.mrf.mxu0
      %2449 = vmatprep.mubr.f32.mxu0 0.0
      %2450 = vmatmul.mubr.f32.gmra.mxu0 %v2269
      %v2451 = vpop.f32.mrf.mxu0
      %v2452 = vadd.f32 0.0, %v2451
      %v2453 = vpop.f32.mrf.mxu0
      %2454 = vmatprep.mubr.f32.mxu0 0.0
      %2455 = vmatmul.mubr.f32.gmra.mxu0 %v2272
      %v2456 = vpop.f32.mrf.mxu0
      %v2457 = vadd.f32 0.0, %v2456
      %v2458 = vpop.f32.mrf.mxu0
      %2459 = vmatprep.mubr.f32.mxu0 0.0
      %2460 = vmatmul.mubr.f32.gmra.mxu0 %v2275
      %v2461 = vpop.f32.mrf.mxu0
      %v2462 = vadd.f32 0.0, %v2461
      %v2463 = vpop.f32.mrf.mxu0
      %2464 = vmatprep.mubr.f32.mxu0 0.0
      %2465 = vmatmul.mubr.f32.gmra.mxu0 %v2278
      %v2466 = vpop.f32.mrf.mxu0
      %v2467 = vadd.f32 0.0, %v2466
      %v2468 = vpop.f32.mrf.mxu0
      %2469 = vmatprep.mubr.f32.mxu0 0.0
      %2470 = vmatmul.mubr.f32.gmra.mxu0 %v2281
      %v2471 = vpop.f32.mrf.mxu0
      %v2472 = vadd.f32 0.0, %v2471
      %v2473 = vpop.f32.mrf.mxu0
      %2474 = vmatprep.mubr.f32.mxu0 0.0
      %2475 = vmatmul.mubr.f32.gmra.mxu0 %v2284
      %v2476 = vpop.f32.mrf.mxu0
      %v2477 = vadd.f32 0.0, %v2476
      %v2478 = vpop.f32.mrf.mxu0
      %2479 = vmatprep.mubr.f32.mxu0 0.0
      %2480 = vmatmul.mubr.f32.gmra.mxu0 %v2287
      %v2481 = vpop.f32.mrf.mxu0
      %v2482 = vadd.f32 0.0, %v2481
      %v2483 = vpop.f32.mrf.mxu0
      %2484 = vmatprep.mubr.f32.mxu0 0.0
      %2485 = vmatmul.mubr.f32.gmra.mxu0 %v2290
      %v2486 = vpop.f32.mrf.mxu0
      %v2487 = vadd.f32 0.0, %v2486
      %v2488 = vpop.f32.mrf.mxu0
      %2489 = vmatprep.mubr.f32.mxu0 0.0
      %2490 = vmatmul.mubr.f32.gmra.mxu0 %v2293
      %v2491 = vpop.f32.mrf.mxu0
      %v2492 = vadd.f32 0.0, %v2491
      %v2493 = vpop.f32.mrf.mxu0
      %2494 = vmatprep.mubr.f32.mxu0 0.0
      %2495 = vmatmul.mubr.f32.gmra.mxu0 %v2296
      %v2496 = vpop.f32.mrf.mxu0
      %v2497 = vadd.f32 0.0, %v2496
      %v2498 = vpop.f32.mrf.mxu0
      %2499 = vmatprep.mubr.f32.mxu0 0.0
      %2500 = vmatmul.mubr.f32.gmra.mxu0 %v2299
      %v2501 = vpop.f32.mrf.mxu0
      %v2502 = vadd.f32 0.0, %v2501
      %v2503 = vpop.f32.mrf.mxu0
      %2504 = vmatprep.mubr.f32.mxu0 0.0
      %2505 = vmatmul.mubr.f32.gmra.mxu0 %v2302
      %v2506 = vpop.f32.mrf.mxu0
      %v2507 = vadd.f32 0.0, %v2506
      %v2508 = vpop.f32.mrf.mxu0
      %2509 = vmatprep.mubr.f32.mxu0 0.0
      %2510 = vmatmul.mubr.f32.gmra.mxu0 %v2305
      %v2511 = vpop.f32.mrf.mxu0
      %v2512 = vadd.f32 0.0, %v2511
      %v2513 = vpop.f32.mrf.mxu0
      %2514 = vmatprep.mubr.f32.mxu0 0.0
      %2515 = vmatmul.mubr.f32.gmra.mxu0 %v2308
      %v2516 = vpop.f32.mrf.mxu0
      %v2517 = vadd.f32 0.0, %v2516
      %v2518 = vpop.f32.mrf.mxu0
      %2519 = vmatprep.mubr.f32.mxu0 0.0
      %2520 = vmatmul.mubr.f32.gmra.mxu0 %v2311
      %v2521 = vpop.f32.mrf.mxu0
      %v2522 = vadd.f32 0.0, %v2521
      %v2523 = vpop.f32.mrf.mxu0
      %2524 = vmatprep.mubr.f32.mxu0 0.0
      %2525 = vmatmul.mubr.f32.gmra.mxu0 %v2314
      %v2526 = vpop.f32.mrf.mxu0
      %v2527 = vadd.f32 0.0, %v2526
      %v2528 = vpop.f32.mrf.mxu0
      %2529 = vmatprep.mubr.f32.mxu0 0.0
      %2530 = vmatmul.mubr.f32.gmra.mxu0 %v2317
      %v2531 = vpop.f32.mrf.mxu0
      %v2532 = vadd.f32 0.0, %v2531
      %v2533 = vpop.f32.mrf.mxu0
      %2534 = vmatprep.mubr.f32.mxu0 0.0
      %2535 = vmatmul.mubr.f32.gmra.mxu0 %v2320
      %v2536 = vpop.f32.mrf.mxu0
      %v2537 = vadd.f32 0.0, %v2536
      %v2538 = vpop.f32.mrf.mxu0
      %2539 = vmatprep.mubr.f32.mxu0 0.0
      %2540 = vmatmul.mubr.f32.gmra.mxu0 %v2323
      %v2541 = vpop.f32.mrf.mxu0
      %v2542 = vadd.f32 0.0, %v2541
      %v2543 = vpop.f32.mrf.mxu0
      %2544 = vmatprep.mubr.f32.mxu0 0.0
      %2545 = vmatmul.mubr.f32.gmra.mxu0 %v2326
      %v2546 = vpop.f32.mrf.mxu0
      %v2547 = vadd.f32 0.0, %v2546
      %v2548 = vpop.f32.mrf.mxu0
      %2549 = vmatprep.mubr.f32.mxu0 0.0
      %2550 = vmatmul.mubr.f32.gmra.mxu0 %v2329
      %v2551 = vpop.f32.mrf.mxu0
      %v2552 = vadd.f32 0.0, %v2551
      %v2553 = vpop.f32.mrf.mxu0
      %2554 = vmatprep.mubr.f32.mxu0 0.0
      %2555 = vmatmul.mubr.f32.gmra.mxu0 %v2332
      %v2556 = vpop.f32.mrf.mxu0
      %v2557 = vadd.f32 0.0, %v2556
      %v2558 = vpop.f32.mrf.mxu0
      %2559 = vmatprep.mubr.f32.mxu0 0.0
      %2560 = vmatmul.mubr.f32.gmra.mxu0 %v2335
      %v2561 = vpop.f32.mrf.mxu0
      %v2562 = vadd.f32 0.0, %v2561
      %v2563 = vpop.f32.mrf.mxu0
      %2564 = vdwg.mxu0
      %v2565 = vadd.f32 %v2175, %v2407
      %v2566 = vadd.f32 %v2176, %v2412
      %v2567 = vadd.f32 %v2177, %v2417
      %v2568 = vadd.f32 %v2178, %v2422
      %v2569 = vadd.f32 %v2179, %v2427
      %v2570 = vadd.f32 %v2180, %v2432
      %v2571 = vadd.f32 %v2181, %v2437
      %v2572 = vadd.f32 %v2182, %v2442
      %v2573 = vadd.f32 %v2183, %v2447
      %v2574 = vadd.f32 %v2184, %v2452
      %v2575 = vadd.f32 %v2185, %v2457
      %v2576 = vadd.f32 %v2186, %v2462
      %v2577 = vadd.f32 %v2187, %v2467
      %v2578 = vadd.f32 %v2188, %v2472
      %v2579 = vadd.f32 %v2189, %v2477
      %v2580 = vadd.f32 %v2190, %v2482
      %v2581 = vadd.f32 %v2191, %v2487
      %v2582 = vadd.f32 %v2192, %v2492
      %v2583 = vadd.f32 %v2193, %v2497
      %v2584 = vadd.f32 %v2194, %v2502
      %v2585 = vadd.f32 %v2195, %v2507
      %v2586 = vadd.f32 %v2196, %v2512
      %v2587 = vadd.f32 %v2197, %v2517
      %v2588 = vadd.f32 %v2198, %v2522
      %v2589 = vadd.f32 %v2199, %v2527
      %v2590 = vadd.f32 %v2200, %v2532
      %v2591 = vadd.f32 %v2201, %v2537
      %v2592 = vadd.f32 %v2202, %v2542
      %v2593 = vadd.f32 %v2203, %v2547
      %v2594 = vadd.f32 %v2204, %v2552
      %v2595 = vadd.f32 %v2205, %v2557
      %v2596 = vadd.f32 %v2206, %v2562
      %v2597 = vld [vmem:[%s237] sm:$0xff]
      %v2598 = vld [vmem:[%s237 + $0x8] sm:$0xff]
      %v2599 = vld [vmem:[%s237 + $0x18] sm:$0xff]
      %v2600 = vld [vmem:[%s237 + $0x20] sm:$0xff]
      %v2601 = vld [vmem:[%s237 + $0x30] sm:$0xff]
      %v2602 = vld [vmem:[%s237 + $0x38] sm:$0xff]
      %v2603 = vld [vmem:[%s237 + $0x48] sm:$0xff]
      %v2604 = vld [vmem:[%s237 + $0x50] sm:$0xff]
      %v2605 = vld [vmem:[%s237 + $0x60] sm:$0xff]
      %v2606 = vld [vmem:[%s237 + $0x68] sm:$0xff]
      %v2607 = vld [vmem:[%s237 + $0x78] sm:$0xff]
      %v2608 = vld [vmem:[%s237 + $0x80] sm:$0xff]
      %v2609 = vld [vmem:[%s237 + $0x90] sm:$0xff]
      %v2610 = vld [vmem:[%s237 + $0x98] sm:$0xff]
      %v2611 = vld [vmem:[%s237 + $0xa8] sm:$0xff]
      %v2612 = vld [vmem:[%s237 + $0xb0] sm:$0xff]
      %v2613 = vld [vmem:[%s237 + $0xc0] sm:$0xff]
      %v2614 = vld [vmem:[%s237 + $0xc8] sm:$0xff]
      %v2615 = vld [vmem:[%s237 + $0xd8] sm:$0xff]
      %v2616 = vld [vmem:[%s237 + $0xe0] sm:$0xff]
      %v2617 = vld [vmem:[%s237 + $0xf0] sm:$0xff]
      %v2618 = vld [vmem:[%s237 + $0xf8] sm:$0xff]
      %v2619 = vld [vmem:[%s237 + $0x108] sm:$0xff]
      %v2620 = vld [vmem:[%s237 + $0x110] sm:$0xff]
      %v2621 = vld [vmem:[%s237 + $0x120] sm:$0xff]
      %v2622 = vld [vmem:[%s237 + $0x128] sm:$0xff]
      %v2623 = vld [vmem:[%s237 + $0x138] sm:$0xff]
      %v2624 = vld [vmem:[%s237 + $0x140] sm:$0xff]
      %v2625 = vld [vmem:[%s237 + $0x150] sm:$0xff]
      %v2626 = vld [vmem:[%s237 + $0x158] sm:$0xff]
      %v2627 = vld [vmem:[%s237 + $0x168] sm:$0xff]
      %v2628 = vld [vmem:[%s237 + $0x170] sm:$0xff]
      %s2629 = scalar_lea.vmem %s1, 24
      %v2630 = vld [vmem:[%s2629] sm:$0xf]
      %v2632 = vsel %vm204, %v2597, 0
      %v2635 = vsel %vm204, %v2598, 0
      %v2638 = vsel %vm204, %v2599, 0
      %v2641 = vsel %vm204, %v2600, 0
      %v2644 = vsel %vm204, %v2601, 0
      %v2647 = vsel %vm204, %v2602, 0
      %v2650 = vsel %vm204, %v2603, 0
      %v2653 = vsel %vm204, %v2604, 0
      %v2656 = vsel %vm204, %v2605, 0
      %v2659 = vsel %vm204, %v2606, 0
      %v2662 = vsel %vm204, %v2607, 0
      %v2665 = vsel %vm204, %v2608, 0
      %v2668 = vsel %vm204, %v2609, 0
      %v2671 = vsel %vm204, %v2610, 0
      %v2674 = vsel %vm204, %v2611, 0
      %v2677 = vsel %vm204, %v2612, 0
      %v2680 = vsel %vm204, %v2613, 0
      %v2683 = vsel %vm204, %v2614, 0
      %v2686 = vsel %vm204, %v2615, 0
      %v2689 = vsel %vm204, %v2616, 0
      %v2692 = vsel %vm204, %v2617, 0
      %v2695 = vsel %vm204, %v2618, 0
      %v2698 = vsel %vm204, %v2619, 0
      %v2701 = vsel %vm204, %v2620, 0
      %v2704 = vsel %vm204, %v2621, 0
      %v2707 = vsel %vm204, %v2622, 0
      %v2710 = vsel %vm204, %v2623, 0
      %v2713 = vsel %vm204, %v2624, 0
      %v2716 = vsel %vm204, %v2625, 0
      %v2719 = vsel %vm204, %v2626, 0
      %v2722 = vsel %vm204, %v2627, 0
      %v2725 = vsel %vm204, %v2628, 0
      %v2728 = vsel %vm484, %v2630, 0
      %2730 = vmatprep.subr.mxu0 0.0
      %2731 = vmatpush1.msra.mxu0 0.0
      %2732 = vmatprep.subr.mxu0 0.0
      %2733 = vmatpush1.msra.mxu0 0.0
      %2734 = vmatprep.subr.mxu0 0.0
      %2735 = vmatpush1.msra.mxu0 0.0
      %2736 = vmatprep.subr.mxu0 0.0
      %2737 = vmatpush1.msra.mxu0 0.0
      %2738 = vmatprep.subr.mxu0 0.0
      %2739 = vmatpush1.msra.mxu0 0.0
      %2740 = vmatprep.subr.mxu0 0.0
      %2741 = vmatpush1.msra.mxu0 0.0
      %2742 = vmatprep.subr.mxu0 0.0
      %2743 = vmatpush1.msra.mxu0 0.0
      %2744 = vmatprep.subr.mxu0 0.0
      %2745 = vmatpush1.msra.mxu0 0.0
      %2746 = vmatprep.subr.mxu0 0.0
      %2747 = vmatpush1.msra.mxu0 0.0
      %2748 = vmatprep.subr.mxu0 0.0
      %2749 = vmatpush1.msra.mxu0 0.0
      %2750 = vmatprep.subr.mxu0 0.0
      %2751 = vmatpush1.msra.mxu0 0.0
      %2752 = vmatprep.subr.mxu0 0.0
      %2753 = vmatpush1.msra.mxu0 0.0
      %2754 = vmatprep.subr.mxu0 0.0
      %2755 = vmatpush1.msra.mxu0 0.0
      %2756 = vmatprep.subr.mxu0 0.0
      %2757 = vmatpush1.msra.mxu0 0.0
      %2758 = vmatprep.subr.mxu0 0.0
      %2759 = vmatpush1.msra.mxu0 0.0
      %2760 = vmatprep.subr.mxu0 0.0
      %2761 = vmatpush1.msra.mxu0 %v2728
      %2762 = vmatprep.subr.mxu0 0.0
      %2763 = vmatpush2.msra.mxu0 0.0
      %2764 = vmatprep.subr.mxu0 0.0
      %2765 = vmatpush2.msra.mxu0 0.0
      %2766 = vmatprep.subr.mxu0 0.0
      %2767 = vmatpush2.msra.mxu0 0.0
      %2768 = vmatprep.subr.mxu0 0.0
      %2769 = vmatpush2.msra.mxu0 0.0
      %2770 = vmatprep.subr.mxu0 0.0
      %2771 = vmatpush2.msra.mxu0 0.0
      %2772 = vmatprep.subr.mxu0 0.0
      %2773 = vmatpush2.msra.mxu0 0.0
      %2774 = vmatprep.subr.mxu0 0.0
      %2775 = vmatpush2.msra.mxu0 0.0
      %2776 = vmatprep.subr.mxu0 0.0
      %2777 = vmatpush2.msra.mxu0 0.0
      %2778 = vmatprep.subr.mxu0 0.0
      %2779 = vmatpush2.msra.mxu0 0.0
      %2780 = vmatprep.subr.mxu0 0.0
      %2781 = vmatpush2.msra.mxu0 0.0
      %2782 = vmatprep.subr.mxu0 0.0
      %2783 = vmatpush2.msra.mxu0 0.0
      %2784 = vmatprep.subr.mxu0 0.0
      %2785 = vmatpush2.msra.mxu0 0.0
      %2786 = vmatprep.subr.mxu0 0.0
      %2787 = vmatpush2.msra.mxu0 0.0
      %2788 = vmatprep.subr.mxu0 0.0
      %2789 = vmatpush2.msra.mxu0 0.0
      %2790 = vmatprep.subr.mxu0 0.0
      %2791 = vmatpush2.msra.mxu0 0.0
      %2792 = vmatprep.subr.mxu0 0.0
      %2793 = vmatpush2.msra.mxu0 0.0
      %2794 = vmatprep.mubr.f32.mxu0 0.0
      %2795 = vmatmul.mubr.f32.gmra.mxu0 %v2632
      %v2796 = vpop.f32.mrf.mxu0
      %v2797 = vadd.f32 0.0, %v2796
      %v2798 = vpop.f32.mrf.mxu0
      %2799 = vmatprep.mubr.f32.mxu0 0.0
      %2800 = vmatmul.mubr.f32.gmra.mxu0 %v2635
      %v2801 = vpop.f32.mrf.mxu0
      %v2802 = vadd.f32 0.0, %v2801
      %v2803 = vpop.f32.mrf.mxu0
      %2804 = vmatprep.mubr.f32.mxu0 0.0
      %2805 = vmatmul.mubr.f32.gmra.mxu0 %v2638
      %v2806 = vpop.f32.mrf.mxu0
      %v2807 = vadd.f32 0.0, %v2806
      %v2808 = vpop.f32.mrf.mxu0
      %2809 = vmatprep.mubr.f32.mxu0 0.0
      %2810 = vmatmul.mubr.f32.gmra.mxu0 %v2641
      %v2811 = vpop.f32.mrf.mxu0
      %v2812 = vadd.f32 0.0, %v2811
      %v2813 = vpop.f32.mrf.mxu0
      %2814 = vmatprep.mubr.f32.mxu0 0.0
      %2815 = vmatmul.mubr.f32.gmra.mxu0 %v2644
      %v2816 = vpop.f32.mrf.mxu0
      %v2817 = vadd.f32 0.0, %v2816
      %v2818 = vpop.f32.mrf.mxu0
      %2819 = vmatprep.mubr.f32.mxu0 0.0
      %2820 = vmatmul.mubr.f32.gmra.mxu0 %v2647
      %v2821 = vpop.f32.mrf.mxu0
      %v2822 = vadd.f32 0.0, %v2821
      %v2823 = vpop.f32.mrf.mxu0
      %2824 = vmatprep.mubr.f32.mxu0 0.0
      %2825 = vmatmul.mubr.f32.gmra.mxu0 %v2650
      %v2826 = vpop.f32.mrf.mxu0
      %v2827 = vadd.f32 0.0, %v2826
      %v2828 = vpop.f32.mrf.mxu0
      %2829 = vmatprep.mubr.f32.mxu0 0.0
      %2830 = vmatmul.mubr.f32.gmra.mxu0 %v2653
      %v2831 = vpop.f32.mrf.mxu0
      %v2832 = vadd.f32 0.0, %v2831
      %v2833 = vpop.f32.mrf.mxu0
      %2834 = vmatprep.mubr.f32.mxu0 0.0
      %2835 = vmatmul.mubr.f32.gmra.mxu0 %v2656
      %v2836 = vpop.f32.mrf.mxu0
      %v2837 = vadd.f32 0.0, %v2836
      %v2838 = vpop.f32.mrf.mxu0
      %2839 = vmatprep.mubr.f32.mxu0 0.0
      %2840 = vmatmul.mubr.f32.gmra.mxu0 %v2659
      %v2841 = vpop.f32.mrf.mxu0
      %v2842 = vadd.f32 0.0, %v2841
      %v2843 = vpop.f32.mrf.mxu0
      %2844 = vmatprep.mubr.f32.mxu0 0.0
      %2845 = vmatmul.mubr.f32.gmra.mxu0 %v2662
      %v2846 = vpop.f32.mrf.mxu0
      %v2847 = vadd.f32 0.0, %v2846
      %v2848 = vpop.f32.mrf.mxu0
      %2849 = vmatprep.mubr.f32.mxu0 0.0
      %2850 = vmatmul.mubr.f32.gmra.mxu0 %v2665
      %v2851 = vpop.f32.mrf.mxu0
      %v2852 = vadd.f32 0.0, %v2851
      %v2853 = vpop.f32.mrf.mxu0
      %2854 = vmatprep.mubr.f32.mxu0 0.0
      %2855 = vmatmul.mubr.f32.gmra.mxu0 %v2668
      %v2856 = vpop.f32.mrf.mxu0
      %v2857 = vadd.f32 0.0, %v2856
      %v2858 = vpop.f32.mrf.mxu0
      %2859 = vmatprep.mubr.f32.mxu0 0.0
      %2860 = vmatmul.mubr.f32.gmra.mxu0 %v2671
      %v2861 = vpop.f32.mrf.mxu0
      %v2862 = vadd.f32 0.0, %v2861
      %v2863 = vpop.f32.mrf.mxu0
      %2864 = vmatprep.mubr.f32.mxu0 0.0
      %2865 = vmatmul.mubr.f32.gmra.mxu0 %v2674
      %v2866 = vpop.f32.mrf.mxu0
      %v2867 = vadd.f32 0.0, %v2866
      %v2868 = vpop.f32.mrf.mxu0
      %2869 = vmatprep.mubr.f32.mxu0 0.0
      %2870 = vmatmul.mubr.f32.gmra.mxu0 %v2677
      %v2871 = vpop.f32.mrf.mxu0
      %v2872 = vadd.f32 0.0, %v2871
      %v2873 = vpop.f32.mrf.mxu0
      %2874 = vmatprep.mubr.f32.mxu0 0.0
      %2875 = vmatmul.mubr.f32.gmra.mxu0 %v2680
      %v2876 = vpop.f32.mrf.mxu0
      %v2877 = vadd.f32 0.0, %v2876
      %v2878 = vpop.f32.mrf.mxu0
      %2879 = vmatprep.mubr.f32.mxu0 0.0
      %2880 = vmatmul.mubr.f32.gmra.mxu0 %v2683
      %v2881 = vpop.f32.mrf.mxu0
      %v2882 = vadd.f32 0.0, %v2881
      %v2883 = vpop.f32.mrf.mxu0
      %2884 = vmatprep.mubr.f32.mxu0 0.0
      %2885 = vmatmul.mubr.f32.gmra.mxu0 %v2686
      %v2886 = vpop.f32.mrf.mxu0
      %v2887 = vadd.f32 0.0, %v2886
      %v2888 = vpop.f32.mrf.mxu0
      %2889 = vmatprep.mubr.f32.mxu0 0.0
      %2890 = vmatmul.mubr.f32.gmra.mxu0 %v2689
      %v2891 = vpop.f32.mrf.mxu0
      %v2892 = vadd.f32 0.0, %v2891
      %v2893 = vpop.f32.mrf.mxu0
      %2894 = vmatprep.mubr.f32.mxu0 0.0
      %2895 = vmatmul.mubr.f32.gmra.mxu0 %v2692
      %v2896 = vpop.f32.mrf.mxu0
      %v2897 = vadd.f32 0.0, %v2896
      %v2898 = vpop.f32.mrf.mxu0
      %2899 = vmatprep.mubr.f32.mxu0 0.0
      %2900 = vmatmul.mubr.f32.gmra.mxu0 %v2695
      %v2901 = vpop.f32.mrf.mxu0
      %v2902 = vadd.f32 0.0, %v2901
      %v2903 = vpop.f32.mrf.mxu0
      %2904 = vmatprep.mubr.f32.mxu0 0.0
      %2905 = vmatmul.mubr.f32.gmra.mxu0 %v2698
      %v2906 = vpop.f32.mrf.mxu0
      %v2907 = vadd.f32 0.0, %v2906
      %v2908 = vpop.f32.mrf.mxu0
      %2909 = vmatprep.mubr.f32.mxu0 0.0
      %2910 = vmatmul.mubr.f32.gmra.mxu0 %v2701
      %v2911 = vpop.f32.mrf.mxu0
      %v2912 = vadd.f32 0.0, %v2911
      %v2913 = vpop.f32.mrf.mxu0
      %2914 = vmatprep.mubr.f32.mxu0 0.0
      %2915 = vmatmul.mubr.f32.gmra.mxu0 %v2704
      %v2916 = vpop.f32.mrf.mxu0
      %v2917 = vadd.f32 0.0, %v2916
      %v2918 = vpop.f32.mrf.mxu0
      %2919 = vmatprep.mubr.f32.mxu0 0.0
      %2920 = vmatmul.mubr.f32.gmra.mxu0 %v2707
      %v2921 = vpop.f32.mrf.mxu0
      %v2922 = vadd.f32 0.0, %v2921
      %v2923 = vpop.f32.mrf.mxu0
      %2924 = vmatprep.mubr.f32.mxu0 0.0
      %2925 = vmatmul.mubr.f32.gmra.mxu0 %v2710
      %v2926 = vpop.f32.mrf.mxu0
      %v2927 = vadd.f32 0.0, %v2926
      %v2928 = vpop.f32.mrf.mxu0
      %2929 = vmatprep.mubr.f32.mxu0 0.0
      %2930 = vmatmul.mubr.f32.gmra.mxu0 %v2713
      %v2931 = vpop.f32.mrf.mxu0
      %v2932 = vadd.f32 0.0, %v2931
      %v2933 = vpop.f32.mrf.mxu0
      %2934 = vmatprep.mubr.f32.mxu0 0.0
      %2935 = vmatmul.mubr.f32.gmra.mxu0 %v2716
      %v2936 = vpop.f32.mrf.mxu0
      %v2937 = vadd.f32 0.0, %v2936
      %v2938 = vpop.f32.mrf.mxu0
      %2939 = vmatprep.mubr.f32.mxu0 0.0
      %2940 = vmatmul.mubr.f32.gmra.mxu0 %v2719
      %v2941 = vpop.f32.mrf.mxu0
      %v2942 = vadd.f32 0.0, %v2941
      %v2943 = vpop.f32.mrf.mxu0
      %2944 = vmatprep.mubr.f32.mxu0 0.0
      %2945 = vmatmul.mubr.f32.gmra.mxu0 %v2722
      %v2946 = vpop.f32.mrf.mxu0
      %v2947 = vadd.f32 0.0, %v2946
      %v2948 = vpop.f32.mrf.mxu0
      %2949 = vmatprep.mubr.f32.mxu0 0.0
      %2950 = vmatmul.mubr.f32.gmra.mxu0 %v2725
      %v2951 = vpop.f32.mrf.mxu0
      %v2952 = vadd.f32 0.0, %v2951
      %v2953 = vpop.f32.mrf.mxu0
      %2954 = vdwg.mxu0
      %v2955 = vadd.f32 %v2565, %v2797
      %v2956 = vadd.f32 %v2566, %v2802
      %v2957 = vadd.f32 %v2567, %v2807
      %v2958 = vadd.f32 %v2568, %v2812
      %v2959 = vadd.f32 %v2569, %v2817
      %v2960 = vadd.f32 %v2570, %v2822
      %v2961 = vadd.f32 %v2571, %v2827
      %v2962 = vadd.f32 %v2572, %v2832
      %v2963 = vadd.f32 %v2573, %v2837
      %v2964 = vadd.f32 %v2574, %v2842
      %v2965 = vadd.f32 %v2575, %v2847
      %v2966 = vadd.f32 %v2576, %v2852
      %v2967 = vadd.f32 %v2577, %v2857
      %v2968 = vadd.f32 %v2578, %v2862
      %v2969 = vadd.f32 %v2579, %v2867
      %v2970 = vadd.f32 %v2580, %v2872
      %v2971 = vadd.f32 %v2581, %v2877
      %v2972 = vadd.f32 %v2582, %v2882
      %v2973 = vadd.f32 %v2583, %v2887
      %v2974 = vadd.f32 %v2584, %v2892
      %v2975 = vadd.f32 %v2585, %v2897
      %v2976 = vadd.f32 %v2586, %v2902
      %v2977 = vadd.f32 %v2587, %v2907
      %v2978 = vadd.f32 %v2588, %v2912
      %v2979 = vadd.f32 %v2589, %v2917
      %v2980 = vadd.f32 %v2590, %v2922
      %v2981 = vadd.f32 %v2591, %v2927
      %v2982 = vadd.f32 %v2592, %v2932
      %v2983 = vadd.f32 %v2593, %v2937
      %v2984 = vadd.f32 %v2594, %v2942
      %v2985 = vadd.f32 %v2595, %v2947
      %v2986 = vadd.f32 %v2596, %v2952
      %v2987 = vld [vmem:[%s237 + $0x1] sm:$0xff]
      %v2988 = vld [vmem:[%s237 + $0x9] sm:$0xff]
      %v2989 = vld [vmem:[%s237 + $0x19] sm:$0xff]
      %v2990 = vld [vmem:[%s237 + $0x21] sm:$0xff]
      %v2991 = vld [vmem:[%s237 + $0x31] sm:$0xff]
      %v2992 = vld [vmem:[%s237 + $0x39] sm:$0xff]
      %v2993 = vld [vmem:[%s237 + $0x49] sm:$0xff]
      %v2994 = vld [vmem:[%s237 + $0x51] sm:$0xff]
      %v2995 = vld [vmem:[%s237 + $0x61] sm:$0xff]
      %v2996 = vld [vmem:[%s237 + $0x69] sm:$0xff]
      %v2997 = vld [vmem:[%s237 + $0x79] sm:$0xff]
      %v2998 = vld [vmem:[%s237 + $0x81] sm:$0xff]
      %v2999 = vld [vmem:[%s237 + $0x91] sm:$0xff]
      %v3000 = vld [vmem:[%s237 + $0x99] sm:$0xff]
      %v3001 = vld [vmem:[%s237 + $0xa9] sm:$0xff]
      %v3002 = vld [vmem:[%s237 + $0xb1] sm:$0xff]
      %v3003 = vld [vmem:[%s237 + $0xc1] sm:$0xff]
      %v3004 = vld [vmem:[%s237 + $0xc9] sm:$0xff]
      %v3005 = vld [vmem:[%s237 + $0xd9] sm:$0xff]
      %v3006 = vld [vmem:[%s237 + $0xe1] sm:$0xff]
      %v3007 = vld [vmem:[%s237 + $0xf1] sm:$0xff]
      %v3008 = vld [vmem:[%s237 + $0xf9] sm:$0xff]
      %v3009 = vld [vmem:[%s237 + $0x109] sm:$0xff]
      %v3010 = vld [vmem:[%s237 + $0x111] sm:$0xff]
      %v3011 = vld [vmem:[%s237 + $0x121] sm:$0xff]
      %v3012 = vld [vmem:[%s237 + $0x129] sm:$0xff]
      %v3013 = vld [vmem:[%s237 + $0x139] sm:$0xff]
      %v3014 = vld [vmem:[%s237 + $0x141] sm:$0xff]
      %v3015 = vld [vmem:[%s237 + $0x151] sm:$0xff]
      %v3016 = vld [vmem:[%s237 + $0x159] sm:$0xff]
      %v3017 = vld [vmem:[%s237 + $0x169] sm:$0xff]
      %v3018 = vld [vmem:[%s237 + $0x171] sm:$0xff]
      %s3019 = scalar_lea.vmem %s1, 28
      %v3020 = vld [vmem:[%s3019] sm:$0xf]
      %v3022 = vsel %vm204, %v2987, 0
      %v3025 = vsel %vm204, %v2988, 0
      %v3028 = vsel %vm204, %v2989, 0
      %v3031 = vsel %vm204, %v2990, 0
      %v3034 = vsel %vm204, %v2991, 0
      %v3037 = vsel %vm204, %v2992, 0
      %v3040 = vsel %vm204, %v2993, 0
      %v3043 = vsel %vm204, %v2994, 0
      %v3046 = vsel %vm204, %v2995, 0
      %v3049 = vsel %vm204, %v2996, 0
      %v3052 = vsel %vm204, %v2997, 0
      %v3055 = vsel %vm204, %v2998, 0
      %v3058 = vsel %vm204, %v2999, 0
      %v3061 = vsel %vm204, %v3000, 0
      %v3064 = vsel %vm204, %v3001, 0
      %v3067 = vsel %vm204, %v3002, 0
      %v3070 = vsel %vm204, %v3003, 0
      %v3073 = vsel %vm204, %v3004, 0
      %v3076 = vsel %vm204, %v3005, 0
      %v3079 = vsel %vm204, %v3006, 0
      %v3082 = vsel %vm204, %v3007, 0
      %v3085 = vsel %vm204, %v3008, 0
      %v3088 = vsel %vm204, %v3009, 0
      %v3091 = vsel %vm204, %v3010, 0
      %v3094 = vsel %vm204, %v3011, 0
      %v3097 = vsel %vm204, %v3012, 0
      %v3100 = vsel %vm204, %v3013, 0
      %v3103 = vsel %vm204, %v3014, 0
      %v3106 = vsel %vm204, %v3015, 0
      %v3109 = vsel %vm204, %v3016, 0
      %v3112 = vsel %vm204, %v3017, 0
      %v3115 = vsel %vm204, %v3018, 0
      %v3118 = vsel %vm484, %v3020, 0
      %3120 = vmatprep.subr.mxu0 0.0
      %3121 = vmatpush1.msra.mxu0 0.0
      %3122 = vmatprep.subr.mxu0 0.0
      %3123 = vmatpush1.msra.mxu0 0.0
      %3124 = vmatprep.subr.mxu0 0.0
      %3125 = vmatpush1.msra.mxu0 0.0
      %3126 = vmatprep.subr.mxu0 0.0
      %3127 = vmatpush1.msra.mxu0 0.0
      %3128 = vmatprep.subr.mxu0 0.0
      %3129 = vmatpush1.msra.mxu0 0.0
      %3130 = vmatprep.subr.mxu0 0.0
      %3131 = vmatpush1.msra.mxu0 0.0
      %3132 = vmatprep.subr.mxu0 0.0
      %3133 = vmatpush1.msra.mxu0 0.0
      %3134 = vmatprep.subr.mxu0 0.0
      %3135 = vmatpush1.msra.mxu0 0.0
      %3136 = vmatprep.subr.mxu0 0.0
      %3137 = vmatpush1.msra.mxu0 0.0
      %3138 = vmatprep.subr.mxu0 0.0
      %3139 = vmatpush1.msra.mxu0 0.0
      %3140 = vmatprep.subr.mxu0 0.0
      %3141 = vmatpush1.msra.mxu0 0.0
      %3142 = vmatprep.subr.mxu0 0.0
      %3143 = vmatpush1.msra.mxu0 0.0
      %3144 = vmatprep.subr.mxu0 0.0
      %3145 = vmatpush1.msra.mxu0 0.0
      %3146 = vmatprep.subr.mxu0 0.0
      %3147 = vmatpush1.msra.mxu0 0.0
      %3148 = vmatprep.subr.mxu0 0.0
      %3149 = vmatpush1.msra.mxu0 0.0
      %3150 = vmatprep.subr.mxu0 0.0
      %3151 = vmatpush1.msra.mxu0 %v3118
      %3152 = vmatprep.subr.mxu0 0.0
      %3153 = vmatpush2.msra.mxu0 0.0
      %3154 = vmatprep.subr.mxu0 0.0
      %3155 = vmatpush2.msra.mxu0 0.0
      %3156 = vmatprep.subr.mxu0 0.0
      %3157 = vmatpush2.msra.mxu0 0.0
      %3158 = vmatprep.subr.mxu0 0.0
      %3159 = vmatpush2.msra.mxu0 0.0
      %3160 = vmatprep.subr.mxu0 0.0
      %3161 = vmatpush2.msra.mxu0 0.0
      %3162 = vmatprep.subr.mxu0 0.0
      %3163 = vmatpush2.msra.mxu0 0.0
      %3164 = vmatprep.subr.mxu0 0.0
      %3165 = vmatpush2.msra.mxu0 0.0
      %3166 = vmatprep.subr.mxu0 0.0
      %3167 = vmatpush2.msra.mxu0 0.0
      %3168 = vmatprep.subr.mxu0 0.0
      %3169 = vmatpush2.msra.mxu0 0.0
      %3170 = vmatprep.subr.mxu0 0.0
      %3171 = vmatpush2.msra.mxu0 0.0
      %3172 = vmatprep.subr.mxu0 0.0
      %3173 = vmatpush2.msra.mxu0 0.0
      %3174 = vmatprep.subr.mxu0 0.0
      %3175 = vmatpush2.msra.mxu0 0.0
      %3176 = vmatprep.subr.mxu0 0.0
      %3177 = vmatpush2.msra.mxu0 0.0
      %3178 = vmatprep.subr.mxu0 0.0
      %3179 = vmatpush2.msra.mxu0 0.0
      %3180 = vmatprep.subr.mxu0 0.0
      %3181 = vmatpush2.msra.mxu0 0.0
      %3182 = vmatprep.subr.mxu0 0.0
      %3183 = vmatpush2.msra.mxu0 0.0
      %3184 = vmatprep.mubr.f32.mxu0 0.0
      %3185 = vmatmul.mubr.f32.gmra.mxu0 %v3022
      %v3186 = vpop.f32.mrf.mxu0
      %v3187 = vadd.f32 0.0, %v3186
      %v3188 = vpop.f32.mrf.mxu0
      %3189 = vmatprep.mubr.f32.mxu0 0.0
      %3190 = vmatmul.mubr.f32.gmra.mxu0 %v3025
      %v3191 = vpop.f32.mrf.mxu0
      %v3192 = vadd.f32 0.0, %v3191
      %v3193 = vpop.f32.mrf.mxu0
      %3194 = vmatprep.mubr.f32.mxu0 0.0
      %3195 = vmatmul.mubr.f32.gmra.mxu0 %v3028
      %v3196 = vpop.f32.mrf.mxu0
      %v3197 = vadd.f32 0.0, %v3196
      %v3198 = vpop.f32.mrf.mxu0
      %3199 = vmatprep.mubr.f32.mxu0 0.0
      %3200 = vmatmul.mubr.f32.gmra.mxu0 %v3031
      %v3201 = vpop.f32.mrf.mxu0
      %v3202 = vadd.f32 0.0, %v3201
      %v3203 = vpop.f32.mrf.mxu0
      %3204 = vmatprep.mubr.f32.mxu0 0.0
      %3205 = vmatmul.mubr.f32.gmra.mxu0 %v3034
      %v3206 = vpop.f32.mrf.mxu0
      %v3207 = vadd.f32 0.0, %v3206
      %v3208 = vpop.f32.mrf.mxu0
      %3209 = vmatprep.mubr.f32.mxu0 0.0
      %3210 = vmatmul.mubr.f32.gmra.mxu0 %v3037
      %v3211 = vpop.f32.mrf.mxu0
      %v3212 = vadd.f32 0.0, %v3211
      %v3213 = vpop.f32.mrf.mxu0
      %3214 = vmatprep.mubr.f32.mxu0 0.0
      %3215 = vmatmul.mubr.f32.gmra.mxu0 %v3040
      %v3216 = vpop.f32.mrf.mxu0
      %v3217 = vadd.f32 0.0, %v3216
      %v3218 = vpop.f32.mrf.mxu0
      %3219 = vmatprep.mubr.f32.mxu0 0.0
      %3220 = vmatmul.mubr.f32.gmra.mxu0 %v3043
      %v3221 = vpop.f32.mrf.mxu0
      %v3222 = vadd.f32 0.0, %v3221
      %v3223 = vpop.f32.mrf.mxu0
      %3224 = vmatprep.mubr.f32.mxu0 0.0
      %3225 = vmatmul.mubr.f32.gmra.mxu0 %v3046
      %v3226 = vpop.f32.mrf.mxu0
      %v3227 = vadd.f32 0.0, %v3226
      %v3228 = vpop.f32.mrf.mxu0
      %3229 = vmatprep.mubr.f32.mxu0 0.0
      %3230 = vmatmul.mubr.f32.gmra.mxu0 %v3049
      %v3231 = vpop.f32.mrf.mxu0
      %v3232 = vadd.f32 0.0, %v3231
      %v3233 = vpop.f32.mrf.mxu0
      %3234 = vmatprep.mubr.f32.mxu0 0.0
      %3235 = vmatmul.mubr.f32.gmra.mxu0 %v3052
      %v3236 = vpop.f32.mrf.mxu0
      %v3237 = vadd.f32 0.0, %v3236
      %v3238 = vpop.f32.mrf.mxu0
      %3239 = vmatprep.mubr.f32.mxu0 0.0
      %3240 = vmatmul.mubr.f32.gmra.mxu0 %v3055
      %v3241 = vpop.f32.mrf.mxu0
      %v3242 = vadd.f32 0.0, %v3241
      %v3243 = vpop.f32.mrf.mxu0
      %3244 = vmatprep.mubr.f32.mxu0 0.0
      %3245 = vmatmul.mubr.f32.gmra.mxu0 %v3058
      %v3246 = vpop.f32.mrf.mxu0
      %v3247 = vadd.f32 0.0, %v3246
      %v3248 = vpop.f32.mrf.mxu0
      %3249 = vmatprep.mubr.f32.mxu0 0.0
      %3250 = vmatmul.mubr.f32.gmra.mxu0 %v3061
      %v3251 = vpop.f32.mrf.mxu0
      %v3252 = vadd.f32 0.0, %v3251
      %v3253 = vpop.f32.mrf.mxu0
      %3254 = vmatprep.mubr.f32.mxu0 0.0
      %3255 = vmatmul.mubr.f32.gmra.mxu0 %v3064
      %v3256 = vpop.f32.mrf.mxu0
      %v3257 = vadd.f32 0.0, %v3256
      %v3258 = vpop.f32.mrf.mxu0
      %3259 = vmatprep.mubr.f32.mxu0 0.0
      %3260 = vmatmul.mubr.f32.gmra.mxu0 %v3067
      %v3261 = vpop.f32.mrf.mxu0
      %v3262 = vadd.f32 0.0, %v3261
      %v3263 = vpop.f32.mrf.mxu0
      %3264 = vmatprep.mubr.f32.mxu0 0.0
      %3265 = vmatmul.mubr.f32.gmra.mxu0 %v3070
      %v3266 = vpop.f32.mrf.mxu0
      %v3267 = vadd.f32 0.0, %v3266
      %v3268 = vpop.f32.mrf.mxu0
      %3269 = vmatprep.mubr.f32.mxu0 0.0
      %3270 = vmatmul.mubr.f32.gmra.mxu0 %v3073
      %v3271 = vpop.f32.mrf.mxu0
      %v3272 = vadd.f32 0.0, %v3271
      %v3273 = vpop.f32.mrf.mxu0
      %3274 = vmatprep.mubr.f32.mxu0 0.0
      %3275 = vmatmul.mubr.f32.gmra.mxu0 %v3076
      %v3276 = vpop.f32.mrf.mxu0
      %v3277 = vadd.f32 0.0, %v3276
      %v3278 = vpop.f32.mrf.mxu0
      %3279 = vmatprep.mubr.f32.mxu0 0.0
      %3280 = vmatmul.mubr.f32.gmra.mxu0 %v3079
      %v3281 = vpop.f32.mrf.mxu0
      %v3282 = vadd.f32 0.0, %v3281
      %v3283 = vpop.f32.mrf.mxu0
      %3284 = vmatprep.mubr.f32.mxu0 0.0
      %3285 = vmatmul.mubr.f32.gmra.mxu0 %v3082
      %v3286 = vpop.f32.mrf.mxu0
      %v3287 = vadd.f32 0.0, %v3286
      %v3288 = vpop.f32.mrf.mxu0
      %3289 = vmatprep.mubr.f32.mxu0 0.0
      %3290 = vmatmul.mubr.f32.gmra.mxu0 %v3085
      %v3291 = vpop.f32.mrf.mxu0
      %v3292 = vadd.f32 0.0, %v3291
      %v3293 = vpop.f32.mrf.mxu0
      %3294 = vmatprep.mubr.f32.mxu0 0.0
      %3295 = vmatmul.mubr.f32.gmra.mxu0 %v3088
      %v3296 = vpop.f32.mrf.mxu0
      %v3297 = vadd.f32 0.0, %v3296
      %v3298 = vpop.f32.mrf.mxu0
      %3299 = vmatprep.mubr.f32.mxu0 0.0
      %3300 = vmatmul.mubr.f32.gmra.mxu0 %v3091
      %v3301 = vpop.f32.mrf.mxu0
      %v3302 = vadd.f32 0.0, %v3301
      %v3303 = vpop.f32.mrf.mxu0
      %3304 = vmatprep.mubr.f32.mxu0 0.0
      %3305 = vmatmul.mubr.f32.gmra.mxu0 %v3094
      %v3306 = vpop.f32.mrf.mxu0
      %v3307 = vadd.f32 0.0, %v3306
      %v3308 = vpop.f32.mrf.mxu0
      %3309 = vmatprep.mubr.f32.mxu0 0.0
      %3310 = vmatmul.mubr.f32.gmra.mxu0 %v3097
      %v3311 = vpop.f32.mrf.mxu0
      %v3312 = vadd.f32 0.0, %v3311
      %v3313 = vpop.f32.mrf.mxu0
      %3314 = vmatprep.mubr.f32.mxu0 0.0
      %3315 = vmatmul.mubr.f32.gmra.mxu0 %v3100
      %v3316 = vpop.f32.mrf.mxu0
      %v3317 = vadd.f32 0.0, %v3316
      %v3318 = vpop.f32.mrf.mxu0
      %3319 = vmatprep.mubr.f32.mxu0 0.0
      %3320 = vmatmul.mubr.f32.gmra.mxu0 %v3103
      %v3321 = vpop.f32.mrf.mxu0
      %v3322 = vadd.f32 0.0, %v3321
      %v3323 = vpop.f32.mrf.mxu0
      %3324 = vmatprep.mubr.f32.mxu0 0.0
      %3325 = vmatmul.mubr.f32.gmra.mxu0 %v3106
      %v3326 = vpop.f32.mrf.mxu0
      %v3327 = vadd.f32 0.0, %v3326
      %v3328 = vpop.f32.mrf.mxu0
      %3329 = vmatprep.mubr.f32.mxu0 0.0
      %3330 = vmatmul.mubr.f32.gmra.mxu0 %v3109
      %v3331 = vpop.f32.mrf.mxu0
      %v3332 = vadd.f32 0.0, %v3331
      %v3333 = vpop.f32.mrf.mxu0
      %3334 = vmatprep.mubr.f32.mxu0 0.0
      %3335 = vmatmul.mubr.f32.gmra.mxu0 %v3112
      %v3336 = vpop.f32.mrf.mxu0
      %v3337 = vadd.f32 0.0, %v3336
      %v3338 = vpop.f32.mrf.mxu0
      %3339 = vmatprep.mubr.f32.mxu0 0.0
      %3340 = vmatmul.mubr.f32.gmra.mxu0 %v3115
      %v3341 = vpop.f32.mrf.mxu0
      %v3342 = vadd.f32 0.0, %v3341
      %v3343 = vpop.f32.mrf.mxu0
      %3344 = vdwg.mxu0
      %v3345 = vadd.f32 %v2955, %v3187
      %v3346 = vadd.f32 %v2956, %v3192
      %v3347 = vadd.f32 %v2957, %v3197
      %v3348 = vadd.f32 %v2958, %v3202
      %v3349 = vadd.f32 %v2959, %v3207
      %v3350 = vadd.f32 %v2960, %v3212
      %v3351 = vadd.f32 %v2961, %v3217
      %v3352 = vadd.f32 %v2962, %v3222
      %v3353 = vadd.f32 %v2963, %v3227
      %v3354 = vadd.f32 %v2964, %v3232
      %v3355 = vadd.f32 %v2965, %v3237
      %v3356 = vadd.f32 %v2966, %v3242
      %v3357 = vadd.f32 %v2967, %v3247
      %v3358 = vadd.f32 %v2968, %v3252
      %v3359 = vadd.f32 %v2969, %v3257
      %v3360 = vadd.f32 %v2970, %v3262
      %v3361 = vadd.f32 %v2971, %v3267
      %v3362 = vadd.f32 %v2972, %v3272
      %v3363 = vadd.f32 %v2973, %v3277
      %v3364 = vadd.f32 %v2974, %v3282
      %v3365 = vadd.f32 %v2975, %v3287
      %v3366 = vadd.f32 %v2976, %v3292
      %v3367 = vadd.f32 %v2977, %v3297
      %v3368 = vadd.f32 %v2978, %v3302
      %v3369 = vadd.f32 %v2979, %v3307
      %v3370 = vadd.f32 %v2980, %v3312
      %v3371 = vadd.f32 %v2981, %v3317
      %v3372 = vadd.f32 %v2982, %v3322
      %v3373 = vadd.f32 %v2983, %v3327
      %v3374 = vadd.f32 %v2984, %v3332
      %v3375 = vadd.f32 %v2985, %v3337
      %v3376 = vadd.f32 %v2986, %v3342
      %v3377 = vld [vmem:[%s237 + $0x2] sm:$0xff]
      %v3378 = vld [vmem:[%s237 + $0xa] sm:$0xff]
      %v3379 = vld [vmem:[%s237 + $0x1a] sm:$0xff]
      %v3380 = vld [vmem:[%s237 + $0x22] sm:$0xff]
      %v3381 = vld [vmem:[%s237 + $0x32] sm:$0xff]
      %v3382 = vld [vmem:[%s237 + $0x3a] sm:$0xff]
      %v3383 = vld [vmem:[%s237 + $0x4a] sm:$0xff]
      %v3384 = vld [vmem:[%s237 + $0x52] sm:$0xff]
      %v3385 = vld [vmem:[%s237 + $0x62] sm:$0xff]
      %v3386 = vld [vmem:[%s237 + $0x6a] sm:$0xff]
      %v3387 = vld [vmem:[%s237 + $0x7a] sm:$0xff]
      %v3388 = vld [vmem:[%s237 + $0x82] sm:$0xff]
      %v3389 = vld [vmem:[%s237 + $0x92] sm:$0xff]
      %v3390 = vld [vmem:[%s237 + $0x9a] sm:$0xff]
      %v3391 = vld [vmem:[%s237 + $0xaa] sm:$0xff]
      %v3392 = vld [vmem:[%s237 + $0xb2] sm:$0xff]
      %v3393 = vld [vmem:[%s237 + $0xc2] sm:$0xff]
      %v3394 = vld [vmem:[%s237 + $0xca] sm:$0xff]
      %v3395 = vld [vmem:[%s237 + $0xda] sm:$0xff]
      %v3396 = vld [vmem:[%s237 + $0xe2] sm:$0xff]
      %v3397 = vld [vmem:[%s237 + $0xf2] sm:$0xff]
      %v3398 = vld [vmem:[%s237 + $0xfa] sm:$0xff]
      %v3399 = vld [vmem:[%s237 + $0x10a] sm:$0xff]
      %v3400 = vld [vmem:[%s237 + $0x112] sm:$0xff]
      %v3401 = vld [vmem:[%s237 + $0x122] sm:$0xff]
      %v3402 = vld [vmem:[%s237 + $0x12a] sm:$0xff]
      %v3403 = vld [vmem:[%s237 + $0x13a] sm:$0xff]
      %v3404 = vld [vmem:[%s237 + $0x142] sm:$0xff]
      %v3405 = vld [vmem:[%s237 + $0x152] sm:$0xff]
      %v3406 = vld [vmem:[%s237 + $0x15a] sm:$0xff]
      %v3407 = vld [vmem:[%s237 + $0x16a] sm:$0xff]
      %v3408 = vld [vmem:[%s237 + $0x172] sm:$0xff]
      %s3409 = scalar_lea.vmem %s1, 32
      %v3410 = vld [vmem:[%s3409] sm:$0xf]
      %v3412 = vsel %vm204, %v3377, 0
      %v3415 = vsel %vm204, %v3378, 0
      %v3418 = vsel %vm204, %v3379, 0
      %v3421 = vsel %vm204, %v3380, 0
      %v3424 = vsel %vm204, %v3381, 0
      %v3427 = vsel %vm204, %v3382, 0
      %v3430 = vsel %vm204, %v3383, 0
      %v3433 = vsel %vm204, %v3384, 0
      %v3436 = vsel %vm204, %v3385, 0
      %v3439 = vsel %vm204, %v3386, 0
      %v3442 = vsel %vm204, %v3387, 0
      %v3445 = vsel %vm204, %v3388, 0
      %v3448 = vsel %vm204, %v3389, 0
      %v3451 = vsel %vm204, %v3390, 0
      %v3454 = vsel %vm204, %v3391, 0
      %v3457 = vsel %vm204, %v3392, 0
      %v3460 = vsel %vm204, %v3393, 0
      %v3463 = vsel %vm204, %v3394, 0
      %v3466 = vsel %vm204, %v3395, 0
      %v3469 = vsel %vm204, %v3396, 0
      %v3472 = vsel %vm204, %v3397, 0
      %v3475 = vsel %vm204, %v3398, 0
      %v3478 = vsel %vm204, %v3399, 0
      %v3481 = vsel %vm204, %v3400, 0
      %v3484 = vsel %vm204, %v3401, 0
      %v3487 = vsel %vm204, %v3402, 0
      %v3490 = vsel %vm204, %v3403, 0
      %v3493 = vsel %vm204, %v3404, 0
      %v3496 = vsel %vm204, %v3405, 0
      %v3499 = vsel %vm204, %v3406, 0
      %v3502 = vsel %vm204, %v3407, 0
      %v3505 = vsel %vm204, %v3408, 0
      %v3508 = vsel %vm484, %v3410, 0
      %3510 = vmatprep.subr.mxu0 0.0
      %3511 = vmatpush1.msra.mxu0 0.0
      %3512 = vmatprep.subr.mxu0 0.0
      %3513 = vmatpush1.msra.mxu0 0.0
      %3514 = vmatprep.subr.mxu0 0.0
      %3515 = vmatpush1.msra.mxu0 0.0
      %3516 = vmatprep.subr.mxu0 0.0
      %3517 = vmatpush1.msra.mxu0 0.0
      %3518 = vmatprep.subr.mxu0 0.0
      %3519 = vmatpush1.msra.mxu0 0.0
      %3520 = vmatprep.subr.mxu0 0.0
      %3521 = vmatpush1.msra.mxu0 0.0
      %3522 = vmatprep.subr.mxu0 0.0
      %3523 = vmatpush1.msra.mxu0 0.0
      %3524 = vmatprep.subr.mxu0 0.0
      %3525 = vmatpush1.msra.mxu0 0.0
      %3526 = vmatprep.subr.mxu0 0.0
      %3527 = vmatpush1.msra.mxu0 0.0
      %3528 = vmatprep.subr.mxu0 0.0
      %3529 = vmatpush1.msra.mxu0 0.0
      %3530 = vmatprep.subr.mxu0 0.0
      %3531 = vmatpush1.msra.mxu0 0.0
      %3532 = vmatprep.subr.mxu0 0.0
      %3533 = vmatpush1.msra.mxu0 0.0
      %3534 = vmatprep.subr.mxu0 0.0
      %3535 = vmatpush1.msra.mxu0 0.0
      %3536 = vmatprep.subr.mxu0 0.0
      %3537 = vmatpush1.msra.mxu0 0.0
      %3538 = vmatprep.subr.mxu0 0.0
      %3539 = vmatpush1.msra.mxu0 0.0
      %3540 = vmatprep.subr.mxu0 0.0
      %3541 = vmatpush1.msra.mxu0 %v3508
      %3542 = vmatprep.subr.mxu0 0.0
      %3543 = vmatpush2.msra.mxu0 0.0
      %3544 = vmatprep.subr.mxu0 0.0
      %3545 = vmatpush2.msra.mxu0 0.0
      %3546 = vmatprep.subr.mxu0 0.0
      %3547 = vmatpush2.msra.mxu0 0.0
      %3548 = vmatprep.subr.mxu0 0.0
      %3549 = vmatpush2.msra.mxu0 0.0
      %3550 = vmatprep.subr.mxu0 0.0
      %3551 = vmatpush2.msra.mxu0 0.0
      %3552 = vmatprep.subr.mxu0 0.0
      %3553 = vmatpush2.msra.mxu0 0.0
      %3554 = vmatprep.subr.mxu0 0.0
      %3555 = vmatpush2.msra.mxu0 0.0
      %3556 = vmatprep.subr.mxu0 0.0
      %3557 = vmatpush2.msra.mxu0 0.0
      %3558 = vmatprep.subr.mxu0 0.0
      %3559 = vmatpush2.msra.mxu0 0.0
      %3560 = vmatprep.subr.mxu0 0.0
      %3561 = vmatpush2.msra.mxu0 0.0
      %3562 = vmatprep.subr.mxu0 0.0
      %3563 = vmatpush2.msra.mxu0 0.0
      %3564 = vmatprep.subr.mxu0 0.0
      %3565 = vmatpush2.msra.mxu0 0.0
      %3566 = vmatprep.subr.mxu0 0.0
      %3567 = vmatpush2.msra.mxu0 0.0
      %3568 = vmatprep.subr.mxu0 0.0
      %3569 = vmatpush2.msra.mxu0 0.0
      %3570 = vmatprep.subr.mxu0 0.0
      %3571 = vmatpush2.msra.mxu0 0.0
      %3572 = vmatprep.subr.mxu0 0.0
      %3573 = vmatpush2.msra.mxu0 0.0
      %3574 = vmatprep.mubr.f32.mxu0 0.0
      %3575 = vmatmul.mubr.f32.gmra.mxu0 %v3412
      %v3576 = vpop.f32.mrf.mxu0
      %v3577 = vadd.f32 0.0, %v3576
      %v3578 = vpop.f32.mrf.mxu0
      %3579 = vmatprep.mubr.f32.mxu0 0.0
      %3580 = vmatmul.mubr.f32.gmra.mxu0 %v3415
      %v3581 = vpop.f32.mrf.mxu0
      %v3582 = vadd.f32 0.0, %v3581
      %v3583 = vpop.f32.mrf.mxu0
      %3584 = vmatprep.mubr.f32.mxu0 0.0
      %3585 = vmatmul.mubr.f32.gmra.mxu0 %v3418
      %v3586 = vpop.f32.mrf.mxu0
      %v3587 = vadd.f32 0.0, %v3586
      %v3588 = vpop.f32.mrf.mxu0
      %3589 = vmatprep.mubr.f32.mxu0 0.0
      %3590 = vmatmul.mubr.f32.gmra.mxu0 %v3421
      %v3591 = vpop.f32.mrf.mxu0
      %v3592 = vadd.f32 0.0, %v3591
      %v3593 = vpop.f32.mrf.mxu0
      %3594 = vmatprep.mubr.f32.mxu0 0.0
      %3595 = vmatmul.mubr.f32.gmra.mxu0 %v3424
      %v3596 = vpop.f32.mrf.mxu0
      %v3597 = vadd.f32 0.0, %v3596
      %v3598 = vpop.f32.mrf.mxu0
      %3599 = vmatprep.mubr.f32.mxu0 0.0
      %3600 = vmatmul.mubr.f32.gmra.mxu0 %v3427
      %v3601 = vpop.f32.mrf.mxu0
      %v3602 = vadd.f32 0.0, %v3601
      %v3603 = vpop.f32.mrf.mxu0
      %3604 = vmatprep.mubr.f32.mxu0 0.0
      %3605 = vmatmul.mubr.f32.gmra.mxu0 %v3430
      %v3606 = vpop.f32.mrf.mxu0
      %v3607 = vadd.f32 0.0, %v3606
      %v3608 = vpop.f32.mrf.mxu0
      %3609 = vmatprep.mubr.f32.mxu0 0.0
      %3610 = vmatmul.mubr.f32.gmra.mxu0 %v3433
      %v3611 = vpop.f32.mrf.mxu0
      %v3612 = vadd.f32 0.0, %v3611
      %v3613 = vpop.f32.mrf.mxu0
      %3614 = vmatprep.mubr.f32.mxu0 0.0
      %3615 = vmatmul.mubr.f32.gmra.mxu0 %v3436
      %v3616 = vpop.f32.mrf.mxu0
      %v3617 = vadd.f32 0.0, %v3616
      %v3618 = vpop.f32.mrf.mxu0
      %3619 = vmatprep.mubr.f32.mxu0 0.0
      %3620 = vmatmul.mubr.f32.gmra.mxu0 %v3439
      %v3621 = vpop.f32.mrf.mxu0
      %v3622 = vadd.f32 0.0, %v3621
      %v3623 = vpop.f32.mrf.mxu0
      %3624 = vmatprep.mubr.f32.mxu0 0.0
      %3625 = vmatmul.mubr.f32.gmra.mxu0 %v3442
      %v3626 = vpop.f32.mrf.mxu0
      %v3627 = vadd.f32 0.0, %v3626
      %v3628 = vpop.f32.mrf.mxu0
      %3629 = vmatprep.mubr.f32.mxu0 0.0
      %3630 = vmatmul.mubr.f32.gmra.mxu0 %v3445
      %v3631 = vpop.f32.mrf.mxu0
      %v3632 = vadd.f32 0.0, %v3631
      %v3633 = vpop.f32.mrf.mxu0
      %3634 = vmatprep.mubr.f32.mxu0 0.0
      %3635 = vmatmul.mubr.f32.gmra.mxu0 %v3448
      %v3636 = vpop.f32.mrf.mxu0
      %v3637 = vadd.f32 0.0, %v3636
      %v3638 = vpop.f32.mrf.mxu0
      %3639 = vmatprep.mubr.f32.mxu0 0.0
      %3640 = vmatmul.mubr.f32.gmra.mxu0 %v3451
      %v3641 = vpop.f32.mrf.mxu0
      %v3642 = vadd.f32 0.0, %v3641
      %v3643 = vpop.f32.mrf.mxu0
      %3644 = vmatprep.mubr.f32.mxu0 0.0
      %3645 = vmatmul.mubr.f32.gmra.mxu0 %v3454
      %v3646 = vpop.f32.mrf.mxu0
      %v3647 = vadd.f32 0.0, %v3646
      %v3648 = vpop.f32.mrf.mxu0
      %3649 = vmatprep.mubr.f32.mxu0 0.0
      %3650 = vmatmul.mubr.f32.gmra.mxu0 %v3457
      %v3651 = vpop.f32.mrf.mxu0
      %v3652 = vadd.f32 0.0, %v3651
      %v3653 = vpop.f32.mrf.mxu0
      %3654 = vmatprep.mubr.f32.mxu0 0.0
      %3655 = vmatmul.mubr.f32.gmra.mxu0 %v3460
      %v3656 = vpop.f32.mrf.mxu0
      %v3657 = vadd.f32 0.0, %v3656
      %v3658 = vpop.f32.mrf.mxu0
      %3659 = vmatprep.mubr.f32.mxu0 0.0
      %3660 = vmatmul.mubr.f32.gmra.mxu0 %v3463
      %v3661 = vpop.f32.mrf.mxu0
      %v3662 = vadd.f32 0.0, %v3661
      %v3663 = vpop.f32.mrf.mxu0
      %3664 = vmatprep.mubr.f32.mxu0 0.0
      %3665 = vmatmul.mubr.f32.gmra.mxu0 %v3466
      %v3666 = vpop.f32.mrf.mxu0
      %v3667 = vadd.f32 0.0, %v3666
      %v3668 = vpop.f32.mrf.mxu0
      %3669 = vmatprep.mubr.f32.mxu0 0.0
      %3670 = vmatmul.mubr.f32.gmra.mxu0 %v3469
      %v3671 = vpop.f32.mrf.mxu0
      %v3672 = vadd.f32 0.0, %v3671
      %v3673 = vpop.f32.mrf.mxu0
      %3674 = vmatprep.mubr.f32.mxu0 0.0
      %3675 = vmatmul.mubr.f32.gmra.mxu0 %v3472
      %v3676 = vpop.f32.mrf.mxu0
      %v3677 = vadd.f32 0.0, %v3676
      %v3678 = vpop.f32.mrf.mxu0
      %3679 = vmatprep.mubr.f32.mxu0 0.0
      %3680 = vmatmul.mubr.f32.gmra.mxu0 %v3475
      %v3681 = vpop.f32.mrf.mxu0
      %v3682 = vadd.f32 0.0, %v3681
      %v3683 = vpop.f32.mrf.mxu0
      %3684 = vmatprep.mubr.f32.mxu0 0.0
      %3685 = vmatmul.mubr.f32.gmra.mxu0 %v3478
      %v3686 = vpop.f32.mrf.mxu0
      %v3687 = vadd.f32 0.0, %v3686
      %v3688 = vpop.f32.mrf.mxu0
      %3689 = vmatprep.mubr.f32.mxu0 0.0
      %3690 = vmatmul.mubr.f32.gmra.mxu0 %v3481
      %v3691 = vpop.f32.mrf.mxu0
      %v3692 = vadd.f32 0.0, %v3691
      %v3693 = vpop.f32.mrf.mxu0
      %3694 = vmatprep.mubr.f32.mxu0 0.0
      %3695 = vmatmul.mubr.f32.gmra.mxu0 %v3484
      %v3696 = vpop.f32.mrf.mxu0
      %v3697 = vadd.f32 0.0, %v3696
      %v3698 = vpop.f32.mrf.mxu0
      %3699 = vmatprep.mubr.f32.mxu0 0.0
      %3700 = vmatmul.mubr.f32.gmra.mxu0 %v3487
      %v3701 = vpop.f32.mrf.mxu0
      %v3702 = vadd.f32 0.0, %v3701
      %v3703 = vpop.f32.mrf.mxu0
      %3704 = vmatprep.mubr.f32.mxu0 0.0
      %3705 = vmatmul.mubr.f32.gmra.mxu0 %v3490
      %v3706 = vpop.f32.mrf.mxu0
      %v3707 = vadd.f32 0.0, %v3706
      %v3708 = vpop.f32.mrf.mxu0
      %3709 = vmatprep.mubr.f32.mxu0 0.0
      %3710 = vmatmul.mubr.f32.gmra.mxu0 %v3493
      %v3711 = vpop.f32.mrf.mxu0
      %v3712 = vadd.f32 0.0, %v3711
      %v3713 = vpop.f32.mrf.mxu0
      %3714 = vmatprep.mubr.f32.mxu0 0.0
      %3715 = vmatmul.mubr.f32.gmra.mxu0 %v3496
      %v3716 = vpop.f32.mrf.mxu0
      %v3717 = vadd.f32 0.0, %v3716
      %v3718 = vpop.f32.mrf.mxu0
      %3719 = vmatprep.mubr.f32.mxu0 0.0
      %3720 = vmatmul.mubr.f32.gmra.mxu0 %v3499
      %v3721 = vpop.f32.mrf.mxu0
      %v3722 = vadd.f32 0.0, %v3721
      %v3723 = vpop.f32.mrf.mxu0
      %3724 = vmatprep.mubr.f32.mxu0 0.0
      %3725 = vmatmul.mubr.f32.gmra.mxu0 %v3502
      %v3726 = vpop.f32.mrf.mxu0
      %v3727 = vadd.f32 0.0, %v3726
      %v3728 = vpop.f32.mrf.mxu0
      %3729 = vmatprep.mubr.f32.mxu0 0.0
      %3730 = vmatmul.mubr.f32.gmra.mxu0 %v3505
      %v3731 = vpop.f32.mrf.mxu0
      %v3732 = vadd.f32 0.0, %v3731
      %v3733 = vpop.f32.mrf.mxu0
      %3734 = vdwg.mxu0
      %v3735 = vadd.f32 %v3345, %v3577
      %v3736 = vadd.f32 %v3346, %v3582
      %v3737 = vadd.f32 %v3347, %v3587
      %v3738 = vadd.f32 %v3348, %v3592
      %v3739 = vadd.f32 %v3349, %v3597
      %v3740 = vadd.f32 %v3350, %v3602
      %v3741 = vadd.f32 %v3351, %v3607
      %v3742 = vadd.f32 %v3352, %v3612
      %v3743 = vadd.f32 %v3353, %v3617
      %v3744 = vadd.f32 %v3354, %v3622
      %v3745 = vadd.f32 %v3355, %v3627
      %v3746 = vadd.f32 %v3356, %v3632
      %v3747 = vadd.f32 %v3357, %v3637
      %v3748 = vadd.f32 %v3358, %v3642
      %v3749 = vadd.f32 %v3359, %v3647
      %v3750 = vadd.f32 %v3360, %v3652
      %v3751 = vadd.f32 %v3361, %v3657
      %v3752 = vadd.f32 %v3362, %v3662
      %v3753 = vadd.f32 %v3363, %v3667
      %v3754 = vadd.f32 %v3364, %v3672
      %v3755 = vadd.f32 %v3365, %v3677
      %v3756 = vadd.f32 %v3366, %v3682
      %v3757 = vadd.f32 %v3367, %v3687
      %v3758 = vadd.f32 %v3368, %v3692
      %v3759 = vadd.f32 %v3369, %v3697
      %v3760 = vadd.f32 %v3370, %v3702
      %v3761 = vadd.f32 %v3371, %v3707
      %v3762 = vadd.f32 %v3372, %v3712
      %v3763 = vadd.f32 %v3373, %v3717
      %v3764 = vadd.f32 %v3374, %v3722
      %v3765 = vadd.f32 %v3375, %v3727
      %v3766 = vadd.f32 %v3376, %v3732
      %3767 = vst.msk [vmem:[#allocation3] sm:$0xff] %vm204, %v3735
      %3768 = vst.msk [vmem:[#allocation3 + $0x8] sm:$0xff] %vm204, %v3736
      %3769 = vst.msk [vmem:[#allocation3 + $0x10] sm:$0xff] %vm204, %v3737
      %3770 = vst.msk [vmem:[#allocation3 + $0x18] sm:$0xff] %vm204, %v3738
      %3771 = vst.msk [vmem:[#allocation3 + $0x20] sm:$0xff] %vm204, %v3739
      %3772 = vst.msk [vmem:[#allocation3 + $0x28] sm:$0xff] %vm204, %v3740
      %3773 = vst.msk [vmem:[#allocation3 + $0x30] sm:$0xff] %vm204, %v3741
      %3774 = vst.msk [vmem:[#allocation3 + $0x38] sm:$0xff] %vm204, %v3742
      %3775 = vst.msk [vmem:[#allocation3 + $0x40] sm:$0xff] %vm204, %v3743
      %3776 = vst.msk [vmem:[#allocation3 + $0x48] sm:$0xff] %vm204, %v3744
      %3777 = vst.msk [vmem:[#allocation3 + $0x50] sm:$0xff] %vm204, %v3745
      %3778 = vst.msk [vmem:[#allocation3 + $0x58] sm:$0xff] %vm204, %v3746
      %3779 = vst.msk [vmem:[#allocation3 + $0x60] sm:$0xff] %vm204, %v3747
      %3780 = vst.msk [vmem:[#allocation3 + $0x68] sm:$0xff] %vm204, %v3748
      %3781 = vst.msk [vmem:[#allocation3 + $0x70] sm:$0xff] %vm204, %v3749
      %3782 = vst.msk [vmem:[#allocation3 + $0x78] sm:$0xff] %vm204, %v3750
      %3783 = vst.msk [vmem:[#allocation3 + $0x80] sm:$0xff] %vm204, %v3751
      %3784 = vst.msk [vmem:[#allocation3 + $0x88] sm:$0xff] %vm204, %v3752
      %3785 = vst.msk [vmem:[#allocation3 + $0x90] sm:$0xff] %vm204, %v3753
      %3786 = vst.msk [vmem:[#allocation3 + $0x98] sm:$0xff] %vm204, %v3754
      %3787 = vst.msk [vmem:[#allocation3 + $0xa0] sm:$0xff] %vm204, %v3755
      %3788 = vst.msk [vmem:[#allocation3 + $0xa8] sm:$0xff] %vm204, %v3756
      %3789 = vst.msk [vmem:[#allocation3 + $0xb0] sm:$0xff] %vm204, %v3757
      %3790 = vst.msk [vmem:[#allocation3 + $0xb8] sm:$0xff] %vm204, %v3758
      %3791 = vst.msk [vmem:[#allocation3 + $0xc0] sm:$0xff] %vm204, %v3759
      %3792 = vst.msk [vmem:[#allocation3 + $0xc8] sm:$0xff] %vm204, %v3760
      %3793 = vst.msk [vmem:[#allocation3 + $0xd0] sm:$0xff] %vm204, %v3761
      %3794 = vst.msk [vmem:[#allocation3 + $0xd8] sm:$0xff] %vm204, %v3762
      %3795 = vst.msk [vmem:[#allocation3 + $0xe0] sm:$0xff] %vm204, %v3763
      %3796 = vst.msk [vmem:[#allocation3 + $0xe8] sm:$0xff] %vm204, %v3764
      %3797 = vst.msk [vmem:[#allocation3 + $0xf0] sm:$0xff] %vm204, %v3765
      %3798 = vst.msk [vmem:[#allocation3 + $0xf8] sm:$0xff] %vm204, %v3766
      %v3799 = vld [vmem:[#allocation3] sm:$0xff]
      %v3800 = vld [vmem:[#allocation3 + $0x8] sm:$0xff]
      %v3801 = vld [vmem:[#allocation3 + $0x10] sm:$0xff]
      %v3802 = vld [vmem:[#allocation3 + $0x18] sm:$0xff]
      %v3803 = vld [vmem:[#allocation3 + $0x20] sm:$0xff]
      %v3804 = vld [vmem:[#allocation3 + $0x28] sm:$0xff]
      %v3805 = vld [vmem:[#allocation3 + $0x30] sm:$0xff]
      %v3806 = vld [vmem:[#allocation3 + $0x38] sm:$0xff]
      %v3807 = vld [vmem:[#allocation3 + $0x40] sm:$0xff]
      %v3808 = vld [vmem:[#allocation3 + $0x48] sm:$0xff]
      %v3809 = vld [vmem:[#allocation3 + $0x50] sm:$0xff]
      %v3810 = vld [vmem:[#allocation3 + $0x58] sm:$0xff]
      %v3811 = vld [vmem:[#allocation3 + $0x60] sm:$0xff]
      %v3812 = vld [vmem:[#allocation3 + $0x68] sm:$0xff]
      %v3813 = vld [vmem:[#allocation3 + $0x70] sm:$0xff]
      %v3814 = vld [vmem:[#allocation3 + $0x78] sm:$0xff]
      %v3815 = vld [vmem:[#allocation3 + $0x80] sm:$0xff]
      %v3816 = vld [vmem:[#allocation3 + $0x88] sm:$0xff]
      %v3817 = vld [vmem:[#allocation3 + $0x90] sm:$0xff]
      %v3818 = vld [vmem:[#allocation3 + $0x98] sm:$0xff]
      %v3819 = vld [vmem:[#allocation3 + $0xa0] sm:$0xff]
      %v3820 = vld [vmem:[#allocation3 + $0xa8] sm:$0xff]
      %v3821 = vld [vmem:[#allocation3 + $0xb0] sm:$0xff]
      %v3822 = vld [vmem:[#allocation3 + $0xb8] sm:$0xff]
      %v3823 = vld [vmem:[#allocation3 + $0xc0] sm:$0xff]
      %v3824 = vld [vmem:[#allocation3 + $0xc8] sm:$0xff]
      %v3825 = vld [vmem:[#allocation3 + $0xd0] sm:$0xff]
      %v3826 = vld [vmem:[#allocation3 + $0xd8] sm:$0xff]
      %v3827 = vld [vmem:[#allocation3 + $0xe0] sm:$0xff]
      %v3828 = vld [vmem:[#allocation3 + $0xe8] sm:$0xff]
      %v3829 = vld [vmem:[#allocation3 + $0xf0] sm:$0xff]
      %v3830 = vld [vmem:[#allocation3 + $0xf8] sm:$0xff]
      %v3831 = vsel %vm204, %v3799, 0.0
      %v3832 = vsel %vm204, %v3800, 0.0
      %v3833 = vadd.f32 %v3831, %v3832
      %v3834 = vsel %vm204, %v3801, 0.0
      %v3835 = vadd.f32 %v3833, %v3834
      %v3836 = vsel %vm204, %v3802, 0.0
      %v3837 = vadd.f32 %v3835, %v3836
      %v3838 = vsel %vm204, %v3803, 0.0
      %v3839 = vadd.f32 %v3837, %v3838
      %v3840 = vsel %vm204, %v3804, 0.0
      %v3841 = vadd.f32 %v3839, %v3840
      %v3842 = vsel %vm204, %v3805, 0.0
      %v3843 = vadd.f32 %v3841, %v3842
      %v3844 = vsel %vm204, %v3806, 0.0
      %v3845 = vadd.f32 %v3843, %v3844
      %v3846 = vsel %vm204, %v3807, 0.0
      %v3847 = vadd.f32 %v3845, %v3846
      %v3848 = vsel %vm204, %v3808, 0.0
      %v3849 = vadd.f32 %v3847, %v3848
      %v3850 = vsel %vm204, %v3809, 0.0
      %v3851 = vadd.f32 %v3849, %v3850
      %v3852 = vsel %vm204, %v3810, 0.0
      %v3853 = vadd.f32 %v3851, %v3852
      %v3854 = vsel %vm204, %v3811, 0.0
      %v3855 = vadd.f32 %v3853, %v3854
      %v3856 = vsel %vm204, %v3812, 0.0
      %v3857 = vadd.f32 %v3855, %v3856
      %v3858 = vsel %vm204, %v3813, 0.0
      %v3859 = vadd.f32 %v3857, %v3858
      %v3860 = vsel %vm204, %v3814, 0.0
      %v3861 = vadd.f32 %v3859, %v3860
      %v3862 = vsel %vm204, %v3815, 0.0
      %v3863 = vadd.f32 %v3861, %v3862
      %v3864 = vsel %vm204, %v3816, 0.0
      %v3865 = vadd.f32 %v3863, %v3864
      %v3866 = vsel %vm204, %v3817, 0.0
      %v3867 = vadd.f32 %v3865, %v3866
      %v3868 = vsel %vm204, %v3818, 0.0
      %v3869 = vadd.f32 %v3867, %v3868
      %v3870 = vsel %vm204, %v3819, 0.0
      %v3871 = vadd.f32 %v3869, %v3870
      %v3872 = vsel %vm204, %v3820, 0.0
      %v3873 = vadd.f32 %v3871, %v3872
      %v3874 = vsel %vm204, %v3821, 0.0
      %v3875 = vadd.f32 %v3873, %v3874
      %v3876 = vsel %vm204, %v3822, 0.0
      %v3877 = vadd.f32 %v3875, %v3876
      %v3878 = vsel %vm204, %v3823, 0.0
      %v3879 = vadd.f32 %v3877, %v3878
      %v3880 = vsel %vm204, %v3824, 0.0
      %v3881 = vadd.f32 %v3879, %v3880
      %v3882 = vsel %vm204, %v3825, 0.0
      %v3883 = vadd.f32 %v3881, %v3882
      %v3884 = vsel %vm204, %v3826, 0.0
      %v3885 = vadd.f32 %v3883, %v3884
      %v3886 = vsel %vm204, %v3827, 0.0
      %v3887 = vadd.f32 %v3885, %v3886
      %v3888 = vsel %vm204, %v3828, 0.0
      %v3889 = vadd.f32 %v3887, %v3888
      %v3890 = vsel %vm204, %v3829, 0.0
      %v3891 = vadd.f32 %v3889, %v3890
      %v3892 = vsel %vm204, %v3830, 0.0
      %v3893 = vadd.f32 %v3891, %v3892
      %v3894 = vrot.slane %v3893, 4
      %v3895 = vadd.f32 %v3893, %v3894
      %v3896 = vrot.slane %v3895, 2
      %v3897 = vadd.f32 %v3895, %v3896
      %v3898 = vrot.slane %v3897, 1
      %v3899 = vadd.f32 %v3897, %v3898
      %v3900 = vmul.f32 %v3899, 0.00390625
      %v3901 = vmul.f32 %v3799, %v3799
      %v3902 = vmul.f32 %v3800, %v3800
      %v3903 = vmul.f32 %v3801, %v3801
      %v3904 = vmul.f32 %v3802, %v3802
      %v3905 = vmul.f32 %v3803, %v3803
      %v3906 = vmul.f32 %v3804, %v3804
      %v3907 = vmul.f32 %v3805, %v3805
      %v3908 = vmul.f32 %v3806, %v3806
      %v3909 = vmul.f32 %v3807, %v3807
      %v3910 = vmul.f32 %v3808, %v3808
      %v3911 = vmul.f32 %v3809, %v3809
      %v3912 = vmul.f32 %v3810, %v3810
      %v3913 = vmul.f32 %v3811, %v3811
      %v3914 = vmul.f32 %v3812, %v3812
      %v3915 = vmul.f32 %v3813, %v3813
      %v3916 = vmul.f32 %v3814, %v3814
      %v3917 = vmul.f32 %v3815, %v3815
      %v3918 = vmul.f32 %v3816, %v3816
      %v3919 = vmul.f32 %v3817, %v3817
      %v3920 = vmul.f32 %v3818, %v3818
      %v3921 = vmul.f32 %v3819, %v3819
      %v3922 = vmul.f32 %v3820, %v3820
      %v3923 = vmul.f32 %v3821, %v3821
      %v3924 = vmul.f32 %v3822, %v3822
      %v3925 = vmul.f32 %v3823, %v3823
      %v3926 = vmul.f32 %v3824, %v3824
      %v3927 = vmul.f32 %v3825, %v3825
      %v3928 = vmul.f32 %v3826, %v3826
      %v3929 = vmul.f32 %v3827, %v3827
      %v3930 = vmul.f32 %v3828, %v3828
      %v3931 = vmul.f32 %v3829, %v3829
      %v3932 = vmul.f32 %v3830, %v3830
      %v3933 = vsel %vm204, %v3901, 0.0
      %v3934 = vsel %vm204, %v3902, 0.0
      %v3935 = vadd.f32 %v3933, %v3934
      %v3936 = vsel %vm204, %v3903, 0.0
      %v3937 = vadd.f32 %v3935, %v3936
      %v3938 = vsel %vm204, %v3904, 0.0
      %v3939 = vadd.f32 %v3937, %v3938
      %v3940 = vsel %vm204, %v3905, 0.0
      %v3941 = vadd.f32 %v3939, %v3940
      %v3942 = vsel %vm204, %v3906, 0.0
      %v3943 = vadd.f32 %v3941, %v3942
      %v3944 = vsel %vm204, %v3907, 0.0
      %v3945 = vadd.f32 %v3943, %v3944
      %v3946 = vsel %vm204, %v3908, 0.0
      %v3947 = vadd.f32 %v3945, %v3946
      %v3948 = vsel %vm204, %v3909, 0.0
      %v3949 = vadd.f32 %v3947, %v3948
      %v3950 = vsel %vm204, %v3910, 0.0
      %v3951 = vadd.f32 %v3949, %v3950
      %v3952 = vsel %vm204, %v3911, 0.0
      %v3953 = vadd.f32 %v3951, %v3952
      %v3954 = vsel %vm204, %v3912, 0.0
      %v3955 = vadd.f32 %v3953, %v3954
      %v3956 = vsel %vm204, %v3913, 0.0
      %v3957 = vadd.f32 %v3955, %v3956
      %v3958 = vsel %vm204, %v3914, 0.0
      %v3959 = vadd.f32 %v3957, %v3958
      %v3960 = vsel %vm204, %v3915, 0.0
      %v3961 = vadd.f32 %v3959, %v3960
      %v3962 = vsel %vm204, %v3916, 0.0
      %v3963 = vadd.f32 %v3961, %v3962
      %v3964 = vsel %vm204, %v3917, 0.0
      %v3965 = vadd.f32 %v3963, %v3964
      %v3966 = vsel %vm204, %v3918, 0.0
      %v3967 = vadd.f32 %v3965, %v3966
      %v3968 = vsel %vm204, %v3919, 0.0
      %v3969 = vadd.f32 %v3967, %v3968
      %v3970 = vsel %vm204, %v3920, 0.0
      %v3971 = vadd.f32 %v3969, %v3970
      %v3972 = vsel %vm204, %v3921, 0.0
      %v3973 = vadd.f32 %v3971, %v3972
      %v3974 = vsel %vm204, %v3922, 0.0
      %v3975 = vadd.f32 %v3973, %v3974
      %v3976 = vsel %vm204, %v3923, 0.0
      %v3977 = vadd.f32 %v3975, %v3976
      %v3978 = vsel %vm204, %v3924, 0.0
      %v3979 = vadd.f32 %v3977, %v3978
      %v3980 = vsel %vm204, %v3925, 0.0
      %v3981 = vadd.f32 %v3979, %v3980
      %v3982 = vsel %vm204, %v3926, 0.0
      %v3983 = vadd.f32 %v3981, %v3982
      %v3984 = vsel %vm204, %v3927, 0.0
      %v3985 = vadd.f32 %v3983, %v3984
      %v3986 = vsel %vm204, %v3928, 0.0
      %v3987 = vadd.f32 %v3985, %v3986
      %v3988 = vsel %vm204, %v3929, 0.0
      %v3989 = vadd.f32 %v3987, %v3988
      %v3990 = vsel %vm204, %v3930, 0.0
      %v3991 = vadd.f32 %v3989, %v3990
      %v3992 = vsel %vm204, %v3931, 0.0
      %v3993 = vadd.f32 %v3991, %v3992
      %v3994 = vsel %vm204, %v3932, 0.0
      %v3995 = vadd.f32 %v3993, %v3994
      %v3996 = vrot.slane %v3995, 4
      %v3997 = vadd.f32 %v3995, %v3996
      %v3998 = vrot.slane %v3997, 2
      %v3999 = vadd.f32 %v3997, %v3998
      %v4000 = vrot.slane %v3999, 1
      %v4001 = vadd.f32 %v3999, %v4000
      %v4002 = vmul.f32 %v4001, 0.00390625
      %v4003 = vmul.f32 %v3900, %v3900
      %v4004 = vsub.f32 %v4002, %v4003
      %v4005 = vmax.f32 %v4004, 0.0
      %v4006 = vadd.f32 %v4005, 1e-05
      %v4007 = vrsqrt.pop %v4006
      %v4008 = vsub.f32 0.0, %v3900
      %v4009 = vmul.f32 %v4008, %v4007
      %v4010 = vmul.f32 %v3799, %v4007
      %v4011 = vmul.f32 %v3800, %v4007
      %v4012 = vmul.f32 %v3801, %v4007
      %v4013 = vmul.f32 %v3802, %v4007
      %v4014 = vmul.f32 %v3803, %v4007
      %v4015 = vmul.f32 %v3804, %v4007
      %v4016 = vmul.f32 %v3805, %v4007
      %v4017 = vmul.f32 %v3806, %v4007
      %v4018 = vmul.f32 %v3807, %v4007
      %v4019 = vmul.f32 %v3808, %v4007
      %v4020 = vmul.f32 %v3809, %v4007
      %v4021 = vmul.f32 %v3810, %v4007
      %v4022 = vmul.f32 %v3811, %v4007
      %v4023 = vmul.f32 %v3812, %v4007
      %v4024 = vmul.f32 %v3813, %v4007
      %v4025 = vmul.f32 %v3814, %v4007
      %v4026 = vmul.f32 %v3815, %v4007
      %v4027 = vmul.f32 %v3816, %v4007
      %v4028 = vmul.f32 %v3817, %v4007
      %v4029 = vmul.f32 %v3818, %v4007
      %v4030 = vmul.f32 %v3819, %v4007
      %v4031 = vmul.f32 %v3820, %v4007
      %v4032 = vmul.f32 %v3821, %v4007
      %v4033 = vmul.f32 %v3822, %v4007
      %v4034 = vmul.f32 %v3823, %v4007
      %v4035 = vmul.f32 %v3824, %v4007
      %v4036 = vmul.f32 %v3825, %v4007
      %v4037 = vmul.f32 %v3826, %v4007
      %v4038 = vmul.f32 %v3827, %v4007
      %v4039 = vmul.f32 %v3828, %v4007
      %v4040 = vmul.f32 %v3829, %v4007
      %v4041 = vmul.f32 %v3830, %v4007
      %v4042 = vadd.f32 %v4010, %v4009
      %v4043 = vadd.f32 %v4011, %v4009
      %v4044 = vadd.f32 %v4012, %v4009
      %v4045 = vadd.f32 %v4013, %v4009
      %v4046 = vadd.f32 %v4014, %v4009
      %v4047 = vadd.f32 %v4015, %v4009
      %v4048 = vadd.f32 %v4016, %v4009
      %v4049 = vadd.f32 %v4017, %v4009
      %v4050 = vadd.f32 %v4018, %v4009
      %v4051 = vadd.f32 %v4019, %v4009
      %v4052 = vadd.f32 %v4020, %v4009
      %v4053 = vadd.f32 %v4021, %v4009
      %v4054 = vadd.f32 %v4022, %v4009
      %v4055 = vadd.f32 %v4023, %v4009
      %v4056 = vadd.f32 %v4024, %v4009
      %v4057 = vadd.f32 %v4025, %v4009
      %v4058 = vadd.f32 %v4026, %v4009
      %v4059 = vadd.f32 %v4027, %v4009
      %v4060 = vadd.f32 %v4028, %v4009
      %v4061 = vadd.f32 %v4029, %v4009
      %v4062 = vadd.f32 %v4030, %v4009
      %v4063 = vadd.f32 %v4031, %v4009
      %v4064 = vadd.f32 %v4032, %v4009
      %v4065 = vadd.f32 %v4033, %v4009
      %v4066 = vadd.f32 %v4034, %v4009
      %v4067 = vadd.f32 %v4035, %v4009
      %v4068 = vadd.f32 %v4036, %v4009
      %v4069 = vadd.f32 %v4037, %v4009
      %v4070 = vadd.f32 %v4038, %v4009
      %v4071 = vadd.f32 %v4039, %v4009
      %v4072 = vadd.f32 %v4040, %v4009
      %v4073 = vadd.f32 %v4041, %v4009
      %v4074 = vmax.f32 %v4042, 0.0
      %v4075 = vmax.f32 %v4043, 0.0
      %v4076 = vmax.f32 %v4044, 0.0
      %v4077 = vmax.f32 %v4045, 0.0
      %v4078 = vmax.f32 %v4046, 0.0
      %v4079 = vmax.f32 %v4047, 0.0
      %v4080 = vmax.f32 %v4048, 0.0
      %v4081 = vmax.f32 %v4049, 0.0
      %v4082 = vmax.f32 %v4050, 0.0
      %v4083 = vmax.f32 %v4051, 0.0
      %v4084 = vmax.f32 %v4052, 0.0
      %v4085 = vmax.f32 %v4053, 0.0
      %v4086 = vmax.f32 %v4054, 0.0
      %v4087 = vmax.f32 %v4055, 0.0
      %v4088 = vmax.f32 %v4056, 0.0
      %v4089 = vmax.f32 %v4057, 0.0
      %v4090 = vmax.f32 %v4058, 0.0
      %v4091 = vmax.f32 %v4059, 0.0
      %v4092 = vmax.f32 %v4060, 0.0
      %v4093 = vmax.f32 %v4061, 0.0
      %v4094 = vmax.f32 %v4062, 0.0
      %v4095 = vmax.f32 %v4063, 0.0
      %v4096 = vmax.f32 %v4064, 0.0
      %v4097 = vmax.f32 %v4065, 0.0
      %v4098 = vmax.f32 %v4066, 0.0
      %v4099 = vmax.f32 %v4067, 0.0
      %v4100 = vmax.f32 %v4068, 0.0
      %v4101 = vmax.f32 %v4069, 0.0
      %v4102 = vmax.f32 %v4070, 0.0
      %v4103 = vmax.f32 %v4071, 0.0
      %v4104 = vmax.f32 %v4072, 0.0
      %v4105 = vmax.f32 %v4073, 0.0
      %4106 = vst.msk [vmem:[%s203 + $0x1] sm:$0xff] %vm204, %v4074
      %4107 = vst.msk [vmem:[%s203 + $0x9] sm:$0xff] %vm204, %v4075
      %4108 = vst.msk [vmem:[%s203 + $0x19] sm:$0xff] %vm204, %v4076
      %4109 = vst.msk [vmem:[%s203 + $0x21] sm:$0xff] %vm204, %v4077
      %4110 = vst.msk [vmem:[%s203 + $0x31] sm:$0xff] %vm204, %v4078
      %4111 = vst.msk [vmem:[%s203 + $0x39] sm:$0xff] %vm204, %v4079
      %4112 = vst.msk [vmem:[%s203 + $0x49] sm:$0xff] %vm204, %v4080
      %4113 = vst.msk [vmem:[%s203 + $0x51] sm:$0xff] %vm204, %v4081
      %4114 = vst.msk [vmem:[%s203 + $0x61] sm:$0xff] %vm204, %v4082
      %4115 = vst.msk [vmem:[%s203 + $0x69] sm:$0xff] %vm204, %v4083
      %4116 = vst.msk [vmem:[%s203 + $0x79] sm:$0xff] %vm204, %v4084
      %4117 = vst.msk [vmem:[%s203 + $0x81] sm:$0xff] %vm204, %v4085
      %4118 = vst.msk [vmem:[%s203 + $0x91] sm:$0xff] %vm204, %v4086
      %4119 = vst.msk [vmem:[%s203 + $0x99] sm:$0xff] %vm204, %v4087
      %4120 = vst.msk [vmem:[%s203 + $0xa9] sm:$0xff] %vm204, %v4088
      %4121 = vst.msk [vmem:[%s203 + $0xb1] sm:$0xff] %vm204, %v4089
      %4122 = vst.msk [vmem:[%s203 + $0xc1] sm:$0xff] %vm204, %v4090
      %4123 = vst.msk [vmem:[%s203 + $0xc9] sm:$0xff] %vm204, %v4091
      %4124 = vst.msk [vmem:[%s203 + $0xd9] sm:$0xff] %vm204, %v4092
      %4125 = vst.msk [vmem:[%s203 + $0xe1] sm:$0xff] %vm204, %v4093
      %4126 = vst.msk [vmem:[%s203 + $0xf1] sm:$0xff] %vm204, %v4094
      %4127 = vst.msk [vmem:[%s203 + $0xf9] sm:$0xff] %vm204, %v4095
      %4128 = vst.msk [vmem:[%s203 + $0x109] sm:$0xff] %vm204, %v4096
      %4129 = vst.msk [vmem:[%s203 + $0x111] sm:$0xff] %vm204, %v4097
      %4130 = vst.msk [vmem:[%s203 + $0x121] sm:$0xff] %vm204, %v4098
      %4131 = vst.msk [vmem:[%s203 + $0x129] sm:$0xff] %vm204, %v4099
      %4132 = vst.msk [vmem:[%s203 + $0x139] sm:$0xff] %vm204, %v4100
      %4133 = vst.msk [vmem:[%s203 + $0x141] sm:$0xff] %vm204, %v4101
      %4134 = vst.msk [vmem:[%s203 + $0x151] sm:$0xff] %vm204, %v4102
      %4135 = vst.msk [vmem:[%s203 + $0x159] sm:$0xff] %vm204, %v4103
      %4136 = vst.msk [vmem:[%s203 + $0x169] sm:$0xff] %vm204, %v4104
      %4137 = vst.msk [vmem:[%s203 + $0x171] sm:$0xff] %vm204, %v4105
      %v4138 = vld [vmem:[%s237 + $0x1] sm:$0xff]
      %v4139 = vld [vmem:[%s237 + $0x9] sm:$0xff]
      %4140 = vst.msk [vmem:[#allocation2 + $0x1] sm:$0xff] %vm204, %v4138
      %4141 = vst.msk [vmem:[#allocation2 + $0x9] sm:$0xff] %vm204, %v4139
      %v4142 = vld [vmem:[%s242 + $0x1] sm:$0xff]
      %v4143 = vld [vmem:[%s242 + $0x9] sm:$0xff]
      %4144 = vst.msk [vmem:[%s245 + $0x1] sm:$0xff] %vm204, %v4142
      %4145 = vst.msk [vmem:[%s245 + $0x9] sm:$0xff] %vm204, %v4143
      %v4146 = vld [vmem:[%s203 + $0x2] sm:$0x1]
      %v4147 = vld [vmem:[%s203 + $0x1a] sm:$0x1]
      %v4148 = vld [vmem:[%s203 + $0x32] sm:$0x1]
      %v4149 = vld [vmem:[%s203 + $0x4a] sm:$0x1]
      %v4150 = vld [vmem:[%s203 + $0x62] sm:$0x1]
      %v4151 = vld [vmem:[%s203 + $0x7a] sm:$0x1]
      %v4152 = vld [vmem:[%s203 + $0x92] sm:$0x1]
      %v4153 = vld [vmem:[%s203 + $0xaa] sm:$0x1]
      %v4154 = vld [vmem:[%s203 + $0xc2] sm:$0x1]
      %v4155 = vld [vmem:[%s203 + $0xda] sm:$0x1]
      %v4156 = vld [vmem:[%s203 + $0xf2] sm:$0x1]
      %v4157 = vld [vmem:[%s203 + $0x10a] sm:$0x1]
      %v4158 = vld [vmem:[%s203 + $0x122] sm:$0x1]
      %v4159 = vld [vmem:[%s203 + $0x13a] sm:$0x1]
      %v4160 = vld [vmem:[%s203 + $0x152] sm:$0x1]
      %v4161 = vld [vmem:[%s203 + $0x16a] sm:$0x1]
      %4162 = vst.msk [vmem:[%s203] sm:$0x1] %vm264, %v4146
      %4163 = vst.msk [vmem:[%s203 + $0x18] sm:$0x1] %vm264, %v4147
      %4164 = vst.msk [vmem:[%s203 + $0x30] sm:$0x1] %vm264, %v4148
      %4165 = vst.msk [vmem:[%s203 + $0x48] sm:$0x1] %vm264, %v4149
      %4166 = vst.msk [vmem:[%s203 + $0x60] sm:$0x1] %vm264, %v4150
      %4167 = vst.msk [vmem:[%s203 + $0x78] sm:$0x1] %vm264, %v4151
      %4168 = vst.msk [vmem:[%s203 + $0x90] sm:$0x1] %vm264, %v4152
      %4169 = vst.msk [vmem:[%s203 + $0xa8] sm:$0x1] %vm264, %v4153
      %4170 = vst.msk [vmem:[%s203 + $0xc0] sm:$0x1] %vm264, %v4154
      %4171 = vst.msk [vmem:[%s203 + $0xd8] sm:$0x1] %vm264, %v4155
      %4172 = vst.msk [vmem:[%s203 + $0xf0] sm:$0x1] %vm264, %v4156
      %4173 = vst.msk [vmem:[%s203 + $0x108] sm:$0x1] %vm264, %v4157
      %4174 = vst.msk [vmem:[%s203 + $0x120] sm:$0x1] %vm264, %v4158
      %4175 = vst.msk [vmem:[%s203 + $0x138] sm:$0x1] %vm264, %v4159
      %4176 = vst.msk [vmem:[%s203 + $0x150] sm:$0x1] %vm264, %v4160
      %4177 = vst.msk [vmem:[%s203 + $0x168] sm:$0x1] %vm264, %v4161
      %v4178 = vld [vmem:[%s203 + $0xf] sm:$0x1]
      %v4179 = vld [vmem:[%s203 + $0x27] sm:$0x1]
      %v4180 = vld [vmem:[%s203 + $0x3f] sm:$0x1]
      %v4181 = vld [vmem:[%s203 + $0x57] sm:$0x1]
      %v4182 = vld [vmem:[%s203 + $0x6f] sm:$0x1]
      %v4183 = vld [vmem:[%s203 + $0x87] sm:$0x1]
      %v4184 = vld [vmem:[%s203 + $0x9f] sm:$0x1]
      %v4185 = vld [vmem:[%s203 + $0xb7] sm:$0x1]
      %v4186 = vld [vmem:[%s203 + $0xcf] sm:$0x1]
      %v4187 = vld [vmem:[%s203 + $0xe7] sm:$0x1]
      %v4188 = vld [vmem:[%s203 + $0xff] sm:$0x1]
      %v4189 = vld [vmem:[%s203 + $0x117] sm:$0x1]
      %v4190 = vld [vmem:[%s203 + $0x12f] sm:$0x1]
      %v4191 = vld [vmem:[%s203 + $0x147] sm:$0x1]
      %v4192 = vld [vmem:[%s203 + $0x15f] sm:$0x1]
      %v4193 = vld [vmem:[%s203 + $0x177] sm:$0x1]
      %4194 = vst.msk [vmem:[%s203 + $0x11] sm:$0x1] %vm264, %v4178
      %4195 = vst.msk [vmem:[%s203 + $0x29] sm:$0x1] %vm264, %v4179
      %4196 = vst.msk [vmem:[%s203 + $0x41] sm:$0x1] %vm264, %v4180
      %4197 = vst.msk [vmem:[%s203 + $0x59] sm:$0x1] %vm264, %v4181
      %4198 = vst.msk [vmem:[%s203 + $0x71] sm:$0x1] %vm264, %v4182
      %4199 = vst.msk [vmem:[%s203 + $0x89] sm:$0x1] %vm264, %v4183
      %4200 = vst.msk [vmem:[%s203 + $0xa1] sm:$0x1] %vm264, %v4184
      %4201 = vst.msk [vmem:[%s203 + $0xb9] sm:$0x1] %vm264, %v4185
      %4202 = vst.msk [vmem:[%s203 + $0xd1] sm:$0x1] %vm264, %v4186
      %4203 = vst.msk [vmem:[%s203 + $0xe9] sm:$0x1] %vm264, %v4187
      %4204 = vst.msk [vmem:[%s203 + $0x101] sm:$0x1] %vm264, %v4188
      %4205 = vst.msk [vmem:[%s203 + $0x119] sm:$0x1] %vm264, %v4189
      %4206 = vst.msk [vmem:[%s203 + $0x131] sm:$0x1] %vm264, %v4190
      %4207 = vst.msk [vmem:[%s203 + $0x149] sm:$0x1] %vm264, %v4191
      %4208 = vst.msk [vmem:[%s203 + $0x161] sm:$0x1] %vm264, %v4192
      %4209 = vst.msk [vmem:[%s203 + $0x179] sm:$0x1] %vm264, %v4193
      %v4210 = vld [vmem:[%s237 + $0x2] sm:$0x1]
      %4211 = vst.msk [vmem:[#allocation2] sm:$0x1] %vm264, %v4210
      %v4212 = vld [vmem:[%s237 + $0xf] sm:$0x1]
      %4213 = vst.msk [vmem:[#allocation2 + $0x11] sm:$0x1] %vm264, %v4212
      %v4214 = vld [vmem:[%s242 + $0x2] sm:$0x1]
      %4215 = vst.msk [vmem:[%s245] sm:$0x1] %vm264, %v4214
      %v4216 = vld [vmem:[%s242 + $0xf] sm:$0x1]
      %4217 = vst.msk [vmem:[%s245 + $0x11] sm:$0x1] %vm264, %v4216
      %v4218 = vld [vmem:[#allocation2] sm:$0xff]
      %v4219 = vld [vmem:[#allocation2 + $0x8] sm:$0xff]
      %v4220 = vld [vmem:[#allocation2 + $0x18] sm:$0xff]
      %v4221 = vld [vmem:[#allocation2 + $0x20] sm:$0xff]
      %v4222 = vld [vmem:[#allocation2 + $0x30] sm:$0xff]
      %v4223 = vld [vmem:[#allocation2 + $0x38] sm:$0xff]
      %v4224 = vld [vmem:[#allocation2 + $0x48] sm:$0xff]
      %v4225 = vld [vmem:[#allocation2 + $0x50] sm:$0xff]
      %v4226 = vld [vmem:[#allocation2 + $0x60] sm:$0xff]
      %v4227 = vld [vmem:[#allocation2 + $0x68] sm:$0xff]
      %v4228 = vld [vmem:[#allocation2 + $0x78] sm:$0xff]
      %v4229 = vld [vmem:[#allocation2 + $0x80] sm:$0xff]
      %v4230 = vld [vmem:[#allocation2 + $0x90] sm:$0xff]
      %v4231 = vld [vmem:[#allocation2 + $0x98] sm:$0xff]
      %v4232 = vld [vmem:[#allocation2 + $0xa8] sm:$0xff]
      %v4233 = vld [vmem:[#allocation2 + $0xb0] sm:$0xff]
      %v4234 = vld [vmem:[#allocation2 + $0xc0] sm:$0xff]
      %v4235 = vld [vmem:[#allocation2 + $0xc8] sm:$0xff]
      %v4236 = vld [vmem:[#allocation2 + $0xd8] sm:$0xff]
      %v4237 = vld [vmem:[#allocation2 + $0xe0] sm:$0xff]
      %v4238 = vld [vmem:[#allocation2 + $0xf0] sm:$0xff]
      %v4239 = vld [vmem:[#allocation2 + $0xf8] sm:$0xff]
      %v4240 = vld [vmem:[#allocation2 + $0x108] sm:$0xff]
      %v4241 = vld [vmem:[#allocation2 + $0x110] sm:$0xff]
      %v4242 = vld [vmem:[#allocation2 + $0x120] sm:$0xff]
      %v4243 = vld [vmem:[#allocation2 + $0x128] sm:$0xff]
      %v4244 = vld [vmem:[#allocation2 + $0x138] sm:$0xff]
      %v4245 = vld [vmem:[#allocation2 + $0x140] sm:$0xff]
      %v4246 = vld [vmem:[#allocation2 + $0x150] sm:$0xff]
      %v4247 = vld [vmem:[#allocation2 + $0x158] sm:$0xff]
      %v4248 = vld [vmem:[#allocation2 + $0x168] sm:$0xff]
      %v4249 = vld [vmem:[#allocation2 + $0x170] sm:$0xff]
      %v4250 = vld [vmem:[%s2] sm:$0xf]
      %v4251 = vld [vmem:[#allocation2 + $0x1] sm:$0xff]
      %v4252 = vld [vmem:[#allocation2 + $0x9] sm:$0xff]
      %v4253 = vld [vmem:[#allocation2 + $0x19] sm:$0xff]
      %v4254 = vld [vmem:[#allocation2 + $0x21] sm:$0xff]
      %v4255 = vld [vmem:[#allocation2 + $0x31] sm:$0xff]
      %v4256 = vld [vmem:[#allocation2 + $0x39] sm:$0xff]
      %v4257 = vld [vmem:[#allocation2 + $0x49] sm:$0xff]
      %v4258 = vld [vmem:[#allocation2 + $0x51] sm:$0xff]
      %v4259 = vld [vmem:[#allocation2 + $0x61] sm:$0xff]
      %v4260 = vld [vmem:[#allocation2 + $0x69] sm:$0xff]
      %v4261 = vld [vmem:[#allocation2 + $0x79] sm:$0xff]
      %v4262 = vld [vmem:[#allocation2 + $0x81] sm:$0xff]
      %v4263 = vld [vmem:[#allocation2 + $0x91] sm:$0xff]
      %v4264 = vld [vmem:[#allocation2 + $0x99] sm:$0xff]
      %v4265 = vld [vmem:[#allocation2 + $0xa9] sm:$0xff]
      %v4266 = vld [vmem:[#allocation2 + $0xb1] sm:$0xff]
      %v4267 = vld [vmem:[#allocation2 + $0xc1] sm:$0xff]
      %v4268 = vld [vmem:[#allocation2 + $0xc9] sm:$0xff]
      %v4269 = vld [vmem:[#allocation2 + $0xd9] sm:$0xff]
      %v4270 = vld [vmem:[#allocation2 + $0xe1] sm:$0xff]
      %v4271 = vld [vmem:[#allocation2 + $0xf1] sm:$0xff]
      %v4272 = vld [vmem:[#allocation2 + $0xf9] sm:$0xff]
      %v4273 = vld [vmem:[#allocation2 + $0x109] sm:$0xff]
      %v4274 = vld [vmem:[#allocation2 + $0x111] sm:$0xff]
      %v4275 = vld [vmem:[#allocation2 + $0x121] sm:$0xff]
      %v4276 = vld [vmem:[#allocation2 + $0x129] sm:$0xff]
      %v4277 = vld [vmem:[#allocation2 + $0x139] sm:$0xff]
      %v4278 = vld [vmem:[#allocation2 + $0x141] sm:$0xff]
      %v4279 = vld [vmem:[#allocation2 + $0x151] sm:$0xff]
      %v4280 = vld [vmem:[#allocation2 + $0x159] sm:$0xff]
      %v4281 = vld [vmem:[#allocation2 + $0x169] sm:$0xff]
      %v4282 = vld [vmem:[#allocation2 + $0x171] sm:$0xff]
      %s4283 = scalar_lea.vmem %s2, 4
      %v4284 = vld [vmem:[%s4283] sm:$0xf]
      %v4286 = vsel %vm204, %v4251, 0
      %v4289 = vsel %vm204, %v4252, 0
      %v4292 = vsel %vm204, %v4253, 0
      %v4295 = vsel %vm204, %v4254, 0
      %v4298 = vsel %vm204, %v4255, 0
      %v4301 = vsel %vm204, %v4256, 0
      %v4304 = vsel %vm204, %v4257, 0
      %v4307 = vsel %vm204, %v4258, 0
      %v4310 = vsel %vm204, %v4259, 0
      %v4313 = vsel %vm204, %v4260, 0
      %v4316 = vsel %vm204, %v4261, 0
      %v4319 = vsel %vm204, %v4262, 0
      %v4322 = vsel %vm204, %v4263, 0
      %v4325 = vsel %vm204, %v4264, 0
      %v4328 = vsel %vm204, %v4265, 0
      %v4331 = vsel %vm204, %v4266, 0
      %v4334 = vsel %vm204, %v4267, 0
      %v4337 = vsel %vm204, %v4268, 0
      %v4340 = vsel %vm204, %v4269, 0
      %v4343 = vsel %vm204, %v4270, 0
      %v4346 = vsel %vm204, %v4271, 0
      %v4349 = vsel %vm204, %v4272, 0
      %v4352 = vsel %vm204, %v4273, 0
      %v4355 = vsel %vm204, %v4274, 0
      %v4358 = vsel %vm204, %v4275, 0
      %v4361 = vsel %vm204, %v4276, 0
      %v4364 = vsel %vm204, %v4277, 0
      %v4367 = vsel %vm204, %v4278, 0
      %v4370 = vsel %vm204, %v4279, 0
      %v4373 = vsel %vm204, %v4280, 0
      %v4376 = vsel %vm204, %v4281, 0
      %v4379 = vsel %vm204, %v4282, 0
      %v4382 = vsel %vm484, %v4284, 0
      %4384 = vmatprep.subr.mxu0 0.0
      %4385 = vmatpush1.msra.mxu0 0.0
      %4386 = vmatprep.subr.mxu0 0.0
      %4387 = vmatpush1.msra.mxu0 0.0
      %4388 = vmatprep.subr.mxu0 0.0
      %4389 = vmatpush1.msra.mxu0 0.0
      %4390 = vmatprep.subr.mxu0 0.0
      %4391 = vmatpush1.msra.mxu0 0.0
      %4392 = vmatprep.subr.mxu0 0.0
      %4393 = vmatpush1.msra.mxu0 0.0
      %4394 = vmatprep.subr.mxu0 0.0
      %4395 = vmatpush1.msra.mxu0 0.0
      %4396 = vmatprep.subr.mxu0 0.0
      %4397 = vmatpush1.msra.mxu0 0.0
      %4398 = vmatprep.subr.mxu0 0.0
      %4399 = vmatpush1.msra.mxu0 0.0
      %4400 = vmatprep.subr.mxu0 0.0
      %4401 = vmatpush1.msra.mxu0 0.0
      %4402 = vmatprep.subr.mxu0 0.0
      %4403 = vmatpush1.msra.mxu0 0.0
      %4404 = vmatprep.subr.mxu0 0.0
      %4405 = vmatpush1.msra.mxu0 0.0
      %4406 = vmatprep.subr.mxu0 0.0
      %4407 = vmatpush1.msra.mxu0 0.0
      %4408 = vmatprep.subr.mxu0 0.0
      %4409 = vmatpush1.msra.mxu0 0.0
      %4410 = vmatprep.subr.mxu0 0.0
      %4411 = vmatpush1.msra.mxu0 0.0
      %4412 = vmatprep.subr.mxu0 0.0
      %4413 = vmatpush1.msra.mxu0 0.0
      %4414 = vmatprep.subr.mxu0 0.0
      %4415 = vmatpush1.msra.mxu0 %v4382
      %4416 = vmatprep.subr.mxu0 0.0
      %4417 = vmatpush2.msra.mxu0 0.0
      %4418 = vmatprep.subr.mxu0 0.0
      %4419 = vmatpush2.msra.mxu0 0.0
      %4420 = vmatprep.subr.mxu0 0.0
      %4421 = vmatpush2.msra.mxu0 0.0
      %4422 = vmatprep.subr.mxu0 0.0
      %4423 = vmatpush2.msra.mxu0 0.0
      %4424 = vmatprep.subr.mxu0 0.0
      %4425 = vmatpush2.msra.mxu0 0.0
      %4426 = vmatprep.subr.mxu0 0.0
      %4427 = vmatpush2.msra.mxu0 0.0
      %4428 = vmatprep.subr.mxu0 0.0
      %4429 = vmatpush2.msra.mxu0 0.0
      %4430 = vmatprep.subr.mxu0 0.0
      %4431 = vmatpush2.msra.mxu0 0.0
      %4432 = vmatprep.subr.mxu0 0.0
      %4433 = vmatpush2.msra.mxu0 0.0
      %4434 = vmatprep.subr.mxu0 0.0
      %4435 = vmatpush2.msra.mxu0 0.0
      %4436 = vmatprep.subr.mxu0 0.0
      %4437 = vmatpush2.msra.mxu0 0.0
      %4438 = vmatprep.subr.mxu0 0.0
      %4439 = vmatpush2.msra.mxu0 0.0
      %4440 = vmatprep.subr.mxu0 0.0
      %4441 = vmatpush2.msra.mxu0 0.0
      %4442 = vmatprep.subr.mxu0 0.0
      %4443 = vmatpush2.msra.mxu0 0.0
      %4444 = vmatprep.subr.mxu0 0.0
      %4445 = vmatpush2.msra.mxu0 0.0
      %4446 = vmatprep.subr.mxu0 0.0
      %4447 = vmatpush2.msra.mxu0 0.0
      %4448 = vmatprep.mubr.f32.mxu0 0.0
      %4449 = vmatmul.mubr.f32.gmra.mxu0 %v4286
      %v4450 = vpop.f32.mrf.mxu0
      %v4451 = vadd.f32 0.0, %v4450
      %v4452 = vpop.f32.mrf.mxu0
      %4453 = vmatprep.mubr.f32.mxu0 0.0
      %4454 = vmatmul.mubr.f32.gmra.mxu0 %v4289
      %v4455 = vpop.f32.mrf.mxu0
      %v4456 = vadd.f32 0.0, %v4455
      %v4457 = vpop.f32.mrf.mxu0
      %4458 = vmatprep.mubr.f32.mxu0 0.0
      %4459 = vmatmul.mubr.f32.gmra.mxu0 %v4292
      %v4460 = vpop.f32.mrf.mxu0
      %v4461 = vadd.f32 0.0, %v4460
      %v4462 = vpop.f32.mrf.mxu0
      %4463 = vmatprep.mubr.f32.mxu0 0.0
      %4464 = vmatmul.mubr.f32.gmra.mxu0 %v4295
      %v4465 = vpop.f32.mrf.mxu0
      %v4466 = vadd.f32 0.0, %v4465
      %v4467 = vpop.f32.mrf.mxu0
      %4468 = vmatprep.mubr.f32.mxu0 0.0
      %4469 = vmatmul.mubr.f32.gmra.mxu0 %v4298
      %v4470 = vpop.f32.mrf.mxu0
      %v4471 = vadd.f32 0.0, %v4470
      %v4472 = vpop.f32.mrf.mxu0
      %4473 = vmatprep.mubr.f32.mxu0 0.0
      %4474 = vmatmul.mubr.f32.gmra.mxu0 %v4301
      %v4475 = vpop.f32.mrf.mxu0
      %v4476 = vadd.f32 0.0, %v4475
      %v4477 = vpop.f32.mrf.mxu0
      %4478 = vmatprep.mubr.f32.mxu0 0.0
      %4479 = vmatmul.mubr.f32.gmra.mxu0 %v4304
      %v4480 = vpop.f32.mrf.mxu0
      %v4481 = vadd.f32 0.0, %v4480
      %v4482 = vpop.f32.mrf.mxu0
      %4483 = vmatprep.mubr.f32.mxu0 0.0
      %4484 = vmatmul.mubr.f32.gmra.mxu0 %v4307
      %v4485 = vpop.f32.mrf.mxu0
      %v4486 = vadd.f32 0.0, %v4485
      %v4487 = vpop.f32.mrf.mxu0
      %4488 = vmatprep.mubr.f32.mxu0 0.0
      %4489 = vmatmul.mubr.f32.gmra.mxu0 %v4310
      %v4490 = vpop.f32.mrf.mxu0
      %v4491 = vadd.f32 0.0, %v4490
      %v4492 = vpop.f32.mrf.mxu0
      %4493 = vmatprep.mubr.f32.mxu0 0.0
      %4494 = vmatmul.mubr.f32.gmra.mxu0 %v4313
      %v4495 = vpop.f32.mrf.mxu0
      %v4496 = vadd.f32 0.0, %v4495
      %v4497 = vpop.f32.mrf.mxu0
      %4498 = vmatprep.mubr.f32.mxu0 0.0
      %4499 = vmatmul.mubr.f32.gmra.mxu0 %v4316
      %v4500 = vpop.f32.mrf.mxu0
      %v4501 = vadd.f32 0.0, %v4500
      %v4502 = vpop.f32.mrf.mxu0
      %4503 = vmatprep.mubr.f32.mxu0 0.0
      %4504 = vmatmul.mubr.f32.gmra.mxu0 %v4319
      %v4505 = vpop.f32.mrf.mxu0
      %v4506 = vadd.f32 0.0, %v4505
      %v4507 = vpop.f32.mrf.mxu0
      %4508 = vmatprep.mubr.f32.mxu0 0.0
      %4509 = vmatmul.mubr.f32.gmra.mxu0 %v4322
      %v4510 = vpop.f32.mrf.mxu0
      %v4511 = vadd.f32 0.0, %v4510
      %v4512 = vpop.f32.mrf.mxu0
      %4513 = vmatprep.mubr.f32.mxu0 0.0
      %4514 = vmatmul.mubr.f32.gmra.mxu0 %v4325
      %v4515 = vpop.f32.mrf.mxu0
      %v4516 = vadd.f32 0.0, %v4515
      %v4517 = vpop.f32.mrf.mxu0
      %4518 = vmatprep.mubr.f32.mxu0 0.0
      %4519 = vmatmul.mubr.f32.gmra.mxu0 %v4328
      %v4520 = vpop.f32.mrf.mxu0
      %v4521 = vadd.f32 0.0, %v4520
      %v4522 = vpop.f32.mrf.mxu0
      %4523 = vmatprep.mubr.f32.mxu0 0.0
      %4524 = vmatmul.mubr.f32.gmra.mxu0 %v4331
      %v4525 = vpop.f32.mrf.mxu0
      %v4526 = vadd.f32 0.0, %v4525
      %v4527 = vpop.f32.mrf.mxu0
      %4528 = vmatprep.mubr.f32.mxu0 0.0
      %4529 = vmatmul.mubr.f32.gmra.mxu0 %v4334
      %v4530 = vpop.f32.mrf.mxu0
      %v4531 = vadd.f32 0.0, %v4530
      %v4532 = vpop.f32.mrf.mxu0
      %4533 = vmatprep.mubr.f32.mxu0 0.0
      %4534 = vmatmul.mubr.f32.gmra.mxu0 %v4337
      %v4535 = vpop.f32.mrf.mxu0
      %v4536 = vadd.f32 0.0, %v4535
      %v4537 = vpop.f32.mrf.mxu0
      %4538 = vmatprep.mubr.f32.mxu0 0.0
      %4539 = vmatmul.mubr.f32.gmra.mxu0 %v4340
      %v4540 = vpop.f32.mrf.mxu0
      %v4541 = vadd.f32 0.0, %v4540
      %v4542 = vpop.f32.mrf.mxu0
      %4543 = vmatprep.mubr.f32.mxu0 0.0
      %4544 = vmatmul.mubr.f32.gmra.mxu0 %v4343
      %v4545 = vpop.f32.mrf.mxu0
      %v4546 = vadd.f32 0.0, %v4545
      %v4547 = vpop.f32.mrf.mxu0
      %4548 = vmatprep.mubr.f32.mxu0 0.0
      %4549 = vmatmul.mubr.f32.gmra.mxu0 %v4346
      %v4550 = vpop.f32.mrf.mxu0
      %v4551 = vadd.f32 0.0, %v4550
      %v4552 = vpop.f32.mrf.mxu0
      %4553 = vmatprep.mubr.f32.mxu0 0.0
      %4554 = vmatmul.mubr.f32.gmra.mxu0 %v4349
      %v4555 = vpop.f32.mrf.mxu0
      %v4556 = vadd.f32 0.0, %v4555
      %v4557 = vpop.f32.mrf.mxu0
      %4558 = vmatprep.mubr.f32.mxu0 0.0
      %4559 = vmatmul.mubr.f32.gmra.mxu0 %v4352
      %v4560 = vpop.f32.mrf.mxu0
      %v4561 = vadd.f32 0.0, %v4560
      %v4562 = vpop.f32.mrf.mxu0
      %4563 = vmatprep.mubr.f32.mxu0 0.0
      %4564 = vmatmul.mubr.f32.gmra.mxu0 %v4355
      %v4565 = vpop.f32.mrf.mxu0
      %v4566 = vadd.f32 0.0, %v4565
      %v4567 = vpop.f32.mrf.mxu0
      %4568 = vmatprep.mubr.f32.mxu0 0.0
      %4569 = vmatmul.mubr.f32.gmra.mxu0 %v4358
      %v4570 = vpop.f32.mrf.mxu0
      %v4571 = vadd.f32 0.0, %v4570
      %v4572 = vpop.f32.mrf.mxu0
      %4573 = vmatprep.mubr.f32.mxu0 0.0
      %4574 = vmatmul.mubr.f32.gmra.mxu0 %v4361
      %v4575 = vpop.f32.mrf.mxu0
      %v4576 = vadd.f32 0.0, %v4575
      %v4577 = vpop.f32.mrf.mxu0
      %4578 = vmatprep.mubr.f32.mxu0 0.0
      %4579 = vmatmul.mubr.f32.gmra.mxu0 %v4364
      %v4580 = vpop.f32.mrf.mxu0
      %v4581 = vadd.f32 0.0, %v4580
      %v4582 = vpop.f32.mrf.mxu0
      %4583 = vmatprep.mubr.f32.mxu0 0.0
      %4584 = vmatmul.mubr.f32.gmra.mxu0 %v4367
      %v4585 = vpop.f32.mrf.mxu0
      %v4586 = vadd.f32 0.0, %v4585
      %v4587 = vpop.f32.mrf.mxu0
      %4588 = vmatprep.mubr.f32.mxu0 0.0
      %4589 = vmatmul.mubr.f32.gmra.mxu0 %v4370
      %v4590 = vpop.f32.mrf.mxu0
      %v4591 = vadd.f32 0.0, %v4590
      %v4592 = vpop.f32.mrf.mxu0
      %4593 = vmatprep.mubr.f32.mxu0 0.0
      %4594 = vmatmul.mubr.f32.gmra.mxu0 %v4373
      %v4595 = vpop.f32.mrf.mxu0
      %v4596 = vadd.f32 0.0, %v4595
      %v4597 = vpop.f32.mrf.mxu0
      %4598 = vmatprep.mubr.f32.mxu0 0.0
      %4599 = vmatmul.mubr.f32.gmra.mxu0 %v4376
      %v4600 = vpop.f32.mrf.mxu0
      %v4601 = vadd.f32 0.0, %v4600
      %v4602 = vpop.f32.mrf.mxu0
      %4603 = vmatprep.mubr.f32.mxu0 0.0
      %4604 = vmatmul.mubr.f32.gmra.mxu0 %v4379
      %v4605 = vpop.f32.mrf.mxu0
      %v4606 = vadd.f32 0.0, %v4605
      %v4607 = vpop.f32.mrf.mxu0
      %4608 = vdwg.mxu0
      %v4610 = vsel %vm204, %v4218, 0
      %v4613 = vsel %vm204, %v4219, 0
      %v4616 = vsel %vm204, %v4220, 0
      %v4619 = vsel %vm204, %v4221, 0
      %v4622 = vsel %vm204, %v4222, 0
      %v4625 = vsel %vm204, %v4223, 0
      %v4628 = vsel %vm204, %v4224, 0
      %v4631 = vsel %vm204, %v4225, 0
      %v4634 = vsel %vm204, %v4226, 0
      %v4637 = vsel %vm204, %v4227, 0
      %v4640 = vsel %vm204, %v4228, 0
      %v4643 = vsel %vm204, %v4229, 0
      %v4646 = vsel %vm204, %v4230, 0
      %v4649 = vsel %vm204, %v4231, 0
      %v4652 = vsel %vm204, %v4232, 0
      %v4655 = vsel %vm204, %v4233, 0
      %v4658 = vsel %vm204, %v4234, 0
      %v4661 = vsel %vm204, %v4235, 0
      %v4664 = vsel %vm204, %v4236, 0
      %v4667 = vsel %vm204, %v4237, 0
      %v4670 = vsel %vm204, %v4238, 0
      %v4673 = vsel %vm204, %v4239, 0
      %v4676 = vsel %vm204, %v4240, 0
      %v4679 = vsel %vm204, %v4241, 0
      %v4682 = vsel %vm204, %v4242, 0
      %v4685 = vsel %vm204, %v4243, 0
      %v4688 = vsel %vm204, %v4244, 0
      %v4691 = vsel %vm204, %v4245, 0
      %v4694 = vsel %vm204, %v4246, 0
      %v4697 = vsel %vm204, %v4247, 0
      %v4700 = vsel %vm204, %v4248, 0
      %v4703 = vsel %vm204, %v4249, 0
      %v4706 = vsel %vm484, %v4250, 0
      %4708 = vmatprep.subr.mxu0 0.0
      %4709 = vmatpush1.msra.mxu0 0.0
      %4710 = vmatprep.subr.mxu0 0.0
      %4711 = vmatpush1.msra.mxu0 0.0
      %4712 = vmatprep.subr.mxu0 0.0
      %4713 = vmatpush1.msra.mxu0 0.0
      %4714 = vmatprep.subr.mxu0 0.0
      %4715 = vmatpush1.msra.mxu0 0.0
      %4716 = vmatprep.subr.mxu0 0.0
      %4717 = vmatpush1.msra.mxu0 0.0
      %4718 = vmatprep.subr.mxu0 0.0
      %4719 = vmatpush1.msra.mxu0 0.0
      %4720 = vmatprep.subr.mxu0 0.0
      %4721 = vmatpush1.msra.mxu0 0.0
      %4722 = vmatprep.subr.mxu0 0.0
      %4723 = vmatpush1.msra.mxu0 0.0
      %4724 = vmatprep.subr.mxu0 0.0
      %4725 = vmatpush1.msra.mxu0 0.0
      %4726 = vmatprep.subr.mxu0 0.0
      %4727 = vmatpush1.msra.mxu0 0.0
      %4728 = vmatprep.subr.mxu0 0.0
      %4729 = vmatpush1.msra.mxu0 0.0
      %4730 = vmatprep.subr.mxu0 0.0
      %4731 = vmatpush1.msra.mxu0 0.0
      %4732 = vmatprep.subr.mxu0 0.0
      %4733 = vmatpush1.msra.mxu0 0.0
      %4734 = vmatprep.subr.mxu0 0.0
      %4735 = vmatpush1.msra.mxu0 0.0
      %4736 = vmatprep.subr.mxu0 0.0
      %4737 = vmatpush1.msra.mxu0 0.0
      %4738 = vmatprep.subr.mxu0 0.0
      %4739 = vmatpush1.msra.mxu0 %v4706
      %4740 = vmatprep.subr.mxu0 0.0
      %4741 = vmatpush2.msra.mxu0 0.0
      %4742 = vmatprep.subr.mxu0 0.0
      %4743 = vmatpush2.msra.mxu0 0.0
      %4744 = vmatprep.subr.mxu0 0.0
      %4745 = vmatpush2.msra.mxu0 0.0
      %4746 = vmatprep.subr.mxu0 0.0
      %4747 = vmatpush2.msra.mxu0 0.0
      %4748 = vmatprep.subr.mxu0 0.0
      %4749 = vmatpush2.msra.mxu0 0.0
      %4750 = vmatprep.subr.mxu0 0.0
      %4751 = vmatpush2.msra.mxu0 0.0
      %4752 = vmatprep.subr.mxu0 0.0
      %4753 = vmatpush2.msra.mxu0 0.0
      %4754 = vmatprep.subr.mxu0 0.0
      %4755 = vmatpush2.msra.mxu0 0.0
      %4756 = vmatprep.subr.mxu0 0.0
      %4757 = vmatpush2.msra.mxu0 0.0
      %4758 = vmatprep.subr.mxu0 0.0
      %4759 = vmatpush2.msra.mxu0 0.0
      %4760 = vmatprep.subr.mxu0 0.0
      %4761 = vmatpush2.msra.mxu0 0.0
      %4762 = vmatprep.subr.mxu0 0.0
      %4763 = vmatpush2.msra.mxu0 0.0
      %4764 = vmatprep.subr.mxu0 0.0
      %4765 = vmatpush2.msra.mxu0 0.0
      %4766 = vmatprep.subr.mxu0 0.0
      %4767 = vmatpush2.msra.mxu0 0.0
      %4768 = vmatprep.subr.mxu0 0.0
      %4769 = vmatpush2.msra.mxu0 0.0
      %4770 = vmatprep.subr.mxu0 0.0
      %4771 = vmatpush2.msra.mxu0 0.0
      %4772 = vmatprep.mubr.f32.mxu0 0.0
      %4773 = vmatmul.mubr.f32.gmra.mxu0 %v4610
      %v4774 = vpop.f32.mrf.mxu0
      %v4775 = vadd.f32 %v4451, %v4774
      %v4776 = vpop.f32.mrf.mxu0
      %4777 = vmatprep.mubr.f32.mxu0 0.0
      %4778 = vmatmul.mubr.f32.gmra.mxu0 %v4613
      %v4779 = vpop.f32.mrf.mxu0
      %v4780 = vadd.f32 %v4456, %v4779
      %v4781 = vpop.f32.mrf.mxu0
      %4782 = vmatprep.mubr.f32.mxu0 0.0
      %4783 = vmatmul.mubr.f32.gmra.mxu0 %v4616
      %v4784 = vpop.f32.mrf.mxu0
      %v4785 = vadd.f32 %v4461, %v4784
      %v4786 = vpop.f32.mrf.mxu0
      %4787 = vmatprep.mubr.f32.mxu0 0.0
      %4788 = vmatmul.mubr.f32.gmra.mxu0 %v4619
      %v4789 = vpop.f32.mrf.mxu0
      %v4790 = vadd.f32 %v4466, %v4789
      %v4791 = vpop.f32.mrf.mxu0
      %4792 = vmatprep.mubr.f32.mxu0 0.0
      %4793 = vmatmul.mubr.f32.gmra.mxu0 %v4622
      %v4794 = vpop.f32.mrf.mxu0
      %v4795 = vadd.f32 %v4471, %v4794
      %v4796 = vpop.f32.mrf.mxu0
      %4797 = vmatprep.mubr.f32.mxu0 0.0
      %4798 = vmatmul.mubr.f32.gmra.mxu0 %v4625
      %v4799 = vpop.f32.mrf.mxu0
      %v4800 = vadd.f32 %v4476, %v4799
      %v4801 = vpop.f32.mrf.mxu0
      %4802 = vmatprep.mubr.f32.mxu0 0.0
      %4803 = vmatmul.mubr.f32.gmra.mxu0 %v4628
      %v4804 = vpop.f32.mrf.mxu0
      %v4805 = vadd.f32 %v4481, %v4804
      %v4806 = vpop.f32.mrf.mxu0
      %4807 = vmatprep.mubr.f32.mxu0 0.0
      %4808 = vmatmul.mubr.f32.gmra.mxu0 %v4631
      %v4809 = vpop.f32.mrf.mxu0
      %v4810 = vadd.f32 %v4486, %v4809
      %v4811 = vpop.f32.mrf.mxu0
      %4812 = vmatprep.mubr.f32.mxu0 0.0
      %4813 = vmatmul.mubr.f32.gmra.mxu0 %v4634
      %v4814 = vpop.f32.mrf.mxu0
      %v4815 = vadd.f32 %v4491, %v4814
      %v4816 = vpop.f32.mrf.mxu0
      %4817 = vmatprep.mubr.f32.mxu0 0.0
      %4818 = vmatmul.mubr.f32.gmra.mxu0 %v4637
      %v4819 = vpop.f32.mrf.mxu0
      %v4820 = vadd.f32 %v4496, %v4819
      %v4821 = vpop.f32.mrf.mxu0
      %4822 = vmatprep.mubr.f32.mxu0 0.0
      %4823 = vmatmul.mubr.f32.gmra.mxu0 %v4640
      %v4824 = vpop.f32.mrf.mxu0
      %v4825 = vadd.f32 %v4501, %v4824
      %v4826 = vpop.f32.mrf.mxu0
      %4827 = vmatprep.mubr.f32.mxu0 0.0
      %4828 = vmatmul.mubr.f32.gmra.mxu0 %v4643
      %v4829 = vpop.f32.mrf.mxu0
      %v4830 = vadd.f32 %v4506, %v4829
      %v4831 = vpop.f32.mrf.mxu0
      %4832 = vmatprep.mubr.f32.mxu0 0.0
      %4833 = vmatmul.mubr.f32.gmra.mxu0 %v4646
      %v4834 = vpop.f32.mrf.mxu0
      %v4835 = vadd.f32 %v4511, %v4834
      %v4836 = vpop.f32.mrf.mxu0
      %4837 = vmatprep.mubr.f32.mxu0 0.0
      %4838 = vmatmul.mubr.f32.gmra.mxu0 %v4649
      %v4839 = vpop.f32.mrf.mxu0
      %v4840 = vadd.f32 %v4516, %v4839
      %v4841 = vpop.f32.mrf.mxu0
      %4842 = vmatprep.mubr.f32.mxu0 0.0
      %4843 = vmatmul.mubr.f32.gmra.mxu0 %v4652
      %v4844 = vpop.f32.mrf.mxu0
      %v4845 = vadd.f32 %v4521, %v4844
      %v4846 = vpop.f32.mrf.mxu0
      %4847 = vmatprep.mubr.f32.mxu0 0.0
      %4848 = vmatmul.mubr.f32.gmra.mxu0 %v4655
      %v4849 = vpop.f32.mrf.mxu0
      %v4850 = vadd.f32 %v4526, %v4849
      %v4851 = vpop.f32.mrf.mxu0
      %4852 = vmatprep.mubr.f32.mxu0 0.0
      %4853 = vmatmul.mubr.f32.gmra.mxu0 %v4658
      %v4854 = vpop.f32.mrf.mxu0
      %v4855 = vadd.f32 %v4531, %v4854
      %v4856 = vpop.f32.mrf.mxu0
      %4857 = vmatprep.mubr.f32.mxu0 0.0
      %4858 = vmatmul.mubr.f32.gmra.mxu0 %v4661
      %v4859 = vpop.f32.mrf.mxu0
      %v4860 = vadd.f32 %v4536, %v4859
      %v4861 = vpop.f32.mrf.mxu0
      %4862 = vmatprep.mubr.f32.mxu0 0.0
      %4863 = vmatmul.mubr.f32.gmra.mxu0 %v4664
      %v4864 = vpop.f32.mrf.mxu0
      %v4865 = vadd.f32 %v4541, %v4864
      %v4866 = vpop.f32.mrf.mxu0
      %4867 = vmatprep.mubr.f32.mxu0 0.0
      %4868 = vmatmul.mubr.f32.gmra.mxu0 %v4667
      %v4869 = vpop.f32.mrf.mxu0
      %v4870 = vadd.f32 %v4546, %v4869
      %v4871 = vpop.f32.mrf.mxu0
      %4872 = vmatprep.mubr.f32.mxu0 0.0
      %4873 = vmatmul.mubr.f32.gmra.mxu0 %v4670
      %v4874 = vpop.f32.mrf.mxu0
      %v4875 = vadd.f32 %v4551, %v4874
      %v4876 = vpop.f32.mrf.mxu0
      %4877 = vmatprep.mubr.f32.mxu0 0.0
      %4878 = vmatmul.mubr.f32.gmra.mxu0 %v4673
      %v4879 = vpop.f32.mrf.mxu0
      %v4880 = vadd.f32 %v4556, %v4879
      %v4881 = vpop.f32.mrf.mxu0
      %4882 = vmatprep.mubr.f32.mxu0 0.0
      %4883 = vmatmul.mubr.f32.gmra.mxu0 %v4676
      %v4884 = vpop.f32.mrf.mxu0
      %v4885 = vadd.f32 %v4561, %v4884
      %v4886 = vpop.f32.mrf.mxu0
      %4887 = vmatprep.mubr.f32.mxu0 0.0
      %4888 = vmatmul.mubr.f32.gmra.mxu0 %v4679
      %v4889 = vpop.f32.mrf.mxu0
      %v4890 = vadd.f32 %v4566, %v4889
      %v4891 = vpop.f32.mrf.mxu0
      %4892 = vmatprep.mubr.f32.mxu0 0.0
      %4893 = vmatmul.mubr.f32.gmra.mxu0 %v4682
      %v4894 = vpop.f32.mrf.mxu0
      %v4895 = vadd.f32 %v4571, %v4894
      %v4896 = vpop.f32.mrf.mxu0
      %4897 = vmatprep.mubr.f32.mxu0 0.0
      %4898 = vmatmul.mubr.f32.gmra.mxu0 %v4685
      %v4899 = vpop.f32.mrf.mxu0
      %v4900 = vadd.f32 %v4576, %v4899
      %v4901 = vpop.f32.mrf.mxu0
      %4902 = vmatprep.mubr.f32.mxu0 0.0
      %4903 = vmatmul.mubr.f32.gmra.mxu0 %v4688
      %v4904 = vpop.f32.mrf.mxu0
      %v4905 = vadd.f32 %v4581, %v4904
      %v4906 = vpop.f32.mrf.mxu0
      %4907 = vmatprep.mubr.f32.mxu0 0.0
      %4908 = vmatmul.mubr.f32.gmra.mxu0 %v4691
      %v4909 = vpop.f32.mrf.mxu0
      %v4910 = vadd.f32 %v4586, %v4909
      %v4911 = vpop.f32.mrf.mxu0
      %4912 = vmatprep.mubr.f32.mxu0 0.0
      %4913 = vmatmul.mubr.f32.gmra.mxu0 %v4694
      %v4914 = vpop.f32.mrf.mxu0
      %v4915 = vadd.f32 %v4591, %v4914
      %v4916 = vpop.f32.mrf.mxu0
      %4917 = vmatprep.mubr.f32.mxu0 0.0
      %4918 = vmatmul.mubr.f32.gmra.mxu0 %v4697
      %v4919 = vpop.f32.mrf.mxu0
      %v4920 = vadd.f32 %v4596, %v4919
      %v4921 = vpop.f32.mrf.mxu0
      %4922 = vmatprep.mubr.f32.mxu0 0.0
      %4923 = vmatmul.mubr.f32.gmra.mxu0 %v4700
      %v4924 = vpop.f32.mrf.mxu0
      %v4925 = vadd.f32 %v4601, %v4924
      %v4926 = vpop.f32.mrf.mxu0
      %4927 = vmatprep.mubr.f32.mxu0 0.0
      %4928 = vmatmul.mubr.f32.gmra.mxu0 %v4703
      %v4929 = vpop.f32.mrf.mxu0
      %v4930 = vadd.f32 %v4606, %v4929
      %v4931 = vpop.f32.mrf.mxu0
      %4932 = vdwg.mxu0
      %v4933 = vld [vmem:[#allocation2 + $0x2] sm:$0xff]
      %v4934 = vld [vmem:[#allocation2 + $0xa] sm:$0xff]
      %v4935 = vld [vmem:[#allocation2 + $0x1a] sm:$0xff]
      %v4936 = vld [vmem:[#allocation2 + $0x22] sm:$0xff]
      %v4937 = vld [vmem:[#allocation2 + $0x32] sm:$0xff]
      %v4938 = vld [vmem:[#allocation2 + $0x3a] sm:$0xff]
      %v4939 = vld [vmem:[#allocation2 + $0x4a] sm:$0xff]
      %v4940 = vld [vmem:[#allocation2 + $0x52] sm:$0xff]
      %v4941 = vld [vmem:[#allocation2 + $0x62] sm:$0xff]
      %v4942 = vld [vmem:[#allocation2 + $0x6a] sm:$0xff]
      %v4943 = vld [vmem:[#allocation2 + $0x7a] sm:$0xff]
      %v4944 = vld [vmem:[#allocation2 + $0x82] sm:$0xff]
      %v4945 = vld [vmem:[#allocation2 + $0x92] sm:$0xff]
      %v4946 = vld [vmem:[#allocation2 + $0x9a] sm:$0xff]
      %v4947 = vld [vmem:[#allocation2 + $0xaa] sm:$0xff]
      %v4948 = vld [vmem:[#allocation2 + $0xb2] sm:$0xff]
      %v4949 = vld [vmem:[#allocation2 + $0xc2] sm:$0xff]
      %v4950 = vld [vmem:[#allocation2 + $0xca] sm:$0xff]
      %v4951 = vld [vmem:[#allocation2 + $0xda] sm:$0xff]
      %v4952 = vld [vmem:[#allocation2 + $0xe2] sm:$0xff]
      %v4953 = vld [vmem:[#allocation2 + $0xf2] sm:$0xff]
      %v4954 = vld [vmem:[#allocation2 + $0xfa] sm:$0xff]
      %v4955 = vld [vmem:[#allocation2 + $0x10a] sm:$0xff]
      %v4956 = vld [vmem:[#allocation2 + $0x112] sm:$0xff]
      %v4957 = vld [vmem:[#allocation2 + $0x122] sm:$0xff]
      %v4958 = vld [vmem:[#allocation2 + $0x12a] sm:$0xff]
      %v4959 = vld [vmem:[#allocation2 + $0x13a] sm:$0xff]
      %v4960 = vld [vmem:[#allocation2 + $0x142] sm:$0xff]
      %v4961 = vld [vmem:[#allocation2 + $0x152] sm:$0xff]
      %v4962 = vld [vmem:[#allocation2 + $0x15a] sm:$0xff]
      %v4963 = vld [vmem:[#allocation2 + $0x16a] sm:$0xff]
      %v4964 = vld [vmem:[#allocation2 + $0x172] sm:$0xff]
      %s4965 = scalar_lea.vmem %s2, 8
      %v4966 = vld [vmem:[%s4965] sm:$0xf]
      %v4968 = vsel %vm204, %v4933, 0
      %v4971 = vsel %vm204, %v4934, 0
      %v4974 = vsel %vm204, %v4935, 0
      %v4977 = vsel %vm204, %v4936, 0
      %v4980 = vsel %vm204, %v4937, 0
      %v4983 = vsel %vm204, %v4938, 0
      %v4986 = vsel %vm204, %v4939, 0
      %v4989 = vsel %vm204, %v4940, 0
      %v4992 = vsel %vm204, %v4941, 0
      %v4995 = vsel %vm204, %v4942, 0
      %v4998 = vsel %vm204, %v4943, 0
      %v5001 = vsel %vm204, %v4944, 0
      %v5004 = vsel %vm204, %v4945, 0
      %v5007 = vsel %vm204, %v4946, 0
      %v5010 = vsel %vm204, %v4947, 0
      %v5013 = vsel %vm204, %v4948, 0
      %v5016 = vsel %vm204, %v4949, 0
      %v5019 = vsel %vm204, %v4950, 0
      %v5022 = vsel %vm204, %v4951, 0
      %v5025 = vsel %vm204, %v4952, 0
      %v5028 = vsel %vm204, %v4953, 0
      %v5031 = vsel %vm204, %v4954, 0
      %v5034 = vsel %vm204, %v4955, 0
      %v5037 = vsel %vm204, %v4956, 0
      %v5040 = vsel %vm204, %v4957, 0
      %v5043 = vsel %vm204, %v4958, 0
      %v5046 = vsel %vm204, %v4959, 0
      %v5049 = vsel %vm204, %v4960, 0
      %v5052 = vsel %vm204, %v4961, 0
      %v5055 = vsel %vm204, %v4962, 0
      %v5058 = vsel %vm204, %v4963, 0
      %v5061 = vsel %vm204, %v4964, 0
      %v5064 = vsel %vm484, %v4966, 0
      %5066 = vmatprep.subr.mxu0 0.0
      %5067 = vmatpush1.msra.mxu0 0.0
      %5068 = vmatprep.subr.mxu0 0.0
      %5069 = vmatpush1.msra.mxu0 0.0
      %5070 = vmatprep.subr.mxu0 0.0
      %5071 = vmatpush1.msra.mxu0 0.0
      %5072 = vmatprep.subr.mxu0 0.0
      %5073 = vmatpush1.msra.mxu0 0.0
      %5074 = vmatprep.subr.mxu0 0.0
      %5075 = vmatpush1.msra.mxu0 0.0
      %5076 = vmatprep.subr.mxu0 0.0
      %5077 = vmatpush1.msra.mxu0 0.0
      %5078 = vmatprep.subr.mxu0 0.0
      %5079 = vmatpush1.msra.mxu0 0.0
      %5080 = vmatprep.subr.mxu0 0.0
      %5081 = vmatpush1.msra.mxu0 0.0
      %5082 = vmatprep.subr.mxu0 0.0
      %5083 = vmatpush1.msra.mxu0 0.0
      %5084 = vmatprep.subr.mxu0 0.0
      %5085 = vmatpush1.msra.mxu0 0.0
      %5086 = vmatprep.subr.mxu0 0.0
      %5087 = vmatpush1.msra.mxu0 0.0
      %5088 = vmatprep.subr.mxu0 0.0
      %5089 = vmatpush1.msra.mxu0 0.0
      %5090 = vmatprep.subr.mxu0 0.0
      %5091 = vmatpush1.msra.mxu0 0.0
      %5092 = vmatprep.subr.mxu0 0.0
      %5093 = vmatpush1.msra.mxu0 0.0
      %5094 = vmatprep.subr.mxu0 0.0
      %5095 = vmatpush1.msra.mxu0 0.0
      %5096 = vmatprep.subr.mxu0 0.0
      %5097 = vmatpush1.msra.mxu0 %v5064
      %5098 = vmatprep.subr.mxu0 0.0
      %5099 = vmatpush2.msra.mxu0 0.0
      %5100 = vmatprep.subr.mxu0 0.0
      %5101 = vmatpush2.msra.mxu0 0.0
      %5102 = vmatprep.subr.mxu0 0.0
      %5103 = vmatpush2.msra.mxu0 0.0
      %5104 = vmatprep.subr.mxu0 0.0
      %5105 = vmatpush2.msra.mxu0 0.0
      %5106 = vmatprep.subr.mxu0 0.0
      %5107 = vmatpush2.msra.mxu0 0.0
      %5108 = vmatprep.subr.mxu0 0.0
      %5109 = vmatpush2.msra.mxu0 0.0
      %5110 = vmatprep.subr.mxu0 0.0
      %5111 = vmatpush2.msra.mxu0 0.0
      %5112 = vmatprep.subr.mxu0 0.0
      %5113 = vmatpush2.msra.mxu0 0.0
      %5114 = vmatprep.subr.mxu0 0.0
      %5115 = vmatpush2.msra.mxu0 0.0
      %5116 = vmatprep.subr.mxu0 0.0
      %5117 = vmatpush2.msra.mxu0 0.0
      %5118 = vmatprep.subr.mxu0 0.0
      %5119 = vmatpush2.msra.mxu0 0.0
      %5120 = vmatprep.subr.mxu0 0.0
      %5121 = vmatpush2.msra.mxu0 0.0
      %5122 = vmatprep.subr.mxu0 0.0
      %5123 = vmatpush2.msra.mxu0 0.0
      %5124 = vmatprep.subr.mxu0 0.0
      %5125 = vmatpush2.msra.mxu0 0.0
      %5126 = vmatprep.subr.mxu0 0.0
      %5127 = vmatpush2.msra.mxu0 0.0
      %5128 = vmatprep.subr.mxu0 0.0
      %5129 = vmatpush2.msra.mxu0 0.0
      %5130 = vmatprep.mubr.f32.mxu0 0.0
      %5131 = vmatmul.mubr.f32.gmra.mxu0 %v4968
      %v5132 = vpop.f32.mrf.mxu0
      %v5133 = vadd.f32 0.0, %v5132
      %v5134 = vpop.f32.mrf.mxu0
      %5135 = vmatprep.mubr.f32.mxu0 0.0
      %5136 = vmatmul.mubr.f32.gmra.mxu0 %v4971
      %v5137 = vpop.f32.mrf.mxu0
      %v5138 = vadd.f32 0.0, %v5137
      %v5139 = vpop.f32.mrf.mxu0
      %5140 = vmatprep.mubr.f32.mxu0 0.0
      %5141 = vmatmul.mubr.f32.gmra.mxu0 %v4974
      %v5142 = vpop.f32.mrf.mxu0
      %v5143 = vadd.f32 0.0, %v5142
      %v5144 = vpop.f32.mrf.mxu0
      %5145 = vmatprep.mubr.f32.mxu0 0.0
      %5146 = vmatmul.mubr.f32.gmra.mxu0 %v4977
      %v5147 = vpop.f32.mrf.mxu0
      %v5148 = vadd.f32 0.0, %v5147
      %v5149 = vpop.f32.mrf.mxu0
      %5150 = vmatprep.mubr.f32.mxu0 0.0
      %5151 = vmatmul.mubr.f32.gmra.mxu0 %v4980
      %v5152 = vpop.f32.mrf.mxu0
      %v5153 = vadd.f32 0.0, %v5152
      %v5154 = vpop.f32.mrf.mxu0
      %5155 = vmatprep.mubr.f32.mxu0 0.0
      %5156 = vmatmul.mubr.f32.gmra.mxu0 %v4983
      %v5157 = vpop.f32.mrf.mxu0
      %v5158 = vadd.f32 0.0, %v5157
      %v5159 = vpop.f32.mrf.mxu0
      %5160 = vmatprep.mubr.f32.mxu0 0.0
      %5161 = vmatmul.mubr.f32.gmra.mxu0 %v4986
      %v5162 = vpop.f32.mrf.mxu0
      %v5163 = vadd.f32 0.0, %v5162
      %v5164 = vpop.f32.mrf.mxu0
      %5165 = vmatprep.mubr.f32.mxu0 0.0
      %5166 = vmatmul.mubr.f32.gmra.mxu0 %v4989
      %v5167 = vpop.f32.mrf.mxu0
      %v5168 = vadd.f32 0.0, %v5167
      %v5169 = vpop.f32.mrf.mxu0
      %5170 = vmatprep.mubr.f32.mxu0 0.0
      %5171 = vmatmul.mubr.f32.gmra.mxu0 %v4992
      %v5172 = vpop.f32.mrf.mxu0
      %v5173 = vadd.f32 0.0, %v5172
      %v5174 = vpop.f32.mrf.mxu0
      %5175 = vmatprep.mubr.f32.mxu0 0.0
      %5176 = vmatmul.mubr.f32.gmra.mxu0 %v4995
      %v5177 = vpop.f32.mrf.mxu0
      %v5178 = vadd.f32 0.0, %v5177
      %v5179 = vpop.f32.mrf.mxu0
      %5180 = vmatprep.mubr.f32.mxu0 0.0
      %5181 = vmatmul.mubr.f32.gmra.mxu0 %v4998
      %v5182 = vpop.f32.mrf.mxu0
      %v5183 = vadd.f32 0.0, %v5182
      %v5184 = vpop.f32.mrf.mxu0
      %5185 = vmatprep.mubr.f32.mxu0 0.0
      %5186 = vmatmul.mubr.f32.gmra.mxu0 %v5001
      %v5187 = vpop.f32.mrf.mxu0
      %v5188 = vadd.f32 0.0, %v5187
      %v5189 = vpop.f32.mrf.mxu0
      %5190 = vmatprep.mubr.f32.mxu0 0.0
      %5191 = vmatmul.mubr.f32.gmra.mxu0 %v5004
      %v5192 = vpop.f32.mrf.mxu0
      %v5193 = vadd.f32 0.0, %v5192
      %v5194 = vpop.f32.mrf.mxu0
      %5195 = vmatprep.mubr.f32.mxu0 0.0
      %5196 = vmatmul.mubr.f32.gmra.mxu0 %v5007
      %v5197 = vpop.f32.mrf.mxu0
      %v5198 = vadd.f32 0.0, %v5197
      %v5199 = vpop.f32.mrf.mxu0
      %5200 = vmatprep.mubr.f32.mxu0 0.0
      %5201 = vmatmul.mubr.f32.gmra.mxu0 %v5010
      %v5202 = vpop.f32.mrf.mxu0
      %v5203 = vadd.f32 0.0, %v5202
      %v5204 = vpop.f32.mrf.mxu0
      %5205 = vmatprep.mubr.f32.mxu0 0.0
      %5206 = vmatmul.mubr.f32.gmra.mxu0 %v5013
      %v5207 = vpop.f32.mrf.mxu0
      %v5208 = vadd.f32 0.0, %v5207
      %v5209 = vpop.f32.mrf.mxu0
      %5210 = vmatprep.mubr.f32.mxu0 0.0
      %5211 = vmatmul.mubr.f32.gmra.mxu0 %v5016
      %v5212 = vpop.f32.mrf.mxu0
      %v5213 = vadd.f32 0.0, %v5212
      %v5214 = vpop.f32.mrf.mxu0
      %5215 = vmatprep.mubr.f32.mxu0 0.0
      %5216 = vmatmul.mubr.f32.gmra.mxu0 %v5019
      %v5217 = vpop.f32.mrf.mxu0
      %v5218 = vadd.f32 0.0, %v5217
      %v5219 = vpop.f32.mrf.mxu0
      %5220 = vmatprep.mubr.f32.mxu0 0.0
      %5221 = vmatmul.mubr.f32.gmra.mxu0 %v5022
      %v5222 = vpop.f32.mrf.mxu0
      %v5223 = vadd.f32 0.0, %v5222
      %v5224 = vpop.f32.mrf.mxu0
      %5225 = vmatprep.mubr.f32.mxu0 0.0
      %5226 = vmatmul.mubr.f32.gmra.mxu0 %v5025
      %v5227 = vpop.f32.mrf.mxu0
      %v5228 = vadd.f32 0.0, %v5227
      %v5229 = vpop.f32.mrf.mxu0
      %5230 = vmatprep.mubr.f32.mxu0 0.0
      %5231 = vmatmul.mubr.f32.gmra.mxu0 %v5028
      %v5232 = vpop.f32.mrf.mxu0
      %v5233 = vadd.f32 0.0, %v5232
      %v5234 = vpop.f32.mrf.mxu0
      %5235 = vmatprep.mubr.f32.mxu0 0.0
      %5236 = vmatmul.mubr.f32.gmra.mxu0 %v5031
      %v5237 = vpop.f32.mrf.mxu0
      %v5238 = vadd.f32 0.0, %v5237
      %v5239 = vpop.f32.mrf.mxu0
      %5240 = vmatprep.mubr.f32.mxu0 0.0
      %5241 = vmatmul.mubr.f32.gmra.mxu0 %v5034
      %v5242 = vpop.f32.mrf.mxu0
      %v5243 = vadd.f32 0.0, %v5242
      %v5244 = vpop.f32.mrf.mxu0
      %5245 = vmatprep.mubr.f32.mxu0 0.0
      %5246 = vmatmul.mubr.f32.gmra.mxu0 %v5037
      %v5247 = vpop.f32.mrf.mxu0
      %v5248 = vadd.f32 0.0, %v5247
      %v5249 = vpop.f32.mrf.mxu0
      %5250 = vmatprep.mubr.f32.mxu0 0.0
      %5251 = vmatmul.mubr.f32.gmra.mxu0 %v5040
      %v5252 = vpop.f32.mrf.mxu0
      %v5253 = vadd.f32 0.0, %v5252
      %v5254 = vpop.f32.mrf.mxu0
      %5255 = vmatprep.mubr.f32.mxu0 0.0
      %5256 = vmatmul.mubr.f32.gmra.mxu0 %v5043
      %v5257 = vpop.f32.mrf.mxu0
      %v5258 = vadd.f32 0.0, %v5257
      %v5259 = vpop.f32.mrf.mxu0
      %5260 = vmatprep.mubr.f32.mxu0 0.0
      %5261 = vmatmul.mubr.f32.gmra.mxu0 %v5046
      %v5262 = vpop.f32.mrf.mxu0
      %v5263 = vadd.f32 0.0, %v5262
      %v5264 = vpop.f32.mrf.mxu0
      %5265 = vmatprep.mubr.f32.mxu0 0.0
      %5266 = vmatmul.mubr.f32.gmra.mxu0 %v5049
      %v5267 = vpop.f32.mrf.mxu0
      %v5268 = vadd.f32 0.0, %v5267
      %v5269 = vpop.f32.mrf.mxu0
      %5270 = vmatprep.mubr.f32.mxu0 0.0
      %5271 = vmatmul.mubr.f32.gmra.mxu0 %v5052
      %v5272 = vpop.f32.mrf.mxu0
      %v5273 = vadd.f32 0.0, %v5272
      %v5274 = vpop.f32.mrf.mxu0
      %5275 = vmatprep.mubr.f32.mxu0 0.0
      %5276 = vmatmul.mubr.f32.gmra.mxu0 %v5055
      %v5277 = vpop.f32.mrf.mxu0
      %v5278 = vadd.f32 0.0, %v5277
      %v5279 = vpop.f32.mrf.mxu0
      %5280 = vmatprep.mubr.f32.mxu0 0.0
      %5281 = vmatmul.mubr.f32.gmra.mxu0 %v5058
      %v5282 = vpop.f32.mrf.mxu0
      %v5283 = vadd.f32 0.0, %v5282
      %v5284 = vpop.f32.mrf.mxu0
      %5285 = vmatprep.mubr.f32.mxu0 0.0
      %5286 = vmatmul.mubr.f32.gmra.mxu0 %v5061
      %v5287 = vpop.f32.mrf.mxu0
      %v5288 = vadd.f32 0.0, %v5287
      %v5289 = vpop.f32.mrf.mxu0
      %5290 = vdwg.mxu0
      %v5291 = vadd.f32 %v4775, %v5133
      %v5292 = vadd.f32 %v4780, %v5138
      %v5293 = vadd.f32 %v4785, %v5143
      %v5294 = vadd.f32 %v4790, %v5148
      %v5295 = vadd.f32 %v4795, %v5153
      %v5296 = vadd.f32 %v4800, %v5158
      %v5297 = vadd.f32 %v4805, %v5163
      %v5298 = vadd.f32 %v4810, %v5168
      %v5299 = vadd.f32 %v4815, %v5173
      %v5300 = vadd.f32 %v4820, %v5178
      %v5301 = vadd.f32 %v4825, %v5183
      %v5302 = vadd.f32 %v4830, %v5188
      %v5303 = vadd.f32 %v4835, %v5193
      %v5304 = vadd.f32 %v4840, %v5198
      %v5305 = vadd.f32 %v4845, %v5203
      %v5306 = vadd.f32 %v4850, %v5208
      %v5307 = vadd.f32 %v4855, %v5213
      %v5308 = vadd.f32 %v4860, %v5218
      %v5309 = vadd.f32 %v4865, %v5223
      %v5310 = vadd.f32 %v4870, %v5228
      %v5311 = vadd.f32 %v4875, %v5233
      %v5312 = vadd.f32 %v4880, %v5238
      %v5313 = vadd.f32 %v4885, %v5243
      %v5314 = vadd.f32 %v4890, %v5248
      %v5315 = vadd.f32 %v4895, %v5253
      %v5316 = vadd.f32 %v4900, %v5258
      %v5317 = vadd.f32 %v4905, %v5263
      %v5318 = vadd.f32 %v4910, %v5268
      %v5319 = vadd.f32 %v4915, %v5273
      %v5320 = vadd.f32 %v4920, %v5278
      %v5321 = vadd.f32 %v4925, %v5283
      %v5322 = vadd.f32 %v4930, %v5288
      %v5323 = vld [vmem:[%s203] sm:$0xff]
      %v5324 = vld [vmem:[%s203 + $0x8] sm:$0xff]
      %v5325 = vld [vmem:[%s203 + $0x18] sm:$0xff]
      %v5326 = vld [vmem:[%s203 + $0x20] sm:$0xff]
      %v5327 = vld [vmem:[%s203 + $0x30] sm:$0xff]
      %v5328 = vld [vmem:[%s203 + $0x38] sm:$0xff]
      %v5329 = vld [vmem:[%s203 + $0x48] sm:$0xff]
      %v5330 = vld [vmem:[%s203 + $0x50] sm:$0xff]
      %v5331 = vld [vmem:[%s203 + $0x60] sm:$0xff]
      %v5332 = vld [vmem:[%s203 + $0x68] sm:$0xff]
      %v5333 = vld [vmem:[%s203 + $0x78] sm:$0xff]
      %v5334 = vld [vmem:[%s203 + $0x80] sm:$0xff]
      %v5335 = vld [vmem:[%s203 + $0x90] sm:$0xff]
      %v5336 = vld [vmem:[%s203 + $0x98] sm:$0xff]
      %v5337 = vld [vmem:[%s203 + $0xa8] sm:$0xff]
      %v5338 = vld [vmem:[%s203 + $0xb0] sm:$0xff]
      %v5339 = vld [vmem:[%s203 + $0xc0] sm:$0xff]
      %v5340 = vld [vmem:[%s203 + $0xc8] sm:$0xff]
      %v5341 = vld [vmem:[%s203 + $0xd8] sm:$0xff]
      %v5342 = vld [vmem:[%s203 + $0xe0] sm:$0xff]
      %v5343 = vld [vmem:[%s203 + $0xf0] sm:$0xff]
      %v5344 = vld [vmem:[%s203 + $0xf8] sm:$0xff]
      %v5345 = vld [vmem:[%s203 + $0x108] sm:$0xff]
      %v5346 = vld [vmem:[%s203 + $0x110] sm:$0xff]
      %v5347 = vld [vmem:[%s203 + $0x120] sm:$0xff]
      %v5348 = vld [vmem:[%s203 + $0x128] sm:$0xff]
      %v5349 = vld [vmem:[%s203 + $0x138] sm:$0xff]
      %v5350 = vld [vmem:[%s203 + $0x140] sm:$0xff]
      %v5351 = vld [vmem:[%s203 + $0x150] sm:$0xff]
      %v5352 = vld [vmem:[%s203 + $0x158] sm:$0xff]
      %v5353 = vld [vmem:[%s203 + $0x168] sm:$0xff]
      %v5354 = vld [vmem:[%s203 + $0x170] sm:$0xff]
      %s5355 = scalar_lea.vmem %s2, 12
      %v5356 = vld [vmem:[%s5355] sm:$0xf]
      %v5358 = vsel %vm204, %v5323, 0
      %v5361 = vsel %vm204, %v5324, 0
      %v5364 = vsel %vm204, %v5325, 0
      %v5367 = vsel %vm204, %v5326, 0
      %v5370 = vsel %vm204, %v5327, 0
      %v5373 = vsel %vm204, %v5328, 0
      %v5376 = vsel %vm204, %v5329, 0
      %v5379 = vsel %vm204, %v5330, 0
      %v5382 = vsel %vm204, %v5331, 0
      %v5385 = vsel %vm204, %v5332, 0
      %v5388 = vsel %vm204, %v5333, 0
      %v5391 = vsel %vm204, %v5334, 0
      %v5394 = vsel %vm204, %v5335, 0
      %v5397 = vsel %vm204, %v5336, 0
      %v5400 = vsel %vm204, %v5337, 0
      %v5403 = vsel %vm204, %v5338, 0
      %v5406 = vsel %vm204, %v5339, 0
      %v5409 = vsel %vm204, %v5340, 0
      %v5412 = vsel %vm204, %v5341, 0
      %v5415 = vsel %vm204, %v5342, 0
      %v5418 = vsel %vm204, %v5343, 0
      %v5421 = vsel %vm204, %v5344, 0
      %v5424 = vsel %vm204, %v5345, 0
      %v5427 = vsel %vm204, %v5346, 0
      %v5430 = vsel %vm204, %v5347, 0
      %v5433 = vsel %vm204, %v5348, 0
      %v5436 = vsel %vm204, %v5349, 0
      %v5439 = vsel %vm204, %v5350, 0
      %v5442 = vsel %vm204, %v5351, 0
      %v5445 = vsel %vm204, %v5352, 0
      %v5448 = vsel %vm204, %v5353, 0
      %v5451 = vsel %vm204, %v5354, 0
      %v5454 = vsel %vm484, %v5356, 0
      %5456 = vmatprep.subr.mxu0 0.0
      %5457 = vmatpush1.msra.mxu0 0.0
      %5458 = vmatprep.subr.mxu0 0.0
      %5459 = vmatpush1.msra.mxu0 0.0
      %5460 = vmatprep.subr.mxu0 0.0
      %5461 = vmatpush1.msra.mxu0 0.0
      %5462 = vmatprep.subr.mxu0 0.0
      %5463 = vmatpush1.msra.mxu0 0.0
      %5464 = vmatprep.subr.mxu0 0.0
      %5465 = vmatpush1.msra.mxu0 0.0
      %5466 = vmatprep.subr.mxu0 0.0
      %5467 = vmatpush1.msra.mxu0 0.0
      %5468 = vmatprep.subr.mxu0 0.0
      %5469 = vmatpush1.msra.mxu0 0.0
      %5470 = vmatprep.subr.mxu0 0.0
      %5471 = vmatpush1.msra.mxu0 0.0
      %5472 = vmatprep.subr.mxu0 0.0
      %5473 = vmatpush1.msra.mxu0 0.0
      %5474 = vmatprep.subr.mxu0 0.0
      %5475 = vmatpush1.msra.mxu0 0.0
      %5476 = vmatprep.subr.mxu0 0.0
      %5477 = vmatpush1.msra.mxu0 0.0
      %5478 = vmatprep.subr.mxu0 0.0
      %5479 = vmatpush1.msra.mxu0 0.0
      %5480 = vmatprep.subr.mxu0 0.0
      %5481 = vmatpush1.msra.mxu0 0.0
      %5482 = vmatprep.subr.mxu0 0.0
      %5483 = vmatpush1.msra.mxu0 0.0
      %5484 = vmatprep.subr.mxu0 0.0
      %5485 = vmatpush1.msra.mxu0 0.0
      %5486 = vmatprep.subr.mxu0 0.0
      %5487 = vmatpush1.msra.mxu0 %v5454
      %5488 = vmatprep.subr.mxu0 0.0
      %5489 = vmatpush2.msra.mxu0 0.0
      %5490 = vmatprep.subr.mxu0 0.0
      %5491 = vmatpush2.msra.mxu0 0.0
      %5492 = vmatprep.subr.mxu0 0.0
      %5493 = vmatpush2.msra.mxu0 0.0
      %5494 = vmatprep.subr.mxu0 0.0
      %5495 = vmatpush2.msra.mxu0 0.0
      %5496 = vmatprep.subr.mxu0 0.0
      %5497 = vmatpush2.msra.mxu0 0.0
      %5498 = vmatprep.subr.mxu0 0.0
      %5499 = vmatpush2.msra.mxu0 0.0
      %5500 = vmatprep.subr.mxu0 0.0
      %5501 = vmatpush2.msra.mxu0 0.0
      %5502 = vmatprep.subr.mxu0 0.0
      %5503 = vmatpush2.msra.mxu0 0.0
      %5504 = vmatprep.subr.mxu0 0.0
      %5505 = vmatpush2.msra.mxu0 0.0
      %5506 = vmatprep.subr.mxu0 0.0
      %5507 = vmatpush2.msra.mxu0 0.0
      %5508 = vmatprep.subr.mxu0 0.0
      %5509 = vmatpush2.msra.mxu0 0.0
      %5510 = vmatprep.subr.mxu0 0.0
      %5511 = vmatpush2.msra.mxu0 0.0
      %5512 = vmatprep.subr.mxu0 0.0
      %5513 = vmatpush2.msra.mxu0 0.0
      %5514 = vmatprep.subr.mxu0 0.0
      %5515 = vmatpush2.msra.mxu0 0.0
      %5516 = vmatprep.subr.mxu0 0.0
      %5517 = vmatpush2.msra.mxu0 0.0
      %5518 = vmatprep.subr.mxu0 0.0
      %5519 = vmatpush2.msra.mxu0 0.0
      %5520 = vmatprep.mubr.f32.mxu0 0.0
      %5521 = vmatmul.mubr.f32.gmra.mxu0 %v5358
      %v5522 = vpop.f32.mrf.mxu0
      %v5523 = vadd.f32 0.0, %v5522
      %v5524 = vpop.f32.mrf.mxu0
      %5525 = vmatprep.mubr.f32.mxu0 0.0
      %5526 = vmatmul.mubr.f32.gmra.mxu0 %v5361
      %v5527 = vpop.f32.mrf.mxu0
      %v5528 = vadd.f32 0.0, %v5527
      %v5529 = vpop.f32.mrf.mxu0
      %5530 = vmatprep.mubr.f32.mxu0 0.0
      %5531 = vmatmul.mubr.f32.gmra.mxu0 %v5364
      %v5532 = vpop.f32.mrf.mxu0
      %v5533 = vadd.f32 0.0, %v5532
      %v5534 = vpop.f32.mrf.mxu0
      %5535 = vmatprep.mubr.f32.mxu0 0.0
      %5536 = vmatmul.mubr.f32.gmra.mxu0 %v5367
      %v5537 = vpop.f32.mrf.mxu0
      %v5538 = vadd.f32 0.0, %v5537
      %v5539 = vpop.f32.mrf.mxu0
      %5540 = vmatprep.mubr.f32.mxu0 0.0
      %5541 = vmatmul.mubr.f32.gmra.mxu0 %v5370
      %v5542 = vpop.f32.mrf.mxu0
      %v5543 = vadd.f32 0.0, %v5542
      %v5544 = vpop.f32.mrf.mxu0
      %5545 = vmatprep.mubr.f32.mxu0 0.0
      %5546 = vmatmul.mubr.f32.gmra.mxu0 %v5373
      %v5547 = vpop.f32.mrf.mxu0
      %v5548 = vadd.f32 0.0, %v5547
      %v5549 = vpop.f32.mrf.mxu0
      %5550 = vmatprep.mubr.f32.mxu0 0.0
      %5551 = vmatmul.mubr.f32.gmra.mxu0 %v5376
      %v5552 = vpop.f32.mrf.mxu0
      %v5553 = vadd.f32 0.0, %v5552
      %v5554 = vpop.f32.mrf.mxu0
      %5555 = vmatprep.mubr.f32.mxu0 0.0
      %5556 = vmatmul.mubr.f32.gmra.mxu0 %v5379
      %v5557 = vpop.f32.mrf.mxu0
      %v5558 = vadd.f32 0.0, %v5557
      %v5559 = vpop.f32.mrf.mxu0
      %5560 = vmatprep.mubr.f32.mxu0 0.0
      %5561 = vmatmul.mubr.f32.gmra.mxu0 %v5382
      %v5562 = vpop.f32.mrf.mxu0
      %v5563 = vadd.f32 0.0, %v5562
      %v5564 = vpop.f32.mrf.mxu0
      %5565 = vmatprep.mubr.f32.mxu0 0.0
      %5566 = vmatmul.mubr.f32.gmra.mxu0 %v5385
      %v5567 = vpop.f32.mrf.mxu0
      %v5568 = vadd.f32 0.0, %v5567
      %v5569 = vpop.f32.mrf.mxu0
      %5570 = vmatprep.mubr.f32.mxu0 0.0
      %5571 = vmatmul.mubr.f32.gmra.mxu0 %v5388
      %v5572 = vpop.f32.mrf.mxu0
      %v5573 = vadd.f32 0.0, %v5572
      %v5574 = vpop.f32.mrf.mxu0
      %5575 = vmatprep.mubr.f32.mxu0 0.0
      %5576 = vmatmul.mubr.f32.gmra.mxu0 %v5391
      %v5577 = vpop.f32.mrf.mxu0
      %v5578 = vadd.f32 0.0, %v5577
      %v5579 = vpop.f32.mrf.mxu0
      %5580 = vmatprep.mubr.f32.mxu0 0.0
      %5581 = vmatmul.mubr.f32.gmra.mxu0 %v5394
      %v5582 = vpop.f32.mrf.mxu0
      %v5583 = vadd.f32 0.0, %v5582
      %v5584 = vpop.f32.mrf.mxu0
      %5585 = vmatprep.mubr.f32.mxu0 0.0
      %5586 = vmatmul.mubr.f32.gmra.mxu0 %v5397
      %v5587 = vpop.f32.mrf.mxu0
      %v5588 = vadd.f32 0.0, %v5587
      %v5589 = vpop.f32.mrf.mxu0
      %5590 = vmatprep.mubr.f32.mxu0 0.0
      %5591 = vmatmul.mubr.f32.gmra.mxu0 %v5400
      %v5592 = vpop.f32.mrf.mxu0
      %v5593 = vadd.f32 0.0, %v5592
      %v5594 = vpop.f32.mrf.mxu0
      %5595 = vmatprep.mubr.f32.mxu0 0.0
      %5596 = vmatmul.mubr.f32.gmra.mxu0 %v5403
      %v5597 = vpop.f32.mrf.mxu0
      %v5598 = vadd.f32 0.0, %v5597
      %v5599 = vpop.f32.mrf.mxu0
      %5600 = vmatprep.mubr.f32.mxu0 0.0
      %5601 = vmatmul.mubr.f32.gmra.mxu0 %v5406
      %v5602 = vpop.f32.mrf.mxu0
      %v5603 = vadd.f32 0.0, %v5602
      %v5604 = vpop.f32.mrf.mxu0
      %5605 = vmatprep.mubr.f32.mxu0 0.0
      %5606 = vmatmul.mubr.f32.gmra.mxu0 %v5409
      %v5607 = vpop.f32.mrf.mxu0
      %v5608 = vadd.f32 0.0, %v5607
      %v5609 = vpop.f32.mrf.mxu0
      %5610 = vmatprep.mubr.f32.mxu0 0.0
      %5611 = vmatmul.mubr.f32.gmra.mxu0 %v5412
      %v5612 = vpop.f32.mrf.mxu0
      %v5613 = vadd.f32 0.0, %v5612
      %v5614 = vpop.f32.mrf.mxu0
      %5615 = vmatprep.mubr.f32.mxu0 0.0
      %5616 = vmatmul.mubr.f32.gmra.mxu0 %v5415
      %v5617 = vpop.f32.mrf.mxu0
      %v5618 = vadd.f32 0.0, %v5617
      %v5619 = vpop.f32.mrf.mxu0
      %5620 = vmatprep.mubr.f32.mxu0 0.0
      %5621 = vmatmul.mubr.f32.gmra.mxu0 %v5418
      %v5622 = vpop.f32.mrf.mxu0
      %v5623 = vadd.f32 0.0, %v5622
      %v5624 = vpop.f32.mrf.mxu0
      %5625 = vmatprep.mubr.f32.mxu0 0.0
      %5626 = vmatmul.mubr.f32.gmra.mxu0 %v5421
      %v5627 = vpop.f32.mrf.mxu0
      %v5628 = vadd.f32 0.0, %v5627
      %v5629 = vpop.f32.mrf.mxu0
      %5630 = vmatprep.mubr.f32.mxu0 0.0
      %5631 = vmatmul.mubr.f32.gmra.mxu0 %v5424
      %v5632 = vpop.f32.mrf.mxu0
      %v5633 = vadd.f32 0.0, %v5632
      %v5634 = vpop.f32.mrf.mxu0
      %5635 = vmatprep.mubr.f32.mxu0 0.0
      %5636 = vmatmul.mubr.f32.gmra.mxu0 %v5427
      %v5637 = vpop.f32.mrf.mxu0
      %v5638 = vadd.f32 0.0, %v5637
      %v5639 = vpop.f32.mrf.mxu0
      %5640 = vmatprep.mubr.f32.mxu0 0.0
      %5641 = vmatmul.mubr.f32.gmra.mxu0 %v5430
      %v5642 = vpop.f32.mrf.mxu0
      %v5643 = vadd.f32 0.0, %v5642
      %v5644 = vpop.f32.mrf.mxu0
      %5645 = vmatprep.mubr.f32.mxu0 0.0
      %5646 = vmatmul.mubr.f32.gmra.mxu0 %v5433
      %v5647 = vpop.f32.mrf.mxu0
      %v5648 = vadd.f32 0.0, %v5647
      %v5649 = vpop.f32.mrf.mxu0
      %5650 = vmatprep.mubr.f32.mxu0 0.0
      %5651 = vmatmul.mubr.f32.gmra.mxu0 %v5436
      %v5652 = vpop.f32.mrf.mxu0
      %v5653 = vadd.f32 0.0, %v5652
      %v5654 = vpop.f32.mrf.mxu0
      %5655 = vmatprep.mubr.f32.mxu0 0.0
      %5656 = vmatmul.mubr.f32.gmra.mxu0 %v5439
      %v5657 = vpop.f32.mrf.mxu0
      %v5658 = vadd.f32 0.0, %v5657
      %v5659 = vpop.f32.mrf.mxu0
      %5660 = vmatprep.mubr.f32.mxu0 0.0
      %5661 = vmatmul.mubr.f32.gmra.mxu0 %v5442
      %v5662 = vpop.f32.mrf.mxu0
      %v5663 = vadd.f32 0.0, %v5662
      %v5664 = vpop.f32.mrf.mxu0
      %5665 = vmatprep.mubr.f32.mxu0 0.0
      %5666 = vmatmul.mubr.f32.gmra.mxu0 %v5445
      %v5667 = vpop.f32.mrf.mxu0
      %v5668 = vadd.f32 0.0, %v5667
      %v5669 = vpop.f32.mrf.mxu0
      %5670 = vmatprep.mubr.f32.mxu0 0.0
      %5671 = vmatmul.mubr.f32.gmra.mxu0 %v5448
      %v5672 = vpop.f32.mrf.mxu0
      %v5673 = vadd.f32 0.0, %v5672
      %v5674 = vpop.f32.mrf.mxu0
      %5675 = vmatprep.mubr.f32.mxu0 0.0
      %5676 = vmatmul.mubr.f32.gmra.mxu0 %v5451
      %v5677 = vpop.f32.mrf.mxu0
      %v5678 = vadd.f32 0.0, %v5677
      %v5679 = vpop.f32.mrf.mxu0
      %5680 = vdwg.mxu0
      %v5681 = vadd.f32 %v5291, %v5523
      %v5682 = vadd.f32 %v5292, %v5528
      %v5683 = vadd.f32 %v5293, %v5533
      %v5684 = vadd.f32 %v5294, %v5538
      %v5685 = vadd.f32 %v5295, %v5543
      %v5686 = vadd.f32 %v5296, %v5548
      %v5687 = vadd.f32 %v5297, %v5553
      %v5688 = vadd.f32 %v5298, %v5558
      %v5689 = vadd.f32 %v5299, %v5563
      %v5690 = vadd.f32 %v5300, %v5568
      %v5691 = vadd.f32 %v5301, %v5573
      %v5692 = vadd.f32 %v5302, %v5578
      %v5693 = vadd.f32 %v5303, %v5583
      %v5694 = vadd.f32 %v5304, %v5588
      %v5695 = vadd.f32 %v5305, %v5593
      %v5696 = vadd.f32 %v5306, %v5598
      %v5697 = vadd.f32 %v5307, %v5603
      %v5698 = vadd.f32 %v5308, %v5608
      %v5699 = vadd.f32 %v5309, %v5613
      %v5700 = vadd.f32 %v5310, %v5618
      %v5701 = vadd.f32 %v5311, %v5623
      %v5702 = vadd.f32 %v5312, %v5628
      %v5703 = vadd.f32 %v5313, %v5633
      %v5704 = vadd.f32 %v5314, %v5638
      %v5705 = vadd.f32 %v5315, %v5643
      %v5706 = vadd.f32 %v5316, %v5648
      %v5707 = vadd.f32 %v5317, %v5653
      %v5708 = vadd.f32 %v5318, %v5658
      %v5709 = vadd.f32 %v5319, %v5663
      %v5710 = vadd.f32 %v5320, %v5668
      %v5711 = vadd.f32 %v5321, %v5673
      %v5712 = vadd.f32 %v5322, %v5678
      %v5713 = vld [vmem:[%s203 + $0x1] sm:$0xff]
      %v5714 = vld [vmem:[%s203 + $0x9] sm:$0xff]
      %v5715 = vld [vmem:[%s203 + $0x19] sm:$0xff]
      %v5716 = vld [vmem:[%s203 + $0x21] sm:$0xff]
      %v5717 = vld [vmem:[%s203 + $0x31] sm:$0xff]
      %v5718 = vld [vmem:[%s203 + $0x39] sm:$0xff]
      %v5719 = vld [vmem:[%s203 + $0x49] sm:$0xff]
      %v5720 = vld [vmem:[%s203 + $0x51] sm:$0xff]
      %v5721 = vld [vmem:[%s203 + $0x61] sm:$0xff]
      %v5722 = vld [vmem:[%s203 + $0x69] sm:$0xff]
      %v5723 = vld [vmem:[%s203 + $0x79] sm:$0xff]
      %v5724 = vld [vmem:[%s203 + $0x81] sm:$0xff]
      %v5725 = vld [vmem:[%s203 + $0x91] sm:$0xff]
      %v5726 = vld [vmem:[%s203 + $0x99] sm:$0xff]
      %v5727 = vld [vmem:[%s203 + $0xa9] sm:$0xff]
      %v5728 = vld [vmem:[%s203 + $0xb1] sm:$0xff]
      %v5729 = vld [vmem:[%s203 + $0xc1] sm:$0xff]
      %v5730 = vld [vmem:[%s203 + $0xc9] sm:$0xff]
      %v5731 = vld [vmem:[%s203 + $0xd9] sm:$0xff]
      %v5732 = vld [vmem:[%s203 + $0xe1] sm:$0xff]
      %v5733 = vld [vmem:[%s203 + $0xf1] sm:$0xff]
      %v5734 = vld [vmem:[%s203 + $0xf9] sm:$0xff]
      %v5735 = vld [vmem:[%s203 + $0x109] sm:$0xff]
      %v5736 = vld [vmem:[%s203 + $0x111] sm:$0xff]
      %v5737 = vld [vmem:[%s203 + $0x121] sm:$0xff]
      %v5738 = vld [vmem:[%s203 + $0x129] sm:$0xff]
      %v5739 = vld [vmem:[%s203 + $0x139] sm:$0xff]
      %v5740 = vld [vmem:[%s203 + $0x141] sm:$0xff]
      %v5741 = vld [vmem:[%s203 + $0x151] sm:$0xff]
      %v5742 = vld [vmem:[%s203 + $0x159] sm:$0xff]
      %v5743 = vld [vmem:[%s203 + $0x169] sm:$0xff]
      %v5744 = vld [vmem:[%s203 + $0x171] sm:$0xff]
      %s5745 = scalar_lea.vmem %s2, 16
      %v5746 = vld [vmem:[%s5745] sm:$0xf]
      %v5748 = vsel %vm204, %v5713, 0
      %v5751 = vsel %vm204, %v5714, 0
      %v5754 = vsel %vm204, %v5715, 0
      %v5757 = vsel %vm204, %v5716, 0
      %v5760 = vsel %vm204, %v5717, 0
      %v5763 = vsel %vm204, %v5718, 0
      %v5766 = vsel %vm204, %v5719, 0
      %v5769 = vsel %vm204, %v5720, 0
      %v5772 = vsel %vm204, %v5721, 0
      %v5775 = vsel %vm204, %v5722, 0
      %v5778 = vsel %vm204, %v5723, 0
      %v5781 = vsel %vm204, %v5724, 0
      %v5784 = vsel %vm204, %v5725, 0
      %v5787 = vsel %vm204, %v5726, 0
      %v5790 = vsel %vm204, %v5727, 0
      %v5793 = vsel %vm204, %v5728, 0
      %v5796 = vsel %vm204, %v5729, 0
      %v5799 = vsel %vm204, %v5730, 0
      %v5802 = vsel %vm204, %v5731, 0
      %v5805 = vsel %vm204, %v5732, 0
      %v5808 = vsel %vm204, %v5733, 0
      %v5811 = vsel %vm204, %v5734, 0
      %v5814 = vsel %vm204, %v5735, 0
      %v5817 = vsel %vm204, %v5736, 0
      %v5820 = vsel %vm204, %v5737, 0
      %v5823 = vsel %vm204, %v5738, 0
      %v5826 = vsel %vm204, %v5739, 0
      %v5829 = vsel %vm204, %v5740, 0
      %v5832 = vsel %vm204, %v5741, 0
      %v5835 = vsel %vm204, %v5742, 0
      %v5838 = vsel %vm204, %v5743, 0
      %v5841 = vsel %vm204, %v5744, 0
      %v5844 = vsel %vm484, %v5746, 0
      %5846 = vmatprep.subr.mxu0 0.0
      %5847 = vmatpush1.msra.mxu0 0.0
      %5848 = vmatprep.subr.mxu0 0.0
      %5849 = vmatpush1.msra.mxu0 0.0
      %5850 = vmatprep.subr.mxu0 0.0
      %5851 = vmatpush1.msra.mxu0 0.0
      %5852 = vmatprep.subr.mxu0 0.0
      %5853 = vmatpush1.msra.mxu0 0.0
      %5854 = vmatprep.subr.mxu0 0.0
      %5855 = vmatpush1.msra.mxu0 0.0
      %5856 = vmatprep.subr.mxu0 0.0
      %5857 = vmatpush1.msra.mxu0 0.0
      %5858 = vmatprep.subr.mxu0 0.0
      %5859 = vmatpush1.msra.mxu0 0.0
      %5860 = vmatprep.subr.mxu0 0.0
      %5861 = vmatpush1.msra.mxu0 0.0
      %5862 = vmatprep.subr.mxu0 0.0
      %5863 = vmatpush1.msra.mxu0 0.0
      %5864 = vmatprep.subr.mxu0 0.0
      %5865 = vmatpush1.msra.mxu0 0.0
      %5866 = vmatprep.subr.mxu0 0.0
      %5867 = vmatpush1.msra.mxu0 0.0
      %5868 = vmatprep.subr.mxu0 0.0
      %5869 = vmatpush1.msra.mxu0 0.0
      %5870 = vmatprep.subr.mxu0 0.0
      %5871 = vmatpush1.msra.mxu0 0.0
      %5872 = vmatprep.subr.mxu0 0.0
      %5873 = vmatpush1.msra.mxu0 0.0
      %5874 = vmatprep.subr.mxu0 0.0
      %5875 = vmatpush1.msra.mxu0 0.0
      %5876 = vmatprep.subr.mxu0 0.0
      %5877 = vmatpush1.msra.mxu0 %v5844
      %5878 = vmatprep.subr.mxu0 0.0
      %5879 = vmatpush2.msra.mxu0 0.0
      %5880 = vmatprep.subr.mxu0 0.0
      %5881 = vmatpush2.msra.mxu0 0.0
      %5882 = vmatprep.subr.mxu0 0.0
      %5883 = vmatpush2.msra.mxu0 0.0
      %5884 = vmatprep.subr.mxu0 0.0
      %5885 = vmatpush2.msra.mxu0 0.0
      %5886 = vmatprep.subr.mxu0 0.0
      %5887 = vmatpush2.msra.mxu0 0.0
      %5888 = vmatprep.subr.mxu0 0.0
      %5889 = vmatpush2.msra.mxu0 0.0
      %5890 = vmatprep.subr.mxu0 0.0
      %5891 = vmatpush2.msra.mxu0 0.0
      %5892 = vmatprep.subr.mxu0 0.0
      %5893 = vmatpush2.msra.mxu0 0.0
      %5894 = vmatprep.subr.mxu0 0.0
      %5895 = vmatpush2.msra.mxu0 0.0
      %5896 = vmatprep.subr.mxu0 0.0
      %5897 = vmatpush2.msra.mxu0 0.0
      %5898 = vmatprep.subr.mxu0 0.0
      %5899 = vmatpush2.msra.mxu0 0.0
      %5900 = vmatprep.subr.mxu0 0.0
      %5901 = vmatpush2.msra.mxu0 0.0
      %5902 = vmatprep.subr.mxu0 0.0
      %5903 = vmatpush2.msra.mxu0 0.0
      %5904 = vmatprep.subr.mxu0 0.0
      %5905 = vmatpush2.msra.mxu0 0.0
      %5906 = vmatprep.subr.mxu0 0.0
      %5907 = vmatpush2.msra.mxu0 0.0
      %5908 = vmatprep.subr.mxu0 0.0
      %5909 = vmatpush2.msra.mxu0 0.0
      %5910 = vmatprep.mubr.f32.mxu0 0.0
      %5911 = vmatmul.mubr.f32.gmra.mxu0 %v5748
      %v5912 = vpop.f32.mrf.mxu0
      %v5913 = vadd.f32 0.0, %v5912
      %v5914 = vpop.f32.mrf.mxu0
      %5915 = vmatprep.mubr.f32.mxu0 0.0
      %5916 = vmatmul.mubr.f32.gmra.mxu0 %v5751
      %v5917 = vpop.f32.mrf.mxu0
      %v5918 = vadd.f32 0.0, %v5917
      %v5919 = vpop.f32.mrf.mxu0
      %5920 = vmatprep.mubr.f32.mxu0 0.0
      %5921 = vmatmul.mubr.f32.gmra.mxu0 %v5754
      %v5922 = vpop.f32.mrf.mxu0
      %v5923 = vadd.f32 0.0, %v5922
      %v5924 = vpop.f32.mrf.mxu0
      %5925 = vmatprep.mubr.f32.mxu0 0.0
      %5926 = vmatmul.mubr.f32.gmra.mxu0 %v5757
      %v5927 = vpop.f32.mrf.mxu0
      %v5928 = vadd.f32 0.0, %v5927
      %v5929 = vpop.f32.mrf.mxu0
      %5930 = vmatprep.mubr.f32.mxu0 0.0
      %5931 = vmatmul.mubr.f32.gmra.mxu0 %v5760
      %v5932 = vpop.f32.mrf.mxu0
      %v5933 = vadd.f32 0.0, %v5932
      %v5934 = vpop.f32.mrf.mxu0
      %5935 = vmatprep.mubr.f32.mxu0 0.0
      %5936 = vmatmul.mubr.f32.gmra.mxu0 %v5763
      %v5937 = vpop.f32.mrf.mxu0
      %v5938 = vadd.f32 0.0, %v5937
      %v5939 = vpop.f32.mrf.mxu0
      %5940 = vmatprep.mubr.f32.mxu0 0.0
      %5941 = vmatmul.mubr.f32.gmra.mxu0 %v5766
      %v5942 = vpop.f32.mrf.mxu0
      %v5943 = vadd.f32 0.0, %v5942
      %v5944 = vpop.f32.mrf.mxu0
      %5945 = vmatprep.mubr.f32.mxu0 0.0
      %5946 = vmatmul.mubr.f32.gmra.mxu0 %v5769
      %v5947 = vpop.f32.mrf.mxu0
      %v5948 = vadd.f32 0.0, %v5947
      %v5949 = vpop.f32.mrf.mxu0
      %5950 = vmatprep.mubr.f32.mxu0 0.0
      %5951 = vmatmul.mubr.f32.gmra.mxu0 %v5772
      %v5952 = vpop.f32.mrf.mxu0
      %v5953 = vadd.f32 0.0, %v5952
      %v5954 = vpop.f32.mrf.mxu0
      %5955 = vmatprep.mubr.f32.mxu0 0.0
      %5956 = vmatmul.mubr.f32.gmra.mxu0 %v5775
      %v5957 = vpop.f32.mrf.mxu0
      %v5958 = vadd.f32 0.0, %v5957
      %v5959 = vpop.f32.mrf.mxu0
      %5960 = vmatprep.mubr.f32.mxu0 0.0
      %5961 = vmatmul.mubr.f32.gmra.mxu0 %v5778
      %v5962 = vpop.f32.mrf.mxu0
      %v5963 = vadd.f32 0.0, %v5962
      %v5964 = vpop.f32.mrf.mxu0
      %5965 = vmatprep.mubr.f32.mxu0 0.0
      %5966 = vmatmul.mubr.f32.gmra.mxu0 %v5781
      %v5967 = vpop.f32.mrf.mxu0
      %v5968 = vadd.f32 0.0, %v5967
      %v5969 = vpop.f32.mrf.mxu0
      %5970 = vmatprep.mubr.f32.mxu0 0.0
      %5971 = vmatmul.mubr.f32.gmra.mxu0 %v5784
      %v5972 = vpop.f32.mrf.mxu0
      %v5973 = vadd.f32 0.0, %v5972
      %v5974 = vpop.f32.mrf.mxu0
      %5975 = vmatprep.mubr.f32.mxu0 0.0
      %5976 = vmatmul.mubr.f32.gmra.mxu0 %v5787
      %v5977 = vpop.f32.mrf.mxu0
      %v5978 = vadd.f32 0.0, %v5977
      %v5979 = vpop.f32.mrf.mxu0
      %5980 = vmatprep.mubr.f32.mxu0 0.0
      %5981 = vmatmul.mubr.f32.gmra.mxu0 %v5790
      %v5982 = vpop.f32.mrf.mxu0
      %v5983 = vadd.f32 0.0, %v5982
      %v5984 = vpop.f32.mrf.mxu0
      %5985 = vmatprep.mubr.f32.mxu0 0.0
      %5986 = vmatmul.mubr.f32.gmra.mxu0 %v5793
      %v5987 = vpop.f32.mrf.mxu0
      %v5988 = vadd.f32 0.0, %v5987
      %v5989 = vpop.f32.mrf.mxu0
      %5990 = vmatprep.mubr.f32.mxu0 0.0
      %5991 = vmatmul.mubr.f32.gmra.mxu0 %v5796
      %v5992 = vpop.f32.mrf.mxu0
      %v5993 = vadd.f32 0.0, %v5992
      %v5994 = vpop.f32.mrf.mxu0
      %5995 = vmatprep.mubr.f32.mxu0 0.0
      %5996 = vmatmul.mubr.f32.gmra.mxu0 %v5799
      %v5997 = vpop.f32.mrf.mxu0
      %v5998 = vadd.f32 0.0, %v5997
      %v5999 = vpop.f32.mrf.mxu0
      %6000 = vmatprep.mubr.f32.mxu0 0.0
      %6001 = vmatmul.mubr.f32.gmra.mxu0 %v5802
      %v6002 = vpop.f32.mrf.mxu0
      %v6003 = vadd.f32 0.0, %v6002
      %v6004 = vpop.f32.mrf.mxu0
      %6005 = vmatprep.mubr.f32.mxu0 0.0
      %6006 = vmatmul.mubr.f32.gmra.mxu0 %v5805
      %v6007 = vpop.f32.mrf.mxu0
      %v6008 = vadd.f32 0.0, %v6007
      %v6009 = vpop.f32.mrf.mxu0
      %6010 = vmatprep.mubr.f32.mxu0 0.0
      %6011 = vmatmul.mubr.f32.gmra.mxu0 %v5808
      %v6012 = vpop.f32.mrf.mxu0
      %v6013 = vadd.f32 0.0, %v6012
      %v6014 = vpop.f32.mrf.mxu0
      %6015 = vmatprep.mubr.f32.mxu0 0.0
      %6016 = vmatmul.mubr.f32.gmra.mxu0 %v5811
      %v6017 = vpop.f32.mrf.mxu0
      %v6018 = vadd.f32 0.0, %v6017
      %v6019 = vpop.f32.mrf.mxu0
      %6020 = vmatprep.mubr.f32.mxu0 0.0
      %6021 = vmatmul.mubr.f32.gmra.mxu0 %v5814
      %v6022 = vpop.f32.mrf.mxu0
      %v6023 = vadd.f32 0.0, %v6022
      %v6024 = vpop.f32.mrf.mxu0
      %6025 = vmatprep.mubr.f32.mxu0 0.0
      %6026 = vmatmul.mubr.f32.gmra.mxu0 %v5817
      %v6027 = vpop.f32.mrf.mxu0
      %v6028 = vadd.f32 0.0, %v6027
      %v6029 = vpop.f32.mrf.mxu0
      %6030 = vmatprep.mubr.f32.mxu0 0.0
      %6031 = vmatmul.mubr.f32.gmra.mxu0 %v5820
      %v6032 = vpop.f32.mrf.mxu0
      %v6033 = vadd.f32 0.0, %v6032
      %v6034 = vpop.f32.mrf.mxu0
      %6035 = vmatprep.mubr.f32.mxu0 0.0
      %6036 = vmatmul.mubr.f32.gmra.mxu0 %v5823
      %v6037 = vpop.f32.mrf.mxu0
      %v6038 = vadd.f32 0.0, %v6037
      %v6039 = vpop.f32.mrf.mxu0
      %6040 = vmatprep.mubr.f32.mxu0 0.0
      %6041 = vmatmul.mubr.f32.gmra.mxu0 %v5826
      %v6042 = vpop.f32.mrf.mxu0
      %v6043 = vadd.f32 0.0, %v6042
      %v6044 = vpop.f32.mrf.mxu0
      %6045 = vmatprep.mubr.f32.mxu0 0.0
      %6046 = vmatmul.mubr.f32.gmra.mxu0 %v5829
      %v6047 = vpop.f32.mrf.mxu0
      %v6048 = vadd.f32 0.0, %v6047
      %v6049 = vpop.f32.mrf.mxu0
      %6050 = vmatprep.mubr.f32.mxu0 0.0
      %6051 = vmatmul.mubr.f32.gmra.mxu0 %v5832
      %v6052 = vpop.f32.mrf.mxu0
      %v6053 = vadd.f32 0.0, %v6052
      %v6054 = vpop.f32.mrf.mxu0
      %6055 = vmatprep.mubr.f32.mxu0 0.0
      %6056 = vmatmul.mubr.f32.gmra.mxu0 %v5835
      %v6057 = vpop.f32.mrf.mxu0
      %v6058 = vadd.f32 0.0, %v6057
      %v6059 = vpop.f32.mrf.mxu0
      %6060 = vmatprep.mubr.f32.mxu0 0.0
      %6061 = vmatmul.mubr.f32.gmra.mxu0 %v5838
      %v6062 = vpop.f32.mrf.mxu0
      %v6063 = vadd.f32 0.0, %v6062
      %v6064 = vpop.f32.mrf.mxu0
      %6065 = vmatprep.mubr.f32.mxu0 0.0
      %6066 = vmatmul.mubr.f32.gmra.mxu0 %v5841
      %v6067 = vpop.f32.mrf.mxu0
      %v6068 = vadd.f32 0.0, %v6067
      %v6069 = vpop.f32.mrf.mxu0
      %6070 = vdwg.mxu0
      %v6071 = vadd.f32 %v5681, %v5913
      %v6072 = vadd.f32 %v5682, %v5918
      %v6073 = vadd.f32 %v5683, %v5923
      %v6074 = vadd.f32 %v5684, %v5928
      %v6075 = vadd.f32 %v5685, %v5933
      %v6076 = vadd.f32 %v5686, %v5938
      %v6077 = vadd.f32 %v5687, %v5943
      %v6078 = vadd.f32 %v5688, %v5948
      %v6079 = vadd.f32 %v5689, %v5953
      %v6080 = vadd.f32 %v5690, %v5958
      %v6081 = vadd.f32 %v5691, %v5963
      %v6082 = vadd.f32 %v5692, %v5968
      %v6083 = vadd.f32 %v5693, %v5973
      %v6084 = vadd.f32 %v5694, %v5978
      %v6085 = vadd.f32 %v5695, %v5983
      %v6086 = vadd.f32 %v5696, %v5988
      %v6087 = vadd.f32 %v5697, %v5993
      %v6088 = vadd.f32 %v5698, %v5998
      %v6089 = vadd.f32 %v5699, %v6003
      %v6090 = vadd.f32 %v5700, %v6008
      %v6091 = vadd.f32 %v5701, %v6013
      %v6092 = vadd.f32 %v5702, %v6018
      %v6093 = vadd.f32 %v5703, %v6023
      %v6094 = vadd.f32 %v5704, %v6028
      %v6095 = vadd.f32 %v5705, %v6033
      %v6096 = vadd.f32 %v5706, %v6038
      %v6097 = vadd.f32 %v5707, %v6043
      %v6098 = vadd.f32 %v5708, %v6048
      %v6099 = vadd.f32 %v5709, %v6053
      %v6100 = vadd.f32 %v5710, %v6058
      %v6101 = vadd.f32 %v5711, %v6063
      %v6102 = vadd.f32 %v5712, %v6068
      %v6103 = vld [vmem:[%s203 + $0x2] sm:$0xff]
      %v6104 = vld [vmem:[%s203 + $0xa] sm:$0xff]
      %v6105 = vld [vmem:[%s203 + $0x1a] sm:$0xff]
      %v6106 = vld [vmem:[%s203 + $0x22] sm:$0xff]
      %v6107 = vld [vmem:[%s203 + $0x32] sm:$0xff]
      %v6108 = vld [vmem:[%s203 + $0x3a] sm:$0xff]
      %v6109 = vld [vmem:[%s203 + $0x4a] sm:$0xff]
      %v6110 = vld [vmem:[%s203 + $0x52] sm:$0xff]
      %v6111 = vld [vmem:[%s203 + $0x62] sm:$0xff]
      %v6112 = vld [vmem:[%s203 + $0x6a] sm:$0xff]
      %v6113 = vld [vmem:[%s203 + $0x7a] sm:$0xff]
      %v6114 = vld [vmem:[%s203 + $0x82] sm:$0xff]
      %v6115 = vld [vmem:[%s203 + $0x92] sm:$0xff]
      %v6116 = vld [vmem:[%s203 + $0x9a] sm:$0xff]
      %v6117 = vld [vmem:[%s203 + $0xaa] sm:$0xff]
      %v6118 = vld [vmem:[%s203 + $0xb2] sm:$0xff]
      %v6119 = vld [vmem:[%s203 + $0xc2] sm:$0xff]
      %v6120 = vld [vmem:[%s203 + $0xca] sm:$0xff]
      %v6121 = vld [vmem:[%s203 + $0xda] sm:$0xff]
      %v6122 = vld [vmem:[%s203 + $0xe2] sm:$0xff]
      %v6123 = vld [vmem:[%s203 + $0xf2] sm:$0xff]
      %v6124 = vld [vmem:[%s203 + $0xfa] sm:$0xff]
      %v6125 = vld [vmem:[%s203 + $0x10a] sm:$0xff]
      %v6126 = vld [vmem:[%s203 + $0x112] sm:$0xff]
      %v6127 = vld [vmem:[%s203 + $0x122] sm:$0xff]
      %v6128 = vld [vmem:[%s203 + $0x12a] sm:$0xff]
      %v6129 = vld [vmem:[%s203 + $0x13a] sm:$0xff]
      %v6130 = vld [vmem:[%s203 + $0x142] sm:$0xff]
      %v6131 = vld [vmem:[%s203 + $0x152] sm:$0xff]
      %v6132 = vld [vmem:[%s203 + $0x15a] sm:$0xff]
      %v6133 = vld [vmem:[%s203 + $0x16a] sm:$0xff]
      %v6134 = vld [vmem:[%s203 + $0x172] sm:$0xff]
      %s6135 = scalar_lea.vmem %s2, 20
      %v6136 = vld [vmem:[%s6135] sm:$0xf]
      %v6138 = vsel %vm204, %v6103, 0
      %v6141 = vsel %vm204, %v6104, 0
      %v6144 = vsel %vm204, %v6105, 0
      %v6147 = vsel %vm204, %v6106, 0
      %v6150 = vsel %vm204, %v6107, 0
      %v6153 = vsel %vm204, %v6108, 0
      %v6156 = vsel %vm204, %v6109, 0
      %v6159 = vsel %vm204, %v6110, 0
      %v6162 = vsel %vm204, %v6111, 0
      %v6165 = vsel %vm204, %v6112, 0
      %v6168 = vsel %vm204, %v6113, 0
      %v6171 = vsel %vm204, %v6114, 0
      %v6174 = vsel %vm204, %v6115, 0
      %v6177 = vsel %vm204, %v6116, 0
      %v6180 = vsel %vm204, %v6117, 0
      %v6183 = vsel %vm204, %v6118, 0
      %v6186 = vsel %vm204, %v6119, 0
      %v6189 = vsel %vm204, %v6120, 0
      %v6192 = vsel %vm204, %v6121, 0
      %v6195 = vsel %vm204, %v6122, 0
      %v6198 = vsel %vm204, %v6123, 0
      %v6201 = vsel %vm204, %v6124, 0
      %v6204 = vsel %vm204, %v6125, 0
      %v6207 = vsel %vm204, %v6126, 0
      %v6210 = vsel %vm204, %v6127, 0
      %v6213 = vsel %vm204, %v6128, 0
      %v6216 = vsel %vm204, %v6129, 0
      %v6219 = vsel %vm204, %v6130, 0
      %v6222 = vsel %vm204, %v6131, 0
      %v6225 = vsel %vm204, %v6132, 0
      %v6228 = vsel %vm204, %v6133, 0
      %v6231 = vsel %vm204, %v6134, 0
      %v6234 = vsel %vm484, %v6136, 0
      %6236 = vmatprep.subr.mxu0 0.0
      %6237 = vmatpush1.msra.mxu0 0.0
      %6238 = vmatprep.subr.mxu0 0.0
      %6239 = vmatpush1.msra.mxu0 0.0
      %6240 = vmatprep.subr.mxu0 0.0
      %6241 = vmatpush1.msra.mxu0 0.0
      %6242 = vmatprep.subr.mxu0 0.0
      %6243 = vmatpush1.msra.mxu0 0.0
      %6244 = vmatprep.subr.mxu0 0.0
      %6245 = vmatpush1.msra.mxu0 0.0
      %6246 = vmatprep.subr.mxu0 0.0
      %6247 = vmatpush1.msra.mxu0 0.0
      %6248 = vmatprep.subr.mxu0 0.0
      %6249 = vmatpush1.msra.mxu0 0.0
      %6250 = vmatprep.subr.mxu0 0.0
      %6251 = vmatpush1.msra.mxu0 0.0
      %6252 = vmatprep.subr.mxu0 0.0
      %6253 = vmatpush1.msra.mxu0 0.0
      %6254 = vmatprep.subr.mxu0 0.0
      %6255 = vmatpush1.msra.mxu0 0.0
      %6256 = vmatprep.subr.mxu0 0.0
      %6257 = vmatpush1.msra.mxu0 0.0
      %6258 = vmatprep.subr.mxu0 0.0
      %6259 = vmatpush1.msra.mxu0 0.0
      %6260 = vmatprep.subr.mxu0 0.0
      %6261 = vmatpush1.msra.mxu0 0.0
      %6262 = vmatprep.subr.mxu0 0.0
      %6263 = vmatpush1.msra.mxu0 0.0
      %6264 = vmatprep.subr.mxu0 0.0
      %6265 = vmatpush1.msra.mxu0 0.0
      %6266 = vmatprep.subr.mxu0 0.0
      %6267 = vmatpush1.msra.mxu0 %v6234
      %6268 = vmatprep.subr.mxu0 0.0
      %6269 = vmatpush2.msra.mxu0 0.0
      %6270 = vmatprep.subr.mxu0 0.0
      %6271 = vmatpush2.msra.mxu0 0.0
      %6272 = vmatprep.subr.mxu0 0.0
      %6273 = vmatpush2.msra.mxu0 0.0
      %6274 = vmatprep.subr.mxu0 0.0
      %6275 = vmatpush2.msra.mxu0 0.0
      %6276 = vmatprep.subr.mxu0 0.0
      %6277 = vmatpush2.msra.mxu0 0.0
      %6278 = vmatprep.subr.mxu0 0.0
      %6279 = vmatpush2.msra.mxu0 0.0
      %6280 = vmatprep.subr.mxu0 0.0
      %6281 = vmatpush2.msra.mxu0 0.0
      %6282 = vmatprep.subr.mxu0 0.0
      %6283 = vmatpush2.msra.mxu0 0.0
      %6284 = vmatprep.subr.mxu0 0.0
      %6285 = vmatpush2.msra.mxu0 0.0
      %6286 = vmatprep.subr.mxu0 0.0
      %6287 = vmatpush2.msra.mxu0 0.0
      %6288 = vmatprep.subr.mxu0 0.0
      %6289 = vmatpush2.msra.mxu0 0.0
      %6290 = vmatprep.subr.mxu0 0.0
      %6291 = vmatpush2.msra.mxu0 0.0
      %6292 = vmatprep.subr.mxu0 0.0
      %6293 = vmatpush2.msra.mxu0 0.0
      %6294 = vmatprep.subr.mxu0 0.0
      %6295 = vmatpush2.msra.mxu0 0.0
      %6296 = vmatprep.subr.mxu0 0.0
      %6297 = vmatpush2.msra.mxu0 0.0
      %6298 = vmatprep.subr.mxu0 0.0
      %6299 = vmatpush2.msra.mxu0 0.0
      %6300 = vmatprep.mubr.f32.mxu0 0.0
      %6301 = vmatmul.mubr.f32.gmra.mxu0 %v6138
      %v6302 = vpop.f32.mrf.mxu0
      %v6303 = vadd.f32 0.0, %v6302
      %v6304 = vpop.f32.mrf.mxu0
      %6305 = vmatprep.mubr.f32.mxu0 0.0
      %6306 = vmatmul.mubr.f32.gmra.mxu0 %v6141
      %v6307 = vpop.f32.mrf.mxu0
      %v6308 = vadd.f32 0.0, %v6307
      %v6309 = vpop.f32.mrf.mxu0
      %6310 = vmatprep.mubr.f32.mxu0 0.0
      %6311 = vmatmul.mubr.f32.gmra.mxu0 %v6144
      %v6312 = vpop.f32.mrf.mxu0
      %v6313 = vadd.f32 0.0, %v6312
      %v6314 = vpop.f32.mrf.mxu0
      %6315 = vmatprep.mubr.f32.mxu0 0.0
      %6316 = vmatmul.mubr.f32.gmra.mxu0 %v6147
      %v6317 = vpop.f32.mrf.mxu0
      %v6318 = vadd.f32 0.0, %v6317
      %v6319 = vpop.f32.mrf.mxu0
      %6320 = vmatprep.mubr.f32.mxu0 0.0
      %6321 = vmatmul.mubr.f32.gmra.mxu0 %v6150
      %v6322 = vpop.f32.mrf.mxu0
      %v6323 = vadd.f32 0.0, %v6322
      %v6324 = vpop.f32.mrf.mxu0
      %6325 = vmatprep.mubr.f32.mxu0 0.0
      %6326 = vmatmul.mubr.f32.gmra.mxu0 %v6153
      %v6327 = vpop.f32.mrf.mxu0
      %v6328 = vadd.f32 0.0, %v6327
      %v6329 = vpop.f32.mrf.mxu0
      %6330 = vmatprep.mubr.f32.mxu0 0.0
      %6331 = vmatmul.mubr.f32.gmra.mxu0 %v6156
      %v6332 = vpop.f32.mrf.mxu0
      %v6333 = vadd.f32 0.0, %v6332
      %v6334 = vpop.f32.mrf.mxu0
      %6335 = vmatprep.mubr.f32.mxu0 0.0
      %6336 = vmatmul.mubr.f32.gmra.mxu0 %v6159
      %v6337 = vpop.f32.mrf.mxu0
      %v6338 = vadd.f32 0.0, %v6337
      %v6339 = vpop.f32.mrf.mxu0
      %6340 = vmatprep.mubr.f32.mxu0 0.0
      %6341 = vmatmul.mubr.f32.gmra.mxu0 %v6162
      %v6342 = vpop.f32.mrf.mxu0
      %v6343 = vadd.f32 0.0, %v6342
      %v6344 = vpop.f32.mrf.mxu0
      %6345 = vmatprep.mubr.f32.mxu0 0.0
      %6346 = vmatmul.mubr.f32.gmra.mxu0 %v6165
      %v6347 = vpop.f32.mrf.mxu0
      %v6348 = vadd.f32 0.0, %v6347
      %v6349 = vpop.f32.mrf.mxu0
      %6350 = vmatprep.mubr.f32.mxu0 0.0
      %6351 = vmatmul.mubr.f32.gmra.mxu0 %v6168
      %v6352 = vpop.f32.mrf.mxu0
      %v6353 = vadd.f32 0.0, %v6352
      %v6354 = vpop.f32.mrf.mxu0
      %6355 = vmatprep.mubr.f32.mxu0 0.0
      %6356 = vmatmul.mubr.f32.gmra.mxu0 %v6171
      %v6357 = vpop.f32.mrf.mxu0
      %v6358 = vadd.f32 0.0, %v6357
      %v6359 = vpop.f32.mrf.mxu0
      %6360 = vmatprep.mubr.f32.mxu0 0.0
      %6361 = vmatmul.mubr.f32.gmra.mxu0 %v6174
      %v6362 = vpop.f32.mrf.mxu0
      %v6363 = vadd.f32 0.0, %v6362
      %v6364 = vpop.f32.mrf.mxu0
      %6365 = vmatprep.mubr.f32.mxu0 0.0
      %6366 = vmatmul.mubr.f32.gmra.mxu0 %v6177
      %v6367 = vpop.f32.mrf.mxu0
      %v6368 = vadd.f32 0.0, %v6367
      %v6369 = vpop.f32.mrf.mxu0
      %6370 = vmatprep.mubr.f32.mxu0 0.0
      %6371 = vmatmul.mubr.f32.gmra.mxu0 %v6180
      %v6372 = vpop.f32.mrf.mxu0
      %v6373 = vadd.f32 0.0, %v6372
      %v6374 = vpop.f32.mrf.mxu0
      %6375 = vmatprep.mubr.f32.mxu0 0.0
      %6376 = vmatmul.mubr.f32.gmra.mxu0 %v6183
      %v6377 = vpop.f32.mrf.mxu0
      %v6378 = vadd.f32 0.0, %v6377
      %v6379 = vpop.f32.mrf.mxu0
      %6380 = vmatprep.mubr.f32.mxu0 0.0
      %6381 = vmatmul.mubr.f32.gmra.mxu0 %v6186
      %v6382 = vpop.f32.mrf.mxu0
      %v6383 = vadd.f32 0.0, %v6382
      %v6384 = vpop.f32.mrf.mxu0
      %6385 = vmatprep.mubr.f32.mxu0 0.0
      %6386 = vmatmul.mubr.f32.gmra.mxu0 %v6189
      %v6387 = vpop.f32.mrf.mxu0
      %v6388 = vadd.f32 0.0, %v6387
      %v6389 = vpop.f32.mrf.mxu0
      %6390 = vmatprep.mubr.f32.mxu0 0.0
      %6391 = vmatmul.mubr.f32.gmra.mxu0 %v6192
      %v6392 = vpop.f32.mrf.mxu0
      %v6393 = vadd.f32 0.0, %v6392
      %v6394 = vpop.f32.mrf.mxu0
      %6395 = vmatprep.mubr.f32.mxu0 0.0
      %6396 = vmatmul.mubr.f32.gmra.mxu0 %v6195
      %v6397 = vpop.f32.mrf.mxu0
      %v6398 = vadd.f32 0.0, %v6397
      %v6399 = vpop.f32.mrf.mxu0
      %6400 = vmatprep.mubr.f32.mxu0 0.0
      %6401 = vmatmul.mubr.f32.gmra.mxu0 %v6198
      %v6402 = vpop.f32.mrf.mxu0
      %v6403 = vadd.f32 0.0, %v6402
      %v6404 = vpop.f32.mrf.mxu0
      %6405 = vmatprep.mubr.f32.mxu0 0.0
      %6406 = vmatmul.mubr.f32.gmra.mxu0 %v6201
      %v6407 = vpop.f32.mrf.mxu0
      %v6408 = vadd.f32 0.0, %v6407
      %v6409 = vpop.f32.mrf.mxu0
      %6410 = vmatprep.mubr.f32.mxu0 0.0
      %6411 = vmatmul.mubr.f32.gmra.mxu0 %v6204
      %v6412 = vpop.f32.mrf.mxu0
      %v6413 = vadd.f32 0.0, %v6412
      %v6414 = vpop.f32.mrf.mxu0
      %6415 = vmatprep.mubr.f32.mxu0 0.0
      %6416 = vmatmul.mubr.f32.gmra.mxu0 %v6207
      %v6417 = vpop.f32.mrf.mxu0
      %v6418 = vadd.f32 0.0, %v6417
      %v6419 = vpop.f32.mrf.mxu0
      %6420 = vmatprep.mubr.f32.mxu0 0.0
      %6421 = vmatmul.mubr.f32.gmra.mxu0 %v6210
      %v6422 = vpop.f32.mrf.mxu0
      %v6423 = vadd.f32 0.0, %v6422
      %v6424 = vpop.f32.mrf.mxu0
      %6425 = vmatprep.mubr.f32.mxu0 0.0
      %6426 = vmatmul.mubr.f32.gmra.mxu0 %v6213
      %v6427 = vpop.f32.mrf.mxu0
      %v6428 = vadd.f32 0.0, %v6427
      %v6429 = vpop.f32.mrf.mxu0
      %6430 = vmatprep.mubr.f32.mxu0 0.0
      %6431 = vmatmul.mubr.f32.gmra.mxu0 %v6216
      %v6432 = vpop.f32.mrf.mxu0
      %v6433 = vadd.f32 0.0, %v6432
      %v6434 = vpop.f32.mrf.mxu0
      %6435 = vmatprep.mubr.f32.mxu0 0.0
      %6436 = vmatmul.mubr.f32.gmra.mxu0 %v6219
      %v6437 = vpop.f32.mrf.mxu0
      %v6438 = vadd.f32 0.0, %v6437
      %v6439 = vpop.f32.mrf.mxu0
      %6440 = vmatprep.mubr.f32.mxu0 0.0
      %6441 = vmatmul.mubr.f32.gmra.mxu0 %v6222
      %v6442 = vpop.f32.mrf.mxu0
      %v6443 = vadd.f32 0.0, %v6442
      %v6444 = vpop.f32.mrf.mxu0
      %6445 = vmatprep.mubr.f32.mxu0 0.0
      %6446 = vmatmul.mubr.f32.gmra.mxu0 %v6225
      %v6447 = vpop.f32.mrf.mxu0
      %v6448 = vadd.f32 0.0, %v6447
      %v6449 = vpop.f32.mrf.mxu0
      %6450 = vmatprep.mubr.f32.mxu0 0.0
      %6451 = vmatmul.mubr.f32.gmra.mxu0 %v6228
      %v6452 = vpop.f32.mrf.mxu0
      %v6453 = vadd.f32 0.0, %v6452
      %v6454 = vpop.f32.mrf.mxu0
      %6455 = vmatprep.mubr.f32.mxu0 0.0
      %6456 = vmatmul.mubr.f32.gmra.mxu0 %v6231
      %v6457 = vpop.f32.mrf.mxu0
      %v6458 = vadd.f32 0.0, %v6457
      %v6459 = vpop.f32.mrf.mxu0
      %6460 = vdwg.mxu0
      %v6461 = vadd.f32 %v6071, %v6303
      %v6462 = vadd.f32 %v6072, %v6308
      %v6463 = vadd.f32 %v6073, %v6313
      %v6464 = vadd.f32 %v6074, %v6318
      %v6465 = vadd.f32 %v6075, %v6323
      %v6466 = vadd.f32 %v6076, %v6328
      %v6467 = vadd.f32 %v6077, %v6333
      %v6468 = vadd.f32 %v6078, %v6338
      %v6469 = vadd.f32 %v6079, %v6343
      %v6470 = vadd.f32 %v6080, %v6348
      %v6471 = vadd.f32 %v6081, %v6353
      %v6472 = vadd.f32 %v6082, %v6358
      %v6473 = vadd.f32 %v6083, %v6363
      %v6474 = vadd.f32 %v6084, %v6368
      %v6475 = vadd.f32 %v6085, %v6373
      %v6476 = vadd.f32 %v6086, %v6378
      %v6477 = vadd.f32 %v6087, %v6383
      %v6478 = vadd.f32 %v6088, %v6388
      %v6479 = vadd.f32 %v6089, %v6393
      %v6480 = vadd.f32 %v6090, %v6398
      %v6481 = vadd.f32 %v6091, %v6403
      %v6482 = vadd.f32 %v6092, %v6408
      %v6483 = vadd.f32 %v6093, %v6413
      %v6484 = vadd.f32 %v6094, %v6418
      %v6485 = vadd.f32 %v6095, %v6423
      %v6486 = vadd.f32 %v6096, %v6428
      %v6487 = vadd.f32 %v6097, %v6433
      %v6488 = vadd.f32 %v6098, %v6438
      %v6489 = vadd.f32 %v6099, %v6443
      %v6490 = vadd.f32 %v6100, %v6448
      %v6491 = vadd.f32 %v6101, %v6453
      %v6492 = vadd.f32 %v6102, %v6458
      %v6493 = vld [vmem:[%s237] sm:$0xff]
      %v6494 = vld [vmem:[%s237 + $0x8] sm:$0xff]
      %v6495 = vld [vmem:[%s237 + $0x18] sm:$0xff]
      %v6496 = vld [vmem:[%s237 + $0x20] sm:$0xff]
      %v6497 = vld [vmem:[%s237 + $0x30] sm:$0xff]
      %v6498 = vld [vmem:[%s237 + $0x38] sm:$0xff]
      %v6499 = vld [vmem:[%s237 + $0x48] sm:$0xff]
      %v6500 = vld [vmem:[%s237 + $0x50] sm:$0xff]
      %v6501 = vld [vmem:[%s237 + $0x60] sm:$0xff]
      %v6502 = vld [vmem:[%s237 + $0x68] sm:$0xff]
      %v6503 = vld [vmem:[%s237 + $0x78] sm:$0xff]
      %v6504 = vld [vmem:[%s237 + $0x80] sm:$0xff]
      %v6505 = vld [vmem:[%s237 + $0x90] sm:$0xff]
      %v6506 = vld [vmem:[%s237 + $0x98] sm:$0xff]
      %v6507 = vld [vmem:[%s237 + $0xa8] sm:$0xff]
      %v6508 = vld [vmem:[%s237 + $0xb0] sm:$0xff]
      %v6509 = vld [vmem:[%s237 + $0xc0] sm:$0xff]
      %v6510 = vld [vmem:[%s237 + $0xc8] sm:$0xff]
      %v6511 = vld [vmem:[%s237 + $0xd8] sm:$0xff]
      %v6512 = vld [vmem:[%s237 + $0xe0] sm:$0xff]
      %v6513 = vld [vmem:[%s237 + $0xf0] sm:$0xff]
      %v6514 = vld [vmem:[%s237 + $0xf8] sm:$0xff]
      %v6515 = vld [vmem:[%s237 + $0x108] sm:$0xff]
      %v6516 = vld [vmem:[%s237 + $0x110] sm:$0xff]
      %v6517 = vld [vmem:[%s237 + $0x120] sm:$0xff]
      %v6518 = vld [vmem:[%s237 + $0x128] sm:$0xff]
      %v6519 = vld [vmem:[%s237 + $0x138] sm:$0xff]
      %v6520 = vld [vmem:[%s237 + $0x140] sm:$0xff]
      %v6521 = vld [vmem:[%s237 + $0x150] sm:$0xff]
      %v6522 = vld [vmem:[%s237 + $0x158] sm:$0xff]
      %v6523 = vld [vmem:[%s237 + $0x168] sm:$0xff]
      %v6524 = vld [vmem:[%s237 + $0x170] sm:$0xff]
      %s6525 = scalar_lea.vmem %s2, 24
      %v6526 = vld [vmem:[%s6525] sm:$0xf]
      %v6528 = vsel %vm204, %v6493, 0
      %v6531 = vsel %vm204, %v6494, 0
      %v6534 = vsel %vm204, %v6495, 0
      %v6537 = vsel %vm204, %v6496, 0
      %v6540 = vsel %vm204, %v6497, 0
      %v6543 = vsel %vm204, %v6498, 0
      %v6546 = vsel %vm204, %v6499, 0
      %v6549 = vsel %vm204, %v6500, 0
      %v6552 = vsel %vm204, %v6501, 0
      %v6555 = vsel %vm204, %v6502, 0
      %v6558 = vsel %vm204, %v6503, 0
      %v6561 = vsel %vm204, %v6504, 0
      %v6564 = vsel %vm204, %v6505, 0
      %v6567 = vsel %vm204, %v6506, 0
      %v6570 = vsel %vm204, %v6507, 0
      %v6573 = vsel %vm204, %v6508, 0
      %v6576 = vsel %vm204, %v6509, 0
      %v6579 = vsel %vm204, %v6510, 0
      %v6582 = vsel %vm204, %v6511, 0
      %v6585 = vsel %vm204, %v6512, 0
      %v6588 = vsel %vm204, %v6513, 0
      %v6591 = vsel %vm204, %v6514, 0
      %v6594 = vsel %vm204, %v6515, 0
      %v6597 = vsel %vm204, %v6516, 0
      %v6600 = vsel %vm204, %v6517, 0
      %v6603 = vsel %vm204, %v6518, 0
      %v6606 = vsel %vm204, %v6519, 0
      %v6609 = vsel %vm204, %v6520, 0
      %v6612 = vsel %vm204, %v6521, 0
      %v6615 = vsel %vm204, %v6522, 0
      %v6618 = vsel %vm204, %v6523, 0
      %v6621 = vsel %vm204, %v6524, 0
      %v6624 = vsel %vm484, %v6526, 0
      %6626 = vmatprep.subr.mxu0 0.0
      %6627 = vmatpush1.msra.mxu0 0.0
      %6628 = vmatprep.subr.mxu0 0.0
      %6629 = vmatpush1.msra.mxu0 0.0
      %6630 = vmatprep.subr.mxu0 0.0
      %6631 = vmatpush1.msra.mxu0 0.0
      %6632 = vmatprep.subr.mxu0 0.0
      %6633 = vmatpush1.msra.mxu0 0.0
      %6634 = vmatprep.subr.mxu0 0.0
      %6635 = vmatpush1.msra.mxu0 0.0
      %6636 = vmatprep.subr.mxu0 0.0
      %6637 = vmatpush1.msra.mxu0 0.0
      %6638 = vmatprep.subr.mxu0 0.0
      %6639 = vmatpush1.msra.mxu0 0.0
      %6640 = vmatprep.subr.mxu0 0.0
      %6641 = vmatpush1.msra.mxu0 0.0
      %6642 = vmatprep.subr.mxu0 0.0
      %6643 = vmatpush1.msra.mxu0 0.0
      %6644 = vmatprep.subr.mxu0 0.0
      %6645 = vmatpush1.msra.mxu0 0.0
      %6646 = vmatprep.subr.mxu0 0.0
      %6647 = vmatpush1.msra.mxu0 0.0
      %6648 = vmatprep.subr.mxu0 0.0
      %6649 = vmatpush1.msra.mxu0 0.0
      %6650 = vmatprep.subr.mxu0 0.0
      %6651 = vmatpush1.msra.mxu0 0.0
      %6652 = vmatprep.subr.mxu0 0.0
      %6653 = vmatpush1.msra.mxu0 0.0
      %6654 = vmatprep.subr.mxu0 0.0
      %6655 = vmatpush1.msra.mxu0 0.0
      %6656 = vmatprep.subr.mxu0 0.0
      %6657 = vmatpush1.msra.mxu0 %v6624
      %6658 = vmatprep.subr.mxu0 0.0
      %6659 = vmatpush2.msra.mxu0 0.0
      %6660 = vmatprep.subr.mxu0 0.0
      %6661 = vmatpush2.msra.mxu0 0.0
      %6662 = vmatprep.subr.mxu0 0.0
      %6663 = vmatpush2.msra.mxu0 0.0
      %6664 = vmatprep.subr.mxu0 0.0
      %6665 = vmatpush2.msra.mxu0 0.0
      %6666 = vmatprep.subr.mxu0 0.0
      %6667 = vmatpush2.msra.mxu0 0.0
      %6668 = vmatprep.subr.mxu0 0.0
      %6669 = vmatpush2.msra.mxu0 0.0
      %6670 = vmatprep.subr.mxu0 0.0
      %6671 = vmatpush2.msra.mxu0 0.0
      %6672 = vmatprep.subr.mxu0 0.0
      %6673 = vmatpush2.msra.mxu0 0.0
      %6674 = vmatprep.subr.mxu0 0.0
      %6675 = vmatpush2.msra.mxu0 0.0
      %6676 = vmatprep.subr.mxu0 0.0
      %6677 = vmatpush2.msra.mxu0 0.0
      %6678 = vmatprep.subr.mxu0 0.0
      %6679 = vmatpush2.msra.mxu0 0.0
      %6680 = vmatprep.subr.mxu0 0.0
      %6681 = vmatpush2.msra.mxu0 0.0
      %6682 = vmatprep.subr.mxu0 0.0
      %6683 = vmatpush2.msra.mxu0 0.0
      %6684 = vmatprep.subr.mxu0 0.0
      %6685 = vmatpush2.msra.mxu0 0.0
      %6686 = vmatprep.subr.mxu0 0.0
      %6687 = vmatpush2.msra.mxu0 0.0
      %6688 = vmatprep.subr.mxu0 0.0
      %6689 = vmatpush2.msra.mxu0 0.0
      %6690 = vmatprep.mubr.f32.mxu0 0.0
      %6691 = vmatmul.mubr.f32.gmra.mxu0 %v6528
      %v6692 = vpop.f32.mrf.mxu0
      %v6693 = vadd.f32 0.0, %v6692
      %v6694 = vpop.f32.mrf.mxu0
      %6695 = vmatprep.mubr.f32.mxu0 0.0
      %6696 = vmatmul.mubr.f32.gmra.mxu0 %v6531
      %v6697 = vpop.f32.mrf.mxu0
      %v6698 = vadd.f32 0.0, %v6697
      %v6699 = vpop.f32.mrf.mxu0
      %6700 = vmatprep.mubr.f32.mxu0 0.0
      %6701 = vmatmul.mubr.f32.gmra.mxu0 %v6534
      %v6702 = vpop.f32.mrf.mxu0
      %v6703 = vadd.f32 0.0, %v6702
      %v6704 = vpop.f32.mrf.mxu0
      %6705 = vmatprep.mubr.f32.mxu0 0.0
      %6706 = vmatmul.mubr.f32.gmra.mxu0 %v6537
      %v6707 = vpop.f32.mrf.mxu0
      %v6708 = vadd.f32 0.0, %v6707
      %v6709 = vpop.f32.mrf.mxu0
      %6710 = vmatprep.mubr.f32.mxu0 0.0
      %6711 = vmatmul.mubr.f32.gmra.mxu0 %v6540
      %v6712 = vpop.f32.mrf.mxu0
      %v6713 = vadd.f32 0.0, %v6712
      %v6714 = vpop.f32.mrf.mxu0
      %6715 = vmatprep.mubr.f32.mxu0 0.0
      %6716 = vmatmul.mubr.f32.gmra.mxu0 %v6543
      %v6717 = vpop.f32.mrf.mxu0
      %v6718 = vadd.f32 0.0, %v6717
      %v6719 = vpop.f32.mrf.mxu0
      %6720 = vmatprep.mubr.f32.mxu0 0.0
      %6721 = vmatmul.mubr.f32.gmra.mxu0 %v6546
      %v6722 = vpop.f32.mrf.mxu0
      %v6723 = vadd.f32 0.0, %v6722
      %v6724 = vpop.f32.mrf.mxu0
      %6725 = vmatprep.mubr.f32.mxu0 0.0
      %6726 = vmatmul.mubr.f32.gmra.mxu0 %v6549
      %v6727 = vpop.f32.mrf.mxu0
      %v6728 = vadd.f32 0.0, %v6727
      %v6729 = vpop.f32.mrf.mxu0
      %6730 = vmatprep.mubr.f32.mxu0 0.0
      %6731 = vmatmul.mubr.f32.gmra.mxu0 %v6552
      %v6732 = vpop.f32.mrf.mxu0
      %v6733 = vadd.f32 0.0, %v6732
      %v6734 = vpop.f32.mrf.mxu0
      %6735 = vmatprep.mubr.f32.mxu0 0.0
      %6736 = vmatmul.mubr.f32.gmra.mxu0 %v6555
      %v6737 = vpop.f32.mrf.mxu0
      %v6738 = vadd.f32 0.0, %v6737
      %v6739 = vpop.f32.mrf.mxu0
      %6740 = vmatprep.mubr.f32.mxu0 0.0
      %6741 = vmatmul.mubr.f32.gmra.mxu0 %v6558
      %v6742 = vpop.f32.mrf.mxu0
      %v6743 = vadd.f32 0.0, %v6742
      %v6744 = vpop.f32.mrf.mxu0
      %6745 = vmatprep.mubr.f32.mxu0 0.0
      %6746 = vmatmul.mubr.f32.gmra.mxu0 %v6561
      %v6747 = vpop.f32.mrf.mxu0
      %v6748 = vadd.f32 0.0, %v6747
      %v6749 = vpop.f32.mrf.mxu0
      %6750 = vmatprep.mubr.f32.mxu0 0.0
      %6751 = vmatmul.mubr.f32.gmra.mxu0 %v6564
      %v6752 = vpop.f32.mrf.mxu0
      %v6753 = vadd.f32 0.0, %v6752
      %v6754 = vpop.f32.mrf.mxu0
      %6755 = vmatprep.mubr.f32.mxu0 0.0
      %6756 = vmatmul.mubr.f32.gmra.mxu0 %v6567
      %v6757 = vpop.f32.mrf.mxu0
      %v6758 = vadd.f32 0.0, %v6757
      %v6759 = vpop.f32.mrf.mxu0
      %6760 = vmatprep.mubr.f32.mxu0 0.0
      %6761 = vmatmul.mubr.f32.gmra.mxu0 %v6570
      %v6762 = vpop.f32.mrf.mxu0
      %v6763 = vadd.f32 0.0, %v6762
      %v6764 = vpop.f32.mrf.mxu0
      %6765 = vmatprep.mubr.f32.mxu0 0.0
      %6766 = vmatmul.mubr.f32.gmra.mxu0 %v6573
      %v6767 = vpop.f32.mrf.mxu0
      %v6768 = vadd.f32 0.0, %v6767
      %v6769 = vpop.f32.mrf.mxu0
      %6770 = vmatprep.mubr.f32.mxu0 0.0
      %6771 = vmatmul.mubr.f32.gmra.mxu0 %v6576
      %v6772 = vpop.f32.mrf.mxu0
      %v6773 = vadd.f32 0.0, %v6772
      %v6774 = vpop.f32.mrf.mxu0
      %6775 = vmatprep.mubr.f32.mxu0 0.0
      %6776 = vmatmul.mubr.f32.gmra.mxu0 %v6579
      %v6777 = vpop.f32.mrf.mxu0
      %v6778 = vadd.f32 0.0, %v6777
      %v6779 = vpop.f32.mrf.mxu0
      %6780 = vmatprep.mubr.f32.mxu0 0.0
      %6781 = vmatmul.mubr.f32.gmra.mxu0 %v6582
      %v6782 = vpop.f32.mrf.mxu0
      %v6783 = vadd.f32 0.0, %v6782
      %v6784 = vpop.f32.mrf.mxu0
      %6785 = vmatprep.mubr.f32.mxu0 0.0
      %6786 = vmatmul.mubr.f32.gmra.mxu0 %v6585
      %v6787 = vpop.f32.mrf.mxu0
      %v6788 = vadd.f32 0.0, %v6787
      %v6789 = vpop.f32.mrf.mxu0
      %6790 = vmatprep.mubr.f32.mxu0 0.0
      %6791 = vmatmul.mubr.f32.gmra.mxu0 %v6588
      %v6792 = vpop.f32.mrf.mxu0
      %v6793 = vadd.f32 0.0, %v6792
      %v6794 = vpop.f32.mrf.mxu0
      %6795 = vmatprep.mubr.f32.mxu0 0.0
      %6796 = vmatmul.mubr.f32.gmra.mxu0 %v6591
      %v6797 = vpop.f32.mrf.mxu0
      %v6798 = vadd.f32 0.0, %v6797
      %v6799 = vpop.f32.mrf.mxu0
      %6800 = vmatprep.mubr.f32.mxu0 0.0
      %6801 = vmatmul.mubr.f32.gmra.mxu0 %v6594
      %v6802 = vpop.f32.mrf.mxu0
      %v6803 = vadd.f32 0.0, %v6802
      %v6804 = vpop.f32.mrf.mxu0
      %6805 = vmatprep.mubr.f32.mxu0 0.0
      %6806 = vmatmul.mubr.f32.gmra.mxu0 %v6597
      %v6807 = vpop.f32.mrf.mxu0
      %v6808 = vadd.f32 0.0, %v6807
      %v6809 = vpop.f32.mrf.mxu0
      %6810 = vmatprep.mubr.f32.mxu0 0.0
      %6811 = vmatmul.mubr.f32.gmra.mxu0 %v6600
      %v6812 = vpop.f32.mrf.mxu0
      %v6813 = vadd.f32 0.0, %v6812
      %v6814 = vpop.f32.mrf.mxu0
      %6815 = vmatprep.mubr.f32.mxu0 0.0
      %6816 = vmatmul.mubr.f32.gmra.mxu0 %v6603
      %v6817 = vpop.f32.mrf.mxu0
      %v6818 = vadd.f32 0.0, %v6817
      %v6819 = vpop.f32.mrf.mxu0
      %6820 = vmatprep.mubr.f32.mxu0 0.0
      %6821 = vmatmul.mubr.f32.gmra.mxu0 %v6606
      %v6822 = vpop.f32.mrf.mxu0
      %v6823 = vadd.f32 0.0, %v6822
      %v6824 = vpop.f32.mrf.mxu0
      %6825 = vmatprep.mubr.f32.mxu0 0.0
      %6826 = vmatmul.mubr.f32.gmra.mxu0 %v6609
      %v6827 = vpop.f32.mrf.mxu0
      %v6828 = vadd.f32 0.0, %v6827
      %v6829 = vpop.f32.mrf.mxu0
      %6830 = vmatprep.mubr.f32.mxu0 0.0
      %6831 = vmatmul.mubr.f32.gmra.mxu0 %v6612
      %v6832 = vpop.f32.mrf.mxu0
      %v6833 = vadd.f32 0.0, %v6832
      %v6834 = vpop.f32.mrf.mxu0
      %6835 = vmatprep.mubr.f32.mxu0 0.0
      %6836 = vmatmul.mubr.f32.gmra.mxu0 %v6615
      %v6837 = vpop.f32.mrf.mxu0
      %v6838 = vadd.f32 0.0, %v6837
      %v6839 = vpop.f32.mrf.mxu0
      %6840 = vmatprep.mubr.f32.mxu0 0.0
      %6841 = vmatmul.mubr.f32.gmra.mxu0 %v6618
      %v6842 = vpop.f32.mrf.mxu0
      %v6843 = vadd.f32 0.0, %v6842
      %v6844 = vpop.f32.mrf.mxu0
      %6845 = vmatprep.mubr.f32.mxu0 0.0
      %6846 = vmatmul.mubr.f32.gmra.mxu0 %v6621
      %v6847 = vpop.f32.mrf.mxu0
      %v6848 = vadd.f32 0.0, %v6847
      %v6849 = vpop.f32.mrf.mxu0
      %6850 = vdwg.mxu0
      %v6851 = vadd.f32 %v6461, %v6693
      %v6852 = vadd.f32 %v6462, %v6698
      %v6853 = vadd.f32 %v6463, %v6703
      %v6854 = vadd.f32 %v6464, %v6708
      %v6855 = vadd.f32 %v6465, %v6713
      %v6856 = vadd.f32 %v6466, %v6718
      %v6857 = vadd.f32 %v6467, %v6723
      %v6858 = vadd.f32 %v6468, %v6728
      %v6859 = vadd.f32 %v6469, %v6733
      %v6860 = vadd.f32 %v6470, %v6738
      %v6861 = vadd.f32 %v6471, %v6743
      %v6862 = vadd.f32 %v6472, %v6748
      %v6863 = vadd.f32 %v6473, %v6753
      %v6864 = vadd.f32 %v6474, %v6758
      %v6865 = vadd.f32 %v6475, %v6763
      %v6866 = vadd.f32 %v6476, %v6768
      %v6867 = vadd.f32 %v6477, %v6773
      %v6868 = vadd.f32 %v6478, %v6778
      %v6869 = vadd.f32 %v6479, %v6783
      %v6870 = vadd.f32 %v6480, %v6788
      %v6871 = vadd.f32 %v6481, %v6793
      %v6872 = vadd.f32 %v6482, %v6798
      %v6873 = vadd.f32 %v6483, %v6803
      %v6874 = vadd.f32 %v6484, %v6808
      %v6875 = vadd.f32 %v6485, %v6813
      %v6876 = vadd.f32 %v6486, %v6818
      %v6877 = vadd.f32 %v6487, %v6823
      %v6878 = vadd.f32 %v6488, %v6828
      %v6879 = vadd.f32 %v6489, %v6833
      %v6880 = vadd.f32 %v6490, %v6838
      %v6881 = vadd.f32 %v6491, %v6843
      %v6882 = vadd.f32 %v6492, %v6848
      %v6883 = vld [vmem:[%s237 + $0x1] sm:$0xff]
      %v6884 = vld [vmem:[%s237 + $0x9] sm:$0xff]
      %v6885 = vld [vmem:[%s237 + $0x19] sm:$0xff]
      %v6886 = vld [vmem:[%s237 + $0x21] sm:$0xff]
      %v6887 = vld [vmem:[%s237 + $0x31] sm:$0xff]
      %v6888 = vld [vmem:[%s237 + $0x39] sm:$0xff]
      %v6889 = vld [vmem:[%s237 + $0x49] sm:$0xff]
      %v6890 = vld [vmem:[%s237 + $0x51] sm:$0xff]
      %v6891 = vld [vmem:[%s237 + $0x61] sm:$0xff]
      %v6892 = vld [vmem:[%s237 + $0x69] sm:$0xff]
      %v6893 = vld [vmem:[%s237 + $0x79] sm:$0xff]
      %v6894 = vld [vmem:[%s237 + $0x81] sm:$0xff]
      %v6895 = vld [vmem:[%s237 + $0x91] sm:$0xff]
      %v6896 = vld [vmem:[%s237 + $0x99] sm:$0xff]
      %v6897 = vld [vmem:[%s237 + $0xa9] sm:$0xff]
      %v6898 = vld [vmem:[%s237 + $0xb1] sm:$0xff]
      %v6899 = vld [vmem:[%s237 + $0xc1] sm:$0xff]
      %v6900 = vld [vmem:[%s237 + $0xc9] sm:$0xff]
      %v6901 = vld [vmem:[%s237 + $0xd9] sm:$0xff]
      %v6902 = vld [vmem:[%s237 + $0xe1] sm:$0xff]
      %v6903 = vld [vmem:[%s237 + $0xf1] sm:$0xff]
      %v6904 = vld [vmem:[%s237 + $0xf9] sm:$0xff]
      %v6905 = vld [vmem:[%s237 + $0x109] sm:$0xff]
      %v6906 = vld [vmem:[%s237 + $0x111] sm:$0xff]
      %v6907 = vld [vmem:[%s237 + $0x121] sm:$0xff]
      %v6908 = vld [vmem:[%s237 + $0x129] sm:$0xff]
      %v6909 = vld [vmem:[%s237 + $0x139] sm:$0xff]
      %v6910 = vld [vmem:[%s237 + $0x141] sm:$0xff]
      %v6911 = vld [vmem:[%s237 + $0x151] sm:$0xff]
      %v6912 = vld [vmem:[%s237 + $0x159] sm:$0xff]
      %v6913 = vld [vmem:[%s237 + $0x169] sm:$0xff]
      %v6914 = vld [vmem:[%s237 + $0x171] sm:$0xff]
      %s6915 = scalar_lea.vmem %s2, 28
      %v6916 = vld [vmem:[%s6915] sm:$0xf]
      %v6918 = vsel %vm204, %v6883, 0
      %v6921 = vsel %vm204, %v6884, 0
      %v6924 = vsel %vm204, %v6885, 0
      %v6927 = vsel %vm204, %v6886, 0
      %v6930 = vsel %vm204, %v6887, 0
      %v6933 = vsel %vm204, %v6888, 0
      %v6936 = vsel %vm204, %v6889, 0
      %v6939 = vsel %vm204, %v6890, 0
      %v6942 = vsel %vm204, %v6891, 0
      %v6945 = vsel %vm204, %v6892, 0
      %v6948 = vsel %vm204, %v6893, 0
      %v6951 = vsel %vm204, %v6894, 0
      %v6954 = vsel %vm204, %v6895, 0
      %v6957 = vsel %vm204, %v6896, 0
      %v6960 = vsel %vm204, %v6897, 0
      %v6963 = vsel %vm204, %v6898, 0
      %v6966 = vsel %vm204, %v6899, 0
      %v6969 = vsel %vm204, %v6900, 0
      %v6972 = vsel %vm204, %v6901, 0
      %v6975 = vsel %vm204, %v6902, 0
      %v6978 = vsel %vm204, %v6903, 0
      %v6981 = vsel %vm204, %v6904, 0
      %v6984 = vsel %vm204, %v6905, 0
      %v6987 = vsel %vm204, %v6906, 0
      %v6990 = vsel %vm204, %v6907, 0
      %v6993 = vsel %vm204, %v6908, 0
      %v6996 = vsel %vm204, %v6909, 0
      %v6999 = vsel %vm204, %v6910, 0
      %v7002 = vsel %vm204, %v6911, 0
      %v7005 = vsel %vm204, %v6912, 0
      %v7008 = vsel %vm204, %v6913, 0
      %v7011 = vsel %vm204, %v6914, 0
      %v7014 = vsel %vm484, %v6916, 0
      %7016 = vmatprep.subr.mxu0 0.0
      %7017 = vmatpush1.msra.mxu0 0.0
      %7018 = vmatprep.subr.mxu0 0.0
      %7019 = vmatpush1.msra.mxu0 0.0
      %7020 = vmatprep.subr.mxu0 0.0
      %7021 = vmatpush1.msra.mxu0 0.0
      %7022 = vmatprep.subr.mxu0 0.0
      %7023 = vmatpush1.msra.mxu0 0.0
      %7024 = vmatprep.subr.mxu0 0.0
      %7025 = vmatpush1.msra.mxu0 0.0
      %7026 = vmatprep.subr.mxu0 0.0
      %7027 = vmatpush1.msra.mxu0 0.0
      %7028 = vmatprep.subr.mxu0 0.0
      %7029 = vmatpush1.msra.mxu0 0.0
      %7030 = vmatprep.subr.mxu0 0.0
      %7031 = vmatpush1.msra.mxu0 0.0
      %7032 = vmatprep.subr.mxu0 0.0
      %7033 = vmatpush1.msra.mxu0 0.0
      %7034 = vmatprep.subr.mxu0 0.0
      %7035 = vmatpush1.msra.mxu0 0.0
      %7036 = vmatprep.subr.mxu0 0.0
      %7037 = vmatpush1.msra.mxu0 0.0
      %7038 = vmatprep.subr.mxu0 0.0
      %7039 = vmatpush1.msra.mxu0 0.0
      %7040 = vmatprep.subr.mxu0 0.0
      %7041 = vmatpush1.msra.mxu0 0.0
      %7042 = vmatprep.subr.mxu0 0.0
      %7043 = vmatpush1.msra.mxu0 0.0
      %7044 = vmatprep.subr.mxu0 0.0
      %7045 = vmatpush1.msra.mxu0 0.0
      %7046 = vmatprep.subr.mxu0 0.0
      %7047 = vmatpush1.msra.mxu0 %v7014
      %7048 = vmatprep.subr.mxu0 0.0
      %7049 = vmatpush2.msra.mxu0 0.0
      %7050 = vmatprep.subr.mxu0 0.0
      %7051 = vmatpush2.msra.mxu0 0.0
      %7052 = vmatprep.subr.mxu0 0.0
      %7053 = vmatpush2.msra.mxu0 0.0
      %7054 = vmatprep.subr.mxu0 0.0
      %7055 = vmatpush2.msra.mxu0 0.0
      %7056 = vmatprep.subr.mxu0 0.0
      %7057 = vmatpush2.msra.mxu0 0.0
      %7058 = vmatprep.subr.mxu0 0.0
      %7059 = vmatpush2.msra.mxu0 0.0
      %7060 = vmatprep.subr.mxu0 0.0
      %7061 = vmatpush2.msra.mxu0 0.0
      %7062 = vmatprep.subr.mxu0 0.0
      %7063 = vmatpush2.msra.mxu0 0.0
      %7064 = vmatprep.subr.mxu0 0.0
      %7065 = vmatpush2.msra.mxu0 0.0
      %7066 = vmatprep.subr.mxu0 0.0
      %7067 = vmatpush2.msra.mxu0 0.0
      %7068 = vmatprep.subr.mxu0 0.0
      %7069 = vmatpush2.msra.mxu0 0.0
      %7070 = vmatprep.subr.mxu0 0.0
      %7071 = vmatpush2.msra.mxu0 0.0
      %7072 = vmatprep.subr.mxu0 0.0
      %7073 = vmatpush2.msra.mxu0 0.0
      %7074 = vmatprep.subr.mxu0 0.0
      %7075 = vmatpush2.msra.mxu0 0.0
      %7076 = vmatprep.subr.mxu0 0.0
      %7077 = vmatpush2.msra.mxu0 0.0
      %7078 = vmatprep.subr.mxu0 0.0
      %7079 = vmatpush2.msra.mxu0 0.0
      %7080 = vmatprep.mubr.f32.mxu0 0.0
      %7081 = vmatmul.mubr.f32.gmra.mxu0 %v6918
      %v7082 = vpop.f32.mrf.mxu0
      %v7083 = vadd.f32 0.0, %v7082
      %v7084 = vpop.f32.mrf.mxu0
      %7085 = vmatprep.mubr.f32.mxu0 0.0
      %7086 = vmatmul.mubr.f32.gmra.mxu0 %v6921
      %v7087 = vpop.f32.mrf.mxu0
      %v7088 = vadd.f32 0.0, %v7087
      %v7089 = vpop.f32.mrf.mxu0
      %7090 = vmatprep.mubr.f32.mxu0 0.0
      %7091 = vmatmul.mubr.f32.gmra.mxu0 %v6924
      %v7092 = vpop.f32.mrf.mxu0
      %v7093 = vadd.f32 0.0, %v7092
      %v7094 = vpop.f32.mrf.mxu0
      %7095 = vmatprep.mubr.f32.mxu0 0.0
      %7096 = vmatmul.mubr.f32.gmra.mxu0 %v6927
      %v7097 = vpop.f32.mrf.mxu0
      %v7098 = vadd.f32 0.0, %v7097
      %v7099 = vpop.f32.mrf.mxu0
      %7100 = vmatprep.mubr.f32.mxu0 0.0
      %7101 = vmatmul.mubr.f32.gmra.mxu0 %v6930
      %v7102 = vpop.f32.mrf.mxu0
      %v7103 = vadd.f32 0.0, %v7102
      %v7104 = vpop.f32.mrf.mxu0
      %7105 = vmatprep.mubr.f32.mxu0 0.0
      %7106 = vmatmul.mubr.f32.gmra.mxu0 %v6933
      %v7107 = vpop.f32.mrf.mxu0
      %v7108 = vadd.f32 0.0, %v7107
      %v7109 = vpop.f32.mrf.mxu0
      %7110 = vmatprep.mubr.f32.mxu0 0.0
      %7111 = vmatmul.mubr.f32.gmra.mxu0 %v6936
      %v7112 = vpop.f32.mrf.mxu0
      %v7113 = vadd.f32 0.0, %v7112
      %v7114 = vpop.f32.mrf.mxu0
      %7115 = vmatprep.mubr.f32.mxu0 0.0
      %7116 = vmatmul.mubr.f32.gmra.mxu0 %v6939
      %v7117 = vpop.f32.mrf.mxu0
      %v7118 = vadd.f32 0.0, %v7117
      %v7119 = vpop.f32.mrf.mxu0
      %7120 = vmatprep.mubr.f32.mxu0 0.0
      %7121 = vmatmul.mubr.f32.gmra.mxu0 %v6942
      %v7122 = vpop.f32.mrf.mxu0
      %v7123 = vadd.f32 0.0, %v7122
      %v7124 = vpop.f32.mrf.mxu0
      %7125 = vmatprep.mubr.f32.mxu0 0.0
      %7126 = vmatmul.mubr.f32.gmra.mxu0 %v6945
      %v7127 = vpop.f32.mrf.mxu0
      %v7128 = vadd.f32 0.0, %v7127
      %v7129 = vpop.f32.mrf.mxu0
      %7130 = vmatprep.mubr.f32.mxu0 0.0
      %7131 = vmatmul.mubr.f32.gmra.mxu0 %v6948
      %v7132 = vpop.f32.mrf.mxu0
      %v7133 = vadd.f32 0.0, %v7132
      %v7134 = vpop.f32.mrf.mxu0
      %7135 = vmatprep.mubr.f32.mxu0 0.0
      %7136 = vmatmul.mubr.f32.gmra.mxu0 %v6951
      %v7137 = vpop.f32.mrf.mxu0
      %v7138 = vadd.f32 0.0, %v7137
      %v7139 = vpop.f32.mrf.mxu0
      %7140 = vmatprep.mubr.f32.mxu0 0.0
      %7141 = vmatmul.mubr.f32.gmra.mxu0 %v6954
      %v7142 = vpop.f32.mrf.mxu0
      %v7143 = vadd.f32 0.0, %v7142
      %v7144 = vpop.f32.mrf.mxu0
      %7145 = vmatprep.mubr.f32.mxu0 0.0
      %7146 = vmatmul.mubr.f32.gmra.mxu0 %v6957
      %v7147 = vpop.f32.mrf.mxu0
      %v7148 = vadd.f32 0.0, %v7147
      %v7149 = vpop.f32.mrf.mxu0
      %7150 = vmatprep.mubr.f32.mxu0 0.0
      %7151 = vmatmul.mubr.f32.gmra.mxu0 %v6960
      %v7152 = vpop.f32.mrf.mxu0
      %v7153 = vadd.f32 0.0, %v7152
      %v7154 = vpop.f32.mrf.mxu0
      %7155 = vmatprep.mubr.f32.mxu0 0.0
      %7156 = vmatmul.mubr.f32.gmra.mxu0 %v6963
      %v7157 = vpop.f32.mrf.mxu0
      %v7158 = vadd.f32 0.0, %v7157
      %v7159 = vpop.f32.mrf.mxu0
      %7160 = vmatprep.mubr.f32.mxu0 0.0
      %7161 = vmatmul.mubr.f32.gmra.mxu0 %v6966
      %v7162 = vpop.f32.mrf.mxu0
      %v7163 = vadd.f32 0.0, %v7162
      %v7164 = vpop.f32.mrf.mxu0
      %7165 = vmatprep.mubr.f32.mxu0 0.0
      %7166 = vmatmul.mubr.f32.gmra.mxu0 %v6969
      %v7167 = vpop.f32.mrf.mxu0
      %v7168 = vadd.f32 0.0, %v7167
      %v7169 = vpop.f32.mrf.mxu0
      %7170 = vmatprep.mubr.f32.mxu0 0.0
      %7171 = vmatmul.mubr.f32.gmra.mxu0 %v6972
      %v7172 = vpop.f32.mrf.mxu0
      %v7173 = vadd.f32 0.0, %v7172
      %v7174 = vpop.f32.mrf.mxu0
      %7175 = vmatprep.mubr.f32.mxu0 0.0
      %7176 = vmatmul.mubr.f32.gmra.mxu0 %v6975
      %v7177 = vpop.f32.mrf.mxu0
      %v7178 = vadd.f32 0.0, %v7177
      %v7179 = vpop.f32.mrf.mxu0
      %7180 = vmatprep.mubr.f32.mxu0 0.0
      %7181 = vmatmul.mubr.f32.gmra.mxu0 %v6978
      %v7182 = vpop.f32.mrf.mxu0
      %v7183 = vadd.f32 0.0, %v7182
      %v7184 = vpop.f32.mrf.mxu0
      %7185 = vmatprep.mubr.f32.mxu0 0.0
      %7186 = vmatmul.mubr.f32.gmra.mxu0 %v6981
      %v7187 = vpop.f32.mrf.mxu0
      %v7188 = vadd.f32 0.0, %v7187
      %v7189 = vpop.f32.mrf.mxu0
      %7190 = vmatprep.mubr.f32.mxu0 0.0
      %7191 = vmatmul.mubr.f32.gmra.mxu0 %v6984
      %v7192 = vpop.f32.mrf.mxu0
      %v7193 = vadd.f32 0.0, %v7192
      %v7194 = vpop.f32.mrf.mxu0
      %7195 = vmatprep.mubr.f32.mxu0 0.0
      %7196 = vmatmul.mubr.f32.gmra.mxu0 %v6987
      %v7197 = vpop.f32.mrf.mxu0
      %v7198 = vadd.f32 0.0, %v7197
      %v7199 = vpop.f32.mrf.mxu0
      %7200 = vmatprep.mubr.f32.mxu0 0.0
      %7201 = vmatmul.mubr.f32.gmra.mxu0 %v6990
      %v7202 = vpop.f32.mrf.mxu0
      %v7203 = vadd.f32 0.0, %v7202
      %v7204 = vpop.f32.mrf.mxu0
      %7205 = vmatprep.mubr.f32.mxu0 0.0
      %7206 = vmatmul.mubr.f32.gmra.mxu0 %v6993
      %v7207 = vpop.f32.mrf.mxu0
      %v7208 = vadd.f32 0.0, %v7207
      %v7209 = vpop.f32.mrf.mxu0
      %7210 = vmatprep.mubr.f32.mxu0 0.0
      %7211 = vmatmul.mubr.f32.gmra.mxu0 %v6996
      %v7212 = vpop.f32.mrf.mxu0
      %v7213 = vadd.f32 0.0, %v7212
      %v7214 = vpop.f32.mrf.mxu0
      %7215 = vmatprep.mubr.f32.mxu0 0.0
      %7216 = vmatmul.mubr.f32.gmra.mxu0 %v6999
      %v7217 = vpop.f32.mrf.mxu0
      %v7218 = vadd.f32 0.0, %v7217
      %v7219 = vpop.f32.mrf.mxu0
      %7220 = vmatprep.mubr.f32.mxu0 0.0
      %7221 = vmatmul.mubr.f32.gmra.mxu0 %v7002
      %v7222 = vpop.f32.mrf.mxu0
      %v7223 = vadd.f32 0.0, %v7222
      %v7224 = vpop.f32.mrf.mxu0
      %7225 = vmatprep.mubr.f32.mxu0 0.0
      %7226 = vmatmul.mubr.f32.gmra.mxu0 %v7005
      %v7227 = vpop.f32.mrf.mxu0
      %v7228 = vadd.f32 0.0, %v7227
      %v7229 = vpop.f32.mrf.mxu0
      %7230 = vmatprep.mubr.f32.mxu0 0.0
      %7231 = vmatmul.mubr.f32.gmra.mxu0 %v7008
      %v7232 = vpop.f32.mrf.mxu0
      %v7233 = vadd.f32 0.0, %v7232
      %v7234 = vpop.f32.mrf.mxu0
      %7235 = vmatprep.mubr.f32.mxu0 0.0
      %7236 = vmatmul.mubr.f32.gmra.mxu0 %v7011
      %v7237 = vpop.f32.mrf.mxu0
      %v7238 = vadd.f32 0.0, %v7237
      %v7239 = vpop.f32.mrf.mxu0
      %7240 = vdwg.mxu0
      %v7241 = vadd.f32 %v6851, %v7083
      %v7242 = vadd.f32 %v6852, %v7088
      %v7243 = vadd.f32 %v6853, %v7093
      %v7244 = vadd.f32 %v6854, %v7098
      %v7245 = vadd.f32 %v6855, %v7103
      %v7246 = vadd.f32 %v6856, %v7108
      %v7247 = vadd.f32 %v6857, %v7113
      %v7248 = vadd.f32 %v6858, %v7118
      %v7249 = vadd.f32 %v6859, %v7123
      %v7250 = vadd.f32 %v6860, %v7128
      %v7251 = vadd.f32 %v6861, %v7133
      %v7252 = vadd.f32 %v6862, %v7138
      %v7253 = vadd.f32 %v6863, %v7143
      %v7254 = vadd.f32 %v6864, %v7148
      %v7255 = vadd.f32 %v6865, %v7153
      %v7256 = vadd.f32 %v6866, %v7158
      %v7257 = vadd.f32 %v6867, %v7163
      %v7258 = vadd.f32 %v6868, %v7168
      %v7259 = vadd.f32 %v6869, %v7173
      %v7260 = vadd.f32 %v6870, %v7178
      %v7261 = vadd.f32 %v6871, %v7183
      %v7262 = vadd.f32 %v6872, %v7188
      %v7263 = vadd.f32 %v6873, %v7193
      %v7264 = vadd.f32 %v6874, %v7198
      %v7265 = vadd.f32 %v6875, %v7203
      %v7266 = vadd.f32 %v6876, %v7208
      %v7267 = vadd.f32 %v6877, %v7213
      %v7268 = vadd.f32 %v6878, %v7218
      %v7269 = vadd.f32 %v6879, %v7223
      %v7270 = vadd.f32 %v6880, %v7228
      %v7271 = vadd.f32 %v6881, %v7233
      %v7272 = vadd.f32 %v6882, %v7238
      %v7273 = vld [vmem:[%s237 + $0x2] sm:$0xff]
      %v7274 = vld [vmem:[%s237 + $0xa] sm:$0xff]
      %v7275 = vld [vmem:[%s237 + $0x1a] sm:$0xff]
      %v7276 = vld [vmem:[%s237 + $0x22] sm:$0xff]
      %v7277 = vld [vmem:[%s237 + $0x32] sm:$0xff]
      %v7278 = vld [vmem:[%s237 + $0x3a] sm:$0xff]
      %v7279 = vld [vmem:[%s237 + $0x4a] sm:$0xff]
      %v7280 = vld [vmem:[%s237 + $0x52] sm:$0xff]
      %v7281 = vld [vmem:[%s237 + $0x62] sm:$0xff]
      %v7282 = vld [vmem:[%s237 + $0x6a] sm:$0xff]
      %v7283 = vld [vmem:[%s237 + $0x7a] sm:$0xff]
      %v7284 = vld [vmem:[%s237 + $0x82] sm:$0xff]
      %v7285 = vld [vmem:[%s237 + $0x92] sm:$0xff]
      %v7286 = vld [vmem:[%s237 + $0x9a] sm:$0xff]
      %v7287 = vld [vmem:[%s237 + $0xaa] sm:$0xff]
      %v7288 = vld [vmem:[%s237 + $0xb2] sm:$0xff]
      %v7289 = vld [vmem:[%s237 + $0xc2] sm:$0xff]
      %v7290 = vld [vmem:[%s237 + $0xca] sm:$0xff]
      %v7291 = vld [vmem:[%s237 + $0xda] sm:$0xff]
      %v7292 = vld [vmem:[%s237 + $0xe2] sm:$0xff]
      %v7293 = vld [vmem:[%s237 + $0xf2] sm:$0xff]
      %v7294 = vld [vmem:[%s237 + $0xfa] sm:$0xff]
      %v7295 = vld [vmem:[%s237 + $0x10a] sm:$0xff]
      %v7296 = vld [vmem:[%s237 + $0x112] sm:$0xff]
      %v7297 = vld [vmem:[%s237 + $0x122] sm:$0xff]
      %v7298 = vld [vmem:[%s237 + $0x12a] sm:$0xff]
      %v7299 = vld [vmem:[%s237 + $0x13a] sm:$0xff]
      %v7300 = vld [vmem:[%s237 + $0x142] sm:$0xff]
      %v7301 = vld [vmem:[%s237 + $0x152] sm:$0xff]
      %v7302 = vld [vmem:[%s237 + $0x15a] sm:$0xff]
      %v7303 = vld [vmem:[%s237 + $0x16a] sm:$0xff]
      %v7304 = vld [vmem:[%s237 + $0x172] sm:$0xff]
      %s7305 = scalar_lea.vmem %s2, 32
      %v7306 = vld [vmem:[%s7305] sm:$0xf]
      %v7308 = vsel %vm204, %v7273, 0
      %v7311 = vsel %vm204, %v7274, 0
      %v7314 = vsel %vm204, %v7275, 0
      %v7317 = vsel %vm204, %v7276, 0
      %v7320 = vsel %vm204, %v7277, 0
      %v7323 = vsel %vm204, %v7278, 0
      %v7326 = vsel %vm204, %v7279, 0
      %v7329 = vsel %vm204, %v7280, 0
      %v7332 = vsel %vm204, %v7281, 0
      %v7335 = vsel %vm204, %v7282, 0
      %v7338 = vsel %vm204, %v7283, 0
      %v7341 = vsel %vm204, %v7284, 0
      %v7344 = vsel %vm204, %v7285, 0
      %v7347 = vsel %vm204, %v7286, 0
      %v7350 = vsel %vm204, %v7287, 0
      %v7353 = vsel %vm204, %v7288, 0
      %v7356 = vsel %vm204, %v7289, 0
      %v7359 = vsel %vm204, %v7290, 0
      %v7362 = vsel %vm204, %v7291, 0
      %v7365 = vsel %vm204, %v7292, 0
      %v7368 = vsel %vm204, %v7293, 0
      %v7371 = vsel %vm204, %v7294, 0
      %v7374 = vsel %vm204, %v7295, 0
      %v7377 = vsel %vm204, %v7296, 0
      %v7380 = vsel %vm204, %v7297, 0
      %v7383 = vsel %vm204, %v7298, 0
      %v7386 = vsel %vm204, %v7299, 0
      %v7389 = vsel %vm204, %v7300, 0
      %v7392 = vsel %vm204, %v7301, 0
      %v7395 = vsel %vm204, %v7302, 0
      %v7398 = vsel %vm204, %v7303, 0
      %v7401 = vsel %vm204, %v7304, 0
      %v7404 = vsel %vm484, %v7306, 0
      %7406 = vmatprep.subr.mxu0 0.0
      %7407 = vmatpush1.msra.mxu0 0.0
      %7408 = vmatprep.subr.mxu0 0.0
      %7409 = vmatpush1.msra.mxu0 0.0
      %7410 = vmatprep.subr.mxu0 0.0
      %7411 = vmatpush1.msra.mxu0 0.0
      %7412 = vmatprep.subr.mxu0 0.0
      %7413 = vmatpush1.msra.mxu0 0.0
      %7414 = vmatprep.subr.mxu0 0.0
      %7415 = vmatpush1.msra.mxu0 0.0
      %7416 = vmatprep.subr.mxu0 0.0
      %7417 = vmatpush1.msra.mxu0 0.0
      %7418 = vmatprep.subr.mxu0 0.0
      %7419 = vmatpush1.msra.mxu0 0.0
      %7420 = vmatprep.subr.mxu0 0.0
      %7421 = vmatpush1.msra.mxu0 0.0
      %7422 = vmatprep.subr.mxu0 0.0
      %7423 = vmatpush1.msra.mxu0 0.0
      %7424 = vmatprep.subr.mxu0 0.0
      %7425 = vmatpush1.msra.mxu0 0.0
      %7426 = vmatprep.subr.mxu0 0.0
      %7427 = vmatpush1.msra.mxu0 0.0
      %7428 = vmatprep.subr.mxu0 0.0
      %7429 = vmatpush1.msra.mxu0 0.0
      %7430 = vmatprep.subr.mxu0 0.0
      %7431 = vmatpush1.msra.mxu0 0.0
      %7432 = vmatprep.subr.mxu0 0.0
      %7433 = vmatpush1.msra.mxu0 0.0
      %7434 = vmatprep.subr.mxu0 0.0
      %7435 = vmatpush1.msra.mxu0 0.0
      %7436 = vmatprep.subr.mxu0 0.0
      %7437 = vmatpush1.msra.mxu0 %v7404
      %7438 = vmatprep.subr.mxu0 0.0
      %7439 = vmatpush2.msra.mxu0 0.0
      %7440 = vmatprep.subr.mxu0 0.0
      %7441 = vmatpush2.msra.mxu0 0.0
      %7442 = vmatprep.subr.mxu0 0.0
      %7443 = vmatpush2.msra.mxu0 0.0
      %7444 = vmatprep.subr.mxu0 0.0
      %7445 = vmatpush2.msra.mxu0 0.0
      %7446 = vmatprep.subr.mxu0 0.0
      %7447 = vmatpush2.msra.mxu0 0.0
      %7448 = vmatprep.subr.mxu0 0.0
      %7449 = vmatpush2.msra.mxu0 0.0
      %7450 = vmatprep.subr.mxu0 0.0
      %7451 = vmatpush2.msra.mxu0 0.0
      %7452 = vmatprep.subr.mxu0 0.0
      %7453 = vmatpush2.msra.mxu0 0.0
      %7454 = vmatprep.subr.mxu0 0.0
      %7455 = vmatpush2.msra.mxu0 0.0
      %7456 = vmatprep.subr.mxu0 0.0
      %7457 = vmatpush2.msra.mxu0 0.0
      %7458 = vmatprep.subr.mxu0 0.0
      %7459 = vmatpush2.msra.mxu0 0.0
      %7460 = vmatprep.subr.mxu0 0.0
      %7461 = vmatpush2.msra.mxu0 0.0
      %7462 = vmatprep.subr.mxu0 0.0
      %7463 = vmatpush2.msra.mxu0 0.0
      %7464 = vmatprep.subr.mxu0 0.0
      %7465 = vmatpush2.msra.mxu0 0.0
      %7466 = vmatprep.subr.mxu0 0.0
      %7467 = vmatpush2.msra.mxu0 0.0
      %7468 = vmatprep.subr.mxu0 0.0
      %7469 = vmatpush2.msra.mxu0 0.0
      %7470 = vmatprep.mubr.f32.mxu0 0.0
      %7471 = vmatmul.mubr.f32.gmra.mxu0 %v7308
      %v7472 = vpop.f32.mrf.mxu0
      %v7473 = vadd.f32 0.0, %v7472
      %v7474 = vpop.f32.mrf.mxu0
      %7475 = vmatprep.mubr.f32.mxu0 0.0
      %7476 = vmatmul.mubr.f32.gmra.mxu0 %v7311
      %v7477 = vpop.f32.mrf.mxu0
      %v7478 = vadd.f32 0.0, %v7477
      %v7479 = vpop.f32.mrf.mxu0
      %7480 = vmatprep.mubr.f32.mxu0 0.0
      %7481 = vmatmul.mubr.f32.gmra.mxu0 %v7314
      %v7482 = vpop.f32.mrf.mxu0
      %v7483 = vadd.f32 0.0, %v7482
      %v7484 = vpop.f32.mrf.mxu0
      %7485 = vmatprep.mubr.f32.mxu0 0.0
      %7486 = vmatmul.mubr.f32.gmra.mxu0 %v7317
      %v7487 = vpop.f32.mrf.mxu0
      %v7488 = vadd.f32 0.0, %v7487
      %v7489 = vpop.f32.mrf.mxu0
      %7490 = vmatprep.mubr.f32.mxu0 0.0
      %7491 = vmatmul.mubr.f32.gmra.mxu0 %v7320
      %v7492 = vpop.f32.mrf.mxu0
      %v7493 = vadd.f32 0.0, %v7492
      %v7494 = vpop.f32.mrf.mxu0
      %7495 = vmatprep.mubr.f32.mxu0 0.0
      %7496 = vmatmul.mubr.f32.gmra.mxu0 %v7323
      %v7497 = vpop.f32.mrf.mxu0
      %v7498 = vadd.f32 0.0, %v7497
      %v7499 = vpop.f32.mrf.mxu0
      %7500 = vmatprep.mubr.f32.mxu0 0.0
      %7501 = vmatmul.mubr.f32.gmra.mxu0 %v7326
      %v7502 = vpop.f32.mrf.mxu0
      %v7503 = vadd.f32 0.0, %v7502
      %v7504 = vpop.f32.mrf.mxu0
      %7505 = vmatprep.mubr.f32.mxu0 0.0
      %7506 = vmatmul.mubr.f32.gmra.mxu0 %v7329
      %v7507 = vpop.f32.mrf.mxu0
      %v7508 = vadd.f32 0.0, %v7507
      %v7509 = vpop.f32.mrf.mxu0
      %7510 = vmatprep.mubr.f32.mxu0 0.0
      %7511 = vmatmul.mubr.f32.gmra.mxu0 %v7332
      %v7512 = vpop.f32.mrf.mxu0
      %v7513 = vadd.f32 0.0, %v7512
      %v7514 = vpop.f32.mrf.mxu0
      %7515 = vmatprep.mubr.f32.mxu0 0.0
      %7516 = vmatmul.mubr.f32.gmra.mxu0 %v7335
      %v7517 = vpop.f32.mrf.mxu0
      %v7518 = vadd.f32 0.0, %v7517
      %v7519 = vpop.f32.mrf.mxu0
      %7520 = vmatprep.mubr.f32.mxu0 0.0
      %7521 = vmatmul.mubr.f32.gmra.mxu0 %v7338
      %v7522 = vpop.f32.mrf.mxu0
      %v7523 = vadd.f32 0.0, %v7522
      %v7524 = vpop.f32.mrf.mxu0
      %7525 = vmatprep.mubr.f32.mxu0 0.0
      %7526 = vmatmul.mubr.f32.gmra.mxu0 %v7341
      %v7527 = vpop.f32.mrf.mxu0
      %v7528 = vadd.f32 0.0, %v7527
      %v7529 = vpop.f32.mrf.mxu0
      %7530 = vmatprep.mubr.f32.mxu0 0.0
      %7531 = vmatmul.mubr.f32.gmra.mxu0 %v7344
      %v7532 = vpop.f32.mrf.mxu0
      %v7533 = vadd.f32 0.0, %v7532
      %v7534 = vpop.f32.mrf.mxu0
      %7535 = vmatprep.mubr.f32.mxu0 0.0
      %7536 = vmatmul.mubr.f32.gmra.mxu0 %v7347
      %v7537 = vpop.f32.mrf.mxu0
      %v7538 = vadd.f32 0.0, %v7537
      %v7539 = vpop.f32.mrf.mxu0
      %7540 = vmatprep.mubr.f32.mxu0 0.0
      %7541 = vmatmul.mubr.f32.gmra.mxu0 %v7350
      %v7542 = vpop.f32.mrf.mxu0
      %v7543 = vadd.f32 0.0, %v7542
      %v7544 = vpop.f32.mrf.mxu0
      %7545 = vmatprep.mubr.f32.mxu0 0.0
      %7546 = vmatmul.mubr.f32.gmra.mxu0 %v7353
      %v7547 = vpop.f32.mrf.mxu0
      %v7548 = vadd.f32 0.0, %v7547
      %v7549 = vpop.f32.mrf.mxu0
      %7550 = vmatprep.mubr.f32.mxu0 0.0
      %7551 = vmatmul.mubr.f32.gmra.mxu0 %v7356
      %v7552 = vpop.f32.mrf.mxu0
      %v7553 = vadd.f32 0.0, %v7552
      %v7554 = vpop.f32.mrf.mxu0
      %7555 = vmatprep.mubr.f32.mxu0 0.0
      %7556 = vmatmul.mubr.f32.gmra.mxu0 %v7359
      %v7557 = vpop.f32.mrf.mxu0
      %v7558 = vadd.f32 0.0, %v7557
      %v7559 = vpop.f32.mrf.mxu0
      %7560 = vmatprep.mubr.f32.mxu0 0.0
      %7561 = vmatmul.mubr.f32.gmra.mxu0 %v7362
      %v7562 = vpop.f32.mrf.mxu0
      %v7563 = vadd.f32 0.0, %v7562
      %v7564 = vpop.f32.mrf.mxu0
      %7565 = vmatprep.mubr.f32.mxu0 0.0
      %7566 = vmatmul.mubr.f32.gmra.mxu0 %v7365
      %v7567 = vpop.f32.mrf.mxu0
      %v7568 = vadd.f32 0.0, %v7567
      %v7569 = vpop.f32.mrf.mxu0
      %7570 = vmatprep.mubr.f32.mxu0 0.0
      %7571 = vmatmul.mubr.f32.gmra.mxu0 %v7368
      %v7572 = vpop.f32.mrf.mxu0
      %v7573 = vadd.f32 0.0, %v7572
      %v7574 = vpop.f32.mrf.mxu0
      %7575 = vmatprep.mubr.f32.mxu0 0.0
      %7576 = vmatmul.mubr.f32.gmra.mxu0 %v7371
      %v7577 = vpop.f32.mrf.mxu0
      %v7578 = vadd.f32 0.0, %v7577
      %v7579 = vpop.f32.mrf.mxu0
      %7580 = vmatprep.mubr.f32.mxu0 0.0
      %7581 = vmatmul.mubr.f32.gmra.mxu0 %v7374
      %v7582 = vpop.f32.mrf.mxu0
      %v7583 = vadd.f32 0.0, %v7582
      %v7584 = vpop.f32.mrf.mxu0
      %7585 = vmatprep.mubr.f32.mxu0 0.0
      %7586 = vmatmul.mubr.f32.gmra.mxu0 %v7377
      %v7587 = vpop.f32.mrf.mxu0
      %v7588 = vadd.f32 0.0, %v7587
      %v7589 = vpop.f32.mrf.mxu0
      %7590 = vmatprep.mubr.f32.mxu0 0.0
      %7591 = vmatmul.mubr.f32.gmra.mxu0 %v7380
      %v7592 = vpop.f32.mrf.mxu0
      %v7593 = vadd.f32 0.0, %v7592
      %v7594 = vpop.f32.mrf.mxu0
      %7595 = vmatprep.mubr.f32.mxu0 0.0
      %7596 = vmatmul.mubr.f32.gmra.mxu0 %v7383
      %v7597 = vpop.f32.mrf.mxu0
      %v7598 = vadd.f32 0.0, %v7597
      %v7599 = vpop.f32.mrf.mxu0
      %7600 = vmatprep.mubr.f32.mxu0 0.0
      %7601 = vmatmul.mubr.f32.gmra.mxu0 %v7386
      %v7602 = vpop.f32.mrf.mxu0
      %v7603 = vadd.f32 0.0, %v7602
      %v7604 = vpop.f32.mrf.mxu0
      %7605 = vmatprep.mubr.f32.mxu0 0.0
      %7606 = vmatmul.mubr.f32.gmra.mxu0 %v7389
      %v7607 = vpop.f32.mrf.mxu0
      %v7608 = vadd.f32 0.0, %v7607
      %v7609 = vpop.f32.mrf.mxu0
      %7610 = vmatprep.mubr.f32.mxu0 0.0
      %7611 = vmatmul.mubr.f32.gmra.mxu0 %v7392
      %v7612 = vpop.f32.mrf.mxu0
      %v7613 = vadd.f32 0.0, %v7612
      %v7614 = vpop.f32.mrf.mxu0
      %7615 = vmatprep.mubr.f32.mxu0 0.0
      %7616 = vmatmul.mubr.f32.gmra.mxu0 %v7395
      %v7617 = vpop.f32.mrf.mxu0
      %v7618 = vadd.f32 0.0, %v7617
      %v7619 = vpop.f32.mrf.mxu0
      %7620 = vmatprep.mubr.f32.mxu0 0.0
      %7621 = vmatmul.mubr.f32.gmra.mxu0 %v7398
      %v7622 = vpop.f32.mrf.mxu0
      %v7623 = vadd.f32 0.0, %v7622
      %v7624 = vpop.f32.mrf.mxu0
      %7625 = vmatprep.mubr.f32.mxu0 0.0
      %7626 = vmatmul.mubr.f32.gmra.mxu0 %v7401
      %v7627 = vpop.f32.mrf.mxu0
      %v7628 = vadd.f32 0.0, %v7627
      %v7629 = vpop.f32.mrf.mxu0
      %7630 = vdwg.mxu0
      %v7631 = vadd.f32 %v7241, %v7473
      %v7632 = vadd.f32 %v7242, %v7478
      %v7633 = vadd.f32 %v7243, %v7483
      %v7634 = vadd.f32 %v7244, %v7488
      %v7635 = vadd.f32 %v7245, %v7493
      %v7636 = vadd.f32 %v7246, %v7498
      %v7637 = vadd.f32 %v7247, %v7503
      %v7638 = vadd.f32 %v7248, %v7508
      %v7639 = vadd.f32 %v7249, %v7513
      %v7640 = vadd.f32 %v7250, %v7518
      %v7641 = vadd.f32 %v7251, %v7523
      %v7642 = vadd.f32 %v7252, %v7528
      %v7643 = vadd.f32 %v7253, %v7533
      %v7644 = vadd.f32 %v7254, %v7538
      %v7645 = vadd.f32 %v7255, %v7543
      %v7646 = vadd.f32 %v7256, %v7548
      %v7647 = vadd.f32 %v7257, %v7553
      %v7648 = vadd.f32 %v7258, %v7558
      %v7649 = vadd.f32 %v7259, %v7563
      %v7650 = vadd.f32 %v7260, %v7568
      %v7651 = vadd.f32 %v7261, %v7573
      %v7652 = vadd.f32 %v7262, %v7578
      %v7653 = vadd.f32 %v7263, %v7583
      %v7654 = vadd.f32 %v7264, %v7588
      %v7655 = vadd.f32 %v7265, %v7593
      %v7656 = vadd.f32 %v7266, %v7598
      %v7657 = vadd.f32 %v7267, %v7603
      %v7658 = vadd.f32 %v7268, %v7608
      %v7659 = vadd.f32 %v7269, %v7613
      %v7660 = vadd.f32 %v7270, %v7618
      %v7661 = vadd.f32 %v7271, %v7623
      %v7662 = vadd.f32 %v7272, %v7628
      %7663 = vst.msk [vmem:[#allocation3] sm:$0xff] %vm204, %v7631
      %7664 = vst.msk [vmem:[#allocation3 + $0x8] sm:$0xff] %vm204, %v7632
      %7665 = vst.msk [vmem:[#allocation3 + $0x10] sm:$0xff] %vm204, %v7633
      %7666 = vst.msk [vmem:[#allocation3 + $0x18] sm:$0xff] %vm204, %v7634
      %7667 = vst.msk [vmem:[#allocation3 + $0x20] sm:$0xff] %vm204, %v7635
      %7668 = vst.msk [vmem:[#allocation3 + $0x28] sm:$0xff] %vm204, %v7636
      %7669 = vst.msk [vmem:[#allocation3 + $0x30] sm:$0xff] %vm204, %v7637
      %7670 = vst.msk [vmem:[#allocation3 + $0x38] sm:$0xff] %vm204, %v7638
      %7671 = vst.msk [vmem:[#allocation3 + $0x40] sm:$0xff] %vm204, %v7639
      %7672 = vst.msk [vmem:[#allocation3 + $0x48] sm:$0xff] %vm204, %v7640
      %7673 = vst.msk [vmem:[#allocation3 + $0x50] sm:$0xff] %vm204, %v7641
      %7674 = vst.msk [vmem:[#allocation3 + $0x58] sm:$0xff] %vm204, %v7642
      %7675 = vst.msk [vmem:[#allocation3 + $0x60] sm:$0xff] %vm204, %v7643
      %7676 = vst.msk [vmem:[#allocation3 + $0x68] sm:$0xff] %vm204, %v7644
      %7677 = vst.msk [vmem:[#allocation3 + $0x70] sm:$0xff] %vm204, %v7645
      %7678 = vst.msk [vmem:[#allocation3 + $0x78] sm:$0xff] %vm204, %v7646
      %7679 = vst.msk [vmem:[#allocation3 + $0x80] sm:$0xff] %vm204, %v7647
      %7680 = vst.msk [vmem:[#allocation3 + $0x88] sm:$0xff] %vm204, %v7648
      %7681 = vst.msk [vmem:[#allocation3 + $0x90] sm:$0xff] %vm204, %v7649
      %7682 = vst.msk [vmem:[#allocation3 + $0x98] sm:$0xff] %vm204, %v7650
      %7683 = vst.msk [vmem:[#allocation3 + $0xa0] sm:$0xff] %vm204, %v7651
      %7684 = vst.msk [vmem:[#allocation3 + $0xa8] sm:$0xff] %vm204, %v7652
      %7685 = vst.msk [vmem:[#allocation3 + $0xb0] sm:$0xff] %vm204, %v7653
      %7686 = vst.msk [vmem:[#allocation3 + $0xb8] sm:$0xff] %vm204, %v7654
      %7687 = vst.msk [vmem:[#allocation3 + $0xc0] sm:$0xff] %vm204, %v7655
      %7688 = vst.msk [vmem:[#allocation3 + $0xc8] sm:$0xff] %vm204, %v7656
      %7689 = vst.msk [vmem:[#allocation3 + $0xd0] sm:$0xff] %vm204, %v7657
      %7690 = vst.msk [vmem:[#allocation3 + $0xd8] sm:$0xff] %vm204, %v7658
      %7691 = vst.msk [vmem:[#allocation3 + $0xe0] sm:$0xff] %vm204, %v7659
      %7692 = vst.msk [vmem:[#allocation3 + $0xe8] sm:$0xff] %vm204, %v7660
      %7693 = vst.msk [vmem:[#allocation3 + $0xf0] sm:$0xff] %vm204, %v7661
      %7694 = vst.msk [vmem:[#allocation3 + $0xf8] sm:$0xff] %vm204, %v7662
      %v7695 = vld [vmem:[#allocation3] sm:$0xff]
      %v7696 = vld [vmem:[#allocation3 + $0x8] sm:$0xff]
      %v7697 = vld [vmem:[#allocation3 + $0x10] sm:$0xff]
      %v7698 = vld [vmem:[#allocation3 + $0x18] sm:$0xff]
      %v7699 = vld [vmem:[#allocation3 + $0x20] sm:$0xff]
      %v7700 = vld [vmem:[#allocation3 + $0x28] sm:$0xff]
      %v7701 = vld [vmem:[#allocation3 + $0x30] sm:$0xff]
      %v7702 = vld [vmem:[#allocation3 + $0x38] sm:$0xff]
      %v7703 = vld [vmem:[#allocation3 + $0x40] sm:$0xff]
      %v7704 = vld [vmem:[#allocation3 + $0x48] sm:$0xff]
      %v7705 = vld [vmem:[#allocation3 + $0x50] sm:$0xff]
      %v7706 = vld [vmem:[#allocation3 + $0x58] sm:$0xff]
      %v7707 = vld [vmem:[#allocation3 + $0x60] sm:$0xff]
      %v7708 = vld [vmem:[#allocation3 + $0x68] sm:$0xff]
      %v7709 = vld [vmem:[#allocation3 + $0x70] sm:$0xff]
      %v7710 = vld [vmem:[#allocation3 + $0x78] sm:$0xff]
      %v7711 = vld [vmem:[#allocation3 + $0x80] sm:$0xff]
      %v7712 = vld [vmem:[#allocation3 + $0x88] sm:$0xff]
      %v7713 = vld [vmem:[#allocation3 + $0x90] sm:$0xff]
      %v7714 = vld [vmem:[#allocation3 + $0x98] sm:$0xff]
      %v7715 = vld [vmem:[#allocation3 + $0xa0] sm:$0xff]
      %v7716 = vld [vmem:[#allocation3 + $0xa8] sm:$0xff]
      %v7717 = vld [vmem:[#allocation3 + $0xb0] sm:$0xff]
      %v7718 = vld [vmem:[#allocation3 + $0xb8] sm:$0xff]
      %v7719 = vld [vmem:[#allocation3 + $0xc0] sm:$0xff]
      %v7720 = vld [vmem:[#allocation3 + $0xc8] sm:$0xff]
      %v7721 = vld [vmem:[#allocation3 + $0xd0] sm:$0xff]
      %v7722 = vld [vmem:[#allocation3 + $0xd8] sm:$0xff]
      %v7723 = vld [vmem:[#allocation3 + $0xe0] sm:$0xff]
      %v7724 = vld [vmem:[#allocation3 + $0xe8] sm:$0xff]
      %v7725 = vld [vmem:[#allocation3 + $0xf0] sm:$0xff]
      %v7726 = vld [vmem:[#allocation3 + $0xf8] sm:$0xff]
      %v7727 = vsel %vm204, %v7695, 0.0
      %v7728 = vsel %vm204, %v7696, 0.0
      %v7729 = vadd.f32 %v7727, %v7728
      %v7730 = vsel %vm204, %v7697, 0.0
      %v7731 = vadd.f32 %v7729, %v7730
      %v7732 = vsel %vm204, %v7698, 0.0
      %v7733 = vadd.f32 %v7731, %v7732
      %v7734 = vsel %vm204, %v7699, 0.0
      %v7735 = vadd.f32 %v7733, %v7734
      %v7736 = vsel %vm204, %v7700, 0.0
      %v7737 = vadd.f32 %v7735, %v7736
      %v7738 = vsel %vm204, %v7701, 0.0
      %v7739 = vadd.f32 %v7737, %v7738
      %v7740 = vsel %vm204, %v7702, 0.0
      %v7741 = vadd.f32 %v7739, %v7740
      %v7742 = vsel %vm204, %v7703, 0.0
      %v7743 = vadd.f32 %v7741, %v7742
      %v7744 = vsel %vm204, %v7704, 0.0
      %v7745 = vadd.f32 %v7743, %v7744
      %v7746 = vsel %vm204, %v7705, 0.0
      %v7747 = vadd.f32 %v7745, %v7746
      %v7748 = vsel %vm204, %v7706, 0.0
      %v7749 = vadd.f32 %v7747, %v7748
      %v7750 = vsel %vm204, %v7707, 0.0
      %v7751 = vadd.f32 %v7749, %v7750
      %v7752 = vsel %vm204, %v7708, 0.0
      %v7753 = vadd.f32 %v7751, %v7752
      %v7754 = vsel %vm204, %v7709, 0.0
      %v7755 = vadd.f32 %v7753, %v7754
      %v7756 = vsel %vm204, %v7710, 0.0
      %v7757 = vadd.f32 %v7755, %v7756
      %v7758 = vsel %vm204, %v7711, 0.0
      %v7759 = vadd.f32 %v7757, %v7758
      %v7760 = vsel %vm204, %v7712, 0.0
      %v7761 = vadd.f32 %v7759, %v7760
      %v7762 = vsel %vm204, %v7713, 0.0
      %v7763 = vadd.f32 %v7761, %v7762
      %v7764 = vsel %vm204, %v7714, 0.0
      %v7765 = vadd.f32 %v7763, %v7764
      %v7766 = vsel %vm204, %v7715, 0.0
      %v7767 = vadd.f32 %v7765, %v7766
      %v7768 = vsel %vm204, %v7716, 0.0
      %v7769 = vadd.f32 %v7767, %v7768
      %v7770 = vsel %vm204, %v7717, 0.0
      %v7771 = vadd.f32 %v7769, %v7770
      %v7772 = vsel %vm204, %v7718, 0.0
      %v7773 = vadd.f32 %v7771, %v7772
      %v7774 = vsel %vm204, %v7719, 0.0
      %v7775 = vadd.f32 %v7773, %v7774
      %v7776 = vsel %vm204, %v7720, 0.0
      %v7777 = vadd.f32 %v7775, %v7776
      %v7778 = vsel %vm204, %v7721, 0.0
      %v7779 = vadd.f32 %v7777, %v7778
      %v7780 = vsel %vm204, %v7722, 0.0
      %v7781 = vadd.f32 %v7779, %v7780
      %v7782 = vsel %vm204, %v7723, 0.0
      %v7783 = vadd.f32 %v7781, %v7782
      %v7784 = vsel %vm204, %v7724, 0.0
      %v7785 = vadd.f32 %v7783, %v7784
      %v7786 = vsel %vm204, %v7725, 0.0
      %v7787 = vadd.f32 %v7785, %v7786
      %v7788 = vsel %vm204, %v7726, 0.0
      %v7789 = vadd.f32 %v7787, %v7788
      %v7790 = vrot.slane %v7789, 4
      %v7791 = vadd.f32 %v7789, %v7790
      %v7792 = vrot.slane %v7791, 2
      %v7793 = vadd.f32 %v7791, %v7792
      %v7794 = vrot.slane %v7793, 1
      %v7795 = vadd.f32 %v7793, %v7794
      %v7796 = vmul.f32 %v7795, 0.00390625
      %v7797 = vmul.f32 %v7695, %v7695
      %v7798 = vmul.f32 %v7696, %v7696
      %v7799 = vmul.f32 %v7697, %v7697
      %v7800 = vmul.f32 %v7698, %v7698
      %v7801 = vmul.f32 %v7699, %v7699
      %v7802 = vmul.f32 %v7700, %v7700
      %v7803 = vmul.f32 %v7701, %v7701
      %v7804 = vmul.f32 %v7702, %v7702
      %v7805 = vmul.f32 %v7703, %v7703
      %v7806 = vmul.f32 %v7704, %v7704
      %v7807 = vmul.f32 %v7705, %v7705
      %v7808 = vmul.f32 %v7706, %v7706
      %v7809 = vmul.f32 %v7707, %v7707
      %v7810 = vmul.f32 %v7708, %v7708
      %v7811 = vmul.f32 %v7709, %v7709
      %v7812 = vmul.f32 %v7710, %v7710
      %v7813 = vmul.f32 %v7711, %v7711
      %v7814 = vmul.f32 %v7712, %v7712
      %v7815 = vmul.f32 %v7713, %v7713
      %v7816 = vmul.f32 %v7714, %v7714
      %v7817 = vmul.f32 %v7715, %v7715
      %v7818 = vmul.f32 %v7716, %v7716
      %v7819 = vmul.f32 %v7717, %v7717
      %v7820 = vmul.f32 %v7718, %v7718
      %v7821 = vmul.f32 %v7719, %v7719
      %v7822 = vmul.f32 %v7720, %v7720
      %v7823 = vmul.f32 %v7721, %v7721
      %v7824 = vmul.f32 %v7722, %v7722
      %v7825 = vmul.f32 %v7723, %v7723
      %v7826 = vmul.f32 %v7724, %v7724
      %v7827 = vmul.f32 %v7725, %v7725
      %v7828 = vmul.f32 %v7726, %v7726
      %v7829 = vsel %vm204, %v7797, 0.0
      %v7830 = vsel %vm204, %v7798, 0.0
      %v7831 = vadd.f32 %v7829, %v7830
      %v7832 = vsel %vm204, %v7799, 0.0
      %v7833 = vadd.f32 %v7831, %v7832
      %v7834 = vsel %vm204, %v7800, 0.0
      %v7835 = vadd.f32 %v7833, %v7834
      %v7836 = vsel %vm204, %v7801, 0.0
      %v7837 = vadd.f32 %v7835, %v7836
      %v7838 = vsel %vm204, %v7802, 0.0
      %v7839 = vadd.f32 %v7837, %v7838
      %v7840 = vsel %vm204, %v7803, 0.0
      %v7841 = vadd.f32 %v7839, %v7840
      %v7842 = vsel %vm204, %v7804, 0.0
      %v7843 = vadd.f32 %v7841, %v7842
      %v7844 = vsel %vm204, %v7805, 0.0
      %v7845 = vadd.f32 %v7843, %v7844
      %v7846 = vsel %vm204, %v7806, 0.0
      %v7847 = vadd.f32 %v7845, %v7846
      %v7848 = vsel %vm204, %v7807, 0.0
      %v7849 = vadd.f32 %v7847, %v7848
      %v7850 = vsel %vm204, %v7808, 0.0
      %v7851 = vadd.f32 %v7849, %v7850
      %v7852 = vsel %vm204, %v7809, 0.0
      %v7853 = vadd.f32 %v7851, %v7852
      %v7854 = vsel %vm204, %v7810, 0.0
      %v7855 = vadd.f32 %v7853, %v7854
      %v7856 = vsel %vm204, %v7811, 0.0
      %v7857 = vadd.f32 %v7855, %v7856
      %v7858 = vsel %vm204, %v7812, 0.0
      %v7859 = vadd.f32 %v7857, %v7858
      %v7860 = vsel %vm204, %v7813, 0.0
      %v7861 = vadd.f32 %v7859, %v7860
      %v7862 = vsel %vm204, %v7814, 0.0
      %v7863 = vadd.f32 %v7861, %v7862
      %v7864 = vsel %vm204, %v7815, 0.0
      %v7865 = vadd.f32 %v7863, %v7864
      %v7866 = vsel %vm204, %v7816, 0.0
      %v7867 = vadd.f32 %v7865, %v7866
      %v7868 = vsel %vm204, %v7817, 0.0
      %v7869 = vadd.f32 %v7867, %v7868
      %v7870 = vsel %vm204, %v7818, 0.0
      %v7871 = vadd.f32 %v7869, %v7870
      %v7872 = vsel %vm204, %v7819, 0.0
      %v7873 = vadd.f32 %v7871, %v7872
      %v7874 = vsel %vm204, %v7820, 0.0
      %v7875 = vadd.f32 %v7873, %v7874
      %v7876 = vsel %vm204, %v7821, 0.0
      %v7877 = vadd.f32 %v7875, %v7876
      %v7878 = vsel %vm204, %v7822, 0.0
      %v7879 = vadd.f32 %v7877, %v7878
      %v7880 = vsel %vm204, %v7823, 0.0
      %v7881 = vadd.f32 %v7879, %v7880
      %v7882 = vsel %vm204, %v7824, 0.0
      %v7883 = vadd.f32 %v7881, %v7882
      %v7884 = vsel %vm204, %v7825, 0.0
      %v7885 = vadd.f32 %v7883, %v7884
      %v7886 = vsel %vm204, %v7826, 0.0
      %v7887 = vadd.f32 %v7885, %v7886
      %v7888 = vsel %vm204, %v7827, 0.0
      %v7889 = vadd.f32 %v7887, %v7888
      %v7890 = vsel %vm204, %v7828, 0.0
      %v7891 = vadd.f32 %v7889, %v7890
      %v7892 = vrot.slane %v7891, 4
      %v7893 = vadd.f32 %v7891, %v7892
      %v7894 = vrot.slane %v7893, 2
      %v7895 = vadd.f32 %v7893, %v7894
      %v7896 = vrot.slane %v7895, 1
      %v7897 = vadd.f32 %v7895, %v7896
      %v7898 = vmul.f32 %v7897, 0.00390625
      %v7899 = vmul.f32 %v7796, %v7796
      %v7900 = vsub.f32 %v7898, %v7899
      %v7901 = vmax.f32 %v7900, 0.0
      %v7902 = vadd.f32 %v7901, 1e-05
      %v7903 = vrsqrt.pop %v7902
      %v7904 = vsub.f32 0.0, %v7796
      %v7905 = vmul.f32 %v7904, %v7903
      %v7906 = vmul.f32 %v7695, %v7903
      %v7907 = vmul.f32 %v7696, %v7903
      %v7908 = vmul.f32 %v7697, %v7903
      %v7909 = vmul.f32 %v7698, %v7903
      %v7910 = vmul.f32 %v7699, %v7903
      %v7911 = vmul.f32 %v7700, %v7903
      %v7912 = vmul.f32 %v7701, %v7903
      %v7913 = vmul.f32 %v7702, %v7903
      %v7914 = vmul.f32 %v7703, %v7903
      %v7915 = vmul.f32 %v7704, %v7903
      %v7916 = vmul.f32 %v7705, %v7903
      %v7917 = vmul.f32 %v7706, %v7903
      %v7918 = vmul.f32 %v7707, %v7903
      %v7919 = vmul.f32 %v7708, %v7903
      %v7920 = vmul.f32 %v7709, %v7903
      %v7921 = vmul.f32 %v7710, %v7903
      %v7922 = vmul.f32 %v7711, %v7903
      %v7923 = vmul.f32 %v7712, %v7903
      %v7924 = vmul.f32 %v7713, %v7903
      %v7925 = vmul.f32 %v7714, %v7903
      %v7926 = vmul.f32 %v7715, %v7903
      %v7927 = vmul.f32 %v7716, %v7903
      %v7928 = vmul.f32 %v7717, %v7903
      %v7929 = vmul.f32 %v7718, %v7903
      %v7930 = vmul.f32 %v7719, %v7903
      %v7931 = vmul.f32 %v7720, %v7903
      %v7932 = vmul.f32 %v7721, %v7903
      %v7933 = vmul.f32 %v7722, %v7903
      %v7934 = vmul.f32 %v7723, %v7903
      %v7935 = vmul.f32 %v7724, %v7903
      %v7936 = vmul.f32 %v7725, %v7903
      %v7937 = vmul.f32 %v7726, %v7903
      %v7938 = vadd.f32 %v7906, %v7905
      %v7939 = vadd.f32 %v7907, %v7905
      %v7940 = vadd.f32 %v7908, %v7905
      %v7941 = vadd.f32 %v7909, %v7905
      %v7942 = vadd.f32 %v7910, %v7905
      %v7943 = vadd.f32 %v7911, %v7905
      %v7944 = vadd.f32 %v7912, %v7905
      %v7945 = vadd.f32 %v7913, %v7905
      %v7946 = vadd.f32 %v7914, %v7905
      %v7947 = vadd.f32 %v7915, %v7905
      %v7948 = vadd.f32 %v7916, %v7905
      %v7949 = vadd.f32 %v7917, %v7905
      %v7950 = vadd.f32 %v7918, %v7905
      %v7951 = vadd.f32 %v7919, %v7905
      %v7952 = vadd.f32 %v7920, %v7905
      %v7953 = vadd.f32 %v7921, %v7905
      %v7954 = vadd.f32 %v7922, %v7905
      %v7955 = vadd.f32 %v7923, %v7905
      %v7956 = vadd.f32 %v7924, %v7905
      %v7957 = vadd.f32 %v7925, %v7905
      %v7958 = vadd.f32 %v7926, %v7905
      %v7959 = vadd.f32 %v7927, %v7905
      %v7960 = vadd.f32 %v7928, %v7905
      %v7961 = vadd.f32 %v7929, %v7905
      %v7962 = vadd.f32 %v7930, %v7905
      %v7963 = vadd.f32 %v7931, %v7905
      %v7964 = vadd.f32 %v7932, %v7905
      %v7965 = vadd.f32 %v7933, %v7905
      %v7966 = vadd.f32 %v7934, %v7905
      %v7967 = vadd.f32 %v7935, %v7905
      %v7968 = vadd.f32 %v7936, %v7905
      %v7969 = vadd.f32 %v7937, %v7905
      %v7970 = vld [vmem:[%s165] sm:$0xff]
      %v7971 = vld [vmem:[%s165 + $0x8] sm:$0xff]
      %v7972 = vld [vmem:[%s165 + $0x10] sm:$0xff]
      %v7973 = vld [vmem:[%s165 + $0x18] sm:$0xff]
      %v7974 = vld [vmem:[%s165 + $0x20] sm:$0xff]
      %v7975 = vld [vmem:[%s165 + $0x28] sm:$0xff]
      %v7976 = vld [vmem:[%s165 + $0x30] sm:$0xff]
      %v7977 = vld [vmem:[%s165 + $0x38] sm:$0xff]
      %v7978 = vld [vmem:[%s165 + $0x40] sm:$0xff]
      %v7979 = vld [vmem:[%s165 + $0x48] sm:$0xff]
      %v7980 = vld [vmem:[%s165 + $0x50] sm:$0xff]
      %v7981 = vld [vmem:[%s165 + $0x58] sm:$0xff]
      %v7982 = vld [vmem:[%s165 + $0x60] sm:$0xff]
      %v7983 = vld [vmem:[%s165 + $0x68] sm:$0xff]
      %v7984 = vld [vmem:[%s165 + $0x70] sm:$0xff]
      %v7985 = vld [vmem:[%s165 + $0x78] sm:$0xff]
      %v7986 = vld [vmem:[%s165 + $0x80] sm:$0xff]
      %v7987 = vld [vmem:[%s165 + $0x88] sm:$0xff]
      %v7988 = vld [vmem:[%s165 + $0x90] sm:$0xff]
      %v7989 = vld [vmem:[%s165 + $0x98] sm:$0xff]
      %v7990 = vld [vmem:[%s165 + $0xa0] sm:$0xff]
      %v7991 = vld [vmem:[%s165 + $0xa8] sm:$0xff]
      %v7992 = vld [vmem:[%s165 + $0xb0] sm:$0xff]
      %v7993 = vld [vmem:[%s165 + $0xb8] sm:$0xff]
      %v7994 = vld [vmem:[%s165 + $0xc0] sm:$0xff]
      %v7995 = vld [vmem:[%s165 + $0xc8] sm:$0xff]
      %v7996 = vld [vmem:[%s165 + $0xd0] sm:$0xff]
      %v7997 = vld [vmem:[%s165 + $0xd8] sm:$0xff]
      %v7998 = vld [vmem:[%s165 + $0xe0] sm:$0xff]
      %v7999 = vld [vmem:[%s165 + $0xe8] sm:$0xff]
      %v8000 = vld [vmem:[%s165 + $0xf0] sm:$0xff]
      %v8001 = vld [vmem:[%s165 + $0xf8] sm:$0xff]
      %v8002 = vadd.f32 %v7970, %v7938
      %v8003 = vadd.f32 %v7971, %v7939
      %v8004 = vadd.f32 %v7972, %v7940
      %v8005 = vadd.f32 %v7973, %v7941
      %v8006 = vadd.f32 %v7974, %v7942
      %v8007 = vadd.f32 %v7975, %v7943
      %v8008 = vadd.f32 %v7976, %v7944
      %v8009 = vadd.f32 %v7977, %v7945
      %v8010 = vadd.f32 %v7978, %v7946
      %v8011 = vadd.f32 %v7979, %v7947
      %v8012 = vadd.f32 %v7980, %v7948
      %v8013 = vadd.f32 %v7981, %v7949
      %v8014 = vadd.f32 %v7982, %v7950
      %v8015 = vadd.f32 %v7983, %v7951
      %v8016 = vadd.f32 %v7984, %v7952
      %v8017 = vadd.f32 %v7985, %v7953
      %v8018 = vadd.f32 %v7986, %v7954
      %v8019 = vadd.f32 %v7987, %v7955
      %v8020 = vadd.f32 %v7988, %v7956
      %v8021 = vadd.f32 %v7989, %v7957
      %v8022 = vadd.f32 %v7990, %v7958
      %v8023 = vadd.f32 %v7991, %v7959
      %v8024 = vadd.f32 %v7992, %v7960
      %v8025 = vadd.f32 %v7993, %v7961
      %v8026 = vadd.f32 %v7994, %v7962
      %v8027 = vadd.f32 %v7995, %v7963
      %v8028 = vadd.f32 %v7996, %v7964
      %v8029 = vadd.f32 %v7997, %v7965
      %v8030 = vadd.f32 %v7998, %v7966
      %v8031 = vadd.f32 %v7999, %v7967
      %v8032 = vadd.f32 %v8000, %v7968
      %v8033 = vadd.f32 %v8001, %v7969
      %8034 = vst.msk [vmem:[%s170] sm:$0xff] %vm204, %v8002
      %8035 = vst.msk [vmem:[%s170 + $0x8] sm:$0xff] %vm204, %v8003
      %8036 = vst.msk [vmem:[%s170 + $0x10] sm:$0xff] %vm204, %v8004
      %8037 = vst.msk [vmem:[%s170 + $0x18] sm:$0xff] %vm204, %v8005
      %8038 = vst.msk [vmem:[%s170 + $0x20] sm:$0xff] %vm204, %v8006
      %8039 = vst.msk [vmem:[%s170 + $0x28] sm:$0xff] %vm204, %v8007
      %8040 = vst.msk [vmem:[%s170 + $0x30] sm:$0xff] %vm204, %v8008
      %8041 = vst.msk [vmem:[%s170 + $0x38] sm:$0xff] %vm204, %v8009
      %8042 = vst.msk [vmem:[%s170 + $0x40] sm:$0xff] %vm204, %v8010
      %8043 = vst.msk [vmem:[%s170 + $0x48] sm:$0xff] %vm204, %v8011
      %8044 = vst.msk [vmem:[%s170 + $0x50] sm:$0xff] %vm204, %v8012
      %8045 = vst.msk [vmem:[%s170 + $0x58] sm:$0xff] %vm204, %v8013
      %8046 = vst.msk [vmem:[%s170 + $0x60] sm:$0xff] %vm204, %v8014
      %8047 = vst.msk [vmem:[%s170 + $0x68] sm:$0xff] %vm204, %v8015
      %8048 = vst.msk [vmem:[%s170 + $0x70] sm:$0xff] %vm204, %v8016
      %8049 = vst.msk [vmem:[%s170 + $0x78] sm:$0xff] %vm204, %v8017
      %8050 = vst.msk [vmem:[%s170 + $0x80] sm:$0xff] %vm204, %v8018
      %8051 = vst.msk [vmem:[%s170 + $0x88] sm:$0xff] %vm204, %v8019
      %8052 = vst.msk [vmem:[%s170 + $0x90] sm:$0xff] %vm204, %v8020
      %8053 = vst.msk [vmem:[%s170 + $0x98] sm:$0xff] %vm204, %v8021
      %8054 = vst.msk [vmem:[%s170 + $0xa0] sm:$0xff] %vm204, %v8022
      %8055 = vst.msk [vmem:[%s170 + $0xa8] sm:$0xff] %vm204, %v8023
      %8056 = vst.msk [vmem:[%s170 + $0xb0] sm:$0xff] %vm204, %v8024
      %8057 = vst.msk [vmem:[%s170 + $0xb8] sm:$0xff] %vm204, %v8025
      %8058 = vst.msk [vmem:[%s170 + $0xc0] sm:$0xff] %vm204, %v8026
      %8059 = vst.msk [vmem:[%s170 + $0xc8] sm:$0xff] %vm204, %v8027
      %8060 = vst.msk [vmem:[%s170 + $0xd0] sm:$0xff] %vm204, %v8028
      %8061 = vst.msk [vmem:[%s170 + $0xd8] sm:$0xff] %vm204, %v8029
      %8062 = vst.msk [vmem:[%s170 + $0xe0] sm:$0xff] %vm204, %v8030
      %8063 = vst.msk [vmem:[%s170 + $0xe8] sm:$0xff] %vm204, %v8031
      %8064 = vst.msk [vmem:[%s170 + $0xf0] sm:$0xff] %vm204, %v8032
      %8065 = vst.msk [vmem:[%s170 + $0xf8] sm:$0xff] %vm204, %v8033
      %p8066 = scmp.lt.s32.totalorder %s14, 1
      %s8067 = scalar_select %p8066, %s14, 1
      %s8068 = smul.addr %s8067, 32
      %s8069 = smul.addr %s8068, 8
      %s8070 = scalar_lea.vmem %s3, %s8069
      // Predicated region
      $region33: #{resnet_block.1} parent=31 // pred_check
        %p8071 = pneg %p100
      $region34: #{resnet_block.1} parent=31 // pred_check_branch
        %8073 = sbr.rel (%p8071) target = $region36
      $region35: #{resnet_block.1} parent=31 // pred_region
        _
      $region36: #{resnet_block.1} parent=31 // pred_fallthru
        _
    $region32: #{resnet_block.1} parent=5 // pred_fallthru
      _
    %p8074 = scmp.le.s32.totalorder 2, %s9
    // Predicated region
    $region37: #{resnet_block.1} parent=5 // pred_check
      %p8075 = pneg %p8074
    $region38: #{resnet_block.1} parent=5 // pred_check_branch
      %8077 = sbr.rel (%p8075) target = $region40
    $region39: #{resnet_block.1} parent=5 // pred_region
      %s8078 = ssub.s32 %s9, 2
      // Predicated region
      $region41: #{resnet_block.1} parent=39 // pred_check
        %p8079 = pneg %p106
      $region42: #{resnet_block.1} parent=39 // pred_check_branch
        %8081 = sbr.rel (%p8079) target = $region44
      $region43: #{resnet_block.1} parent=39 // pred_region
        %p8082 = scmp.lt.s32.totalorder %s15, 1
        %s8083 = scalar_select %p8082, %s15, 1
        %s8084 = smul.addr %s8083, 32
        %s8085 = smul.addr %s8084, 8
        %s8086 = scalar_lea.vmem %s3, %s8085
      $region44: #{resnet_block.1} parent=39 // pred_fallthru
        _
    $region40: #{resnet_block.1} parent=5 // pred_fallthru
      _
  $region6: #{resnet_block.1} parent=0 // loop_footer
    %s13 = sadd.s32 1, %s9
  $region7: #{resnet_block.1} parent=0 // loop_footer_branch
    %8 = sbr.rel target = $region3
  $region8: #{resnet_block.1} parent=0 // loop_exit
    _

</llo_original>
